<compile_context>
chip_gen: v5e
topology: v5e:2x2
jax: 0.10.0
libtpu: 0.0.40
codegen_flags: <defaults>
</compile_context>

<pallas_src>
import functools

import jax
import jax.numpy as jnp
from jax.experimental import pallas as pl
from jax.experimental.pallas import tpu as pltpu

BN_EPS = 1e-5
ACT_DTYPE = jnp.bfloat16
VMEM_LIMIT = 32 * 1024 * 1024   # within scoped VMEM on v5e/v6e and v7x (64 MiB phys)


def _round_up(x, m):
    return ((x + m - 1) // m) * m


# --------------------------------------------------------------------------
# Pallas kernels
# --------------------------------------------------------------------------
def _mm_kernel(a_ref, b_ref, bias_ref, *refs, relu, has_residual):
    """Single-K-step bf16 GEMM tile; epilogue = +bias (+residual) (+ReLU)."""
    if has_residual:
        r_ref, o_ref = refs
    else:
        (o_ref,) = refs
    y = jnp.dot(a_ref[...], b_ref[...], preferred_element_type=jnp.float32)
    y = y + bias_ref[...]
    if has_residual:
        y = y + r_ref[...].astype(jnp.float32)
    if relu:
        y = jnp.maximum(y, 0.0)
    o_ref[...] = y.astype(o_ref.dtype)


def _fused_block_kernel(x_ref, w1_ref, b1_ref, w2_ref, b2_ref, o_ref):
    """Residual block at 1x1 spatial, no downsample: relu(relu(x@W1+b1)@W2+b2+x)."""
    x = x_ref[...]
    h = jnp.dot(x, w1_ref[...], preferred_element_type=jnp.float32) + b1_ref[...]
    h = jnp.maximum(h, 0.0).astype(jnp.bfloat16)
    y = jnp.dot(h, w2_ref[...], preferred_element_type=jnp.float32) + b2_ref[...]
    y = y + x.astype(jnp.float32)
    o_ref[...] = jnp.maximum(y, 0.0).astype(o_ref.dtype)


def _fused_block_ds_kernel(a1_ref, ads_ref, w1_ref, b1_ref, w2_ref, b2_ref,
                           wds_ref, bds_ref, o_ref):
    """Residual block at 1x1 spatial with downsample conv on the identity path."""
    idn = jnp.dot(ads_ref[...], wds_ref[...],
                  preferred_element_type=jnp.float32) + bds_ref[...]
    h = jnp.dot(a1_ref[...], w1_ref[...],
                preferred_element_type=jnp.float32) + b1_ref[...]
    h = jnp.maximum(h, 0.0).astype(jnp.bfloat16)
    y = jnp.dot(h, w2_ref[...], preferred_element_type=jnp.float32) + b2_ref[...]
    o_ref[...] = jnp.maximum(y + idn, 0.0).astype(o_ref.dtype)


def _max_reduce_kernel(x_ref, o_ref):
    # x: (K*K, TR, 128) lane-dense window-shifted views -> max over window axis.
    o_ref[...] = jnp.max(x_ref[...], axis=0)


def _head_kernel(x_ref, w_ref, b_ref, o_ref):
    # x: (N, H*W, C) bf16 -> global average pool -> FC (+bias), fp32 logits.
    pooled = jnp.mean(x_ref[...].astype(jnp.float32), axis=1)          # (N, C)
    o_ref[...] = jnp.dot(pooled, w_ref[...],
                         preferred_element_type=jnp.float32) + b_ref[...]


# --------------------------------------------------------------------------
# Conv-as-GEMM wrapper (single K step, epilogue fused)
# --------------------------------------------------------------------------
def matmul_bias_act(a, w, bias, residual=None, relu=False, out_dtype=ACT_DTYPE):
    """(a @ w) + bias (+ residual) (+ ReLU); a/w fed to the MXU as bf16."""
    M, K = a.shape
    Kw, N = w.shape
    assert K == Kw, (K, Kw)

    if M <= 128:
        TM, Mp = M, M
    else:
        TM = 128
        Mp = _round_up(M, TM)
    if N <= 128:
        TN = N
    elif N % 256 == 0:
        TN = 256            # keeps >=2 parallel j-steps for Cout=512 (v7x dual-TC)
    elif N % 128 == 0:
        TN = 128
    else:
        TN = N

    a_p = a.astype(jnp.bfloat16)
    if Mp != M:
        a_p = jnp.pad(a_p, ((0, Mp - M), (0, 0)))

    inputs = [a_p, w, bias]
    in_specs = [
        pl.BlockSpec((TM, K), lambda i, j: (i, 0)),
        pl.BlockSpec((K, TN), lambda i, j: (0, j)),
        pl.BlockSpec((1, TN), lambda i, j: (0, j)),
    ]

    has_residual = residual is not None
    if has_residual:
        r_p = residual.astype(jnp.bfloat16)
        if Mp != M:
            r_p = jnp.pad(r_p, ((0, Mp - M), (0, 0)))
        inputs.append(r_p)
        in_specs.append(pl.BlockSpec((TM, TN), lambda i, j: (i, j)))

    out = pl.pallas_call(
        functools.partial(_mm_kernel, relu=relu, has_residual=has_residual),
        out_shape=jax.ShapeDtypeStruct((Mp, N), out_dtype),
        grid_spec=pltpu.PrefetchScalarGridSpec(
            num_scalar_prefetch=0,
            grid=(Mp // TM, N // TN),
            in_specs=in_specs,
            out_specs=pl.BlockSpec((TM, TN), lambda i, j: (i, j)),
        ),
        compiler_params=pltpu.CompilerParams(
            dimension_semantics=("parallel", "parallel"),
            vmem_limit_bytes=VMEM_LIMIT),
    )(*inputs)

    if Mp != M:
        out = out[:M]
    return out


# --------------------------------------------------------------------------
# Static planning (tap pruning, fusion decisions) -- Python-level metadata
# --------------------------------------------------------------------------
def _conv_plan(H, W, kh, kw, stride, pad):
    OH = (H + 2 * pad - kh) // stride + 1
    OW = (W + 2 * pad - kw) // stride + 1
    taps = []
    need_pad = False
    for i in range(kh):
        for j in range(kw):
            rr = [oh * stride + i - pad for oh in range(OH)]
            cc = [ow * stride + j - pad for ow in range(OW)]
            if any(0 <= r < H for r in rr) and any(0 <= c < W for c in cc):
                taps.append((i, j))
                if (any(r < 0 or r >= H for r in rr)
                        or any(c < 0 or c >= W for c in cc)):
                    need_pad = True
    return dict(kh=kh, kw=kw, stride=stride, pad=pad, OH=OH, OW=OW,
                taps=tuple(taps), need_pad=need_pad)


def build_plan(image_hw, image_channels, num_classes):
    del image_channels  # shape-independent of channel count
    H, W = image_hw
    plan = {"num_classes": num_classes}
    plan["conv1"] = _conv_plan(H, W, 7, 7, 2, 3)
    H, W = plan["conv1"]["OH"], plan["conv1"]["OW"]
    H, W = (H + 2 - 3) // 2 + 1, (W + 2 - 3) // 2 + 1        # maxpool 3x3 s2 p1
    for name, stride in (("layer1", 1), ("layer2", 2), ("layer3", 2), ("layer4", 2)):
        blocks = []
        for bidx in range(2):
            s = stride if bidx == 0 else 1
            bp = {"conv1": _conv_plan(H, W, 3, 3, s, 1)}
            H1, W1 = bp["conv1"]["OH"], bp["conv1"]["OW"]
            bp["conv2"] = _conv_plan(H1, W1, 3, 3, 1, 1)
            if bidx == 0 and stride != 1:
                bp["ds_conv"] = _conv_plan(H, W, 3, 3, 2, 1)
            # conv2 runs at 1x1 spatial -> whole block fuses into one kernel.
            bp["fused"] = (H1 == 1 and W1 == 1)
            blocks.append(bp)
            H, W = bp["conv2"]["OH"], bp["conv2"]["OW"]
        plan[name] = blocks
    return plan


# --------------------------------------------------------------------------
# One-time parameter preparation (hoisted out of the traced forward)
# --------------------------------------------------------------------------
def _prep_conv(conv_p, bn_p, cp):
    """Fold BN into the weight matrix, prune pruned-tap rows, cast to bf16."""
    w = conv_p["w"]                                 # (Cout, Cin, KH, KW)
    cout = w.shape[0]
    scale = bn_p["gamma"] * jax.lax.rsqrt(bn_p["var"] + BN_EPS)
    bias = bn_p["beta"] + scale * (conv_p["b"] - bn_p["mean"])
    w_hwio = jnp.transpose(w, (2, 3, 1, 0))         # (KH, KW, Cin, Cout)
    rows = [w_hwio[i, j] for (i, j) in cp["taps"]]  # each (Cin, Cout)
    w_mat = jnp.concatenate(rows, axis=0) * scale[None, :]
    return {"w": w_mat.astype(jnp.bfloat16),
            "b": bias.astype(jnp.float32).reshape(1, cout)}


def prepare_params(params, plan):
    prepared = {"conv1": _prep_conv(params["conv1"], params["bn1"], plan["conv1"])}
    for name in ("layer1", "layer2", "layer3", "layer4"):
        blocks = []
        for bidx in range(2):
            p = params[name][bidx]
            bp = plan[name][bidx]
            entry = {"conv1": _prep_conv(p["conv1"], p["bn1"], bp["conv1"]),
                     "conv2": _prep_conv(p["conv2"], p["bn2"], bp["conv2"])}
            if "ds_conv" in p:
                entry["ds"] = _prep_conv(p["ds_conv"], p["ds_bn"], bp["ds_conv"])
            blocks.append(entry)
        prepared[name] = blocks
    nc = params["fc"]["w"].shape[0]
    ncp = _round_up(nc, 128)                         # lane-dense head output
    fc_w = jnp.pad(params["fc"]["w"].T.astype(jnp.float32),
                   ((0, 0), (0, ncp - nc)))
    fc_b = jnp.pad(params["fc"]["b"].astype(jnp.float32).reshape(1, nc),
                   ((0, 0), (0, ncp - nc)))
    prepared["fc"] = {"w": fc_w, "b": fc_b}
    return prepared


# --------------------------------------------------------------------------
# Forward-pass glue
# --------------------------------------------------------------------------
def im2col_planned(x, cp):
    """x: (N,H,W,C) bf16 -> patches (N*OH*OW, T*C) over the kept taps only."""
    N, H, W, C = x.shape
    s, pad = cp["stride"], cp["pad"]
    OH, OW = cp["OH"], cp["OW"]
    taps = cp["taps"]
    if cp["need_pad"]:
        src = jnp.pad(x, ((0, 0), (pad, pad), (pad, pad), (0, 0)))
        off = 0
    else:
        src = x
        off = -pad
    cols = []
    for (i, j) in taps:
        r0, c0 = i + off, j + off
        cols.append(src[:, r0:r0 + s * OH:s, c0:c0 + s * OW:s, :])
    patches = cols[0] if len(cols) == 1 else jnp.stack(cols, axis=3)
    return patches.reshape(N * OH * OW, len(taps) * C), (N, OH, OW)


def conv_bn_act(x, prep, cp, relu, residual=None):
    patches, (N, OH, OW) = im2col_planned(x, cp)
    cout = prep["w"].shape[1]
    res_mat = None
    if residual is not None:
        res_mat = residual.reshape(N * OH * OW, cout)
    y = matmul_bias_act(patches, prep["w"], prep["b"], residual=res_mat, relu=relu)
    return y.reshape(N, OH, OW, cout)


def fused_block(x, prep_b, plan_b, has_ds):
    """Whole residual block at 1x1 spatial in one pallas_call."""
    N = x.shape[0]
    cout = prep_b["conv2"]["w"].shape[1]
    a1, _ = im2col_planned(x, plan_b["conv1"])            # (N, K1), conv1 out = 1x1
    cparams = pltpu.CompilerParams(vmem_limit_bytes=VMEM_LIMIT)
    if has_ds:
        ads, _ = im2col_planned(x, plan_b["ds_conv"])     # (N, Kds)
        out = pl.pallas_call(
            _fused_block_ds_kernel,
            out_shape=jax.ShapeDtypeStruct((N, cout), ACT_DTYPE),
            compiler_params=cparams,
        )(a1, ads,
          prep_b["conv1"]["w"], prep_b["conv1"]["b"],
          prep_b["conv2"]["w"], prep_b["conv2"]["b"],
          prep_b["ds"]["w"], prep_b["ds"]["b"])
    else:
        # 1x1 spatial, center tap only -> a1 == flattened x == identity path.
        assert a1.shape[1] == cout, "no-downsample fused block needs Cin == Cout"
        out = pl.pallas_call(
            _fused_block_kernel,
            out_shape=jax.ShapeDtypeStruct((N, cout), ACT_DTYPE),
            compiler_params=cparams,
        )(a1,
          prep_b["conv1"]["w"], prep_b["conv1"]["b"],
          prep_b["conv2"]["w"], prep_b["conv2"]["b"])
    return out.reshape(N, 1, 1, cout)


def block_forward(x, prep_b, plan_b):
    has_ds = "ds" in prep_b
    if plan_b["fused"]:
        return fused_block(x, prep_b, plan_b, has_ds)
    if has_ds:
        identity = conv_bn_act(x, prep_b["ds"], plan_b["ds_conv"], relu=False)
    else:
        identity = x
    y = conv_bn_act(x, prep_b["conv1"], plan_b["conv1"], relu=True)
    y = conv_bn_act(y, prep_b["conv2"], plan_b["conv2"], relu=True,
                    residual=identity)
    return y


def maxpool_3x3_s2_p1(x):
    N, H, W, C = x.shape
    k, s, pad = 3, 2, 1
    OH = (H + 2 * pad - k) // s + 1
    OW = (W + 2 * pad - k) // s + 1
    neg = float("-inf")
    xp = jnp.pad(x, ((0, 0), (pad, pad), (pad, pad), (0, 0)), constant_values=neg)
    slices = [xp[:, i:i + s * OH:s, j:j + s * OW:s, :]
              for i in range(k) for j in range(k)]
    total = N * OH * OW * C
    stacked = jnp.stack(slices, axis=0).reshape(k * k, total)

    # Lane-dense layout: reduce over the window axis on (rows, 128) vregs.
    R = pl.cdiv(total, 128)
    TR = min(_round_up(R, 8), 1024)
    Rp = _round_up(R, TR)
    Tp = Rp * 128
    if Tp != total:
        stacked = jnp.pad(stacked, ((0, 0), (0, Tp - total)), constant_values=neg)
    stacked = stacked.reshape(k * k, Rp, 128)

    out = pl.pallas_call(
        _max_reduce_kernel,
        out_shape=jax.ShapeDtypeStruct((Rp, 128), x.dtype),
        grid_spec=pltpu.PrefetchScalarGridSpec(
            num_scalar_prefetch=0,
            grid=(Rp // TR,),
            in_specs=[pl.BlockSpec((k * k, TR, 128), lambda r: (0, r, 0))],
            out_specs=pl.BlockSpec((TR, 128), lambda r: (r, 0)),
        ),
        compiler_params=pltpu.CompilerParams(
            dimension_semantics=("parallel",),
            vmem_limit_bytes=VMEM_LIMIT),
    )(stacked)
    out = out.reshape(Tp)
    if Tp != total:
        out = out[:total]
    return out.reshape(N, OH, OW, C)


def avgpool_fc(x, fc_prep, num_classes):
    """Fused adaptive-avg-pool(1x1) + Linear head; fp32 logits (N, num_classes)."""
    N, H, W, C = x.shape
    x3 = x.reshape(N, H * W, C)
    out = pl.pallas_call(
        _head_kernel,
        out_shape=jax.ShapeDtypeStruct((N, fc_prep["w"].shape[1]), jnp.float32),
        compiler_params=pltpu.CompilerParams(vmem_limit_bytes=VMEM_LIMIT),
    )(x3, fc_prep["w"], fc_prep["b"])
    return out[:, :num_classes]


def resnet18_forward(x_nchw, prepared, plan):
    x = jnp.transpose(x_nchw, (0, 2, 3, 1)).astype(ACT_DTYPE)   # NCHW -> NHWC bf16
    x = conv_bn_act(x, prepared["conv1"], plan["conv1"], relu=True)
    x = maxpool_3x3_s2_p1(x)
    for name in ("layer1", "layer2", "layer3", "layer4"):
        for bidx in range(2):
            x = block_forward(x, prepared[name][bidx], plan[name][bidx])
    return avgpool_fc(x, prepared["fc"], plan["num_classes"])


# --------------------------------------------------------------------------
# Deterministic parameter init (shapes follow the PyTorch module's __init__)
# --------------------------------------------------------------------------
def init_conv(key, cout, cin, kh, kw):
    k1, k2 = jax.random.split(key)
    return {"w": 0.05 * jax.random.normal(k1, (cout, cin, kh, kw), jnp.float32),
            "b": 0.05 * jax.random.normal(k2, (cout,), jnp.float32)}


def init_bn(key, c):
    k1, k2 = jax.random.split(key)
    return {"gamma": 1.0 + 0.1 * jax.random.normal(k1, (c,), jnp.float32),
            "beta": 0.1 * jax.random.normal(k2, (c,), jnp.float32),
            "mean": jnp.zeros((c,), jnp.float32),
            "var": jnp.ones((c,), jnp.float32)}


def init_block(key, cin, cout, downsample):
    ks = jax.random.split(key, 6)
    p = {"conv1": init_conv(ks[0], cout, cin, 3, 3), "bn1": init_bn(ks[1], cout),
         "conv2": init_conv(ks[2], cout, cout, 3, 3), "bn2": init_bn(ks[3], cout)}
    if downsample:
        p["ds_conv"] = init_conv(ks[4], cout, cin, 3, 3)   # 3x3 stride-2 downsample
        p["ds_bn"] = init_bn(ks[5], cout)
    return p


def init_params(key, image_channels, num_classes):
    ks = jax.random.split(key, 11)
    params = {
        "conv1": init_conv(ks[0], 64, image_channels, 7, 7),
        "bn1": init_bn(ks[1], 64),
        "layer1": [init_block(ks[2], 64, 64, False), init_block(ks[3], 64, 64, False)],
        "layer2": [init_block(ks[4], 64, 128, True), init_block(ks[5], 128, 128, False)],
        "layer3": [init_block(ks[6], 128, 256, True), init_block(ks[7], 256, 256, False)],
        "layer4": [init_block(ks[8], 256, 512, True), init_block(ks[9], 512, 512, False)],
    }
    kw_, kb_ = jax.random.split(ks[10])
    params["fc"] = {"w": 0.05 * jax.random.normal(kw_, (num_classes, 512), jnp.float32),
                    "b": 0.05 * jax.random.normal(kb_, (num_classes,), jnp.float32)}
    return params


# --------------------------------------------------------------------------
if __name__ == "__main__":
    key = jax.random.PRNGKey(0)
    kx, kp = jax.random.split(key)
    # MNIST-like: image_channels=1, num_classes=10, small spatial size.
    x = jax.random.normal(kx, (2, 1, 16, 16), dtype=jnp.float32)   # NCHW, like PyTorch
    params = init_params(kp, image_channels=1, num_classes=10)

    # One-time preparation: plan (static metadata) + folded/pruned/bf16 weights.
    plan = build_plan((16, 16), image_channels=1, num_classes=10)
    prepared = prepare_params(params, plan)

    fwd = jax.jit(functools.partial(resnet18_forward, plan=plan))
    logits = jax.block_until_ready(fwd(x, prepared))

    assert logits.shape == (2, 10), logits.shape
    assert bool(jnp.all(jnp.isfinite(logits)))
    print("KERNEL_OK")
</pallas_src>

<mosaic_0001>
module attributes {stable_mosaic.version = 11 : i64} {
  func.func @_mm_kernel(%arg0: i32, %arg1: i32, %arg2: memref<128x49xbf16, #tpu.memory_space<vmem>>, %arg3: memref<49x64xbf16, #tpu.memory_space<vmem>>, %arg4: memref<1x64xf32, #tpu.memory_space<vmem>>, %arg5: memref<128x64xbf16, #tpu.memory_space<vmem>>) attributes {dimension_semantics = [#tpu.dimension_semantics<parallel>, #tpu.dimension_semantics<parallel>], iteration_bounds = array<i64: 1, 1>, scalar_prefetch = 0 : i64, scratch_operands = 0 : i64, tpu.core_type = #tpu.core_type<tc>, window_params = [{transform_indices = @transform_0, window_bounds = array<i64: 128, 49>}, {transform_indices = @transform_1, window_bounds = array<i64: 49, 64>}, {transform_indices = @transform_2, window_bounds = array<i64: 1, 64>}, {transform_indices = @transform_3, window_bounds = array<i64: 128, 64>}]} {
    %c0 = arith.constant 0 : index
    %c0_0 = arith.constant 0 : index
    %0 = vector.load %arg2[%c0, %c0_0] : memref<128x49xbf16, #tpu.memory_space<vmem>>, vector<128x49xbf16>
    %c0_1 = arith.constant 0 : index
    %c0_2 = arith.constant 0 : index
    %1 = vector.load %arg3[%c0_1, %c0_2] : memref<49x64xbf16, #tpu.memory_space<vmem>>, vector<49x64xbf16>
    %cst = arith.constant dense<0.000000e+00> : vector<128x64xf32>
    %2 = tpu.matmul %0, %1, %cst {dimension_numbers = #tpu.dot_dimension_numbers<[1], [0], [0], [1], [0, 0, 1, 1], [], []>} : vector<128x49xbf16>, vector<49x64xbf16>, vector<128x64xf32> -> vector<128x64xf32>
    %c0_3 = arith.constant 0 : index
    %c0_4 = arith.constant 0 : index
    %3 = vector.load %arg4[%c0_3, %c0_4] : memref<1x64xf32, #tpu.memory_space<vmem>>, vector<1x64xf32>
    %4 = vector.broadcast %3 : vector<1x64xf32> to vector<128x64xf32>
    %5 = arith.addf %2, %4 : vector<128x64xf32>
    %cst_5 = arith.constant 0.000000e+00 : f32
    %6 = vector.broadcast %cst_5 : f32 to vector<128x64xf32>
    %7 = arith.maximumf %5, %6 : vector<128x64xf32>
    %8 = arith.truncf %7 : vector<128x64xf32> to vector<128x64xbf16>
    %c0_6 = arith.constant 0 : index
    %c0_7 = arith.constant 0 : index
    %9 = vector.load %arg5[%c0_6, %c0_7] : memref<128x64xbf16, #tpu.memory_space<vmem>>, vector<128x64xbf16>
    tpu.vector_store %arg5[%c0_6, %c0_7], %8 {strides = array<i32>} : memref<128x64xbf16, #tpu.memory_space<vmem>>, vector<128x64xbf16>,
    return
  }
  func.func @transform_0(%arg0: i32, %arg1: i32) -> (i32, i32) {
    %c0_i32 = arith.constant 0 : i32
    %c0_i32_0 = arith.constant 0 : i32
    return %arg0, %c0_i32 : i32, i32
  }
  func.func @transform_1(%arg0: i32, %arg1: i32) -> (i32, i32) {
    %c0_i32 = arith.constant 0 : i32
    %c0_i32_0 = arith.constant 0 : i32
    return %c0_i32, %arg1 : i32, i32
  }
  func.func @transform_2(%arg0: i32, %arg1: i32) -> (i32, i32) {
    %c0_i32 = arith.constant 0 : i32
    %c0_i32_0 = arith.constant 0 : i32
    return %c0_i32, %arg1 : i32, i32
  }
  func.func @transform_3(%arg0: i32, %arg1: i32) -> (i32, i32) {
    %c0_i32 = arith.constant 0 : i32
    return %arg0, %arg1 : i32, i32
  }
}

module attributes {stable_mosaic.version = 11 : i64} {
  func.func @_max_reduce_kernel(%arg0: i32, %arg1: memref<9x16x128xbf16, #tpu.memory_space<vmem>>, %arg2: memref<16x128xbf16, #tpu.memory_space<vmem>>) attributes {dimension_semantics = [#tpu.dimension_semantics<parallel>], iteration_bounds = array<i64: 1>, scalar_prefetch = 0 : i64, scratch_operands = 0 : i64, tpu.core_type = #tpu.core_type<tc>, window_params = [{transform_indices = @transform_0, window_bounds = array<i64: 9, 16, 128>}, {transform_indices = @transform_1, window_bounds = array<i64: 16, 128>}]} {
    %c0 = arith.constant 0 : index
    %c0_0 = arith.constant 0 : index
    %c0_1 = arith.constant 0 : index
    %0 = vector.load %arg1[%c0, %c0_0, %c0_1] : memref<9x16x128xbf16, #tpu.memory_space<vmem>>, vector<9x16x128xbf16>
    %cst = arith.constant dense<0xFF80> : vector<16x128xbf16>
    %1 = vector.multi_reduction <maximumf>, %0, %cst [0] : vector<9x16x128xbf16> to vector<16x128xbf16>
    %c0_2 = arith.constant 0 : index
    %c0_3 = arith.constant 0 : index
    %2 = vector.load %arg2[%c0_2, %c0_3] : memref<16x128xbf16, #tpu.memory_space<vmem>>, vector<16x128xbf16>
    tpu.vector_store %arg2[%c0_2, %c0_3], %1 {strides = array<i32>} : memref<16x128xbf16, #tpu.memory_space<vmem>>, vector<16x128xbf16>,
    return
  }
  func.func @transform_0(%arg0: i32) -> (i32, i32, i32) {
    %c0_i32 = arith.constant 0 : i32
    %c0_i32_0 = arith.constant 0 : i32
    %c0_i32_1 = arith.constant 0 : i32
    return %c0_i32, %arg0, %c0_i32_0 : i32, i32, i32
  }
  func.func @transform_1(%arg0: i32) -> (i32, i32) {
    %c0_i32 = arith.constant 0 : i32
    %c0_i32_0 = arith.constant 0 : i32
    return %arg0, %c0_i32 : i32, i32
  }
}

module attributes {stable_mosaic.version = 11 : i64} {
  func.func @_mm_kernel(%arg0: i32, %arg1: i32, %arg2: memref<32x576xbf16, #tpu.memory_space<vmem>>, %arg3: memref<576x64xbf16, #tpu.memory_space<vmem>>, %arg4: memref<1x64xf32, #tpu.memory_space<vmem>>, %arg5: memref<32x64xbf16, #tpu.memory_space<vmem>>) attributes {dimension_semantics = [#tpu.dimension_semantics<parallel>, #tpu.dimension_semantics<parallel>], iteration_bounds = array<i64: 1, 1>, scalar_prefetch = 0 : i64, scratch_operands = 0 : i64, tpu.core_type = #tpu.core_type<tc>, window_params = [{transform_indices = @transform_0, window_bounds = array<i64: 32, 576>}, {transform_indices = @transform_1, window_bounds = array<i64: 576, 64>}, {transform_indices = @transform_2, window_bounds = array<i64: 1, 64>}, {transform_indices = @transform_3, window_bounds = array<i64: 32, 64>}]} {
    %c0 = arith.constant 0 : index
    %c0_0 = arith.constant 0 : index
    %0 = vector.load %arg2[%c0, %c0_0] : memref<32x576xbf16, #tpu.memory_space<vmem>>, vector<32x576xbf16>
    %c0_1 = arith.constant 0 : index
    %c0_2 = arith.constant 0 : index
    %1 = vector.load %arg3[%c0_1, %c0_2] : memref<576x64xbf16, #tpu.memory_space<vmem>>, vector<576x64xbf16>
    %cst = arith.constant dense<0.000000e+00> : vector<32x64xf32>
    %2 = tpu.matmul %0, %1, %cst {dimension_numbers = #tpu.dot_dimension_numbers<[1], [0], [0], [1], [0, 0, 1, 1], [], []>} : vector<32x576xbf16>, vector<576x64xbf16>, vector<32x64xf32> -> vector<32x64xf32>
    %c0_3 = arith.constant 0 : index
    %c0_4 = arith.constant 0 : index
    %3 = vector.load %arg4[%c0_3, %c0_4] : memref<1x64xf32, #tpu.memory_space<vmem>>, vector<1x64xf32>
    %4 = vector.broadcast %3 : vector<1x64xf32> to vector<32x64xf32>
    %5 = arith.addf %2, %4 : vector<32x64xf32>
    %cst_5 = arith.constant 0.000000e+00 : f32
    %6 = vector.broadcast %cst_5 : f32 to vector<32x64xf32>
    %7 = arith.maximumf %5, %6 : vector<32x64xf32>
    %8 = arith.truncf %7 : vector<32x64xf32> to vector<32x64xbf16>
    %c0_6 = arith.constant 0 : index
    %c0_7 = arith.constant 0 : index
    %9 = vector.load %arg5[%c0_6, %c0_7] : memref<32x64xbf16, #tpu.memory_space<vmem>>, vector<32x64xbf16>
    tpu.vector_store %arg5[%c0_6, %c0_7], %8 {strides = array<i32>} : memref<32x64xbf16, #tpu.memory_space<vmem>>, vector<32x64xbf16>,
    return
  }
  func.func @transform_0(%arg0: i32, %arg1: i32) -> (i32, i32) {
    %c0_i32 = arith.constant 0 : i32
    %c0_i32_0 = arith.constant 0 : i32
    return %arg0, %c0_i32 : i32, i32
  }
  func.func @transform_1(%arg0: i32, %arg1: i32) -> (i32, i32) {
    %c0_i32 = arith.constant 0 : i32
    %c0_i32_0 = arith.constant 0 : i32
    return %c0_i32, %arg1 : i32, i32
  }
  func.func @transform_2(%arg0: i32, %arg1: i32) -> (i32, i32) {
    %c0_i32 = arith.constant 0 : i32
    %c0_i32_0 = arith.constant 0 : i32
    return %c0_i32, %arg1 : i32, i32
  }
  func.func @transform_3(%arg0: i32, %arg1: i32) -> (i32, i32) {
    %c0_i32 = arith.constant 0 : i32
    return %arg0, %arg1 : i32, i32
  }
}

module attributes {stable_mosaic.version = 11 : i64} {
  func.func @_mm_kernel(%arg0: i32, %arg1: i32, %arg2: memref<32x576xbf16, #tpu.memory_space<vmem>>, %arg3: memref<576x64xbf16, #tpu.memory_space<vmem>>, %arg4: memref<1x64xf32, #tpu.memory_space<vmem>>, %arg5: memref<32x64xbf16, #tpu.memory_space<vmem>>, %arg6: memref<32x64xbf16, #tpu.memory_space<vmem>>) attributes {dimension_semantics = [#tpu.dimension_semantics<parallel>, #tpu.dimension_semantics<parallel>], iteration_bounds = array<i64: 1, 1>, scalar_prefetch = 0 : i64, scratch_operands = 0 : i64, tpu.core_type = #tpu.core_type<tc>, window_params = [{transform_indices = @transform_0, window_bounds = array<i64: 32, 576>}, {transform_indices = @transform_1, window_bounds = array<i64: 576, 64>}, {transform_indices = @transform_2, window_bounds = array<i64: 1, 64>}, {transform_indices = @transform_3, window_bounds = array<i64: 32, 64>}, {transform_indices = @transform_4, window_bounds = array<i64: 32, 64>}]} {
    %c0 = arith.constant 0 : index
    %c0_0 = arith.constant 0 : index
    %0 = vector.load %arg2[%c0, %c0_0] : memref<32x576xbf16, #tpu.memory_space<vmem>>, vector<32x576xbf16>
    %c0_1 = arith.constant 0 : index
    %c0_2 = arith.constant 0 : index
    %1 = vector.load %arg3[%c0_1, %c0_2] : memref<576x64xbf16, #tpu.memory_space<vmem>>, vector<576x64xbf16>
    %cst = arith.constant dense<0.000000e+00> : vector<32x64xf32>
    %2 = tpu.matmul %0, %1, %cst {dimension_numbers = #tpu.dot_dimension_numbers<[1], [0], [0], [1], [0, 0, 1, 1], [], []>} : vector<32x576xbf16>, vector<576x64xbf16>, vector<32x64xf32> -> vector<32x64xf32>
    %c0_3 = arith.constant 0 : index
    %c0_4 = arith.constant 0 : index
    %3 = vector.load %arg4[%c0_3, %c0_4] : memref<1x64xf32, #tpu.memory_space<vmem>>, vector<1x64xf32>
    %4 = vector.broadcast %3 : vector<1x64xf32> to vector<32x64xf32>
    %5 = arith.addf %2, %4 : vector<32x64xf32>
    %c0_5 = arith.constant 0 : index
    %c0_6 = arith.constant 0 : index
    %6 = vector.load %arg5[%c0_5, %c0_6] : memref<32x64xbf16, #tpu.memory_space<vmem>>, vector<32x64xbf16>
    %7 = arith.extf %6 : vector<32x64xbf16> to vector<32x64xf32>
    %8 = arith.addf %5, %7 : vector<32x64xf32>
    %cst_7 = arith.constant 0.000000e+00 : f32
    %9 = vector.broadcast %cst_7 : f32 to vector<32x64xf32>
    %10 = arith.maximumf %8, %9 : vector<32x64xf32>
    %11 = arith.truncf %10 : vector<32x64xf32> to vector<32x64xbf16>
    %c0_8 = arith.constant 0 : index
    %c0_9 = arith.constant 0 : index
    %12 = vector.load %arg6[%c0_8, %c0_9] : memref<32x64xbf16, #tpu.memory_space<vmem>>, vector<32x64xbf16>
    tpu.vector_store %arg6[%c0_8, %c0_9], %11 {strides = array<i32>} : memref<32x64xbf16, #tpu.memory_space<vmem>>, vector<32x64xbf16>,
    return
  }
  func.func @transform_0(%arg0: i32, %arg1: i32) -> (i32, i32) {
    %c0_i32 = arith.constant 0 : i32
    %c0_i32_0 = arith.constant 0 : i32
    return %arg0, %c0_i32 : i32, i32
  }
  func.func @transform_1(%arg0: i32, %arg1: i32) -> (i32, i32) {
    %c0_i32 = arith.constant 0 : i32
    %c0_i32_0 = arith.constant 0 : i32
    return %c0_i32, %arg1 : i32, i32
  }
  func.func @transform_2(%arg0: i32, %arg1: i32) -> (i32, i32) {
    %c0_i32 = arith.constant 0 : i32
    %c0_i32_0 = arith.constant 0 : i32
    return %c0_i32, %arg1 : i32, i32
  }
  func.func @transform_3(%arg0: i32, %arg1: i32) -> (i32, i32) {
    %c0_i32 = arith.constant 0 : i32
    return %arg0, %arg1 : i32, i32
  }
  func.func @transform_4(%arg0: i32, %arg1: i32) -> (i32, i32) {
    %c0_i32 = arith.constant 0 : i32
    return %arg0, %arg1 : i32, i32
  }
}

module attributes {stable_mosaic.version = 11 : i64} {
  func.func @_mm_kernel(%arg0: i32, %arg1: i32, %arg2: memref<8x576xbf16, #tpu.memory_space<vmem>>, %arg3: memref<576x128xbf16, #tpu.memory_space<vmem>>, %arg4: memref<1x128xf32, #tpu.memory_space<vmem>>, %arg5: memref<8x128xbf16, #tpu.memory_space<vmem>>) attributes {dimension_semantics = [#tpu.dimension_semantics<parallel>, #tpu.dimension_semantics<parallel>], iteration_bounds = array<i64: 1, 1>, scalar_prefetch = 0 : i64, scratch_operands = 0 : i64, tpu.core_type = #tpu.core_type<tc>, window_params = [{transform_indices = @transform_0, window_bounds = array<i64: 8, 576>}, {transform_indices = @transform_1, window_bounds = array<i64: 576, 128>}, {transform_indices = @transform_2, window_bounds = array<i64: 1, 128>}, {transform_indices = @transform_3, window_bounds = array<i64: 8, 128>}]} {
    %c0 = arith.constant 0 : index
    %c0_0 = arith.constant 0 : index
    %0 = vector.load %arg2[%c0, %c0_0] : memref<8x576xbf16, #tpu.memory_space<vmem>>, vector<8x576xbf16>
    %c0_1 = arith.constant 0 : index
    %c0_2 = arith.constant 0 : index
    %1 = vector.load %arg3[%c0_1, %c0_2] : memref<576x128xbf16, #tpu.memory_space<vmem>>, vector<576x128xbf16>
    %cst = arith.constant dense<0.000000e+00> : vector<8x128xf32>
    %2 = tpu.matmul %0, %1, %cst {dimension_numbers = #tpu.dot_dimension_numbers<[1], [0], [0], [1], [0, 0, 1, 1], [], []>} : vector<8x576xbf16>, vector<576x128xbf16>, vector<8x128xf32> -> vector<8x128xf32>
    %c0_3 = arith.constant 0 : index
    %c0_4 = arith.constant 0 : index
    %3 = vector.load %arg4[%c0_3, %c0_4] : memref<1x128xf32, #tpu.memory_space<vmem>>, vector<1x128xf32>
    %4 = vector.broadcast %3 : vector<1x128xf32> to vector<8x128xf32>
    %5 = arith.addf %2, %4 : vector<8x128xf32>
    %cst_5 = arith.constant 0.000000e+00 : f32
    %6 = vector.broadcast %cst_5 : f32 to vector<8x128xf32>
    %7 = arith.maximumf %5, %6 : vector<8x128xf32>
    %8 = arith.truncf %7 : vector<8x128xf32> to vector<8x128xbf16>
    %c0_6 = arith.constant 0 : index
    %c0_7 = arith.constant 0 : index
    %9 = vector.load %arg5[%c0_6, %c0_7] : memref<8x128xbf16, #tpu.memory_space<vmem>>, vector<8x128xbf16>
    tpu.vector_store %arg5[%c0_6, %c0_7], %8 {strides = array<i32>} : memref<8x128xbf16, #tpu.memory_space<vmem>>, vector<8x128xbf16>,
    return
  }
  func.func @transform_0(%arg0: i32, %arg1: i32) -> (i32, i32) {
    %c0_i32 = arith.constant 0 : i32
    %c0_i32_0 = arith.constant 0 : i32
    return %arg0, %c0_i32 : i32, i32
  }
  func.func @transform_1(%arg0: i32, %arg1: i32) -> (i32, i32) {
    %c0_i32 = arith.constant 0 : i32
    %c0_i32_0 = arith.constant 0 : i32
    return %c0_i32, %arg1 : i32, i32
  }
  func.func @transform_2(%arg0: i32, %arg1: i32) -> (i32, i32) {
    %c0_i32 = arith.constant 0 : i32
    %c0_i32_0 = arith.constant 0 : i32
    return %c0_i32, %arg1 : i32, i32
  }
  func.func @transform_3(%arg0: i32, %arg1: i32) -> (i32, i32) {
    %c0_i32 = arith.constant 0 : i32
    return %arg0, %arg1 : i32, i32
  }
}

module attributes {stable_mosaic.version = 11 : i64} {
  func.func @_mm_kernel(%arg0: i32, %arg1: i32, %arg2: memref<8x576xbf16, #tpu.memory_space<vmem>>, %arg3: memref<576x128xbf16, #tpu.memory_space<vmem>>, %arg4: memref<1x128xf32, #tpu.memory_space<vmem>>, %arg5: memref<8x128xbf16, #tpu.memory_space<vmem>>) attributes {dimension_semantics = [#tpu.dimension_semantics<parallel>, #tpu.dimension_semantics<parallel>], iteration_bounds = array<i64: 1, 1>, scalar_prefetch = 0 : i64, scratch_operands = 0 : i64, tpu.core_type = #tpu.core_type<tc>, window_params = [{transform_indices = @transform_0, window_bounds = array<i64: 8, 576>}, {transform_indices = @transform_1, window_bounds = array<i64: 576, 128>}, {transform_indices = @transform_2, window_bounds = array<i64: 1, 128>}, {transform_indices = @transform_3, window_bounds = array<i64: 8, 128>}]} {
    %c0 = arith.constant 0 : index
    %c0_0 = arith.constant 0 : index
    %0 = vector.load %arg2[%c0, %c0_0] : memref<8x576xbf16, #tpu.memory_space<vmem>>, vector<8x576xbf16>
    %c0_1 = arith.constant 0 : index
    %c0_2 = arith.constant 0 : index
    %1 = vector.load %arg3[%c0_1, %c0_2] : memref<576x128xbf16, #tpu.memory_space<vmem>>, vector<576x128xbf16>
    %cst = arith.constant dense<0.000000e+00> : vector<8x128xf32>
    %2 = tpu.matmul %0, %1, %cst {dimension_numbers = #tpu.dot_dimension_numbers<[1], [0], [0], [1], [0, 0, 1, 1], [], []>} : vector<8x576xbf16>, vector<576x128xbf16>, vector<8x128xf32> -> vector<8x128xf32>
    %c0_3 = arith.constant 0 : index
    %c0_4 = arith.constant 0 : index
    %3 = vector.load %arg4[%c0_3, %c0_4] : memref<1x128xf32, #tpu.memory_space<vmem>>, vector<1x128xf32>
    %4 = vector.broadcast %3 : vector<1x128xf32> to vector<8x128xf32>
    %5 = arith.addf %2, %4 : vector<8x128xf32>
    %6 = arith.truncf %5 : vector<8x128xf32> to vector<8x128xbf16>
    %c0_5 = arith.constant 0 : index
    %c0_6 = arith.constant 0 : index
    %7 = vector.load %arg5[%c0_5, %c0_6] : memref<8x128xbf16, #tpu.memory_space<vmem>>, vector<8x128xbf16>
    tpu.vector_store %arg5[%c0_5, %c0_6], %6 {strides = array<i32>} : memref<8x128xbf16, #tpu.memory_space<vmem>>, vector<8x128xbf16>,
    return
  }
  func.func @transform_0(%arg0: i32, %arg1: i32) -> (i32, i32) {
    %c0_i32 = arith.constant 0 : i32
    %c0_i32_0 = arith.constant 0 : i32
    return %arg0, %c0_i32 : i32, i32
  }
  func.func @transform_1(%arg0: i32, %arg1: i32) -> (i32, i32) {
    %c0_i32 = arith.constant 0 : i32
    %c0_i32_0 = arith.constant 0 : i32
    return %c0_i32, %arg1 : i32, i32
  }
  func.func @transform_2(%arg0: i32, %arg1: i32) -> (i32, i32) {
    %c0_i32 = arith.constant 0 : i32
    %c0_i32_0 = arith.constant 0 : i32
    return %c0_i32, %arg1 : i32, i32
  }
  func.func @transform_3(%arg0: i32, %arg1: i32) -> (i32, i32) {
    %c0_i32 = arith.constant 0 : i32
    return %arg0, %arg1 : i32, i32
  }
}

module attributes {stable_mosaic.version = 11 : i64} {
  func.func @_mm_kernel(%arg0: i32, %arg1: i32, %arg2: memref<8x1152xbf16, #tpu.memory_space<vmem>>, %arg3: memref<1152x128xbf16, #tpu.memory_space<vmem>>, %arg4: memref<1x128xf32, #tpu.memory_space<vmem>>, %arg5: memref<8x128xbf16, #tpu.memory_space<vmem>>, %arg6: memref<8x128xbf16, #tpu.memory_space<vmem>>) attributes {dimension_semantics = [#tpu.dimension_semantics<parallel>, #tpu.dimension_semantics<parallel>], iteration_bounds = array<i64: 1, 1>, scalar_prefetch = 0 : i64, scratch_operands = 0 : i64, tpu.core_type = #tpu.core_type<tc>, window_params = [{transform_indices = @transform_0, window_bounds = array<i64: 8, 1152>}, {transform_indices = @transform_1, window_bounds = array<i64: 1152, 128>}, {transform_indices = @transform_2, window_bounds = array<i64: 1, 128>}, {transform_indices = @transform_3, window_bounds = array<i64: 8, 128>}, {transform_indices = @transform_4, window_bounds = array<i64: 8, 128>}]} {
    %c0 = arith.constant 0 : index
    %c0_0 = arith.constant 0 : index
    %0 = vector.load %arg2[%c0, %c0_0] : memref<8x1152xbf16, #tpu.memory_space<vmem>>, vector<8x1152xbf16>
    %c0_1 = arith.constant 0 : index
    %c0_2 = arith.constant 0 : index
    %1 = vector.load %arg3[%c0_1, %c0_2] : memref<1152x128xbf16, #tpu.memory_space<vmem>>, vector<1152x128xbf16>
    %cst = arith.constant dense<0.000000e+00> : vector<8x128xf32>
    %2 = tpu.matmul %0, %1, %cst {dimension_numbers = #tpu.dot_dimension_numbers<[1], [0], [0], [1], [0, 0, 1, 1], [], []>} : vector<8x1152xbf16>, vector<1152x128xbf16>, vector<8x128xf32> -> vector<8x128xf32>
    %c0_3 = arith.constant 0 : index
    %c0_4 = arith.constant 0 : index
    %3 = vector.load %arg4[%c0_3, %c0_4] : memref<1x128xf32, #tpu.memory_space<vmem>>, vector<1x128xf32>
    %4 = vector.broadcast %3 : vector<1x128xf32> to vector<8x128xf32>
    %5 = arith.addf %2, %4 : vector<8x128xf32>
    %c0_5 = arith.constant 0 : index
    %c0_6 = arith.constant 0 : index
    %6 = vector.load %arg5[%c0_5, %c0_6] : memref<8x128xbf16, #tpu.memory_space<vmem>>, vector<8x128xbf16>
    %7 = arith.extf %6 : vector<8x128xbf16> to vector<8x128xf32>
    %8 = arith.addf %5, %7 : vector<8x128xf32>
    %cst_7 = arith.constant 0.000000e+00 : f32
    %9 = vector.broadcast %cst_7 : f32 to vector<8x128xf32>
    %10 = arith.maximumf %8, %9 : vector<8x128xf32>
    %11 = arith.truncf %10 : vector<8x128xf32> to vector<8x128xbf16>
    %c0_8 = arith.constant 0 : index
    %c0_9 = arith.constant 0 : index
    %12 = vector.load %arg6[%c0_8, %c0_9] : memref<8x128xbf16, #tpu.memory_space<vmem>>, vector<8x128xbf16>
    tpu.vector_store %arg6[%c0_8, %c0_9], %11 {strides = array<i32>} : memref<8x128xbf16, #tpu.memory_space<vmem>>, vector<8x128xbf16>,
    return
  }
  func.func @transform_0(%arg0: i32, %arg1: i32) -> (i32, i32) {
    %c0_i32 = arith.constant 0 : i32
    %c0_i32_0 = arith.constant 0 : i32
    return %arg0, %c0_i32 : i32, i32
  }
  func.func @transform_1(%arg0: i32, %arg1: i32) -> (i32, i32) {
    %c0_i32 = arith.constant 0 : i32
    %c0_i32_0 = arith.constant 0 : i32
    return %c0_i32, %arg1 : i32, i32
  }
  func.func @transform_2(%arg0: i32, %arg1: i32) -> (i32, i32) {
    %c0_i32 = arith.constant 0 : i32
    %c0_i32_0 = arith.constant 0 : i32
    return %c0_i32, %arg1 : i32, i32
  }
  func.func @transform_3(%arg0: i32, %arg1: i32) -> (i32, i32) {
    %c0_i32 = arith.constant 0 : i32
    return %arg0, %arg1 : i32, i32
  }
  func.func @transform_4(%arg0: i32, %arg1: i32) -> (i32, i32) {
    %c0_i32 = arith.constant 0 : i32
    return %arg0, %arg1 : i32, i32
  }
}

module attributes {stable_mosaic.version = 11 : i64} {
  func.func @_mm_kernel(%arg0: i32, %arg1: i32, %arg2: memref<8x1152xbf16, #tpu.memory_space<vmem>>, %arg3: memref<1152x128xbf16, #tpu.memory_space<vmem>>, %arg4: memref<1x128xf32, #tpu.memory_space<vmem>>, %arg5: memref<8x128xbf16, #tpu.memory_space<vmem>>) attributes {dimension_semantics = [#tpu.dimension_semantics<parallel>, #tpu.dimension_semantics<parallel>], iteration_bounds = array<i64: 1, 1>, scalar_prefetch = 0 : i64, scratch_operands = 0 : i64, tpu.core_type = #tpu.core_type<tc>, window_params = [{transform_indices = @transform_0, window_bounds = array<i64: 8, 1152>}, {transform_indices = @transform_1, window_bounds = array<i64: 1152, 128>}, {transform_indices = @transform_2, window_bounds = array<i64: 1, 128>}, {transform_indices = @transform_3, window_bounds = array<i64: 8, 128>}]} {
    %c0 = arith.constant 0 : index
    %c0_0 = arith.constant 0 : index
    %0 = vector.load %arg2[%c0, %c0_0] : memref<8x1152xbf16, #tpu.memory_space<vmem>>, vector<8x1152xbf16>
    %c0_1 = arith.constant 0 : index
    %c0_2 = arith.constant 0 : index
    %1 = vector.load %arg3[%c0_1, %c0_2] : memref<1152x128xbf16, #tpu.memory_space<vmem>>, vector<1152x128xbf16>
    %cst = arith.constant dense<0.000000e+00> : vector<8x128xf32>
    %2 = tpu.matmul %0, %1, %cst {dimension_numbers = #tpu.dot_dimension_numbers<[1], [0], [0], [1], [0, 0, 1, 1], [], []>} : vector<8x1152xbf16>, vector<1152x128xbf16>, vector<8x128xf32> -> vector<8x128xf32>
    %c0_3 = arith.constant 0 : index
    %c0_4 = arith.constant 0 : index
    %3 = vector.load %arg4[%c0_3, %c0_4] : memref<1x128xf32, #tpu.memory_space<vmem>>, vector<1x128xf32>
    %4 = vector.broadcast %3 : vector<1x128xf32> to vector<8x128xf32>
    %5 = arith.addf %2, %4 : vector<8x128xf32>
    %cst_5 = arith.constant 0.000000e+00 : f32
    %6 = vector.broadcast %cst_5 : f32 to vector<8x128xf32>
    %7 = arith.maximumf %5, %6 : vector<8x128xf32>
    %8 = arith.truncf %7 : vector<8x128xf32> to vector<8x128xbf16>
    %c0_6 = arith.constant 0 : index
    %c0_7 = arith.constant 0 : index
    %9 = vector.load %arg5[%c0_6, %c0_7] : memref<8x128xbf16, #tpu.memory_space<vmem>>, vector<8x128xbf16>
    tpu.vector_store %arg5[%c0_6, %c0_7], %8 {strides = array<i32>} : memref<8x128xbf16, #tpu.memory_space<vmem>>, vector<8x128xbf16>,
    return
  }
  func.func @transform_0(%arg0: i32, %arg1: i32) -> (i32, i32) {
    %c0_i32 = arith.constant 0 : i32
    %c0_i32_0 = arith.constant 0 : i32
    return %arg0, %c0_i32 : i32, i32
  }
  func.func @transform_1(%arg0: i32, %arg1: i32) -> (i32, i32) {
    %c0_i32 = arith.constant 0 : i32
    %c0_i32_0 = arith.constant 0 : i32
    return %c0_i32, %arg1 : i32, i32
  }
  func.func @transform_2(%arg0: i32, %arg1: i32) -> (i32, i32) {
    %c0_i32 = arith.constant 0 : i32
    %c0_i32_0 = arith.constant 0 : i32
    return %c0_i32, %arg1 : i32, i32
  }
  func.func @transform_3(%arg0: i32, %arg1: i32) -> (i32, i32) {
    %c0_i32 = arith.constant 0 : i32
    return %arg0, %arg1 : i32, i32
  }
}

module attributes {stable_mosaic.version = 11 : i64} {
  func.func @_fused_block_ds_kernel(%arg0: memref<2x512xbf16, #tpu.memory_space<vmem>>, %arg1: memref<2x512xbf16, #tpu.memory_space<vmem>>, %arg2: memref<512x256xbf16, #tpu.memory_space<vmem>>, %arg3: memref<1x256xf32, #tpu.memory_space<vmem>>, %arg4: memref<256x256xbf16, #tpu.memory_space<vmem>>, %arg5: memref<1x256xf32, #tpu.memory_space<vmem>>, %arg6: memref<512x256xbf16, #tpu.memory_space<vmem>>, %arg7: memref<1x256xf32, #tpu.memory_space<vmem>>, %arg8: memref<2x256xbf16, #tpu.memory_space<vmem>>) attributes {dimension_semantics = [], scalar_prefetch = 0 : i64, scratch_operands = 0 : i64, tpu.core_type = #tpu.core_type<tc>} {
    %c0 = arith.constant 0 : index
    %c0_0 = arith.constant 0 : index
    %0 = vector.load %arg1[%c0, %c0_0] : memref<2x512xbf16, #tpu.memory_space<vmem>>, vector<2x512xbf16>
    %c0_1 = arith.constant 0 : index
    %c0_2 = arith.constant 0 : index
    %1 = vector.load %arg6[%c0_1, %c0_2] : memref<512x256xbf16, #tpu.memory_space<vmem>>, vector<512x256xbf16>
    %cst = arith.constant dense<0.000000e+00> : vector<2x256xf32>
    %2 = tpu.matmul %0, %1, %cst {dimension_numbers = #tpu.dot_dimension_numbers<[1], [0], [0], [1], [0, 0, 1, 1], [], []>} : vector<2x512xbf16>, vector<512x256xbf16>, vector<2x256xf32> -> vector<2x256xf32>
    %c0_3 = arith.constant 0 : index
    %c0_4 = arith.constant 0 : index
    %3 = vector.load %arg7[%c0_3, %c0_4] : memref<1x256xf32, #tpu.memory_space<vmem>>, vector<1x256xf32>
    %4 = vector.broadcast %3 : vector<1x256xf32> to vector<2x256xf32>
    %5 = arith.addf %2, %4 : vector<2x256xf32>
    %c0_5 = arith.constant 0 : index
    %c0_6 = arith.constant 0 : index
    %6 = vector.load %arg0[%c0_5, %c0_6] : memref<2x512xbf16, #tpu.memory_space<vmem>>, vector<2x512xbf16>
    %c0_7 = arith.constant 0 : index
    %c0_8 = arith.constant 0 : index
    %7 = vector.load %arg2[%c0_7, %c0_8] : memref<512x256xbf16, #tpu.memory_space<vmem>>, vector<512x256xbf16>
    %cst_9 = arith.constant dense<0.000000e+00> : vector<2x256xf32>
    %8 = tpu.matmul %6, %7, %cst_9 {dimension_numbers = #tpu.dot_dimension_numbers<[1], [0], [0], [1], [0, 0, 1, 1], [], []>} : vector<2x512xbf16>, vector<512x256xbf16>, vector<2x256xf32> -> vector<2x256xf32>
    %c0_10 = arith.constant 0 : index
    %c0_11 = arith.constant 0 : index
    %9 = vector.load %arg3[%c0_10, %c0_11] : memref<1x256xf32, #tpu.memory_space<vmem>>, vector<1x256xf32>
    %10 = vector.broadcast %9 : vector<1x256xf32> to vector<2x256xf32>
    %11 = arith.addf %8, %10 : vector<2x256xf32>
    %cst_12 = arith.constant 0.000000e+00 : f32
    %12 = vector.broadcast %cst_12 : f32 to vector<2x256xf32>
    %13 = arith.maximumf %11, %12 : vector<2x256xf32>
    %14 = arith.truncf %13 : vector<2x256xf32> to vector<2x256xbf16>
    %c0_13 = arith.constant 0 : index
    %c0_14 = arith.constant 0 : index
    %15 = vector.load %arg4[%c0_13, %c0_14] : memref<256x256xbf16, #tpu.memory_space<vmem>>, vector<256x256xbf16>
    %cst_15 = arith.constant dense<0.000000e+00> : vector<2x256xf32>
    %16 = tpu.matmul %14, %15, %cst_15 {dimension_numbers = #tpu.dot_dimension_numbers<[1], [0], [0], [1], [0, 0, 1, 1], [], []>} : vector<2x256xbf16>, vector<256x256xbf16>, vector<2x256xf32> -> vector<2x256xf32>
    %c0_16 = arith.constant 0 : index
    %c0_17 = arith.constant 0 : index
    %17 = vector.load %arg5[%c0_16, %c0_17] : memref<1x256xf32, #tpu.memory_space<vmem>>, vector<1x256xf32>
    %18 = vector.broadcast %17 : vector<1x256xf32> to vector<2x256xf32>
    %19 = arith.addf %16, %18 : vector<2x256xf32>
    %20 = arith.addf %19, %5 : vector<2x256xf32>
    %cst_18 = arith.constant 0.000000e+00 : f32
    %21 = vector.broadcast %cst_18 : f32 to vector<2x256xf32>
    %22 = arith.maximumf %20, %21 : vector<2x256xf32>
    %23 = arith.truncf %22 : vector<2x256xf32> to vector<2x256xbf16>
    %c0_19 = arith.constant 0 : index
    %c0_20 = arith.constant 0 : index
    %24 = vector.load %arg8[%c0_19, %c0_20] : memref<2x256xbf16, #tpu.memory_space<vmem>>, vector<2x256xbf16>
    tpu.vector_store %arg8[%c0_19, %c0_20], %23 {strides = array<i32>} : memref<2x256xbf16, #tpu.memory_space<vmem>>, vector<2x256xbf16>,
    return
  }
}

module attributes {stable_mosaic.version = 11 : i64} {
  func.func @_fused_block_kernel(%arg0: memref<2x256xbf16, #tpu.memory_space<vmem>>, %arg1: memref<256x256xbf16, #tpu.memory_space<vmem>>, %arg2: memref<1x256xf32, #tpu.memory_space<vmem>>, %arg3: memref<256x256xbf16, #tpu.memory_space<vmem>>, %arg4: memref<1x256xf32, #tpu.memory_space<vmem>>, %arg5: memref<2x256xbf16, #tpu.memory_space<vmem>>) attributes {dimension_semantics = [], scalar_prefetch = 0 : i64, scratch_operands = 0 : i64, tpu.core_type = #tpu.core_type<tc>} {
    %c0 = arith.constant 0 : index
    %c0_0 = arith.constant 0 : index
    %0 = vector.load %arg0[%c0, %c0_0] : memref<2x256xbf16, #tpu.memory_space<vmem>>, vector<2x256xbf16>
    %c0_1 = arith.constant 0 : index
    %c0_2 = arith.constant 0 : index
    %1 = vector.load %arg1[%c0_1, %c0_2] : memref<256x256xbf16, #tpu.memory_space<vmem>>, vector<256x256xbf16>
    %cst = arith.constant dense<0.000000e+00> : vector<2x256xf32>
    %2 = tpu.matmul %0, %1, %cst {dimension_numbers = #tpu.dot_dimension_numbers<[1], [0], [0], [1], [0, 0, 1, 1], [], []>} : vector<2x256xbf16>, vector<256x256xbf16>, vector<2x256xf32> -> vector<2x256xf32>
    %c0_3 = arith.constant 0 : index
    %c0_4 = arith.constant 0 : index
    %3 = vector.load %arg2[%c0_3, %c0_4] : memref<1x256xf32, #tpu.memory_space<vmem>>, vector<1x256xf32>
    %4 = vector.broadcast %3 : vector<1x256xf32> to vector<2x256xf32>
    %5 = arith.addf %2, %4 : vector<2x256xf32>
    %cst_5 = arith.constant 0.000000e+00 : f32
    %6 = vector.broadcast %cst_5 : f32 to vector<2x256xf32>
    %7 = arith.maximumf %5, %6 : vector<2x256xf32>
    %8 = arith.truncf %7 : vector<2x256xf32> to vector<2x256xbf16>
    %c0_6 = arith.constant 0 : index
    %c0_7 = arith.constant 0 : index
    %9 = vector.load %arg3[%c0_6, %c0_7] : memref<256x256xbf16, #tpu.memory_space<vmem>>, vector<256x256xbf16>
    %cst_8 = arith.constant dense<0.000000e+00> : vector<2x256xf32>
    %10 = tpu.matmul %8, %9, %cst_8 {dimension_numbers = #tpu.dot_dimension_numbers<[1], [0], [0], [1], [0, 0, 1, 1], [], []>} : vector<2x256xbf16>, vector<256x256xbf16>, vector<2x256xf32> -> vector<2x256xf32>
    %c0_9 = arith.constant 0 : index
    %c0_10 = arith.constant 0 : index
    %11 = vector.load %arg4[%c0_9, %c0_10] : memref<1x256xf32, #tpu.memory_space<vmem>>, vector<1x256xf32>
    %12 = vector.broadcast %11 : vector<1x256xf32> to vector<2x256xf32>
    %13 = arith.addf %10, %12 : vector<2x256xf32>
    %14 = arith.extf %0 : vector<2x256xbf16> to vector<2x256xf32>
    %15 = arith.addf %13, %14 : vector<2x256xf32>
    %cst_11 = arith.constant 0.000000e+00 : f32
    %16 = vector.broadcast %cst_11 : f32 to vector<2x256xf32>
    %17 = arith.maximumf %15, %16 : vector<2x256xf32>
    %18 = arith.truncf %17 : vector<2x256xf32> to vector<2x256xbf16>
    %c0_12 = arith.constant 0 : index
    %c0_13 = arith.constant 0 : index
    %19 = vector.load %arg5[%c0_12, %c0_13] : memref<2x256xbf16, #tpu.memory_space<vmem>>, vector<2x256xbf16>
    tpu.vector_store %arg5[%c0_12, %c0_13], %18 {strides = array<i32>} : memref<2x256xbf16, #tpu.memory_space<vmem>>, vector<2x256xbf16>,
    return
  }
}

module attributes {stable_mosaic.version = 11 : i64} {
  func.func @_fused_block_ds_kernel(%arg0: memref<2x256xbf16, #tpu.memory_space<vmem>>, %arg1: memref<2x256xbf16, #tpu.memory_space<vmem>>, %arg2: memref<256x512xbf16, #tpu.memory_space<vmem>>, %arg3: memref<1x512xf32, #tpu.memory_space<vmem>>, %arg4: memref<512x512xbf16, #tpu.memory_space<vmem>>, %arg5: memref<1x512xf32, #tpu.memory_space<vmem>>, %arg6: memref<256x512xbf16, #tpu.memory_space<vmem>>, %arg7: memref<1x512xf32, #tpu.memory_space<vmem>>, %arg8: memref<2x512xbf16, #tpu.memory_space<vmem>>) attributes {dimension_semantics = [], scalar_prefetch = 0 : i64, scratch_operands = 0 : i64, tpu.core_type = #tpu.core_type<tc>} {
    %c0 = arith.constant 0 : index
    %c0_0 = arith.constant 0 : index
    %0 = vector.load %arg1[%c0, %c0_0] : memref<2x256xbf16, #tpu.memory_space<vmem>>, vector<2x256xbf16>
    %c0_1 = arith.constant 0 : index
    %c0_2 = arith.constant 0 : index
    %1 = vector.load %arg6[%c0_1, %c0_2] : memref<256x512xbf16, #tpu.memory_space<vmem>>, vector<256x512xbf16>
    %cst = arith.constant dense<0.000000e+00> : vector<2x512xf32>
    %2 = tpu.matmul %0, %1, %cst {dimension_numbers = #tpu.dot_dimension_numbers<[1], [0], [0], [1], [0, 0, 1, 1], [], []>} : vector<2x256xbf16>, vector<256x512xbf16>, vector<2x512xf32> -> vector<2x512xf32>
    %c0_3 = arith.constant 0 : index
    %c0_4 = arith.constant 0 : index
    %3 = vector.load %arg7[%c0_3, %c0_4] : memref<1x512xf32, #tpu.memory_space<vmem>>, vector<1x512xf32>
    %4 = vector.broadcast %3 : vector<1x512xf32> to vector<2x512xf32>
    %5 = arith.addf %2, %4 : vector<2x512xf32>
    %c0_5 = arith.constant 0 : index
    %c0_6 = arith.constant 0 : index
    %6 = vector.load %arg0[%c0_5, %c0_6] : memref<2x256xbf16, #tpu.memory_space<vmem>>, vector<2x256xbf16>
    %c0_7 = arith.constant 0 : index
    %c0_8 = arith.constant 0 : index
    %7 = vector.load %arg2[%c0_7, %c0_8] : memref<256x512xbf16, #tpu.memory_space<vmem>>, vector<256x512xbf16>
    %cst_9 = arith.constant dense<0.000000e+00> : vector<2x512xf32>
    %8 = tpu.matmul %6, %7, %cst_9 {dimension_numbers = #tpu.dot_dimension_numbers<[1], [0], [0], [1], [0, 0, 1, 1], [], []>} : vector<2x256xbf16>, vector<256x512xbf16>, vector<2x512xf32> -> vector<2x512xf32>
    %c0_10 = arith.constant 0 : index
    %c0_11 = arith.constant 0 : index
    %9 = vector.load %arg3[%c0_10, %c0_11] : memref<1x512xf32, #tpu.memory_space<vmem>>, vector<1x512xf32>
    %10 = vector.broadcast %9 : vector<1x512xf32> to vector<2x512xf32>
    %11 = arith.addf %8, %10 : vector<2x512xf32>
    %cst_12 = arith.constant 0.000000e+00 : f32
    %12 = vector.broadcast %cst_12 : f32 to vector<2x512xf32>
    %13 = arith.maximumf %11, %12 : vector<2x512xf32>
    %14 = arith.truncf %13 : vector<2x512xf32> to vector<2x512xbf16>
    %c0_13 = arith.constant 0 : index
    %c0_14 = arith.constant 0 : index
    %15 = vector.load %arg4[%c0_13, %c0_14] : memref<512x512xbf16, #tpu.memory_space<vmem>>, vector<512x512xbf16>
    %cst_15 = arith.constant dense<0.000000e+00> : vector<2x512xf32>
    %16 = tpu.matmul %14, %15, %cst_15 {dimension_numbers = #tpu.dot_dimension_numbers<[1], [0], [0], [1], [0, 0, 1, 1], [], []>} : vector<2x512xbf16>, vector<512x512xbf16>, vector<2x512xf32> -> vector<2x512xf32>
    %c0_16 = arith.constant 0 : index
    %c0_17 = arith.constant 0 : index
    %17 = vector.load %arg5[%c0_16, %c0_17] : memref<1x512xf32, #tpu.memory_space<vmem>>, vector<1x512xf32>
    %18 = vector.broadcast %17 : vector<1x512xf32> to vector<2x512xf32>
    %19 = arith.addf %16, %18 : vector<2x512xf32>
    %20 = arith.addf %19, %5 : vector<2x512xf32>
    %cst_18 = arith.constant 0.000000e+00 : f32
    %21 = vector.broadcast %cst_18 : f32 to vector<2x512xf32>
    %22 = arith.maximumf %20, %21 : vector<2x512xf32>
    %23 = arith.truncf %22 : vector<2x512xf32> to vector<2x512xbf16>
    %c0_19 = arith.constant 0 : index
    %c0_20 = arith.constant 0 : index
    %24 = vector.load %arg8[%c0_19, %c0_20] : memref<2x512xbf16, #tpu.memory_space<vmem>>, vector<2x512xbf16>
    tpu.vector_store %arg8[%c0_19, %c0_20], %23 {strides = array<i32>} : memref<2x512xbf16, #tpu.memory_space<vmem>>, vector<2x512xbf16>,
    return
  }
}

module attributes {stable_mosaic.version = 11 : i64} {
  func.func @_fused_block_kernel(%arg0: memref<2x512xbf16, #tpu.memory_space<vmem>>, %arg1: memref<512x512xbf16, #tpu.memory_space<vmem>>, %arg2: memref<1x512xf32, #tpu.memory_space<vmem>>, %arg3: memref<512x512xbf16, #tpu.memory_space<vmem>>, %arg4: memref<1x512xf32, #tpu.memory_space<vmem>>, %arg5: memref<2x512xbf16, #tpu.memory_space<vmem>>) attributes {dimension_semantics = [], scalar_prefetch = 0 : i64, scratch_operands = 0 : i64, tpu.core_type = #tpu.core_type<tc>} {
    %c0 = arith.constant 0 : index
    %c0_0 = arith.constant 0 : index
    %0 = vector.load %arg0[%c0, %c0_0] : memref<2x512xbf16, #tpu.memory_space<vmem>>, vector<2x512xbf16>
    %c0_1 = arith.constant 0 : index
    %c0_2 = arith.constant 0 : index
    %1 = vector.load %arg1[%c0_1, %c0_2] : memref<512x512xbf16, #tpu.memory_space<vmem>>, vector<512x512xbf16>
    %cst = arith.constant dense<0.000000e+00> : vector<2x512xf32>
    %2 = tpu.matmul %0, %1, %cst {dimension_numbers = #tpu.dot_dimension_numbers<[1], [0], [0], [1], [0, 0, 1, 1], [], []>} : vector<2x512xbf16>, vector<512x512xbf16>, vector<2x512xf32> -> vector<2x512xf32>
    %c0_3 = arith.constant 0 : index
    %c0_4 = arith.constant 0 : index
    %3 = vector.load %arg2[%c0_3, %c0_4] : memref<1x512xf32, #tpu.memory_space<vmem>>, vector<1x512xf32>
    %4 = vector.broadcast %3 : vector<1x512xf32> to vector<2x512xf32>
    %5 = arith.addf %2, %4 : vector<2x512xf32>
    %cst_5 = arith.constant 0.000000e+00 : f32
    %6 = vector.broadcast %cst_5 : f32 to vector<2x512xf32>
    %7 = arith.maximumf %5, %6 : vector<2x512xf32>
    %8 = arith.truncf %7 : vector<2x512xf32> to vector<2x512xbf16>
    %c0_6 = arith.constant 0 : index
    %c0_7 = arith.constant 0 : index
    %9 = vector.load %arg3[%c0_6, %c0_7] : memref<512x512xbf16, #tpu.memory_space<vmem>>, vector<512x512xbf16>
    %cst_8 = arith.constant dense<0.000000e+00> : vector<2x512xf32>
    %10 = tpu.matmul %8, %9, %cst_8 {dimension_numbers = #tpu.dot_dimension_numbers<[1], [0], [0], [1], [0, 0, 1, 1], [], []>} : vector<2x512xbf16>, vector<512x512xbf16>, vector<2x512xf32> -> vector<2x512xf32>
    %c0_9 = arith.constant 0 : index
    %c0_10 = arith.constant 0 : index
    %11 = vector.load %arg4[%c0_9, %c0_10] : memref<1x512xf32, #tpu.memory_space<vmem>>, vector<1x512xf32>
    %12 = vector.broadcast %11 : vector<1x512xf32> to vector<2x512xf32>
    %13 = arith.addf %10, %12 : vector<2x512xf32>
    %14 = arith.extf %0 : vector<2x512xbf16> to vector<2x512xf32>
    %15 = arith.addf %13, %14 : vector<2x512xf32>
    %cst_11 = arith.constant 0.000000e+00 : f32
    %16 = vector.broadcast %cst_11 : f32 to vector<2x512xf32>
    %17 = arith.maximumf %15, %16 : vector<2x512xf32>
    %18 = arith.truncf %17 : vector<2x512xf32> to vector<2x512xbf16>
    %c0_12 = arith.constant 0 : index
    %c0_13 = arith.constant 0 : index
    %19 = vector.load %arg5[%c0_12, %c0_13] : memref<2x512xbf16, #tpu.memory_space<vmem>>, vector<2x512xbf16>
    tpu.vector_store %arg5[%c0_12, %c0_13], %18 {strides = array<i32>} : memref<2x512xbf16, #tpu.memory_space<vmem>>, vector<2x512xbf16>,
    return
  }
}

module attributes {stable_mosaic.version = 11 : i64} {
  func.func @_head_kernel(%arg0: memref<2x1x512xbf16, #tpu.memory_space<vmem>>, %arg1: memref<512x128xf32, #tpu.memory_space<vmem>>, %arg2: memref<1x128xf32, #tpu.memory_space<vmem>>, %arg3: memref<2x128xf32, #tpu.memory_space<vmem>>) attributes {dimension_semantics = [], scalar_prefetch = 0 : i64, scratch_operands = 0 : i64, tpu.core_type = #tpu.core_type<tc>} {
    %c0 = arith.constant 0 : index
    %c0_0 = arith.constant 0 : index
    %c0_1 = arith.constant 0 : index
    %0 = vector.load %arg0[%c0, %c0_0, %c0_1] : memref<2x1x512xbf16, #tpu.memory_space<vmem>>, vector<2x1x512xbf16>
    %1 = arith.extf %0 : vector<2x1x512xbf16> to vector<2x1x512xf32>
    %cst = arith.constant dense<0.000000e+00> : vector<2x512xf32>
    %2 = vector.multi_reduction <add>, %1, %cst [1] : vector<2x1x512xf32> to vector<2x512xf32>
    %cst_2 = arith.constant 1.000000e+00 : f32
    %3 = vector.broadcast %cst_2 : f32 to vector<2x512xf32>
    %4 = arith.divf %2, %3 : vector<2x512xf32>
    %c0_3 = arith.constant 0 : index
    %c0_4 = arith.constant 0 : index
    %5 = vector.load %arg1[%c0_3, %c0_4] : memref<512x128xf32, #tpu.memory_space<vmem>>, vector<512x128xf32>
    %cst_5 = arith.constant dense<0.000000e+00> : vector<2x128xf32>
    %6 = tpu.matmul %4, %5, %cst_5 {dimension_numbers = #tpu.dot_dimension_numbers<[1], [0], [0], [1], [0, 0, 1, 1], [], []>} : vector<2x512xf32>, vector<512x128xf32>, vector<2x128xf32> -> vector<2x128xf32>
    %c0_6 = arith.constant 0 : index
    %c0_7 = arith.constant 0 : index
    %7 = vector.load %arg2[%c0_6, %c0_7] : memref<1x128xf32, #tpu.memory_space<vmem>>, vector<1x128xf32>
    %8 = vector.broadcast %7 : vector<1x128xf32> to vector<2x128xf32>
    %9 = arith.addf %6, %8 : vector<2x128xf32>
    %c0_8 = arith.constant 0 : index
    %c0_9 = arith.constant 0 : index
    %10 = vector.load %arg3[%c0_8, %c0_9] : memref<2x128xf32, #tpu.memory_space<vmem>>, vector<2x128xf32>
    tpu.vector_store %arg3[%c0_8, %c0_9], %9 {strides = array<i32>} : memref<2x128xf32, #tpu.memory_space<vmem>>, vector<2x128xf32>,
    return
  }
}

</mosaic_0001>

<llo_original>
// kernel: resnet18_forward.17
$region0: #{resnet18_forward.17}
  #allocation0 [shape = 'u32[]', space=smem, size = 0x4, offset = 0x4, fixed_abs, tag = 'smem constant byte address 0x4 - core index']
  #allocation1 [shape = 'u32[72,128]{1,0:T(1,128)}', space=vmem, size = 0x9000, scoped, tag = 'internal scratch']
  %s0 = inlined_call_operand.vmem [shape: bf16[9,16,128], index: 0, kind: input, shape index: {}]
  %s1 = inlined_call_operand.vmem [shape: bf16[16,128], index: 1, kind: output, shape index: {}]
  %s2 = sld [smem:[#allocation0]]
  $region14: #{resnet18_forward.17} parent=0
    _
  %s4 = ssub.s32 1, %s2
  %s5 = scalar_select 0, %s4, %s2
  // Predicated region
  $region2: #{resnet18_forward.17} parent=0 // pred_check
    _
  $region3: #{resnet18_forward.17} parent=0 // pred_check_branch
    %7 = sbr.rel (0) target = $region5
  $region4: #{resnet18_forward.17} parent=0 // pred_region
    _
  $region5: #{resnet18_forward.17} parent=0 // pred_fallthru
    _
  %v8 = vld [vmem:[%s0] sm:$0xf]
  %v9 = vld [vmem:[%s0 + $0x4] sm:$0xf]
  %v10 = vld [vmem:[%s0 + $0x8] sm:$0xf]
  %v11 = vld [vmem:[%s0 + $0xc] sm:$0xf]
  %v12 = vld [vmem:[%s0 + $0x10] sm:$0xf]
  %v13 = vld [vmem:[%s0 + $0x14] sm:$0xf]
  %v14 = vld [vmem:[%s0 + $0x18] sm:$0xf]
  %v15 = vld [vmem:[%s0 + $0x1c] sm:$0xf]
  %v16 = vld [vmem:[%s0 + $0x20] sm:$0xf]
  %v17 = vld [vmem:[%s0 + $0x24] sm:$0xf]
  %v18 = vld [vmem:[%s0 + $0x28] sm:$0xf]
  %v19 = vld [vmem:[%s0 + $0x2c] sm:$0xf]
  %v20 = vld [vmem:[%s0 + $0x30] sm:$0xf]
  %v21 = vld [vmem:[%s0 + $0x34] sm:$0xf]
  %v22 = vld [vmem:[%s0 + $0x38] sm:$0xf]
  %v23 = vld [vmem:[%s0 + $0x3c] sm:$0xf]
  %v24 = vld [vmem:[%s0 + $0x40] sm:$0xf]
  %v25 = vld [vmem:[%s0 + $0x44] sm:$0xf]
  %v26 = vunpack.c.l.bf16 %v8
  %v27 = vunpack.c.l.bf16 %v9
  %v28 = vunpack.c.l.bf16 %v10
  %v29 = vunpack.c.l.bf16 %v11
  %v30 = vunpack.c.l.bf16 %v12
  %v31 = vunpack.c.l.bf16 %v13
  %v32 = vunpack.c.l.bf16 %v14
  %v33 = vunpack.c.l.bf16 %v15
  %v34 = vunpack.c.l.bf16 %v16
  %v35 = vunpack.c.l.bf16 %v17
  %v36 = vunpack.c.l.bf16 %v18
  %v37 = vunpack.c.l.bf16 %v19
  %v38 = vunpack.c.l.bf16 %v20
  %v39 = vunpack.c.l.bf16 %v21
  %v40 = vunpack.c.l.bf16 %v22
  %v41 = vunpack.c.l.bf16 %v23
  %v42 = vunpack.c.l.bf16 %v24
  %v43 = vunpack.c.l.bf16 %v25
  %v44 = vmax.f32 %v26, %v30
  %v45 = vmax.f32 %v28, %v32
  %v46 = vmax.f32 %v44, %v34
  %v47 = vmax.f32 %v45, %v36
  %v48 = vmax.f32 %v46, %v38
  %v49 = vmax.f32 %v47, %v40
  %v50 = vmax.f32 %v48, %v42
  %v51 = vmax.f32 %v50, %v49
  %v52 = vmax.f32 %v27, %v31
  %v53 = vmax.f32 %v29, %v33
  %v54 = vmax.f32 %v52, %v35
  %v55 = vmax.f32 %v53, %v37
  %v56 = vmax.f32 %v54, %v39
  %v57 = vmax.f32 %v55, %v41
  %v58 = vmax.f32 %v56, %v43
  %v59 = vmax.f32 %v58, %v57
  %v60 = vpack.c.bf16 %v51, %v51
  %v61 = vpack.c.bf16 %v59, %v59
  %62 = vst [vmem:[%s1] sm:$0xf] %v60
  %63 = vst [vmem:[%s1 + $0x4] sm:$0xf] %v61
  // Predicated region
  $region6: #{resnet18_forward.17} parent=0 // pred_check
    _
  $region7: #{resnet18_forward.17} parent=0 // pred_check_branch
    %65 = sbr.rel (0) target = $region9
  $region8: #{resnet18_forward.17} parent=0 // pred_region
    _
  $region9: #{resnet18_forward.17} parent=0 // pred_fallthru
    _
  // Predicated region
  $region10: #{resnet18_forward.17} parent=0 // pred_check
    _
  $region11: #{resnet18_forward.17} parent=0 // pred_check_branch
    %67 = sbr.rel (0) target = $region13
  $region12: #{resnet18_forward.17} parent=0 // pred_region
    _
  $region13: #{resnet18_forward.17} parent=0 // pred_fallthru
    _

// kernel: resnet18_forward.16
$region0: #{resnet18_forward.16}
  #allocation0 [shape = 'u32[]', space=smem, size = 0x4, offset = 0x4, fixed_abs, tag = 'smem constant byte address 0x4 - core index']
  #allocation1 [shape = 'u32[72,128]{1,0:T(1,128)}', space=vmem, size = 0x9000, scoped, tag = 'internal scratch']
  %s0 = inlined_call_operand.vmem [shape: bf16[128,49], index: 0, kind: input, shape index: {}]
  %s1 = inlined_call_operand.vmem [shape: bf16[49,64], index: 1, kind: input, shape index: {}]
  %s2 = inlined_call_operand.vmem [shape: f32[1,64], index: 2, kind: input, shape index: {}]
  %s3 = inlined_call_operand.vmem [shape: bf16[128,64], index: 3, kind: output, shape index: {}]
  %s4 = sld [smem:[#allocation0]]
  $region22: #{resnet18_forward.16} parent=0
    _
  %s6 = ssub.s32 1, %s4
  %s7 = scalar_select 0, %s6, %s4
  // Predicated region
  $region2: #{resnet18_forward.16} parent=0 // pred_check
    _
  $region3: #{resnet18_forward.16} parent=0 // pred_check_branch
    %9 = sbr.rel (0) target = $region5
  $region4: #{resnet18_forward.16} parent=0 // pred_region
    _
  $region5: #{resnet18_forward.16} parent=0 // pred_fallthru
    _
  // Predicated region
  $region6: #{resnet18_forward.16} parent=0 // pred_check
    _
  $region7: #{resnet18_forward.16} parent=0 // pred_check_branch
    %11 = sbr.rel (0) target = $region9
  $region8: #{resnet18_forward.16} parent=0 // pred_region
    _
  $region9: #{resnet18_forward.16} parent=0 // pred_fallthru
    _
  // Predicated region
  $region10: #{resnet18_forward.16} parent=0 // pred_check
    _
  $region11: #{resnet18_forward.16} parent=0 // pred_check_branch
    %13 = sbr.rel (0) target = $region13
  $region12: #{resnet18_forward.16} parent=0 // pred_region
    _
  $region13: #{resnet18_forward.16} parent=0 // pred_fallthru
    _
  %v15 = vld [vmem:[%s0] sm:$0xf]
  %v16 = vld [vmem:[%s0 + $0x4] sm:$0xf]
  %v17 = vld [vmem:[%s0 + $0x8] sm:$0xf]
  %v18 = vld [vmem:[%s0 + $0xc] sm:$0xf]
  %v19 = vld [vmem:[%s0 + $0x10] sm:$0xf]
  %v20 = vld [vmem:[%s0 + $0x14] sm:$0xf]
  %v21 = vld [vmem:[%s0 + $0x18] sm:$0xf]
  %v22 = vld [vmem:[%s0 + $0x1c] sm:$0xf]
  %v23 = vld [vmem:[%s0 + $0x20] sm:$0xf]
  %v24 = vld [vmem:[%s0 + $0x24] sm:$0xf]
  %v25 = vld [vmem:[%s0 + $0x28] sm:$0xf]
  %v26 = vld [vmem:[%s0 + $0x2c] sm:$0xf]
  %v27 = vld [vmem:[%s0 + $0x30] sm:$0xf]
  %v28 = vld [vmem:[%s0 + $0x34] sm:$0xf]
  %v29 = vld [vmem:[%s0 + $0x38] sm:$0xf]
  %v30 = vld [vmem:[%s0 + $0x3c] sm:$0xf]
  %v31 = vld [vmem:[%s1] sm:$0xf]
  %v32 = vld [vmem:[%s1 + $0x4] sm:$0xf]
  %v33 = vld [vmem:[%s1 + $0x8] sm:$0xf]
  %v34 = vld [vmem:[%s1 + $0xc] sm:$0xf]
  %v35 = vld [vmem:[%s1 + $0x10] sm:$0xf]
  %v36 = vld [vmem:[%s1 + $0x14] sm:$0xf]
  %v37 = vld [vmem:[%s1 + $0x18] sm:$0x1]
  %v38 = vld [vmem:[%s2] sm:$0x1]
  %v40 = vperm.slane %v38, 0
  %v58 = vunpack.c.l.b16 %v15
  %v59 = vunpack.c.l.b16 %v16
  %v60 = vunpack.c.l.b16 %v17
  %v61 = vunpack.c.l.b16 %v18
  %v62 = vunpack.c.l.b16 %v19
  %v63 = vunpack.c.l.b16 %v20
  %v64 = vunpack.c.l.b16 %v21
  %v65 = vunpack.c.l.b16 %v22
  %v66 = vunpack.c.l.b16 %v23
  %v67 = vunpack.c.l.b16 %v24
  %v68 = vunpack.c.l.b16 %v25
  %v69 = vunpack.c.l.b16 %v26
  %v70 = vunpack.c.l.b16 %v27
  %v71 = vunpack.c.l.b16 %v28
  %v72 = vunpack.c.l.b16 %v29
  %v73 = vunpack.c.l.b16 %v30
  %v74 = vpack.c.b16 %v59, %v58
  %v75 = vpack.c.b16 %v61, %v60
  %v76 = vpack.c.b16 %v63, %v62
  %v77 = vpack.c.b16 %v65, %v64
  %v78 = vpack.c.b16 %v67, %v66
  %v79 = vpack.c.b16 %v69, %v68
  %v80 = vpack.c.b16 %v71, %v70
  %v81 = vpack.c.b16 %v73, %v72
  %v89 = vunpack.c.l.b16 %v31
  %v90 = vunpack.c.l.b16 %v32
  %v91 = vunpack.c.l.b16 %v33
  %v92 = vunpack.c.l.b16 %v34
  %v93 = vunpack.c.l.b16 %v35
  %v94 = vunpack.c.l.b16 %v36
  %v95 = vunpack.c.l.b16 %v37
  %v96 = vpack.c.b16 %v90, %v89
  %v97 = vpack.c.b16 %v92, %v91
  %v98 = vpack.c.b16 %v94, %v93
  %v99 = vpack.c.b16 %v95, %v95
  %vm103 = vcmask 400384
  %v105 = vsel %vm103, %v74, 0
  %v108 = vsel %vm103, %v75, 0
  %v111 = vsel %vm103, %v76, 0
  %v114 = vsel %vm103, %v77, 0
  %v117 = vsel %vm103, %v78, 0
  %v120 = vsel %vm103, %v79, 0
  %v123 = vsel %vm103, %v80, 0
  %v126 = vsel %vm103, %v81, 0
  %vm128 = vcmask 1040384
  %v129 = vsel 0, 4294967295, 65535
  %v130 = vsel %vm128, %v129, 0
  %v132 = vand.u32 %v99, %v130
  %134 = vmatpush.bf16.msra.mxu0 0
  %135 = vmatpush.bf16.msra.mxu0 0
  %136 = vmatpush.bf16.msra.mxu0 0
  %137 = vmatpush.bf16.msra.mxu0 0
  %138 = vmatpush.bf16.msra.mxu0 %v132
  %139 = vmatpush.bf16.msra.mxu0 %v98
  %140 = vmatpush.bf16.msra.mxu0 %v97
  %141 = vmatpush.bf16.msra.mxu0 %v96
  %142 = vmatmul.bf16.gmra.mxu0 %v105
  %v143 = vpop.f32.mrf.mxu0
  %v144 = vadd.f32 %v40, %v143
  %v145 = vpop.f32.mrf.mxu0
  %v146 = vadd.f32 %v40, %v145
  %147 = vmatmul.bf16.gmra.mxu0 %v108
  %v148 = vpop.f32.mrf.mxu0
  %v149 = vadd.f32 %v40, %v148
  %v150 = vpop.f32.mrf.mxu0
  %v151 = vadd.f32 %v40, %v150
  %152 = vmatmul.bf16.gmra.mxu0 %v111
  %v153 = vpop.f32.mrf.mxu0
  %v154 = vadd.f32 %v40, %v153
  %v155 = vpop.f32.mrf.mxu0
  %v156 = vadd.f32 %v40, %v155
  %157 = vmatmul.bf16.gmra.mxu0 %v114
  %v158 = vpop.f32.mrf.mxu0
  %v159 = vadd.f32 %v40, %v158
  %v160 = vpop.f32.mrf.mxu0
  %v161 = vadd.f32 %v40, %v160
  %162 = vmatmul.bf16.gmra.mxu0 %v117
  %v163 = vpop.f32.mrf.mxu0
  %v164 = vadd.f32 %v40, %v163
  %v165 = vpop.f32.mrf.mxu0
  %v166 = vadd.f32 %v40, %v165
  %167 = vmatmul.bf16.gmra.mxu0 %v120
  %v168 = vpop.f32.mrf.mxu0
  %v169 = vadd.f32 %v40, %v168
  %v170 = vpop.f32.mrf.mxu0
  %v171 = vadd.f32 %v40, %v170
  %172 = vmatmul.bf16.gmra.mxu0 %v123
  %v173 = vpop.f32.mrf.mxu0
  %v174 = vadd.f32 %v40, %v173
  %v175 = vpop.f32.mrf.mxu0
  %v176 = vadd.f32 %v40, %v175
  %177 = vmatmul.bf16.gmra.mxu0 %v126
  %v178 = vpop.f32.mrf.mxu0
  %v179 = vadd.f32 %v40, %v178
  %v180 = vpop.f32.mrf.mxu0
  %v181 = vadd.f32 %v40, %v180
  %182 = vdwg.mxu0
  %v183 = vmax.f32 %v144, 0.0
  %v184 = vmax.f32 %v146, 0.0
  %v185 = vmax.f32 %v149, 0.0
  %v186 = vmax.f32 %v151, 0.0
  %v187 = vmax.f32 %v154, 0.0
  %v188 = vmax.f32 %v156, 0.0
  %v189 = vmax.f32 %v159, 0.0
  %v190 = vmax.f32 %v161, 0.0
  %v191 = vmax.f32 %v164, 0.0
  %v192 = vmax.f32 %v166, 0.0
  %v193 = vmax.f32 %v169, 0.0
  %v194 = vmax.f32 %v171, 0.0
  %v195 = vmax.f32 %v174, 0.0
  %v196 = vmax.f32 %v176, 0.0
  %v197 = vmax.f32 %v179, 0.0
  %v198 = vmax.f32 %v181, 0.0
  %v199 = vpack.c.bf16 %v183, %v183
  %v200 = vpack.c.bf16 %v184, %v184
  %v201 = vpack.c.bf16 %v185, %v185
  %v202 = vpack.c.bf16 %v186, %v186
  %v203 = vpack.c.bf16 %v187, %v187
  %v204 = vpack.c.bf16 %v188, %v188
  %v205 = vpack.c.bf16 %v189, %v189
  %v206 = vpack.c.bf16 %v190, %v190
  %v207 = vpack.c.bf16 %v191, %v191
  %v208 = vpack.c.bf16 %v192, %v192
  %v209 = vpack.c.bf16 %v193, %v193
  %v210 = vpack.c.bf16 %v194, %v194
  %v211 = vpack.c.bf16 %v195, %v195
  %v212 = vpack.c.bf16 %v196, %v196
  %v213 = vpack.c.bf16 %v197, %v197
  %v214 = vpack.c.bf16 %v198, %v198
  %vm215 = vcmask 519168
  %216 = vst.msk [vmem:[%s3] sm:$0xf] %vm215, %v199
  %217 = vst.msk [vmem:[%s3 + $0x4] sm:$0xf] %vm215, %v200
  %218 = vst.msk [vmem:[%s3 + $0x8] sm:$0xf] %vm215, %v201
  %219 = vst.msk [vmem:[%s3 + $0xc] sm:$0xf] %vm215, %v202
  %220 = vst.msk [vmem:[%s3 + $0x10] sm:$0xf] %vm215, %v203
  %221 = vst.msk [vmem:[%s3 + $0x14] sm:$0xf] %vm215, %v204
  %222 = vst.msk [vmem:[%s3 + $0x18] sm:$0xf] %vm215, %v205
  %223 = vst.msk [vmem:[%s3 + $0x1c] sm:$0xf] %vm215, %v206
  %224 = vst.msk [vmem:[%s3 + $0x20] sm:$0xf] %vm215, %v207
  %225 = vst.msk [vmem:[%s3 + $0x24] sm:$0xf] %vm215, %v208
  %226 = vst.msk [vmem:[%s3 + $0x28] sm:$0xf] %vm215, %v209
  %227 = vst.msk [vmem:[%s3 + $0x2c] sm:$0xf] %vm215, %v210
  %228 = vst.msk [vmem:[%s3 + $0x30] sm:$0xf] %vm215, %v211
  %229 = vst.msk [vmem:[%s3 + $0x34] sm:$0xf] %vm215, %v212
  %230 = vst.msk [vmem:[%s3 + $0x38] sm:$0xf] %vm215, %v213
  %231 = vst.msk [vmem:[%s3 + $0x3c] sm:$0xf] %vm215, %v214
  // Predicated region
  $region14: #{resnet18_forward.16} parent=0 // pred_check
    _
  $region15: #{resnet18_forward.16} parent=0 // pred_check_branch
    %233 = sbr.rel (0) target = $region17
  $region16: #{resnet18_forward.16} parent=0 // pred_region
    _
  $region17: #{resnet18_forward.16} parent=0 // pred_fallthru
    _
  // Predicated region
  $region18: #{resnet18_forward.16} parent=0 // pred_check
    _
  $region19: #{resnet18_forward.16} parent=0 // pred_check_branch
    %235 = sbr.rel (0) target = $region21
  $region20: #{resnet18_forward.16} parent=0 // pred_region
    _
  $region21: #{resnet18_forward.16} parent=0 // pred_fallthru
    _

// kernel: resnet18_forward.18
$region0: #{resnet18_forward.18}
  #allocation0 [shape = 'u32[]', space=smem, size = 0x4, offset = 0x4, fixed_abs, tag = 'smem constant byte address 0x4 - core index']
  #allocation1 [shape = 'u32[72,128]{1,0:T(1,128)}', space=vmem, size = 0x9000, scoped, tag = 'internal scratch']
  %s0 = inlined_call_operand.vmem [shape: bf16[32,576], index: 0, kind: input, shape index: {}]
  %s1 = inlined_call_operand.vmem [shape: bf16[576,64], index: 1, kind: input, shape index: {}]
  %s2 = inlined_call_operand.vmem [shape: f32[1,64], index: 2, kind: input, shape index: {}]
  %s3 = inlined_call_operand.vmem [shape: bf16[32,64], index: 3, kind: output, shape index: {}]
  %s4 = sld [smem:[#allocation0]]
  $region22: #{resnet18_forward.18} parent=0
    _
  %s6 = ssub.s32 1, %s4
  %s7 = scalar_select 0, %s6, %s4
  // Predicated region
  $region2: #{resnet18_forward.18} parent=0 // pred_check
    _
  $region3: #{resnet18_forward.18} parent=0 // pred_check_branch
    %9 = sbr.rel (0) target = $region5
  $region4: #{resnet18_forward.18} parent=0 // pred_region
    _
  $region5: #{resnet18_forward.18} parent=0 // pred_fallthru
    _
  // Predicated region
  $region6: #{resnet18_forward.18} parent=0 // pred_check
    _
  $region7: #{resnet18_forward.18} parent=0 // pred_check_branch
    %11 = sbr.rel (0) target = $region9
  $region8: #{resnet18_forward.18} parent=0 // pred_region
    _
  $region9: #{resnet18_forward.18} parent=0 // pred_fallthru
    _
  // Predicated region
  $region10: #{resnet18_forward.18} parent=0 // pred_check
    _
  $region11: #{resnet18_forward.18} parent=0 // pred_check_branch
    %13 = sbr.rel (0) target = $region13
  $region12: #{resnet18_forward.18} parent=0 // pred_region
    _
  $region13: #{resnet18_forward.18} parent=0 // pred_fallthru
    _
  %v15 = vld [vmem:[%s0] sm:$0xff]
  %v16 = vld [vmem:[%s0 + $0x8] sm:$0xff]
  %v17 = vld [vmem:[%s0 + $0x10] sm:$0xf]
  %v18 = vld [vmem:[%s0 + $0x14] sm:$0xff]
  %v19 = vld [vmem:[%s0 + $0x1c] sm:$0xff]
  %v20 = vld [vmem:[%s0 + $0x24] sm:$0xf]
  %v21 = vld [vmem:[%s0 + $0x28] sm:$0xff]
  %v22 = vld [vmem:[%s0 + $0x30] sm:$0xff]
  %v23 = vld [vmem:[%s0 + $0x38] sm:$0xf]
  %v24 = vld [vmem:[%s0 + $0x3c] sm:$0xff]
  %v25 = vld [vmem:[%s0 + $0x44] sm:$0xff]
  %v26 = vld [vmem:[%s0 + $0x4c] sm:$0xf]
  %v27 = vld [vmem:[%s1] sm:$0xf]
  %v28 = vld [vmem:[%s1 + $0x4] sm:$0xf]
  %v29 = vld [vmem:[%s1 + $0x8] sm:$0xf]
  %v30 = vld [vmem:[%s1 + $0xc] sm:$0xf]
  %v31 = vld [vmem:[%s1 + $0x10] sm:$0xf]
  %v32 = vld [vmem:[%s1 + $0x14] sm:$0xf]
  %v33 = vld [vmem:[%s1 + $0x18] sm:$0xf]
  %v34 = vld [vmem:[%s1 + $0x1c] sm:$0xf]
  %v35 = vld [vmem:[%s1 + $0x20] sm:$0xf]
  %v36 = vld [vmem:[%s1 + $0x24] sm:$0xf]
  %v37 = vld [vmem:[%s1 + $0x28] sm:$0xf]
  %v38 = vld [vmem:[%s1 + $0x2c] sm:$0xf]
  %v39 = vld [vmem:[%s1 + $0x30] sm:$0xf]
  %v40 = vld [vmem:[%s1 + $0x34] sm:$0xf]
  %v41 = vld [vmem:[%s1 + $0x38] sm:$0xf]
  %v42 = vld [vmem:[%s1 + $0x3c] sm:$0xf]
  %v43 = vld [vmem:[%s1 + $0x40] sm:$0xf]
  %v44 = vld [vmem:[%s1 + $0x44] sm:$0xf]
  %v45 = vld [vmem:[%s1 + $0x48] sm:$0xf]
  %v46 = vld [vmem:[%s1 + $0x4c] sm:$0xf]
  %v47 = vld [vmem:[%s1 + $0x50] sm:$0xf]
  %v48 = vld [vmem:[%s1 + $0x54] sm:$0xf]
  %v49 = vld [vmem:[%s1 + $0x58] sm:$0xf]
  %v50 = vld [vmem:[%s1 + $0x5c] sm:$0xf]
  %v51 = vld [vmem:[%s1 + $0x60] sm:$0xf]
  %v52 = vld [vmem:[%s1 + $0x64] sm:$0xf]
  %v53 = vld [vmem:[%s1 + $0x68] sm:$0xf]
  %v54 = vld [vmem:[%s1 + $0x6c] sm:$0xf]
  %v55 = vld [vmem:[%s1 + $0x70] sm:$0xf]
  %v56 = vld [vmem:[%s1 + $0x74] sm:$0xf]
  %v57 = vld [vmem:[%s1 + $0x78] sm:$0xf]
  %v58 = vld [vmem:[%s1 + $0x7c] sm:$0xf]
  %v59 = vld [vmem:[%s1 + $0x80] sm:$0xf]
  %v60 = vld [vmem:[%s1 + $0x84] sm:$0xf]
  %v61 = vld [vmem:[%s1 + $0x88] sm:$0xf]
  %v62 = vld [vmem:[%s1 + $0x8c] sm:$0xf]
  %v63 = vld [vmem:[%s1 + $0x90] sm:$0xf]
  %v64 = vld [vmem:[%s1 + $0x94] sm:$0xf]
  %v65 = vld [vmem:[%s1 + $0x98] sm:$0xf]
  %v66 = vld [vmem:[%s1 + $0x9c] sm:$0xf]
  %v67 = vld [vmem:[%s1 + $0xa0] sm:$0xf]
  %v68 = vld [vmem:[%s1 + $0xa4] sm:$0xf]
  %v69 = vld [vmem:[%s1 + $0xa8] sm:$0xf]
  %v70 = vld [vmem:[%s1 + $0xac] sm:$0xf]
  %v71 = vld [vmem:[%s1 + $0xb0] sm:$0xf]
  %v72 = vld [vmem:[%s1 + $0xb4] sm:$0xf]
  %v73 = vld [vmem:[%s1 + $0xb8] sm:$0xf]
  %v74 = vld [vmem:[%s1 + $0xbc] sm:$0xf]
  %v75 = vld [vmem:[%s1 + $0xc0] sm:$0xf]
  %v76 = vld [vmem:[%s1 + $0xc4] sm:$0xf]
  %v77 = vld [vmem:[%s1 + $0xc8] sm:$0xf]
  %v78 = vld [vmem:[%s1 + $0xcc] sm:$0xf]
  %v79 = vld [vmem:[%s1 + $0xd0] sm:$0xf]
  %v80 = vld [vmem:[%s1 + $0xd4] sm:$0xf]
  %v81 = vld [vmem:[%s1 + $0xd8] sm:$0xf]
  %v82 = vld [vmem:[%s1 + $0xdc] sm:$0xf]
  %v83 = vld [vmem:[%s1 + $0xe0] sm:$0xf]
  %v84 = vld [vmem:[%s1 + $0xe4] sm:$0xf]
  %v85 = vld [vmem:[%s1 + $0xe8] sm:$0xf]
  %v86 = vld [vmem:[%s1 + $0xec] sm:$0xf]
  %v87 = vld [vmem:[%s1 + $0xf0] sm:$0xf]
  %v88 = vld [vmem:[%s1 + $0xf4] sm:$0xf]
  %v89 = vld [vmem:[%s1 + $0xf8] sm:$0xf]
  %v90 = vld [vmem:[%s1 + $0xfc] sm:$0xf]
  %v91 = vld [vmem:[%s1 + $0x100] sm:$0xf]
  %v92 = vld [vmem:[%s1 + $0x104] sm:$0xf]
  %v93 = vld [vmem:[%s1 + $0x108] sm:$0xf]
  %v94 = vld [vmem:[%s1 + $0x10c] sm:$0xf]
  %v95 = vld [vmem:[%s1 + $0x110] sm:$0xf]
  %v96 = vld [vmem:[%s1 + $0x114] sm:$0xf]
  %v97 = vld [vmem:[%s1 + $0x118] sm:$0xf]
  %v98 = vld [vmem:[%s1 + $0x11c] sm:$0xf]
  %v99 = vld [vmem:[%s2] sm:$0x1]
  %v101 = vperm.slane %v99, 0
  %v115 = vunpack.c.l.b16 %v15
  %v116 = vunpack.c.h.b16 %v15
  %v117 = vunpack.c.l.b16 %v16
  %v118 = vunpack.c.h.b16 %v16
  %v119 = vunpack.c.l.b16 %v17
  %v120 = vunpack.c.l.b16 %v18
  %v121 = vunpack.c.h.b16 %v18
  %v122 = vunpack.c.l.b16 %v19
  %v123 = vunpack.c.h.b16 %v19
  %v124 = vunpack.c.l.b16 %v20
  %v125 = vunpack.c.l.b16 %v21
  %v126 = vunpack.c.h.b16 %v21
  %v127 = vunpack.c.l.b16 %v22
  %v128 = vunpack.c.h.b16 %v22
  %v129 = vunpack.c.l.b16 %v23
  %v130 = vunpack.c.l.b16 %v24
  %v131 = vunpack.c.h.b16 %v24
  %v132 = vunpack.c.l.b16 %v25
  %v133 = vunpack.c.h.b16 %v25
  %v134 = vunpack.c.l.b16 %v26
  %v135 = vpack.c.b16 %v120, %v115
  %v136 = vpack.c.b16 %v121, %v116
  %v137 = vpack.c.b16 %v122, %v117
  %v138 = vpack.c.b16 %v123, %v118
  %v139 = vpack.c.b16 %v124, %v119
  %v140 = vpack.c.b16 %v130, %v125
  %v141 = vpack.c.b16 %v131, %v126
  %v142 = vpack.c.b16 %v132, %v127
  %v143 = vpack.c.b16 %v133, %v128
  %v144 = vpack.c.b16 %v134, %v129
  %v225 = vunpack.c.l.b16 %v27
  %v226 = vunpack.c.l.b16 %v28
  %v227 = vunpack.c.l.b16 %v29
  %v228 = vunpack.c.l.b16 %v30
  %v229 = vunpack.c.l.b16 %v31
  %v230 = vunpack.c.l.b16 %v32
  %v231 = vunpack.c.l.b16 %v33
  %v232 = vunpack.c.l.b16 %v34
  %v233 = vunpack.c.l.b16 %v35
  %v234 = vunpack.c.l.b16 %v36
  %v235 = vunpack.c.l.b16 %v37
  %v236 = vunpack.c.l.b16 %v38
  %v237 = vunpack.c.l.b16 %v39
  %v238 = vunpack.c.l.b16 %v40
  %v239 = vunpack.c.l.b16 %v41
  %v240 = vunpack.c.l.b16 %v42
  %v241 = vunpack.c.l.b16 %v43
  %v242 = vunpack.c.l.b16 %v44
  %v243 = vunpack.c.l.b16 %v45
  %v244 = vunpack.c.l.b16 %v46
  %v245 = vunpack.c.l.b16 %v47
  %v246 = vunpack.c.l.b16 %v48
  %v247 = vunpack.c.l.b16 %v49
  %v248 = vunpack.c.l.b16 %v50
  %v249 = vunpack.c.l.b16 %v51
  %v250 = vunpack.c.l.b16 %v52
  %v251 = vunpack.c.l.b16 %v53
  %v252 = vunpack.c.l.b16 %v54
  %v253 = vunpack.c.l.b16 %v55
  %v254 = vunpack.c.l.b16 %v56
  %v255 = vunpack.c.l.b16 %v57
  %v256 = vunpack.c.l.b16 %v58
  %v257 = vunpack.c.l.b16 %v59
  %v258 = vunpack.c.l.b16 %v60
  %v259 = vunpack.c.l.b16 %v61
  %v260 = vunpack.c.l.b16 %v62
  %v261 = vunpack.c.l.b16 %v63
  %v262 = vunpack.c.l.b16 %v64
  %v263 = vunpack.c.l.b16 %v65
  %v264 = vunpack.c.l.b16 %v66
  %v265 = vunpack.c.l.b16 %v67
  %v266 = vunpack.c.l.b16 %v68
  %v267 = vunpack.c.l.b16 %v69
  %v268 = vunpack.c.l.b16 %v70
  %v269 = vunpack.c.l.b16 %v71
  %v270 = vunpack.c.l.b16 %v72
  %v271 = vunpack.c.l.b16 %v73
  %v272 = vunpack.c.l.b16 %v74
  %v273 = vunpack.c.l.b16 %v75
  %v274 = vunpack.c.l.b16 %v76
  %v275 = vunpack.c.l.b16 %v77
  %v276 = vunpack.c.l.b16 %v78
  %v277 = vunpack.c.l.b16 %v79
  %v278 = vunpack.c.l.b16 %v80
  %v279 = vunpack.c.l.b16 %v81
  %v280 = vunpack.c.l.b16 %v82
  %v281 = vunpack.c.l.b16 %v83
  %v282 = vunpack.c.l.b16 %v84
  %v283 = vunpack.c.l.b16 %v85
  %v284 = vunpack.c.l.b16 %v86
  %v285 = vunpack.c.l.b16 %v87
  %v286 = vunpack.c.l.b16 %v88
  %v287 = vunpack.c.l.b16 %v89
  %v288 = vunpack.c.l.b16 %v90
  %v289 = vunpack.c.l.b16 %v91
  %v290 = vunpack.c.l.b16 %v92
  %v291 = vunpack.c.l.b16 %v93
  %v292 = vunpack.c.l.b16 %v94
  %v293 = vunpack.c.l.b16 %v95
  %v294 = vunpack.c.l.b16 %v96
  %v295 = vunpack.c.l.b16 %v97
  %v296 = vunpack.c.l.b16 %v98
  %v297 = vpack.c.b16 %v226, %v225
  %v298 = vpack.c.b16 %v228, %v227
  %v299 = vpack.c.b16 %v230, %v229
  %v300 = vpack.c.b16 %v232, %v231
  %v301 = vpack.c.b16 %v234, %v233
  %v302 = vpack.c.b16 %v236, %v235
  %v303 = vpack.c.b16 %v238, %v237
  %v304 = vpack.c.b16 %v240, %v239
  %v305 = vpack.c.b16 %v242, %v241
  %v306 = vpack.c.b16 %v244, %v243
  %v307 = vpack.c.b16 %v246, %v245
  %v308 = vpack.c.b16 %v248, %v247
  %v309 = vpack.c.b16 %v250, %v249
  %v310 = vpack.c.b16 %v252, %v251
  %v311 = vpack.c.b16 %v254, %v253
  %v312 = vpack.c.b16 %v256, %v255
  %v313 = vpack.c.b16 %v258, %v257
  %v314 = vpack.c.b16 %v260, %v259
  %v315 = vpack.c.b16 %v262, %v261
  %v316 = vpack.c.b16 %v264, %v263
  %v317 = vpack.c.b16 %v266, %v265
  %v318 = vpack.c.b16 %v268, %v267
  %v319 = vpack.c.b16 %v270, %v269
  %v320 = vpack.c.b16 %v272, %v271
  %v321 = vpack.c.b16 %v274, %v273
  %v322 = vpack.c.b16 %v276, %v275
  %v323 = vpack.c.b16 %v278, %v277
  %v324 = vpack.c.b16 %v280, %v279
  %v325 = vpack.c.b16 %v282, %v281
  %v326 = vpack.c.b16 %v284, %v283
  %v327 = vpack.c.b16 %v286, %v285
  %v328 = vpack.c.b16 %v288, %v287
  %v329 = vpack.c.b16 %v290, %v289
  %v330 = vpack.c.b16 %v292, %v291
  %v331 = vpack.c.b16 %v294, %v293
  %v332 = vpack.c.b16 %v296, %v295
  %vm369 = vcmask 523264
  %v371 = vsel %vm369, %v139, 0
  %v374 = vsel %vm369, %v144, 0
  %376 = vmatpush.bf16.msra.mxu0 %v304
  %377 = vmatpush.bf16.msra.mxu0 %v303
  %378 = vmatpush.bf16.msra.mxu0 %v302
  %379 = vmatpush.bf16.msra.mxu0 %v301
  %380 = vmatpush.bf16.msra.mxu0 %v300
  %381 = vmatpush.bf16.msra.mxu0 %v299
  %382 = vmatpush.bf16.msra.mxu0 %v298
  %383 = vmatpush.bf16.msra.mxu0 %v297
  %384 = vmatmul.bf16.gmra.mxu0 %v135
  %v385 = vpop.f32.mrf.mxu0
  %v386 = vadd.f32 %v101, %v385
  %v387 = vpop.f32.mrf.mxu0
  %v388 = vadd.f32 %v101, %v387
  %389 = vmatmul.bf16.gmra.mxu0 %v140
  %v390 = vpop.f32.mrf.mxu0
  %v391 = vadd.f32 %v101, %v390
  %v392 = vpop.f32.mrf.mxu0
  %v393 = vadd.f32 %v101, %v392
  %394 = vdwg.mxu0
  %395 = vmatpush.bf16.msra.mxu0 %v312
  %396 = vmatpush.bf16.msra.mxu0 %v311
  %397 = vmatpush.bf16.msra.mxu0 %v310
  %398 = vmatpush.bf16.msra.mxu0 %v309
  %399 = vmatpush.bf16.msra.mxu0 %v308
  %400 = vmatpush.bf16.msra.mxu0 %v307
  %401 = vmatpush.bf16.msra.mxu0 %v306
  %402 = vmatpush.bf16.msra.mxu0 %v305
  %403 = vmatmul.bf16.gmra.mxu0 %v136
  %v404 = vpop.f32.mrf.mxu0
  %v405 = vadd.f32 %v386, %v404
  %v406 = vpop.f32.mrf.mxu0
  %v407 = vadd.f32 %v388, %v406
  %408 = vmatmul.bf16.gmra.mxu0 %v141
  %v409 = vpop.f32.mrf.mxu0
  %v410 = vadd.f32 %v391, %v409
  %v411 = vpop.f32.mrf.mxu0
  %v412 = vadd.f32 %v393, %v411
  %413 = vdwg.mxu0
  %414 = vmatpush.bf16.msra.mxu0 %v320
  %415 = vmatpush.bf16.msra.mxu0 %v319
  %416 = vmatpush.bf16.msra.mxu0 %v318
  %417 = vmatpush.bf16.msra.mxu0 %v317
  %418 = vmatpush.bf16.msra.mxu0 %v316
  %419 = vmatpush.bf16.msra.mxu0 %v315
  %420 = vmatpush.bf16.msra.mxu0 %v314
  %421 = vmatpush.bf16.msra.mxu0 %v313
  %422 = vmatmul.bf16.gmra.mxu0 %v137
  %v423 = vpop.f32.mrf.mxu0
  %v424 = vadd.f32 %v405, %v423
  %v425 = vpop.f32.mrf.mxu0
  %v426 = vadd.f32 %v407, %v425
  %427 = vmatmul.bf16.gmra.mxu0 %v142
  %v428 = vpop.f32.mrf.mxu0
  %v429 = vadd.f32 %v410, %v428
  %v430 = vpop.f32.mrf.mxu0
  %v431 = vadd.f32 %v412, %v430
  %432 = vdwg.mxu0
  %433 = vmatpush.bf16.msra.mxu0 %v328
  %434 = vmatpush.bf16.msra.mxu0 %v327
  %435 = vmatpush.bf16.msra.mxu0 %v326
  %436 = vmatpush.bf16.msra.mxu0 %v325
  %437 = vmatpush.bf16.msra.mxu0 %v324
  %438 = vmatpush.bf16.msra.mxu0 %v323
  %439 = vmatpush.bf16.msra.mxu0 %v322
  %440 = vmatpush.bf16.msra.mxu0 %v321
  %441 = vmatmul.bf16.gmra.mxu0 %v138
  %v442 = vpop.f32.mrf.mxu0
  %v443 = vadd.f32 %v424, %v442
  %v444 = vpop.f32.mrf.mxu0
  %v445 = vadd.f32 %v426, %v444
  %446 = vmatmul.bf16.gmra.mxu0 %v143
  %v447 = vpop.f32.mrf.mxu0
  %v448 = vadd.f32 %v429, %v447
  %v449 = vpop.f32.mrf.mxu0
  %v450 = vadd.f32 %v431, %v449
  %451 = vdwg.mxu0
  %452 = vmatpush.bf16.msra.mxu0 0
  %453 = vmatpush.bf16.msra.mxu0 0
  %454 = vmatpush.bf16.msra.mxu0 0
  %455 = vmatpush.bf16.msra.mxu0 0
  %456 = vmatpush.bf16.msra.mxu0 %v332
  %457 = vmatpush.bf16.msra.mxu0 %v331
  %458 = vmatpush.bf16.msra.mxu0 %v330
  %459 = vmatpush.bf16.msra.mxu0 %v329
  %460 = vmatmul.bf16.gmra.mxu0 %v371
  %v461 = vpop.f32.mrf.mxu0
  %v462 = vadd.f32 %v443, %v461
  %v463 = vpop.f32.mrf.mxu0
  %v464 = vadd.f32 %v445, %v463
  %465 = vmatmul.bf16.gmra.mxu0 %v374
  %v466 = vpop.f32.mrf.mxu0
  %v467 = vadd.f32 %v448, %v466
  %v468 = vpop.f32.mrf.mxu0
  %v469 = vadd.f32 %v450, %v468
  %470 = vdwg.mxu0
  %v471 = vmax.f32 %v462, 0.0
  %v472 = vmax.f32 %v464, 0.0
  %v473 = vmax.f32 %v467, 0.0
  %v474 = vmax.f32 %v469, 0.0
  %v475 = vpack.c.bf16 %v471, %v471
  %v476 = vpack.c.bf16 %v472, %v472
  %v477 = vpack.c.bf16 %v473, %v473
  %v478 = vpack.c.bf16 %v474, %v474
  %vm479 = vcmask 519168
  %480 = vst.msk [vmem:[%s3] sm:$0xf] %vm479, %v475
  %481 = vst.msk [vmem:[%s3 + $0x4] sm:$0xf] %vm479, %v476
  %482 = vst.msk [vmem:[%s3 + $0x8] sm:$0xf] %vm479, %v477
  %483 = vst.msk [vmem:[%s3 + $0xc] sm:$0xf] %vm479, %v478
  // Predicated region
  $region14: #{resnet18_forward.18} parent=0 // pred_check
    _
  $region15: #{resnet18_forward.18} parent=0 // pred_check_branch
    %485 = sbr.rel (0) target = $region17
  $region16: #{resnet18_forward.18} parent=0 // pred_region
    _
  $region17: #{resnet18_forward.18} parent=0 // pred_fallthru
    _
  // Predicated region
  $region18: #{resnet18_forward.18} parent=0 // pred_check
    _
  $region19: #{resnet18_forward.18} parent=0 // pred_check_branch
    %487 = sbr.rel (0) target = $region21
  $region20: #{resnet18_forward.18} parent=0 // pred_region
    _
  $region21: #{resnet18_forward.18} parent=0 // pred_fallthru
    _

// kernel: resnet18_forward.19
$region0: #{resnet18_forward.19}
  #allocation0 [shape = 'u32[]', space=smem, size = 0x4, offset = 0x4, fixed_abs, tag = 'smem constant byte address 0x4 - core index']
  #allocation1 [shape = 'u32[72,128]{1,0:T(1,128)}', space=vmem, size = 0x9000, scoped, tag = 'internal scratch']
  %s0 = inlined_call_operand.vmem [shape: bf16[32,576], index: 0, kind: input, shape index: {}]
  %s1 = inlined_call_operand.vmem [shape: bf16[576,64], index: 1, kind: input, shape index: {}]
  %s2 = inlined_call_operand.vmem [shape: f32[1,64], index: 2, kind: input, shape index: {}]
  %s3 = inlined_call_operand.vmem [shape: bf16[32,64], index: 3, kind: input, shape index: {}]
  %s4 = inlined_call_operand.vmem [shape: bf16[32,64], index: 4, kind: output, shape index: {}]
  %s5 = sld [smem:[#allocation0]]
  $region26: #{resnet18_forward.19} parent=0
    _
  %s7 = ssub.s32 1, %s5
  %s8 = scalar_select 0, %s7, %s5
  // Predicated region
  $region2: #{resnet18_forward.19} parent=0 // pred_check
    _
  $region3: #{resnet18_forward.19} parent=0 // pred_check_branch
    %10 = sbr.rel (0) target = $region5
  $region4: #{resnet18_forward.19} parent=0 // pred_region
    _
  $region5: #{resnet18_forward.19} parent=0 // pred_fallthru
    _
  // Predicated region
  $region6: #{resnet18_forward.19} parent=0 // pred_check
    _
  $region7: #{resnet18_forward.19} parent=0 // pred_check_branch
    %12 = sbr.rel (0) target = $region9
  $region8: #{resnet18_forward.19} parent=0 // pred_region
    _
  $region9: #{resnet18_forward.19} parent=0 // pred_fallthru
    _
  // Predicated region
  $region10: #{resnet18_forward.19} parent=0 // pred_check
    _
  $region11: #{resnet18_forward.19} parent=0 // pred_check_branch
    %14 = sbr.rel (0) target = $region13
  $region12: #{resnet18_forward.19} parent=0 // pred_region
    _
  $region13: #{resnet18_forward.19} parent=0 // pred_fallthru
    _
  // Predicated region
  $region14: #{resnet18_forward.19} parent=0 // pred_check
    _
  $region15: #{resnet18_forward.19} parent=0 // pred_check_branch
    %16 = sbr.rel (0) target = $region17
  $region16: #{resnet18_forward.19} parent=0 // pred_region
    _
  $region17: #{resnet18_forward.19} parent=0 // pred_fallthru
    _
  %v18 = vld [vmem:[%s0] sm:$0xff]
  %v19 = vld [vmem:[%s0 + $0x8] sm:$0xff]
  %v20 = vld [vmem:[%s0 + $0x10] sm:$0xf]
  %v21 = vld [vmem:[%s0 + $0x14] sm:$0xff]
  %v22 = vld [vmem:[%s0 + $0x1c] sm:$0xff]
  %v23 = vld [vmem:[%s0 + $0x24] sm:$0xf]
  %v24 = vld [vmem:[%s0 + $0x28] sm:$0xff]
  %v25 = vld [vmem:[%s0 + $0x30] sm:$0xff]
  %v26 = vld [vmem:[%s0 + $0x38] sm:$0xf]
  %v27 = vld [vmem:[%s0 + $0x3c] sm:$0xff]
  %v28 = vld [vmem:[%s0 + $0x44] sm:$0xff]
  %v29 = vld [vmem:[%s0 + $0x4c] sm:$0xf]
  %v30 = vld [vmem:[%s1] sm:$0xf]
  %v31 = vld [vmem:[%s1 + $0x4] sm:$0xf]
  %v32 = vld [vmem:[%s1 + $0x8] sm:$0xf]
  %v33 = vld [vmem:[%s1 + $0xc] sm:$0xf]
  %v34 = vld [vmem:[%s1 + $0x10] sm:$0xf]
  %v35 = vld [vmem:[%s1 + $0x14] sm:$0xf]
  %v36 = vld [vmem:[%s1 + $0x18] sm:$0xf]
  %v37 = vld [vmem:[%s1 + $0x1c] sm:$0xf]
  %v38 = vld [vmem:[%s1 + $0x20] sm:$0xf]
  %v39 = vld [vmem:[%s1 + $0x24] sm:$0xf]
  %v40 = vld [vmem:[%s1 + $0x28] sm:$0xf]
  %v41 = vld [vmem:[%s1 + $0x2c] sm:$0xf]
  %v42 = vld [vmem:[%s1 + $0x30] sm:$0xf]
  %v43 = vld [vmem:[%s1 + $0x34] sm:$0xf]
  %v44 = vld [vmem:[%s1 + $0x38] sm:$0xf]
  %v45 = vld [vmem:[%s1 + $0x3c] sm:$0xf]
  %v46 = vld [vmem:[%s1 + $0x40] sm:$0xf]
  %v47 = vld [vmem:[%s1 + $0x44] sm:$0xf]
  %v48 = vld [vmem:[%s1 + $0x48] sm:$0xf]
  %v49 = vld [vmem:[%s1 + $0x4c] sm:$0xf]
  %v50 = vld [vmem:[%s1 + $0x50] sm:$0xf]
  %v51 = vld [vmem:[%s1 + $0x54] sm:$0xf]
  %v52 = vld [vmem:[%s1 + $0x58] sm:$0xf]
  %v53 = vld [vmem:[%s1 + $0x5c] sm:$0xf]
  %v54 = vld [vmem:[%s1 + $0x60] sm:$0xf]
  %v55 = vld [vmem:[%s1 + $0x64] sm:$0xf]
  %v56 = vld [vmem:[%s1 + $0x68] sm:$0xf]
  %v57 = vld [vmem:[%s1 + $0x6c] sm:$0xf]
  %v58 = vld [vmem:[%s1 + $0x70] sm:$0xf]
  %v59 = vld [vmem:[%s1 + $0x74] sm:$0xf]
  %v60 = vld [vmem:[%s1 + $0x78] sm:$0xf]
  %v61 = vld [vmem:[%s1 + $0x7c] sm:$0xf]
  %v62 = vld [vmem:[%s1 + $0x80] sm:$0xf]
  %v63 = vld [vmem:[%s1 + $0x84] sm:$0xf]
  %v64 = vld [vmem:[%s1 + $0x88] sm:$0xf]
  %v65 = vld [vmem:[%s1 + $0x8c] sm:$0xf]
  %v66 = vld [vmem:[%s1 + $0x90] sm:$0xf]
  %v67 = vld [vmem:[%s1 + $0x94] sm:$0xf]
  %v68 = vld [vmem:[%s1 + $0x98] sm:$0xf]
  %v69 = vld [vmem:[%s1 + $0x9c] sm:$0xf]
  %v70 = vld [vmem:[%s1 + $0xa0] sm:$0xf]
  %v71 = vld [vmem:[%s1 + $0xa4] sm:$0xf]
  %v72 = vld [vmem:[%s1 + $0xa8] sm:$0xf]
  %v73 = vld [vmem:[%s1 + $0xac] sm:$0xf]
  %v74 = vld [vmem:[%s1 + $0xb0] sm:$0xf]
  %v75 = vld [vmem:[%s1 + $0xb4] sm:$0xf]
  %v76 = vld [vmem:[%s1 + $0xb8] sm:$0xf]
  %v77 = vld [vmem:[%s1 + $0xbc] sm:$0xf]
  %v78 = vld [vmem:[%s1 + $0xc0] sm:$0xf]
  %v79 = vld [vmem:[%s1 + $0xc4] sm:$0xf]
  %v80 = vld [vmem:[%s1 + $0xc8] sm:$0xf]
  %v81 = vld [vmem:[%s1 + $0xcc] sm:$0xf]
  %v82 = vld [vmem:[%s1 + $0xd0] sm:$0xf]
  %v83 = vld [vmem:[%s1 + $0xd4] sm:$0xf]
  %v84 = vld [vmem:[%s1 + $0xd8] sm:$0xf]
  %v85 = vld [vmem:[%s1 + $0xdc] sm:$0xf]
  %v86 = vld [vmem:[%s1 + $0xe0] sm:$0xf]
  %v87 = vld [vmem:[%s1 + $0xe4] sm:$0xf]
  %v88 = vld [vmem:[%s1 + $0xe8] sm:$0xf]
  %v89 = vld [vmem:[%s1 + $0xec] sm:$0xf]
  %v90 = vld [vmem:[%s1 + $0xf0] sm:$0xf]
  %v91 = vld [vmem:[%s1 + $0xf4] sm:$0xf]
  %v92 = vld [vmem:[%s1 + $0xf8] sm:$0xf]
  %v93 = vld [vmem:[%s1 + $0xfc] sm:$0xf]
  %v94 = vld [vmem:[%s1 + $0x100] sm:$0xf]
  %v95 = vld [vmem:[%s1 + $0x104] sm:$0xf]
  %v96 = vld [vmem:[%s1 + $0x108] sm:$0xf]
  %v97 = vld [vmem:[%s1 + $0x10c] sm:$0xf]
  %v98 = vld [vmem:[%s1 + $0x110] sm:$0xf]
  %v99 = vld [vmem:[%s1 + $0x114] sm:$0xf]
  %v100 = vld [vmem:[%s1 + $0x118] sm:$0xf]
  %v101 = vld [vmem:[%s1 + $0x11c] sm:$0xf]
  %v102 = vld [vmem:[%s2] sm:$0x1]
  %v104 = vperm.slane %v102, 0
  %v118 = vunpack.c.l.b16 %v18
  %v119 = vunpack.c.h.b16 %v18
  %v120 = vunpack.c.l.b16 %v19
  %v121 = vunpack.c.h.b16 %v19
  %v122 = vunpack.c.l.b16 %v20
  %v123 = vunpack.c.l.b16 %v21
  %v124 = vunpack.c.h.b16 %v21
  %v125 = vunpack.c.l.b16 %v22
  %v126 = vunpack.c.h.b16 %v22
  %v127 = vunpack.c.l.b16 %v23
  %v128 = vunpack.c.l.b16 %v24
  %v129 = vunpack.c.h.b16 %v24
  %v130 = vunpack.c.l.b16 %v25
  %v131 = vunpack.c.h.b16 %v25
  %v132 = vunpack.c.l.b16 %v26
  %v133 = vunpack.c.l.b16 %v27
  %v134 = vunpack.c.h.b16 %v27
  %v135 = vunpack.c.l.b16 %v28
  %v136 = vunpack.c.h.b16 %v28
  %v137 = vunpack.c.l.b16 %v29
  %v138 = vpack.c.b16 %v123, %v118
  %v139 = vpack.c.b16 %v124, %v119
  %v140 = vpack.c.b16 %v125, %v120
  %v141 = vpack.c.b16 %v126, %v121
  %v142 = vpack.c.b16 %v127, %v122
  %v143 = vpack.c.b16 %v133, %v128
  %v144 = vpack.c.b16 %v134, %v129
  %v145 = vpack.c.b16 %v135, %v130
  %v146 = vpack.c.b16 %v136, %v131
  %v147 = vpack.c.b16 %v137, %v132
  %v228 = vunpack.c.l.b16 %v30
  %v229 = vunpack.c.l.b16 %v31
  %v230 = vunpack.c.l.b16 %v32
  %v231 = vunpack.c.l.b16 %v33
  %v232 = vunpack.c.l.b16 %v34
  %v233 = vunpack.c.l.b16 %v35
  %v234 = vunpack.c.l.b16 %v36
  %v235 = vunpack.c.l.b16 %v37
  %v236 = vunpack.c.l.b16 %v38
  %v237 = vunpack.c.l.b16 %v39
  %v238 = vunpack.c.l.b16 %v40
  %v239 = vunpack.c.l.b16 %v41
  %v240 = vunpack.c.l.b16 %v42
  %v241 = vunpack.c.l.b16 %v43
  %v242 = vunpack.c.l.b16 %v44
  %v243 = vunpack.c.l.b16 %v45
  %v244 = vunpack.c.l.b16 %v46
  %v245 = vunpack.c.l.b16 %v47
  %v246 = vunpack.c.l.b16 %v48
  %v247 = vunpack.c.l.b16 %v49
  %v248 = vunpack.c.l.b16 %v50
  %v249 = vunpack.c.l.b16 %v51
  %v250 = vunpack.c.l.b16 %v52
  %v251 = vunpack.c.l.b16 %v53
  %v252 = vunpack.c.l.b16 %v54
  %v253 = vunpack.c.l.b16 %v55
  %v254 = vunpack.c.l.b16 %v56
  %v255 = vunpack.c.l.b16 %v57
  %v256 = vunpack.c.l.b16 %v58
  %v257 = vunpack.c.l.b16 %v59
  %v258 = vunpack.c.l.b16 %v60
  %v259 = vunpack.c.l.b16 %v61
  %v260 = vunpack.c.l.b16 %v62
  %v261 = vunpack.c.l.b16 %v63
  %v262 = vunpack.c.l.b16 %v64
  %v263 = vunpack.c.l.b16 %v65
  %v264 = vunpack.c.l.b16 %v66
  %v265 = vunpack.c.l.b16 %v67
  %v266 = vunpack.c.l.b16 %v68
  %v267 = vunpack.c.l.b16 %v69
  %v268 = vunpack.c.l.b16 %v70
  %v269 = vunpack.c.l.b16 %v71
  %v270 = vunpack.c.l.b16 %v72
  %v271 = vunpack.c.l.b16 %v73
  %v272 = vunpack.c.l.b16 %v74
  %v273 = vunpack.c.l.b16 %v75
  %v274 = vunpack.c.l.b16 %v76
  %v275 = vunpack.c.l.b16 %v77
  %v276 = vunpack.c.l.b16 %v78
  %v277 = vunpack.c.l.b16 %v79
  %v278 = vunpack.c.l.b16 %v80
  %v279 = vunpack.c.l.b16 %v81
  %v280 = vunpack.c.l.b16 %v82
  %v281 = vunpack.c.l.b16 %v83
  %v282 = vunpack.c.l.b16 %v84
  %v283 = vunpack.c.l.b16 %v85
  %v284 = vunpack.c.l.b16 %v86
  %v285 = vunpack.c.l.b16 %v87
  %v286 = vunpack.c.l.b16 %v88
  %v287 = vunpack.c.l.b16 %v89
  %v288 = vunpack.c.l.b16 %v90
  %v289 = vunpack.c.l.b16 %v91
  %v290 = vunpack.c.l.b16 %v92
  %v291 = vunpack.c.l.b16 %v93
  %v292 = vunpack.c.l.b16 %v94
  %v293 = vunpack.c.l.b16 %v95
  %v294 = vunpack.c.l.b16 %v96
  %v295 = vunpack.c.l.b16 %v97
  %v296 = vunpack.c.l.b16 %v98
  %v297 = vunpack.c.l.b16 %v99
  %v298 = vunpack.c.l.b16 %v100
  %v299 = vunpack.c.l.b16 %v101
  %v300 = vpack.c.b16 %v229, %v228
  %v301 = vpack.c.b16 %v231, %v230
  %v302 = vpack.c.b16 %v233, %v232
  %v303 = vpack.c.b16 %v235, %v234
  %v304 = vpack.c.b16 %v237, %v236
  %v305 = vpack.c.b16 %v239, %v238
  %v306 = vpack.c.b16 %v241, %v240
  %v307 = vpack.c.b16 %v243, %v242
  %v308 = vpack.c.b16 %v245, %v244
  %v309 = vpack.c.b16 %v247, %v246
  %v310 = vpack.c.b16 %v249, %v248
  %v311 = vpack.c.b16 %v251, %v250
  %v312 = vpack.c.b16 %v253, %v252
  %v313 = vpack.c.b16 %v255, %v254
  %v314 = vpack.c.b16 %v257, %v256
  %v315 = vpack.c.b16 %v259, %v258
  %v316 = vpack.c.b16 %v261, %v260
  %v317 = vpack.c.b16 %v263, %v262
  %v318 = vpack.c.b16 %v265, %v264
  %v319 = vpack.c.b16 %v267, %v266
  %v320 = vpack.c.b16 %v269, %v268
  %v321 = vpack.c.b16 %v271, %v270
  %v322 = vpack.c.b16 %v273, %v272
  %v323 = vpack.c.b16 %v275, %v274
  %v324 = vpack.c.b16 %v277, %v276
  %v325 = vpack.c.b16 %v279, %v278
  %v326 = vpack.c.b16 %v281, %v280
  %v327 = vpack.c.b16 %v283, %v282
  %v328 = vpack.c.b16 %v285, %v284
  %v329 = vpack.c.b16 %v287, %v286
  %v330 = vpack.c.b16 %v289, %v288
  %v331 = vpack.c.b16 %v291, %v290
  %v332 = vpack.c.b16 %v293, %v292
  %v333 = vpack.c.b16 %v295, %v294
  %v334 = vpack.c.b16 %v297, %v296
  %v335 = vpack.c.b16 %v299, %v298
  %vm372 = vcmask 523264
  %v374 = vsel %vm372, %v142, 0
  %v377 = vsel %vm372, %v147, 0
  %379 = vmatpush.bf16.msra.mxu0 %v307
  %380 = vmatpush.bf16.msra.mxu0 %v306
  %381 = vmatpush.bf16.msra.mxu0 %v305
  %382 = vmatpush.bf16.msra.mxu0 %v304
  %383 = vmatpush.bf16.msra.mxu0 %v303
  %384 = vmatpush.bf16.msra.mxu0 %v302
  %385 = vmatpush.bf16.msra.mxu0 %v301
  %386 = vmatpush.bf16.msra.mxu0 %v300
  %387 = vmatmul.bf16.gmra.mxu0 %v138
  %v388 = vpop.f32.mrf.mxu0
  %v389 = vadd.f32 %v104, %v388
  %v390 = vpop.f32.mrf.mxu0
  %v391 = vadd.f32 %v104, %v390
  %392 = vmatmul.bf16.gmra.mxu0 %v143
  %v393 = vpop.f32.mrf.mxu0
  %v394 = vadd.f32 %v104, %v393
  %v395 = vpop.f32.mrf.mxu0
  %v396 = vadd.f32 %v104, %v395
  %397 = vdwg.mxu0
  %398 = vmatpush.bf16.msra.mxu0 %v315
  %399 = vmatpush.bf16.msra.mxu0 %v314
  %400 = vmatpush.bf16.msra.mxu0 %v313
  %401 = vmatpush.bf16.msra.mxu0 %v312
  %402 = vmatpush.bf16.msra.mxu0 %v311
  %403 = vmatpush.bf16.msra.mxu0 %v310
  %404 = vmatpush.bf16.msra.mxu0 %v309
  %405 = vmatpush.bf16.msra.mxu0 %v308
  %406 = vmatmul.bf16.gmra.mxu0 %v139
  %v407 = vpop.f32.mrf.mxu0
  %v408 = vadd.f32 %v389, %v407
  %v409 = vpop.f32.mrf.mxu0
  %v410 = vadd.f32 %v391, %v409
  %411 = vmatmul.bf16.gmra.mxu0 %v144
  %v412 = vpop.f32.mrf.mxu0
  %v413 = vadd.f32 %v394, %v412
  %v414 = vpop.f32.mrf.mxu0
  %v415 = vadd.f32 %v396, %v414
  %416 = vdwg.mxu0
  %417 = vmatpush.bf16.msra.mxu0 %v323
  %418 = vmatpush.bf16.msra.mxu0 %v322
  %419 = vmatpush.bf16.msra.mxu0 %v321
  %420 = vmatpush.bf16.msra.mxu0 %v320
  %421 = vmatpush.bf16.msra.mxu0 %v319
  %422 = vmatpush.bf16.msra.mxu0 %v318
  %423 = vmatpush.bf16.msra.mxu0 %v317
  %424 = vmatpush.bf16.msra.mxu0 %v316
  %425 = vmatmul.bf16.gmra.mxu0 %v140
  %v426 = vpop.f32.mrf.mxu0
  %v427 = vadd.f32 %v408, %v426
  %v428 = vpop.f32.mrf.mxu0
  %v429 = vadd.f32 %v410, %v428
  %430 = vmatmul.bf16.gmra.mxu0 %v145
  %v431 = vpop.f32.mrf.mxu0
  %v432 = vadd.f32 %v413, %v431
  %v433 = vpop.f32.mrf.mxu0
  %v434 = vadd.f32 %v415, %v433
  %435 = vdwg.mxu0
  %436 = vmatpush.bf16.msra.mxu0 %v331
  %437 = vmatpush.bf16.msra.mxu0 %v330
  %438 = vmatpush.bf16.msra.mxu0 %v329
  %439 = vmatpush.bf16.msra.mxu0 %v328
  %440 = vmatpush.bf16.msra.mxu0 %v327
  %441 = vmatpush.bf16.msra.mxu0 %v326
  %442 = vmatpush.bf16.msra.mxu0 %v325
  %443 = vmatpush.bf16.msra.mxu0 %v324
  %444 = vmatmul.bf16.gmra.mxu0 %v141
  %v445 = vpop.f32.mrf.mxu0
  %v446 = vadd.f32 %v427, %v445
  %v447 = vpop.f32.mrf.mxu0
  %v448 = vadd.f32 %v429, %v447
  %449 = vmatmul.bf16.gmra.mxu0 %v146
  %v450 = vpop.f32.mrf.mxu0
  %v451 = vadd.f32 %v432, %v450
  %v452 = vpop.f32.mrf.mxu0
  %v453 = vadd.f32 %v434, %v452
  %454 = vdwg.mxu0
  %455 = vmatpush.bf16.msra.mxu0 0
  %456 = vmatpush.bf16.msra.mxu0 0
  %457 = vmatpush.bf16.msra.mxu0 0
  %458 = vmatpush.bf16.msra.mxu0 0
  %459 = vmatpush.bf16.msra.mxu0 %v335
  %460 = vmatpush.bf16.msra.mxu0 %v334
  %461 = vmatpush.bf16.msra.mxu0 %v333
  %462 = vmatpush.bf16.msra.mxu0 %v332
  %463 = vmatmul.bf16.gmra.mxu0 %v374
  %v464 = vpop.f32.mrf.mxu0
  %v465 = vadd.f32 %v446, %v464
  %v466 = vpop.f32.mrf.mxu0
  %v467 = vadd.f32 %v448, %v466
  %468 = vmatmul.bf16.gmra.mxu0 %v377
  %v469 = vpop.f32.mrf.mxu0
  %v470 = vadd.f32 %v451, %v469
  %v471 = vpop.f32.mrf.mxu0
  %v472 = vadd.f32 %v453, %v471
  %473 = vdwg.mxu0
  %v474 = vld [vmem:[%s3] sm:$0xf]
  %v475 = vld [vmem:[%s3 + $0x4] sm:$0xf]
  %v476 = vld [vmem:[%s3 + $0x8] sm:$0xf]
  %v477 = vld [vmem:[%s3 + $0xc] sm:$0xf]
  %v478 = vunpack.c.l.bf16 %v474
  %v479 = vunpack.c.l.bf16 %v475
  %v480 = vunpack.c.l.bf16 %v476
  %v481 = vunpack.c.l.bf16 %v477
  %v482 = vadd.f32 %v465, %v478
  %v483 = vadd.f32 %v467, %v479
  %v484 = vadd.f32 %v470, %v480
  %v485 = vadd.f32 %v472, %v481
  %v486 = vmax.f32 %v482, 0.0
  %v487 = vmax.f32 %v483, 0.0
  %v488 = vmax.f32 %v484, 0.0
  %v489 = vmax.f32 %v485, 0.0
  %v490 = vpack.c.bf16 %v486, %v486
  %v491 = vpack.c.bf16 %v487, %v487
  %v492 = vpack.c.bf16 %v488, %v488
  %v493 = vpack.c.bf16 %v489, %v489
  %vm494 = vcmask 519168
  %495 = vst.msk [vmem:[%s4] sm:$0xf] %vm494, %v490
  %496 = vst.msk [vmem:[%s4 + $0x4] sm:$0xf] %vm494, %v491
  %497 = vst.msk [vmem:[%s4 + $0x8] sm:$0xf] %vm494, %v492
  %498 = vst.msk [vmem:[%s4 + $0xc] sm:$0xf] %vm494, %v493
  // Predicated region
  $region18: #{resnet18_forward.19} parent=0 // pred_check
    _
  $region19: #{resnet18_forward.19} parent=0 // pred_check_branch
    %500 = sbr.rel (0) target = $region21
  $region20: #{resnet18_forward.19} parent=0 // pred_region
    _
  $region21: #{resnet18_forward.19} parent=0 // pred_fallthru
    _
  // Predicated region
  $region22: #{resnet18_forward.19} parent=0 // pred_check
    _
  $region23: #{resnet18_forward.19} parent=0 // pred_check_branch
    %502 = sbr.rel (0) target = $region25
  $region24: #{resnet18_forward.19} parent=0 // pred_region
    _
  $region25: #{resnet18_forward.19} parent=0 // pred_fallthru
    _

// kernel: resnet18_forward.23
$region0: #{resnet18_forward.23}
  #allocation0 [shape = 'u32[]', space=smem, size = 0x4, offset = 0x4, fixed_abs, tag = 'smem constant byte address 0x4 - core index']
  #allocation1 [shape = 'u32[72,128]{1,0:T(1,128)}', space=vmem, size = 0x9000, scoped, tag = 'internal scratch']
  %s0 = inlined_call_operand.vmem [shape: bf16[8,576], index: 0, kind: input, shape index: {}]
  %s1 = inlined_call_operand.vmem [shape: bf16[576,128], index: 1, kind: input, shape index: {}]
  %s2 = inlined_call_operand.vmem [shape: f32[1,128], index: 2, kind: input, shape index: {}]
  %s3 = inlined_call_operand.vmem [shape: bf16[8,128], index: 3, kind: output, shape index: {}]
  %s4 = sld [smem:[#allocation0]]
  $region22: #{resnet18_forward.23} parent=0
    _
  %s6 = ssub.s32 1, %s4
  %s7 = scalar_select 0, %s6, %s4
  // Predicated region
  $region2: #{resnet18_forward.23} parent=0 // pred_check
    _
  $region3: #{resnet18_forward.23} parent=0 // pred_check_branch
    %9 = sbr.rel (0) target = $region5
  $region4: #{resnet18_forward.23} parent=0 // pred_region
    _
  $region5: #{resnet18_forward.23} parent=0 // pred_fallthru
    _
  // Predicated region
  $region6: #{resnet18_forward.23} parent=0 // pred_check
    _
  $region7: #{resnet18_forward.23} parent=0 // pred_check_branch
    %11 = sbr.rel (0) target = $region9
  $region8: #{resnet18_forward.23} parent=0 // pred_region
    _
  $region9: #{resnet18_forward.23} parent=0 // pred_fallthru
    _
  // Predicated region
  $region10: #{resnet18_forward.23} parent=0 // pred_check
    _
  $region11: #{resnet18_forward.23} parent=0 // pred_check_branch
    %13 = sbr.rel (0) target = $region13
  $region12: #{resnet18_forward.23} parent=0 // pred_region
    _
  $region13: #{resnet18_forward.23} parent=0 // pred_fallthru
    _
  %v15 = vld [vmem:[%s0] sm:$0xff]
  %v16 = vld [vmem:[%s0 + $0x8] sm:$0xff]
  %v17 = vld [vmem:[%s0 + $0x10] sm:$0xf]
  %v18 = vld [vmem:[%s1] sm:$0xf]
  %v19 = vld [vmem:[%s1 + $0x4] sm:$0xf]
  %v20 = vld [vmem:[%s1 + $0x8] sm:$0xf]
  %v21 = vld [vmem:[%s1 + $0xc] sm:$0xf]
  %v22 = vld [vmem:[%s1 + $0x10] sm:$0xf]
  %v23 = vld [vmem:[%s1 + $0x14] sm:$0xf]
  %v24 = vld [vmem:[%s1 + $0x18] sm:$0xf]
  %v25 = vld [vmem:[%s1 + $0x1c] sm:$0xf]
  %v26 = vld [vmem:[%s1 + $0x20] sm:$0xf]
  %v27 = vld [vmem:[%s1 + $0x24] sm:$0xf]
  %v28 = vld [vmem:[%s1 + $0x28] sm:$0xf]
  %v29 = vld [vmem:[%s1 + $0x2c] sm:$0xf]
  %v30 = vld [vmem:[%s1 + $0x30] sm:$0xf]
  %v31 = vld [vmem:[%s1 + $0x34] sm:$0xf]
  %v32 = vld [vmem:[%s1 + $0x38] sm:$0xf]
  %v33 = vld [vmem:[%s1 + $0x3c] sm:$0xf]
  %v34 = vld [vmem:[%s1 + $0x40] sm:$0xf]
  %v35 = vld [vmem:[%s1 + $0x44] sm:$0xf]
  %v36 = vld [vmem:[%s1 + $0x48] sm:$0xf]
  %v37 = vld [vmem:[%s1 + $0x4c] sm:$0xf]
  %v38 = vld [vmem:[%s1 + $0x50] sm:$0xf]
  %v39 = vld [vmem:[%s1 + $0x54] sm:$0xf]
  %v40 = vld [vmem:[%s1 + $0x58] sm:$0xf]
  %v41 = vld [vmem:[%s1 + $0x5c] sm:$0xf]
  %v42 = vld [vmem:[%s1 + $0x60] sm:$0xf]
  %v43 = vld [vmem:[%s1 + $0x64] sm:$0xf]
  %v44 = vld [vmem:[%s1 + $0x68] sm:$0xf]
  %v45 = vld [vmem:[%s1 + $0x6c] sm:$0xf]
  %v46 = vld [vmem:[%s1 + $0x70] sm:$0xf]
  %v47 = vld [vmem:[%s1 + $0x74] sm:$0xf]
  %v48 = vld [vmem:[%s1 + $0x78] sm:$0xf]
  %v49 = vld [vmem:[%s1 + $0x7c] sm:$0xf]
  %v50 = vld [vmem:[%s1 + $0x80] sm:$0xf]
  %v51 = vld [vmem:[%s1 + $0x84] sm:$0xf]
  %v52 = vld [vmem:[%s1 + $0x88] sm:$0xf]
  %v53 = vld [vmem:[%s1 + $0x8c] sm:$0xf]
  %v54 = vld [vmem:[%s1 + $0x90] sm:$0xf]
  %v55 = vld [vmem:[%s1 + $0x94] sm:$0xf]
  %v56 = vld [vmem:[%s1 + $0x98] sm:$0xf]
  %v57 = vld [vmem:[%s1 + $0x9c] sm:$0xf]
  %v58 = vld [vmem:[%s1 + $0xa0] sm:$0xf]
  %v59 = vld [vmem:[%s1 + $0xa4] sm:$0xf]
  %v60 = vld [vmem:[%s1 + $0xa8] sm:$0xf]
  %v61 = vld [vmem:[%s1 + $0xac] sm:$0xf]
  %v62 = vld [vmem:[%s1 + $0xb0] sm:$0xf]
  %v63 = vld [vmem:[%s1 + $0xb4] sm:$0xf]
  %v64 = vld [vmem:[%s1 + $0xb8] sm:$0xf]
  %v65 = vld [vmem:[%s1 + $0xbc] sm:$0xf]
  %v66 = vld [vmem:[%s1 + $0xc0] sm:$0xf]
  %v67 = vld [vmem:[%s1 + $0xc4] sm:$0xf]
  %v68 = vld [vmem:[%s1 + $0xc8] sm:$0xf]
  %v69 = vld [vmem:[%s1 + $0xcc] sm:$0xf]
  %v70 = vld [vmem:[%s1 + $0xd0] sm:$0xf]
  %v71 = vld [vmem:[%s1 + $0xd4] sm:$0xf]
  %v72 = vld [vmem:[%s1 + $0xd8] sm:$0xf]
  %v73 = vld [vmem:[%s1 + $0xdc] sm:$0xf]
  %v74 = vld [vmem:[%s1 + $0xe0] sm:$0xf]
  %v75 = vld [vmem:[%s1 + $0xe4] sm:$0xf]
  %v76 = vld [vmem:[%s1 + $0xe8] sm:$0xf]
  %v77 = vld [vmem:[%s1 + $0xec] sm:$0xf]
  %v78 = vld [vmem:[%s1 + $0xf0] sm:$0xf]
  %v79 = vld [vmem:[%s1 + $0xf4] sm:$0xf]
  %v80 = vld [vmem:[%s1 + $0xf8] sm:$0xf]
  %v81 = vld [vmem:[%s1 + $0xfc] sm:$0xf]
  %v82 = vld [vmem:[%s1 + $0x100] sm:$0xf]
  %v83 = vld [vmem:[%s1 + $0x104] sm:$0xf]
  %v84 = vld [vmem:[%s1 + $0x108] sm:$0xf]
  %v85 = vld [vmem:[%s1 + $0x10c] sm:$0xf]
  %v86 = vld [vmem:[%s1 + $0x110] sm:$0xf]
  %v87 = vld [vmem:[%s1 + $0x114] sm:$0xf]
  %v88 = vld [vmem:[%s1 + $0x118] sm:$0xf]
  %v89 = vld [vmem:[%s1 + $0x11c] sm:$0xf]
  %v90 = vld [vmem:[%s2] sm:$0x1]
  %v92 = vperm.slane %v90, 0
  %v97 = vunpack.c.l.b16 %v15
  %v98 = vunpack.c.h.b16 %v15
  %v99 = vunpack.c.l.b16 %v16
  %v100 = vunpack.c.h.b16 %v16
  %v101 = vunpack.c.l.b16 %v17
  %v102 = vpack.c.b16 %v97, %v97
  %v103 = vpack.c.b16 %v98, %v98
  %v104 = vpack.c.b16 %v99, %v99
  %v105 = vpack.c.b16 %v100, %v100
  %v106 = vpack.c.b16 %v101, %v101
  %v183 = vunpack.c.l.b16 %v18
  %v184 = vunpack.c.l.b16 %v19
  %v185 = vunpack.c.l.b16 %v20
  %v186 = vunpack.c.l.b16 %v21
  %v187 = vunpack.c.l.b16 %v22
  %v188 = vunpack.c.l.b16 %v23
  %v189 = vunpack.c.l.b16 %v24
  %v190 = vunpack.c.l.b16 %v25
  %v191 = vunpack.c.l.b16 %v26
  %v192 = vunpack.c.l.b16 %v27
  %v193 = vunpack.c.l.b16 %v28
  %v194 = vunpack.c.l.b16 %v29
  %v195 = vunpack.c.l.b16 %v30
  %v196 = vunpack.c.l.b16 %v31
  %v197 = vunpack.c.l.b16 %v32
  %v198 = vunpack.c.l.b16 %v33
  %v199 = vunpack.c.l.b16 %v34
  %v200 = vunpack.c.l.b16 %v35
  %v201 = vunpack.c.l.b16 %v36
  %v202 = vunpack.c.l.b16 %v37
  %v203 = vunpack.c.l.b16 %v38
  %v204 = vunpack.c.l.b16 %v39
  %v205 = vunpack.c.l.b16 %v40
  %v206 = vunpack.c.l.b16 %v41
  %v207 = vunpack.c.l.b16 %v42
  %v208 = vunpack.c.l.b16 %v43
  %v209 = vunpack.c.l.b16 %v44
  %v210 = vunpack.c.l.b16 %v45
  %v211 = vunpack.c.l.b16 %v46
  %v212 = vunpack.c.l.b16 %v47
  %v213 = vunpack.c.l.b16 %v48
  %v214 = vunpack.c.l.b16 %v49
  %v215 = vunpack.c.l.b16 %v50
  %v216 = vunpack.c.l.b16 %v51
  %v217 = vunpack.c.l.b16 %v52
  %v218 = vunpack.c.l.b16 %v53
  %v219 = vunpack.c.l.b16 %v54
  %v220 = vunpack.c.l.b16 %v55
  %v221 = vunpack.c.l.b16 %v56
  %v222 = vunpack.c.l.b16 %v57
  %v223 = vunpack.c.l.b16 %v58
  %v224 = vunpack.c.l.b16 %v59
  %v225 = vunpack.c.l.b16 %v60
  %v226 = vunpack.c.l.b16 %v61
  %v227 = vunpack.c.l.b16 %v62
  %v228 = vunpack.c.l.b16 %v63
  %v229 = vunpack.c.l.b16 %v64
  %v230 = vunpack.c.l.b16 %v65
  %v231 = vunpack.c.l.b16 %v66
  %v232 = vunpack.c.l.b16 %v67
  %v233 = vunpack.c.l.b16 %v68
  %v234 = vunpack.c.l.b16 %v69
  %v235 = vunpack.c.l.b16 %v70
  %v236 = vunpack.c.l.b16 %v71
  %v237 = vunpack.c.l.b16 %v72
  %v238 = vunpack.c.l.b16 %v73
  %v239 = vunpack.c.l.b16 %v74
  %v240 = vunpack.c.l.b16 %v75
  %v241 = vunpack.c.l.b16 %v76
  %v242 = vunpack.c.l.b16 %v77
  %v243 = vunpack.c.l.b16 %v78
  %v244 = vunpack.c.l.b16 %v79
  %v245 = vunpack.c.l.b16 %v80
  %v246 = vunpack.c.l.b16 %v81
  %v247 = vunpack.c.l.b16 %v82
  %v248 = vunpack.c.l.b16 %v83
  %v249 = vunpack.c.l.b16 %v84
  %v250 = vunpack.c.l.b16 %v85
  %v251 = vunpack.c.l.b16 %v86
  %v252 = vunpack.c.l.b16 %v87
  %v253 = vunpack.c.l.b16 %v88
  %v254 = vunpack.c.l.b16 %v89
  %v255 = vpack.c.b16 %v184, %v183
  %v256 = vpack.c.b16 %v186, %v185
  %v257 = vpack.c.b16 %v188, %v187
  %v258 = vpack.c.b16 %v190, %v189
  %v259 = vpack.c.b16 %v192, %v191
  %v260 = vpack.c.b16 %v194, %v193
  %v261 = vpack.c.b16 %v196, %v195
  %v262 = vpack.c.b16 %v198, %v197
  %v263 = vpack.c.b16 %v200, %v199
  %v264 = vpack.c.b16 %v202, %v201
  %v265 = vpack.c.b16 %v204, %v203
  %v266 = vpack.c.b16 %v206, %v205
  %v267 = vpack.c.b16 %v208, %v207
  %v268 = vpack.c.b16 %v210, %v209
  %v269 = vpack.c.b16 %v212, %v211
  %v270 = vpack.c.b16 %v214, %v213
  %v271 = vpack.c.b16 %v216, %v215
  %v272 = vpack.c.b16 %v218, %v217
  %v273 = vpack.c.b16 %v220, %v219
  %v274 = vpack.c.b16 %v222, %v221
  %v275 = vpack.c.b16 %v224, %v223
  %v276 = vpack.c.b16 %v226, %v225
  %v277 = vpack.c.b16 %v228, %v227
  %v278 = vpack.c.b16 %v230, %v229
  %v279 = vpack.c.b16 %v232, %v231
  %v280 = vpack.c.b16 %v234, %v233
  %v281 = vpack.c.b16 %v236, %v235
  %v282 = vpack.c.b16 %v238, %v237
  %v283 = vpack.c.b16 %v240, %v239
  %v284 = vpack.c.b16 %v242, %v241
  %v285 = vpack.c.b16 %v244, %v243
  %v286 = vpack.c.b16 %v246, %v245
  %v287 = vpack.c.b16 %v248, %v247
  %v288 = vpack.c.b16 %v250, %v249
  %v289 = vpack.c.b16 %v252, %v251
  %v290 = vpack.c.b16 %v254, %v253
  %vm327 = vcmask 523264
  %v329 = vsel %vm327, %v106, 0
  %331 = vmatpush.bf16.msra.mxu0 %v262
  %332 = vmatpush.bf16.msra.mxu0 %v261
  %333 = vmatpush.bf16.msra.mxu0 %v260
  %334 = vmatpush.bf16.msra.mxu0 %v259
  %335 = vmatpush.bf16.msra.mxu0 %v258
  %336 = vmatpush.bf16.msra.mxu0 %v257
  %337 = vmatpush.bf16.msra.mxu0 %v256
  %338 = vmatpush.bf16.msra.mxu0 %v255
  %339 = vmatmul.bf16.gmra.mxu0 %v102
  %v340 = vpop.f32.mrf.mxu0
  %v341 = vadd.f32 %v92, %v340
  %v342 = vpop.f32.mrf.mxu0
  %343 = vdwg.mxu0
  %344 = vmatpush.bf16.msra.mxu0 %v270
  %345 = vmatpush.bf16.msra.mxu0 %v269
  %346 = vmatpush.bf16.msra.mxu0 %v268
  %347 = vmatpush.bf16.msra.mxu0 %v267
  %348 = vmatpush.bf16.msra.mxu0 %v266
  %349 = vmatpush.bf16.msra.mxu0 %v265
  %350 = vmatpush.bf16.msra.mxu0 %v264
  %351 = vmatpush.bf16.msra.mxu0 %v263
  %352 = vmatmul.bf16.gmra.mxu0 %v103
  %v353 = vpop.f32.mrf.mxu0
  %v354 = vadd.f32 %v341, %v353
  %v355 = vpop.f32.mrf.mxu0
  %356 = vdwg.mxu0
  %357 = vmatpush.bf16.msra.mxu0 %v278
  %358 = vmatpush.bf16.msra.mxu0 %v277
  %359 = vmatpush.bf16.msra.mxu0 %v276
  %360 = vmatpush.bf16.msra.mxu0 %v275
  %361 = vmatpush.bf16.msra.mxu0 %v274
  %362 = vmatpush.bf16.msra.mxu0 %v273
  %363 = vmatpush.bf16.msra.mxu0 %v272
  %364 = vmatpush.bf16.msra.mxu0 %v271
  %365 = vmatmul.bf16.gmra.mxu0 %v104
  %v366 = vpop.f32.mrf.mxu0
  %v367 = vadd.f32 %v354, %v366
  %v368 = vpop.f32.mrf.mxu0
  %369 = vdwg.mxu0
  %370 = vmatpush.bf16.msra.mxu0 %v286
  %371 = vmatpush.bf16.msra.mxu0 %v285
  %372 = vmatpush.bf16.msra.mxu0 %v284
  %373 = vmatpush.bf16.msra.mxu0 %v283
  %374 = vmatpush.bf16.msra.mxu0 %v282
  %375 = vmatpush.bf16.msra.mxu0 %v281
  %376 = vmatpush.bf16.msra.mxu0 %v280
  %377 = vmatpush.bf16.msra.mxu0 %v279
  %378 = vmatmul.bf16.gmra.mxu0 %v105
  %v379 = vpop.f32.mrf.mxu0
  %v380 = vadd.f32 %v367, %v379
  %v381 = vpop.f32.mrf.mxu0
  %382 = vdwg.mxu0
  %383 = vmatpush.bf16.msra.mxu0 0
  %384 = vmatpush.bf16.msra.mxu0 0
  %385 = vmatpush.bf16.msra.mxu0 0
  %386 = vmatpush.bf16.msra.mxu0 0
  %387 = vmatpush.bf16.msra.mxu0 %v290
  %388 = vmatpush.bf16.msra.mxu0 %v289
  %389 = vmatpush.bf16.msra.mxu0 %v288
  %390 = vmatpush.bf16.msra.mxu0 %v287
  %391 = vmatmul.bf16.gmra.mxu0 %v329
  %v392 = vpop.f32.mrf.mxu0
  %v393 = vadd.f32 %v380, %v392
  %v394 = vpop.f32.mrf.mxu0
  %395 = vdwg.mxu0
  %v396 = vmax.f32 %v393, 0.0
  %v397 = vpack.c.bf16 %v396, %v396
  %398 = vst [vmem:[%s3] sm:$0xf] %v397
  // Predicated region
  $region14: #{resnet18_forward.23} parent=0 // pred_check
    _
  $region15: #{resnet18_forward.23} parent=0 // pred_check_branch
    %400 = sbr.rel (0) target = $region17
  $region16: #{resnet18_forward.23} parent=0 // pred_region
    _
  $region17: #{resnet18_forward.23} parent=0 // pred_fallthru
    _
  // Predicated region
  $region18: #{resnet18_forward.23} parent=0 // pred_check
    _
  $region19: #{resnet18_forward.23} parent=0 // pred_check_branch
    %402 = sbr.rel (0) target = $region21
  $region20: #{resnet18_forward.23} parent=0 // pred_region
    _
  $region21: #{resnet18_forward.23} parent=0 // pred_fallthru
    _

// kernel: resnet18_forward.22
$region0: #{resnet18_forward.22}
  #allocation0 [shape = 'u32[]', space=smem, size = 0x4, offset = 0x4, fixed_abs, tag = 'smem constant byte address 0x4 - core index']
  #allocation1 [shape = 'u32[72,128]{1,0:T(1,128)}', space=vmem, size = 0x9000, scoped, tag = 'internal scratch']
  %s0 = inlined_call_operand.vmem [shape: bf16[8,576], index: 0, kind: input, shape index: {}]
  %s1 = inlined_call_operand.vmem [shape: bf16[576,128], index: 1, kind: input, shape index: {}]
  %s2 = inlined_call_operand.vmem [shape: f32[1,128], index: 2, kind: input, shape index: {}]
  %s3 = inlined_call_operand.vmem [shape: bf16[8,128], index: 3, kind: output, shape index: {}]
  %s4 = sld [smem:[#allocation0]]
  $region22: #{resnet18_forward.22} parent=0
    _
  %s6 = ssub.s32 1, %s4
  %s7 = scalar_select 0, %s6, %s4
  // Predicated region
  $region2: #{resnet18_forward.22} parent=0 // pred_check
    _
  $region3: #{resnet18_forward.22} parent=0 // pred_check_branch
    %9 = sbr.rel (0) target = $region5
  $region4: #{resnet18_forward.22} parent=0 // pred_region
    _
  $region5: #{resnet18_forward.22} parent=0 // pred_fallthru
    _
  // Predicated region
  $region6: #{resnet18_forward.22} parent=0 // pred_check
    _
  $region7: #{resnet18_forward.22} parent=0 // pred_check_branch
    %11 = sbr.rel (0) target = $region9
  $region8: #{resnet18_forward.22} parent=0 // pred_region
    _
  $region9: #{resnet18_forward.22} parent=0 // pred_fallthru
    _
  // Predicated region
  $region10: #{resnet18_forward.22} parent=0 // pred_check
    _
  $region11: #{resnet18_forward.22} parent=0 // pred_check_branch
    %13 = sbr.rel (0) target = $region13
  $region12: #{resnet18_forward.22} parent=0 // pred_region
    _
  $region13: #{resnet18_forward.22} parent=0 // pred_fallthru
    _
  %v15 = vld [vmem:[%s0] sm:$0xff]
  %v16 = vld [vmem:[%s0 + $0x8] sm:$0xff]
  %v17 = vld [vmem:[%s0 + $0x10] sm:$0xf]
  %v18 = vld [vmem:[%s1] sm:$0xf]
  %v19 = vld [vmem:[%s1 + $0x4] sm:$0xf]
  %v20 = vld [vmem:[%s1 + $0x8] sm:$0xf]
  %v21 = vld [vmem:[%s1 + $0xc] sm:$0xf]
  %v22 = vld [vmem:[%s1 + $0x10] sm:$0xf]
  %v23 = vld [vmem:[%s1 + $0x14] sm:$0xf]
  %v24 = vld [vmem:[%s1 + $0x18] sm:$0xf]
  %v25 = vld [vmem:[%s1 + $0x1c] sm:$0xf]
  %v26 = vld [vmem:[%s1 + $0x20] sm:$0xf]
  %v27 = vld [vmem:[%s1 + $0x24] sm:$0xf]
  %v28 = vld [vmem:[%s1 + $0x28] sm:$0xf]
  %v29 = vld [vmem:[%s1 + $0x2c] sm:$0xf]
  %v30 = vld [vmem:[%s1 + $0x30] sm:$0xf]
  %v31 = vld [vmem:[%s1 + $0x34] sm:$0xf]
  %v32 = vld [vmem:[%s1 + $0x38] sm:$0xf]
  %v33 = vld [vmem:[%s1 + $0x3c] sm:$0xf]
  %v34 = vld [vmem:[%s1 + $0x40] sm:$0xf]
  %v35 = vld [vmem:[%s1 + $0x44] sm:$0xf]
  %v36 = vld [vmem:[%s1 + $0x48] sm:$0xf]
  %v37 = vld [vmem:[%s1 + $0x4c] sm:$0xf]
  %v38 = vld [vmem:[%s1 + $0x50] sm:$0xf]
  %v39 = vld [vmem:[%s1 + $0x54] sm:$0xf]
  %v40 = vld [vmem:[%s1 + $0x58] sm:$0xf]
  %v41 = vld [vmem:[%s1 + $0x5c] sm:$0xf]
  %v42 = vld [vmem:[%s1 + $0x60] sm:$0xf]
  %v43 = vld [vmem:[%s1 + $0x64] sm:$0xf]
  %v44 = vld [vmem:[%s1 + $0x68] sm:$0xf]
  %v45 = vld [vmem:[%s1 + $0x6c] sm:$0xf]
  %v46 = vld [vmem:[%s1 + $0x70] sm:$0xf]
  %v47 = vld [vmem:[%s1 + $0x74] sm:$0xf]
  %v48 = vld [vmem:[%s1 + $0x78] sm:$0xf]
  %v49 = vld [vmem:[%s1 + $0x7c] sm:$0xf]
  %v50 = vld [vmem:[%s1 + $0x80] sm:$0xf]
  %v51 = vld [vmem:[%s1 + $0x84] sm:$0xf]
  %v52 = vld [vmem:[%s1 + $0x88] sm:$0xf]
  %v53 = vld [vmem:[%s1 + $0x8c] sm:$0xf]
  %v54 = vld [vmem:[%s1 + $0x90] sm:$0xf]
  %v55 = vld [vmem:[%s1 + $0x94] sm:$0xf]
  %v56 = vld [vmem:[%s1 + $0x98] sm:$0xf]
  %v57 = vld [vmem:[%s1 + $0x9c] sm:$0xf]
  %v58 = vld [vmem:[%s1 + $0xa0] sm:$0xf]
  %v59 = vld [vmem:[%s1 + $0xa4] sm:$0xf]
  %v60 = vld [vmem:[%s1 + $0xa8] sm:$0xf]
  %v61 = vld [vmem:[%s1 + $0xac] sm:$0xf]
  %v62 = vld [vmem:[%s1 + $0xb0] sm:$0xf]
  %v63 = vld [vmem:[%s1 + $0xb4] sm:$0xf]
  %v64 = vld [vmem:[%s1 + $0xb8] sm:$0xf]
  %v65 = vld [vmem:[%s1 + $0xbc] sm:$0xf]
  %v66 = vld [vmem:[%s1 + $0xc0] sm:$0xf]
  %v67 = vld [vmem:[%s1 + $0xc4] sm:$0xf]
  %v68 = vld [vmem:[%s1 + $0xc8] sm:$0xf]
  %v69 = vld [vmem:[%s1 + $0xcc] sm:$0xf]
  %v70 = vld [vmem:[%s1 + $0xd0] sm:$0xf]
  %v71 = vld [vmem:[%s1 + $0xd4] sm:$0xf]
  %v72 = vld [vmem:[%s1 + $0xd8] sm:$0xf]
  %v73 = vld [vmem:[%s1 + $0xdc] sm:$0xf]
  %v74 = vld [vmem:[%s1 + $0xe0] sm:$0xf]
  %v75 = vld [vmem:[%s1 + $0xe4] sm:$0xf]
  %v76 = vld [vmem:[%s1 + $0xe8] sm:$0xf]
  %v77 = vld [vmem:[%s1 + $0xec] sm:$0xf]
  %v78 = vld [vmem:[%s1 + $0xf0] sm:$0xf]
  %v79 = vld [vmem:[%s1 + $0xf4] sm:$0xf]
  %v80 = vld [vmem:[%s1 + $0xf8] sm:$0xf]
  %v81 = vld [vmem:[%s1 + $0xfc] sm:$0xf]
  %v82 = vld [vmem:[%s1 + $0x100] sm:$0xf]
  %v83 = vld [vmem:[%s1 + $0x104] sm:$0xf]
  %v84 = vld [vmem:[%s1 + $0x108] sm:$0xf]
  %v85 = vld [vmem:[%s1 + $0x10c] sm:$0xf]
  %v86 = vld [vmem:[%s1 + $0x110] sm:$0xf]
  %v87 = vld [vmem:[%s1 + $0x114] sm:$0xf]
  %v88 = vld [vmem:[%s1 + $0x118] sm:$0xf]
  %v89 = vld [vmem:[%s1 + $0x11c] sm:$0xf]
  %v90 = vld [vmem:[%s2] sm:$0x1]
  %v92 = vperm.slane %v90, 0
  %v97 = vunpack.c.l.b16 %v15
  %v98 = vunpack.c.h.b16 %v15
  %v99 = vunpack.c.l.b16 %v16
  %v100 = vunpack.c.h.b16 %v16
  %v101 = vunpack.c.l.b16 %v17
  %v102 = vpack.c.b16 %v97, %v97
  %v103 = vpack.c.b16 %v98, %v98
  %v104 = vpack.c.b16 %v99, %v99
  %v105 = vpack.c.b16 %v100, %v100
  %v106 = vpack.c.b16 %v101, %v101
  %v183 = vunpack.c.l.b16 %v18
  %v184 = vunpack.c.l.b16 %v19
  %v185 = vunpack.c.l.b16 %v20
  %v186 = vunpack.c.l.b16 %v21
  %v187 = vunpack.c.l.b16 %v22
  %v188 = vunpack.c.l.b16 %v23
  %v189 = vunpack.c.l.b16 %v24
  %v190 = vunpack.c.l.b16 %v25
  %v191 = vunpack.c.l.b16 %v26
  %v192 = vunpack.c.l.b16 %v27
  %v193 = vunpack.c.l.b16 %v28
  %v194 = vunpack.c.l.b16 %v29
  %v195 = vunpack.c.l.b16 %v30
  %v196 = vunpack.c.l.b16 %v31
  %v197 = vunpack.c.l.b16 %v32
  %v198 = vunpack.c.l.b16 %v33
  %v199 = vunpack.c.l.b16 %v34
  %v200 = vunpack.c.l.b16 %v35
  %v201 = vunpack.c.l.b16 %v36
  %v202 = vunpack.c.l.b16 %v37
  %v203 = vunpack.c.l.b16 %v38
  %v204 = vunpack.c.l.b16 %v39
  %v205 = vunpack.c.l.b16 %v40
  %v206 = vunpack.c.l.b16 %v41
  %v207 = vunpack.c.l.b16 %v42
  %v208 = vunpack.c.l.b16 %v43
  %v209 = vunpack.c.l.b16 %v44
  %v210 = vunpack.c.l.b16 %v45
  %v211 = vunpack.c.l.b16 %v46
  %v212 = vunpack.c.l.b16 %v47
  %v213 = vunpack.c.l.b16 %v48
  %v214 = vunpack.c.l.b16 %v49
  %v215 = vunpack.c.l.b16 %v50
  %v216 = vunpack.c.l.b16 %v51
  %v217 = vunpack.c.l.b16 %v52
  %v218 = vunpack.c.l.b16 %v53
  %v219 = vunpack.c.l.b16 %v54
  %v220 = vunpack.c.l.b16 %v55
  %v221 = vunpack.c.l.b16 %v56
  %v222 = vunpack.c.l.b16 %v57
  %v223 = vunpack.c.l.b16 %v58
  %v224 = vunpack.c.l.b16 %v59
  %v225 = vunpack.c.l.b16 %v60
  %v226 = vunpack.c.l.b16 %v61
  %v227 = vunpack.c.l.b16 %v62
  %v228 = vunpack.c.l.b16 %v63
  %v229 = vunpack.c.l.b16 %v64
  %v230 = vunpack.c.l.b16 %v65
  %v231 = vunpack.c.l.b16 %v66
  %v232 = vunpack.c.l.b16 %v67
  %v233 = vunpack.c.l.b16 %v68
  %v234 = vunpack.c.l.b16 %v69
  %v235 = vunpack.c.l.b16 %v70
  %v236 = vunpack.c.l.b16 %v71
  %v237 = vunpack.c.l.b16 %v72
  %v238 = vunpack.c.l.b16 %v73
  %v239 = vunpack.c.l.b16 %v74
  %v240 = vunpack.c.l.b16 %v75
  %v241 = vunpack.c.l.b16 %v76
  %v242 = vunpack.c.l.b16 %v77
  %v243 = vunpack.c.l.b16 %v78
  %v244 = vunpack.c.l.b16 %v79
  %v245 = vunpack.c.l.b16 %v80
  %v246 = vunpack.c.l.b16 %v81
  %v247 = vunpack.c.l.b16 %v82
  %v248 = vunpack.c.l.b16 %v83
  %v249 = vunpack.c.l.b16 %v84
  %v250 = vunpack.c.l.b16 %v85
  %v251 = vunpack.c.l.b16 %v86
  %v252 = vunpack.c.l.b16 %v87
  %v253 = vunpack.c.l.b16 %v88
  %v254 = vunpack.c.l.b16 %v89
  %v255 = vpack.c.b16 %v184, %v183
  %v256 = vpack.c.b16 %v186, %v185
  %v257 = vpack.c.b16 %v188, %v187
  %v258 = vpack.c.b16 %v190, %v189
  %v259 = vpack.c.b16 %v192, %v191
  %v260 = vpack.c.b16 %v194, %v193
  %v261 = vpack.c.b16 %v196, %v195
  %v262 = vpack.c.b16 %v198, %v197
  %v263 = vpack.c.b16 %v200, %v199
  %v264 = vpack.c.b16 %v202, %v201
  %v265 = vpack.c.b16 %v204, %v203
  %v266 = vpack.c.b16 %v206, %v205
  %v267 = vpack.c.b16 %v208, %v207
  %v268 = vpack.c.b16 %v210, %v209
  %v269 = vpack.c.b16 %v212, %v211
  %v270 = vpack.c.b16 %v214, %v213
  %v271 = vpack.c.b16 %v216, %v215
  %v272 = vpack.c.b16 %v218, %v217
  %v273 = vpack.c.b16 %v220, %v219
  %v274 = vpack.c.b16 %v222, %v221
  %v275 = vpack.c.b16 %v224, %v223
  %v276 = vpack.c.b16 %v226, %v225
  %v277 = vpack.c.b16 %v228, %v227
  %v278 = vpack.c.b16 %v230, %v229
  %v279 = vpack.c.b16 %v232, %v231
  %v280 = vpack.c.b16 %v234, %v233
  %v281 = vpack.c.b16 %v236, %v235
  %v282 = vpack.c.b16 %v238, %v237
  %v283 = vpack.c.b16 %v240, %v239
  %v284 = vpack.c.b16 %v242, %v241
  %v285 = vpack.c.b16 %v244, %v243
  %v286 = vpack.c.b16 %v246, %v245
  %v287 = vpack.c.b16 %v248, %v247
  %v288 = vpack.c.b16 %v250, %v249
  %v289 = vpack.c.b16 %v252, %v251
  %v290 = vpack.c.b16 %v254, %v253
  %vm327 = vcmask 523264
  %v329 = vsel %vm327, %v106, 0
  %331 = vmatpush.bf16.msra.mxu0 %v262
  %332 = vmatpush.bf16.msra.mxu0 %v261
  %333 = vmatpush.bf16.msra.mxu0 %v260
  %334 = vmatpush.bf16.msra.mxu0 %v259
  %335 = vmatpush.bf16.msra.mxu0 %v258
  %336 = vmatpush.bf16.msra.mxu0 %v257
  %337 = vmatpush.bf16.msra.mxu0 %v256
  %338 = vmatpush.bf16.msra.mxu0 %v255
  %339 = vmatmul.bf16.gmra.mxu0 %v102
  %v340 = vpop.f32.mrf.mxu0
  %v341 = vadd.f32 %v92, %v340
  %v342 = vpop.f32.mrf.mxu0
  %343 = vdwg.mxu0
  %344 = vmatpush.bf16.msra.mxu0 %v270
  %345 = vmatpush.bf16.msra.mxu0 %v269
  %346 = vmatpush.bf16.msra.mxu0 %v268
  %347 = vmatpush.bf16.msra.mxu0 %v267
  %348 = vmatpush.bf16.msra.mxu0 %v266
  %349 = vmatpush.bf16.msra.mxu0 %v265
  %350 = vmatpush.bf16.msra.mxu0 %v264
  %351 = vmatpush.bf16.msra.mxu0 %v263
  %352 = vmatmul.bf16.gmra.mxu0 %v103
  %v353 = vpop.f32.mrf.mxu0
  %v354 = vadd.f32 %v341, %v353
  %v355 = vpop.f32.mrf.mxu0
  %356 = vdwg.mxu0
  %357 = vmatpush.bf16.msra.mxu0 %v278
  %358 = vmatpush.bf16.msra.mxu0 %v277
  %359 = vmatpush.bf16.msra.mxu0 %v276
  %360 = vmatpush.bf16.msra.mxu0 %v275
  %361 = vmatpush.bf16.msra.mxu0 %v274
  %362 = vmatpush.bf16.msra.mxu0 %v273
  %363 = vmatpush.bf16.msra.mxu0 %v272
  %364 = vmatpush.bf16.msra.mxu0 %v271
  %365 = vmatmul.bf16.gmra.mxu0 %v104
  %v366 = vpop.f32.mrf.mxu0
  %v367 = vadd.f32 %v354, %v366
  %v368 = vpop.f32.mrf.mxu0
  %369 = vdwg.mxu0
  %370 = vmatpush.bf16.msra.mxu0 %v286
  %371 = vmatpush.bf16.msra.mxu0 %v285
  %372 = vmatpush.bf16.msra.mxu0 %v284
  %373 = vmatpush.bf16.msra.mxu0 %v283
  %374 = vmatpush.bf16.msra.mxu0 %v282
  %375 = vmatpush.bf16.msra.mxu0 %v281
  %376 = vmatpush.bf16.msra.mxu0 %v280
  %377 = vmatpush.bf16.msra.mxu0 %v279
  %378 = vmatmul.bf16.gmra.mxu0 %v105
  %v379 = vpop.f32.mrf.mxu0
  %v380 = vadd.f32 %v367, %v379
  %v381 = vpop.f32.mrf.mxu0
  %382 = vdwg.mxu0
  %383 = vmatpush.bf16.msra.mxu0 0
  %384 = vmatpush.bf16.msra.mxu0 0
  %385 = vmatpush.bf16.msra.mxu0 0
  %386 = vmatpush.bf16.msra.mxu0 0
  %387 = vmatpush.bf16.msra.mxu0 %v290
  %388 = vmatpush.bf16.msra.mxu0 %v289
  %389 = vmatpush.bf16.msra.mxu0 %v288
  %390 = vmatpush.bf16.msra.mxu0 %v287
  %391 = vmatmul.bf16.gmra.mxu0 %v329
  %v392 = vpop.f32.mrf.mxu0
  %v393 = vadd.f32 %v380, %v392
  %v394 = vpop.f32.mrf.mxu0
  %395 = vdwg.mxu0
  %v396 = vpack.c.bf16 %v393, %v393
  %397 = vst [vmem:[%s3] sm:$0xf] %v396
  // Predicated region
  $region14: #{resnet18_forward.22} parent=0 // pred_check
    _
  $region15: #{resnet18_forward.22} parent=0 // pred_check_branch
    %399 = sbr.rel (0) target = $region17
  $region16: #{resnet18_forward.22} parent=0 // pred_region
    _
  $region17: #{resnet18_forward.22} parent=0 // pred_fallthru
    _
  // Predicated region
  $region18: #{resnet18_forward.22} parent=0 // pred_check
    _
  $region19: #{resnet18_forward.22} parent=0 // pred_check_branch
    %401 = sbr.rel (0) target = $region21
  $region20: #{resnet18_forward.22} parent=0 // pred_region
    _
  $region21: #{resnet18_forward.22} parent=0 // pred_fallthru
    _

// kernel: resnet18_forward.24
$region0: #{resnet18_forward.24}
  #allocation0 [shape = 'u32[]', space=smem, size = 0x4, offset = 0x4, fixed_abs, tag = 'smem constant byte address 0x4 - core index']
  #allocation1 [shape = 'u32[72,128]{1,0:T(1,128)}', space=vmem, size = 0x9000, scoped, tag = 'internal scratch']
  %s0 = inlined_call_operand.vmem [shape: bf16[8,1152], index: 0, kind: input, shape index: {}]
  %s1 = inlined_call_operand.vmem [shape: bf16[1152,128], index: 1, kind: input, shape index: {}]
  %s2 = inlined_call_operand.vmem [shape: f32[1,128], index: 2, kind: input, shape index: {}]
  %s3 = inlined_call_operand.vmem [shape: bf16[8,128], index: 3, kind: input, shape index: {}]
  %s4 = inlined_call_operand.vmem [shape: bf16[8,128], index: 4, kind: output, shape index: {}]
  %s5 = sld [smem:[#allocation0]]
  $region26: #{resnet18_forward.24} parent=0
    _
  %s7 = ssub.s32 1, %s5
  %s8 = scalar_select 0, %s7, %s5
  // Predicated region
  $region2: #{resnet18_forward.24} parent=0 // pred_check
    _
  $region3: #{resnet18_forward.24} parent=0 // pred_check_branch
    %10 = sbr.rel (0) target = $region5
  $region4: #{resnet18_forward.24} parent=0 // pred_region
    _
  $region5: #{resnet18_forward.24} parent=0 // pred_fallthru
    _
  // Predicated region
  $region6: #{resnet18_forward.24} parent=0 // pred_check
    _
  $region7: #{resnet18_forward.24} parent=0 // pred_check_branch
    %12 = sbr.rel (0) target = $region9
  $region8: #{resnet18_forward.24} parent=0 // pred_region
    _
  $region9: #{resnet18_forward.24} parent=0 // pred_fallthru
    _
  // Predicated region
  $region10: #{resnet18_forward.24} parent=0 // pred_check
    _
  $region11: #{resnet18_forward.24} parent=0 // pred_check_branch
    %14 = sbr.rel (0) target = $region13
  $region12: #{resnet18_forward.24} parent=0 // pred_region
    _
  $region13: #{resnet18_forward.24} parent=0 // pred_fallthru
    _
  // Predicated region
  $region14: #{resnet18_forward.24} parent=0 // pred_check
    _
  $region15: #{resnet18_forward.24} parent=0 // pred_check_branch
    %16 = sbr.rel (0) target = $region17
  $region16: #{resnet18_forward.24} parent=0 // pred_region
    _
  $region17: #{resnet18_forward.24} parent=0 // pred_fallthru
    _
  %v17 = vld [vmem:[%s0] sm:$0xff]
  %v18 = vld [vmem:[%s0 + $0x8] sm:$0xff]
  %v19 = vld [vmem:[%s0 + $0x10] sm:$0xff]
  %v20 = vld [vmem:[%s0 + $0x18] sm:$0xff]
  %v21 = vld [vmem:[%s0 + $0x20] sm:$0xf]
  %v22 = vld [vmem:[%s1] sm:$0xf]
  %v23 = vld [vmem:[%s1 + $0x4] sm:$0xf]
  %v24 = vld [vmem:[%s1 + $0x8] sm:$0xf]
  %v25 = vld [vmem:[%s1 + $0xc] sm:$0xf]
  %v26 = vld [vmem:[%s1 + $0x10] sm:$0xf]
  %v27 = vld [vmem:[%s1 + $0x14] sm:$0xf]
  %v28 = vld [vmem:[%s1 + $0x18] sm:$0xf]
  %v29 = vld [vmem:[%s1 + $0x1c] sm:$0xf]
  %v30 = vld [vmem:[%s1 + $0x20] sm:$0xf]
  %v31 = vld [vmem:[%s1 + $0x24] sm:$0xf]
  %v32 = vld [vmem:[%s1 + $0x28] sm:$0xf]
  %v33 = vld [vmem:[%s1 + $0x2c] sm:$0xf]
  %v34 = vld [vmem:[%s1 + $0x30] sm:$0xf]
  %v35 = vld [vmem:[%s1 + $0x34] sm:$0xf]
  %v36 = vld [vmem:[%s1 + $0x38] sm:$0xf]
  %v37 = vld [vmem:[%s1 + $0x3c] sm:$0xf]
  %v38 = vld [vmem:[%s1 + $0x40] sm:$0xf]
  %v39 = vld [vmem:[%s1 + $0x44] sm:$0xf]
  %v40 = vld [vmem:[%s1 + $0x48] sm:$0xf]
  %v41 = vld [vmem:[%s1 + $0x4c] sm:$0xf]
  %v42 = vld [vmem:[%s1 + $0x50] sm:$0xf]
  %v43 = vld [vmem:[%s1 + $0x54] sm:$0xf]
  %v44 = vld [vmem:[%s1 + $0x58] sm:$0xf]
  %v45 = vld [vmem:[%s1 + $0x5c] sm:$0xf]
  %v46 = vld [vmem:[%s1 + $0x60] sm:$0xf]
  %v47 = vld [vmem:[%s1 + $0x64] sm:$0xf]
  %v48 = vld [vmem:[%s1 + $0x68] sm:$0xf]
  %v49 = vld [vmem:[%s1 + $0x6c] sm:$0xf]
  %v50 = vld [vmem:[%s1 + $0x70] sm:$0xf]
  %v51 = vld [vmem:[%s1 + $0x74] sm:$0xf]
  %v52 = vld [vmem:[%s1 + $0x78] sm:$0xf]
  %v53 = vld [vmem:[%s1 + $0x7c] sm:$0xf]
  %v54 = vld [vmem:[%s1 + $0x80] sm:$0xf]
  %v55 = vld [vmem:[%s1 + $0x84] sm:$0xf]
  %v56 = vld [vmem:[%s1 + $0x88] sm:$0xf]
  %v57 = vld [vmem:[%s1 + $0x8c] sm:$0xf]
  %v58 = vld [vmem:[%s1 + $0x90] sm:$0xf]
  %v59 = vld [vmem:[%s1 + $0x94] sm:$0xf]
  %v60 = vld [vmem:[%s1 + $0x98] sm:$0xf]
  %v61 = vld [vmem:[%s1 + $0x9c] sm:$0xf]
  %v62 = vld [vmem:[%s1 + $0xa0] sm:$0xf]
  %v63 = vld [vmem:[%s1 + $0xa4] sm:$0xf]
  %v64 = vld [vmem:[%s1 + $0xa8] sm:$0xf]
  %v65 = vld [vmem:[%s1 + $0xac] sm:$0xf]
  %v66 = vld [vmem:[%s1 + $0xb0] sm:$0xf]
  %v67 = vld [vmem:[%s1 + $0xb4] sm:$0xf]
  %v68 = vld [vmem:[%s1 + $0xb8] sm:$0xf]
  %v69 = vld [vmem:[%s1 + $0xbc] sm:$0xf]
  %v70 = vld [vmem:[%s1 + $0xc0] sm:$0xf]
  %v71 = vld [vmem:[%s1 + $0xc4] sm:$0xf]
  %v72 = vld [vmem:[%s1 + $0xc8] sm:$0xf]
  %v73 = vld [vmem:[%s1 + $0xcc] sm:$0xf]
  %v74 = vld [vmem:[%s1 + $0xd0] sm:$0xf]
  %v75 = vld [vmem:[%s1 + $0xd4] sm:$0xf]
  %v76 = vld [vmem:[%s1 + $0xd8] sm:$0xf]
  %v77 = vld [vmem:[%s1 + $0xdc] sm:$0xf]
  %v78 = vld [vmem:[%s1 + $0xe0] sm:$0xf]
  %v79 = vld [vmem:[%s1 + $0xe4] sm:$0xf]
  %v80 = vld [vmem:[%s1 + $0xe8] sm:$0xf]
  %v81 = vld [vmem:[%s1 + $0xec] sm:$0xf]
  %v82 = vld [vmem:[%s1 + $0xf0] sm:$0xf]
  %v83 = vld [vmem:[%s1 + $0xf4] sm:$0xf]
  %v84 = vld [vmem:[%s1 + $0xf8] sm:$0xf]
  %v85 = vld [vmem:[%s1 + $0xfc] sm:$0xf]
  %v86 = vld [vmem:[%s1 + $0x100] sm:$0xf]
  %v87 = vld [vmem:[%s1 + $0x104] sm:$0xf]
  %v88 = vld [vmem:[%s1 + $0x108] sm:$0xf]
  %v89 = vld [vmem:[%s1 + $0x10c] sm:$0xf]
  %v90 = vld [vmem:[%s1 + $0x110] sm:$0xf]
  %v91 = vld [vmem:[%s1 + $0x114] sm:$0xf]
  %v92 = vld [vmem:[%s1 + $0x118] sm:$0xf]
  %v93 = vld [vmem:[%s1 + $0x11c] sm:$0xf]
  %v94 = vld [vmem:[%s1 + $0x120] sm:$0xf]
  %v95 = vld [vmem:[%s1 + $0x124] sm:$0xf]
  %v96 = vld [vmem:[%s1 + $0x128] sm:$0xf]
  %v97 = vld [vmem:[%s1 + $0x12c] sm:$0xf]
  %v98 = vld [vmem:[%s1 + $0x130] sm:$0xf]
  %v99 = vld [vmem:[%s1 + $0x134] sm:$0xf]
  %v100 = vld [vmem:[%s1 + $0x138] sm:$0xf]
  %v101 = vld [vmem:[%s1 + $0x13c] sm:$0xf]
  %v102 = vld [vmem:[%s1 + $0x140] sm:$0xf]
  %v103 = vld [vmem:[%s1 + $0x144] sm:$0xf]
  %v104 = vld [vmem:[%s1 + $0x148] sm:$0xf]
  %v105 = vld [vmem:[%s1 + $0x14c] sm:$0xf]
  %v106 = vld [vmem:[%s1 + $0x150] sm:$0xf]
  %v107 = vld [vmem:[%s1 + $0x154] sm:$0xf]
  %v108 = vld [vmem:[%s1 + $0x158] sm:$0xf]
  %v109 = vld [vmem:[%s1 + $0x15c] sm:$0xf]
  %v110 = vld [vmem:[%s1 + $0x160] sm:$0xf]
  %v111 = vld [vmem:[%s1 + $0x164] sm:$0xf]
  %v112 = vld [vmem:[%s1 + $0x168] sm:$0xf]
  %v113 = vld [vmem:[%s1 + $0x16c] sm:$0xf]
  %v114 = vld [vmem:[%s1 + $0x170] sm:$0xf]
  %v115 = vld [vmem:[%s1 + $0x174] sm:$0xf]
  %v116 = vld [vmem:[%s1 + $0x178] sm:$0xf]
  %v117 = vld [vmem:[%s1 + $0x17c] sm:$0xf]
  %v118 = vld [vmem:[%s1 + $0x180] sm:$0xf]
  %v119 = vld [vmem:[%s1 + $0x184] sm:$0xf]
  %v120 = vld [vmem:[%s1 + $0x188] sm:$0xf]
  %v121 = vld [vmem:[%s1 + $0x18c] sm:$0xf]
  %v122 = vld [vmem:[%s1 + $0x190] sm:$0xf]
  %v123 = vld [vmem:[%s1 + $0x194] sm:$0xf]
  %v124 = vld [vmem:[%s1 + $0x198] sm:$0xf]
  %v125 = vld [vmem:[%s1 + $0x19c] sm:$0xf]
  %v126 = vld [vmem:[%s1 + $0x1a0] sm:$0xf]
  %v127 = vld [vmem:[%s1 + $0x1a4] sm:$0xf]
  %v128 = vld [vmem:[%s1 + $0x1a8] sm:$0xf]
  %v129 = vld [vmem:[%s1 + $0x1ac] sm:$0xf]
  %v130 = vld [vmem:[%s1 + $0x1b0] sm:$0xf]
  %v131 = vld [vmem:[%s1 + $0x1b4] sm:$0xf]
  %v132 = vld [vmem:[%s1 + $0x1b8] sm:$0xf]
  %v133 = vld [vmem:[%s1 + $0x1bc] sm:$0xf]
  %v134 = vld [vmem:[%s1 + $0x1c0] sm:$0xf]
  %v135 = vld [vmem:[%s1 + $0x1c4] sm:$0xf]
  %v136 = vld [vmem:[%s1 + $0x1c8] sm:$0xf]
  %v137 = vld [vmem:[%s1 + $0x1cc] sm:$0xf]
  %v138 = vld [vmem:[%s1 + $0x1d0] sm:$0xf]
  %v139 = vld [vmem:[%s1 + $0x1d4] sm:$0xf]
  %v140 = vld [vmem:[%s1 + $0x1d8] sm:$0xf]
  %v141 = vld [vmem:[%s1 + $0x1dc] sm:$0xf]
  %v142 = vld [vmem:[%s1 + $0x1e0] sm:$0xf]
  %v143 = vld [vmem:[%s1 + $0x1e4] sm:$0xf]
  %v144 = vld [vmem:[%s1 + $0x1e8] sm:$0xf]
  %v145 = vld [vmem:[%s1 + $0x1ec] sm:$0xf]
  %v146 = vld [vmem:[%s1 + $0x1f0] sm:$0xf]
  %v147 = vld [vmem:[%s1 + $0x1f4] sm:$0xf]
  %v148 = vld [vmem:[%s1 + $0x1f8] sm:$0xf]
  %v149 = vld [vmem:[%s1 + $0x1fc] sm:$0xf]
  %v150 = vld [vmem:[%s1 + $0x200] sm:$0xf]
  %v151 = vld [vmem:[%s1 + $0x204] sm:$0xf]
  %v152 = vld [vmem:[%s1 + $0x208] sm:$0xf]
  %v153 = vld [vmem:[%s1 + $0x20c] sm:$0xf]
  %v154 = vld [vmem:[%s1 + $0x210] sm:$0xf]
  %v155 = vld [vmem:[%s1 + $0x214] sm:$0xf]
  %v156 = vld [vmem:[%s1 + $0x218] sm:$0xf]
  %v157 = vld [vmem:[%s1 + $0x21c] sm:$0xf]
  %v158 = vld [vmem:[%s1 + $0x220] sm:$0xf]
  %v159 = vld [vmem:[%s1 + $0x224] sm:$0xf]
  %v160 = vld [vmem:[%s1 + $0x228] sm:$0xf]
  %v161 = vld [vmem:[%s1 + $0x22c] sm:$0xf]
  %v162 = vld [vmem:[%s1 + $0x230] sm:$0xf]
  %v163 = vld [vmem:[%s1 + $0x234] sm:$0xf]
  %v164 = vld [vmem:[%s1 + $0x238] sm:$0xf]
  %v165 = vld [vmem:[%s1 + $0x23c] sm:$0xf]
  %v166 = vld [vmem:[%s2] sm:$0x1]
  %v168 = vperm.slane %v166, 0
  %v175 = vunpack.c.l.b16 %v17
  %v176 = vunpack.c.h.b16 %v17
  %v177 = vunpack.c.l.b16 %v18
  %v178 = vunpack.c.h.b16 %v18
  %v179 = vunpack.c.l.b16 %v19
  %v180 = vunpack.c.h.b16 %v19
  %v181 = vunpack.c.l.b16 %v20
  %v182 = vunpack.c.h.b16 %v20
  %v183 = vunpack.c.l.b16 %v21
  %v184 = vpack.c.b16 %v175, %v175
  %v185 = vpack.c.b16 %v176, %v176
  %v186 = vpack.c.b16 %v177, %v177
  %v187 = vpack.c.b16 %v178, %v178
  %v188 = vpack.c.b16 %v179, %v179
  %v189 = vpack.c.b16 %v180, %v180
  %v190 = vpack.c.b16 %v181, %v181
  %v191 = vpack.c.b16 %v182, %v182
  %v192 = vpack.c.b16 %v183, %v183
  %v346 = vunpack.c.l.b16 %v22
  %v347 = vunpack.c.l.b16 %v23
  %v348 = vunpack.c.l.b16 %v24
  %v349 = vunpack.c.l.b16 %v25
  %v350 = vunpack.c.l.b16 %v26
  %v351 = vunpack.c.l.b16 %v27
  %v352 = vunpack.c.l.b16 %v28
  %v353 = vunpack.c.l.b16 %v29
  %v354 = vunpack.c.l.b16 %v30
  %v355 = vunpack.c.l.b16 %v31
  %v356 = vunpack.c.l.b16 %v32
  %v357 = vunpack.c.l.b16 %v33
  %v358 = vunpack.c.l.b16 %v34
  %v359 = vunpack.c.l.b16 %v35
  %v360 = vunpack.c.l.b16 %v36
  %v361 = vunpack.c.l.b16 %v37
  %v362 = vunpack.c.l.b16 %v38
  %v363 = vunpack.c.l.b16 %v39
  %v364 = vunpack.c.l.b16 %v40
  %v365 = vunpack.c.l.b16 %v41
  %v366 = vunpack.c.l.b16 %v42
  %v367 = vunpack.c.l.b16 %v43
  %v368 = vunpack.c.l.b16 %v44
  %v369 = vunpack.c.l.b16 %v45
  %v370 = vunpack.c.l.b16 %v46
  %v371 = vunpack.c.l.b16 %v47
  %v372 = vunpack.c.l.b16 %v48
  %v373 = vunpack.c.l.b16 %v49
  %v374 = vunpack.c.l.b16 %v50
  %v375 = vunpack.c.l.b16 %v51
  %v376 = vunpack.c.l.b16 %v52
  %v377 = vunpack.c.l.b16 %v53
  %v378 = vunpack.c.l.b16 %v54
  %v379 = vunpack.c.l.b16 %v55
  %v380 = vunpack.c.l.b16 %v56
  %v381 = vunpack.c.l.b16 %v57
  %v382 = vunpack.c.l.b16 %v58
  %v383 = vunpack.c.l.b16 %v59
  %v384 = vunpack.c.l.b16 %v60
  %v385 = vunpack.c.l.b16 %v61
  %v386 = vunpack.c.l.b16 %v62
  %v387 = vunpack.c.l.b16 %v63
  %v388 = vunpack.c.l.b16 %v64
  %v389 = vunpack.c.l.b16 %v65
  %v390 = vunpack.c.l.b16 %v66
  %v391 = vunpack.c.l.b16 %v67
  %v392 = vunpack.c.l.b16 %v68
  %v393 = vunpack.c.l.b16 %v69
  %v394 = vunpack.c.l.b16 %v70
  %v395 = vunpack.c.l.b16 %v71
  %v396 = vunpack.c.l.b16 %v72
  %v397 = vunpack.c.l.b16 %v73
  %v398 = vunpack.c.l.b16 %v74
  %v399 = vunpack.c.l.b16 %v75
  %v400 = vunpack.c.l.b16 %v76
  %v401 = vunpack.c.l.b16 %v77
  %v402 = vunpack.c.l.b16 %v78
  %v403 = vunpack.c.l.b16 %v79
  %v404 = vunpack.c.l.b16 %v80
  %v405 = vunpack.c.l.b16 %v81
  %v406 = vunpack.c.l.b16 %v82
  %v407 = vunpack.c.l.b16 %v83
  %v408 = vunpack.c.l.b16 %v84
  %v409 = vunpack.c.l.b16 %v85
  %v410 = vunpack.c.l.b16 %v86
  %v411 = vunpack.c.l.b16 %v87
  %v412 = vunpack.c.l.b16 %v88
  %v413 = vunpack.c.l.b16 %v89
  %v414 = vunpack.c.l.b16 %v90
  %v415 = vunpack.c.l.b16 %v91
  %v416 = vunpack.c.l.b16 %v92
  %v417 = vunpack.c.l.b16 %v93
  %v418 = vunpack.c.l.b16 %v94
  %v419 = vunpack.c.l.b16 %v95
  %v420 = vunpack.c.l.b16 %v96
  %v421 = vunpack.c.l.b16 %v97
  %v422 = vunpack.c.l.b16 %v98
  %v423 = vunpack.c.l.b16 %v99
  %v424 = vunpack.c.l.b16 %v100
  %v425 = vunpack.c.l.b16 %v101
  %v426 = vunpack.c.l.b16 %v102
  %v427 = vunpack.c.l.b16 %v103
  %v428 = vunpack.c.l.b16 %v104
  %v429 = vunpack.c.l.b16 %v105
  %v430 = vunpack.c.l.b16 %v106
  %v431 = vunpack.c.l.b16 %v107
  %v432 = vunpack.c.l.b16 %v108
  %v433 = vunpack.c.l.b16 %v109
  %v434 = vunpack.c.l.b16 %v110
  %v435 = vunpack.c.l.b16 %v111
  %v436 = vunpack.c.l.b16 %v112
  %v437 = vunpack.c.l.b16 %v113
  %v438 = vunpack.c.l.b16 %v114
  %v439 = vunpack.c.l.b16 %v115
  %v440 = vunpack.c.l.b16 %v116
  %v441 = vunpack.c.l.b16 %v117
  %v442 = vunpack.c.l.b16 %v118
  %v443 = vunpack.c.l.b16 %v119
  %v444 = vunpack.c.l.b16 %v120
  %v445 = vunpack.c.l.b16 %v121
  %v446 = vunpack.c.l.b16 %v122
  %v447 = vunpack.c.l.b16 %v123
  %v448 = vunpack.c.l.b16 %v124
  %v449 = vunpack.c.l.b16 %v125
  %v450 = vunpack.c.l.b16 %v126
  %v451 = vunpack.c.l.b16 %v127
  %v452 = vunpack.c.l.b16 %v128
  %v453 = vunpack.c.l.b16 %v129
  %v454 = vunpack.c.l.b16 %v130
  %v455 = vunpack.c.l.b16 %v131
  %v456 = vunpack.c.l.b16 %v132
  %v457 = vunpack.c.l.b16 %v133
  %v458 = vunpack.c.l.b16 %v134
  %v459 = vunpack.c.l.b16 %v135
  %v460 = vunpack.c.l.b16 %v136
  %v461 = vunpack.c.l.b16 %v137
  %v462 = vunpack.c.l.b16 %v138
  %v463 = vunpack.c.l.b16 %v139
  %v464 = vunpack.c.l.b16 %v140
  %v465 = vunpack.c.l.b16 %v141
  %v466 = vunpack.c.l.b16 %v142
  %v467 = vunpack.c.l.b16 %v143
  %v468 = vunpack.c.l.b16 %v144
  %v469 = vunpack.c.l.b16 %v145
  %v470 = vunpack.c.l.b16 %v146
  %v471 = vunpack.c.l.b16 %v147
  %v472 = vunpack.c.l.b16 %v148
  %v473 = vunpack.c.l.b16 %v149
  %v474 = vunpack.c.l.b16 %v150
  %v475 = vunpack.c.l.b16 %v151
  %v476 = vunpack.c.l.b16 %v152
  %v477 = vunpack.c.l.b16 %v153
  %v478 = vunpack.c.l.b16 %v154
  %v479 = vunpack.c.l.b16 %v155
  %v480 = vunpack.c.l.b16 %v156
  %v481 = vunpack.c.l.b16 %v157
  %v482 = vunpack.c.l.b16 %v158
  %v483 = vunpack.c.l.b16 %v159
  %v484 = vunpack.c.l.b16 %v160
  %v485 = vunpack.c.l.b16 %v161
  %v486 = vunpack.c.l.b16 %v162
  %v487 = vunpack.c.l.b16 %v163
  %v488 = vunpack.c.l.b16 %v164
  %v489 = vunpack.c.l.b16 %v165
  %v490 = vpack.c.b16 %v347, %v346
  %v491 = vpack.c.b16 %v349, %v348
  %v492 = vpack.c.b16 %v351, %v350
  %v493 = vpack.c.b16 %v353, %v352
  %v494 = vpack.c.b16 %v355, %v354
  %v495 = vpack.c.b16 %v357, %v356
  %v496 = vpack.c.b16 %v359, %v358
  %v497 = vpack.c.b16 %v361, %v360
  %v498 = vpack.c.b16 %v363, %v362
  %v499 = vpack.c.b16 %v365, %v364
  %v500 = vpack.c.b16 %v367, %v366
  %v501 = vpack.c.b16 %v369, %v368
  %v502 = vpack.c.b16 %v371, %v370
  %v503 = vpack.c.b16 %v373, %v372
  %v504 = vpack.c.b16 %v375, %v374
  %v505 = vpack.c.b16 %v377, %v376
  %v506 = vpack.c.b16 %v379, %v378
  %v507 = vpack.c.b16 %v381, %v380
  %v508 = vpack.c.b16 %v383, %v382
  %v509 = vpack.c.b16 %v385, %v384
  %v510 = vpack.c.b16 %v387, %v386
  %v511 = vpack.c.b16 %v389, %v388
  %v512 = vpack.c.b16 %v391, %v390
  %v513 = vpack.c.b16 %v393, %v392
  %v514 = vpack.c.b16 %v395, %v394
  %v515 = vpack.c.b16 %v397, %v396
  %v516 = vpack.c.b16 %v399, %v398
  %v517 = vpack.c.b16 %v401, %v400
  %v518 = vpack.c.b16 %v403, %v402
  %v519 = vpack.c.b16 %v405, %v404
  %v520 = vpack.c.b16 %v407, %v406
  %v521 = vpack.c.b16 %v409, %v408
  %v522 = vpack.c.b16 %v411, %v410
  %v523 = vpack.c.b16 %v413, %v412
  %v524 = vpack.c.b16 %v415, %v414
  %v525 = vpack.c.b16 %v417, %v416
  %v526 = vpack.c.b16 %v419, %v418
  %v527 = vpack.c.b16 %v421, %v420
  %v528 = vpack.c.b16 %v423, %v422
  %v529 = vpack.c.b16 %v425, %v424
  %v530 = vpack.c.b16 %v427, %v426
  %v531 = vpack.c.b16 %v429, %v428
  %v532 = vpack.c.b16 %v431, %v430
  %v533 = vpack.c.b16 %v433, %v432
  %v534 = vpack.c.b16 %v435, %v434
  %v535 = vpack.c.b16 %v437, %v436
  %v536 = vpack.c.b16 %v439, %v438
  %v537 = vpack.c.b16 %v441, %v440
  %v538 = vpack.c.b16 %v443, %v442
  %v539 = vpack.c.b16 %v445, %v444
  %v540 = vpack.c.b16 %v447, %v446
  %v541 = vpack.c.b16 %v449, %v448
  %v542 = vpack.c.b16 %v451, %v450
  %v543 = vpack.c.b16 %v453, %v452
  %v544 = vpack.c.b16 %v455, %v454
  %v545 = vpack.c.b16 %v457, %v456
  %v546 = vpack.c.b16 %v459, %v458
  %v547 = vpack.c.b16 %v461, %v460
  %v548 = vpack.c.b16 %v463, %v462
  %v549 = vpack.c.b16 %v465, %v464
  %v550 = vpack.c.b16 %v467, %v466
  %v551 = vpack.c.b16 %v469, %v468
  %v552 = vpack.c.b16 %v471, %v470
  %v553 = vpack.c.b16 %v473, %v472
  %v554 = vpack.c.b16 %v475, %v474
  %v555 = vpack.c.b16 %v477, %v476
  %v556 = vpack.c.b16 %v479, %v478
  %v557 = vpack.c.b16 %v481, %v480
  %v558 = vpack.c.b16 %v483, %v482
  %v559 = vpack.c.b16 %v485, %v484
  %v560 = vpack.c.b16 %v487, %v486
  %v561 = vpack.c.b16 %v489, %v488
  %634 = vmatpush.bf16.msra.mxu0 %v497
  %635 = vmatpush.bf16.msra.mxu0 %v496
  %636 = vmatpush.bf16.msra.mxu0 %v495
  %637 = vmatpush.bf16.msra.mxu0 %v494
  %638 = vmatpush.bf16.msra.mxu0 %v493
  %639 = vmatpush.bf16.msra.mxu0 %v492
  %640 = vmatpush.bf16.msra.mxu0 %v491
  %641 = vmatpush.bf16.msra.mxu0 %v490
  %642 = vmatmul.bf16.gmra.mxu0 %v184
  %v643 = vpop.f32.mrf.mxu0
  %v644 = vadd.f32 %v168, %v643
  %v645 = vpop.f32.mrf.mxu0
  %646 = vdwg.mxu0
  %647 = vmatpush.bf16.msra.mxu0 %v505
  %648 = vmatpush.bf16.msra.mxu0 %v504
  %649 = vmatpush.bf16.msra.mxu0 %v503
  %650 = vmatpush.bf16.msra.mxu0 %v502
  %651 = vmatpush.bf16.msra.mxu0 %v501
  %652 = vmatpush.bf16.msra.mxu0 %v500
  %653 = vmatpush.bf16.msra.mxu0 %v499
  %654 = vmatpush.bf16.msra.mxu0 %v498
  %655 = vmatmul.bf16.gmra.mxu0 %v185
  %v656 = vpop.f32.mrf.mxu0
  %v657 = vadd.f32 %v644, %v656
  %v658 = vpop.f32.mrf.mxu0
  %659 = vdwg.mxu0
  %660 = vmatpush.bf16.msra.mxu0 %v513
  %661 = vmatpush.bf16.msra.mxu0 %v512
  %662 = vmatpush.bf16.msra.mxu0 %v511
  %663 = vmatpush.bf16.msra.mxu0 %v510
  %664 = vmatpush.bf16.msra.mxu0 %v509
  %665 = vmatpush.bf16.msra.mxu0 %v508
  %666 = vmatpush.bf16.msra.mxu0 %v507
  %667 = vmatpush.bf16.msra.mxu0 %v506
  %668 = vmatmul.bf16.gmra.mxu0 %v186
  %v669 = vpop.f32.mrf.mxu0
  %v670 = vadd.f32 %v657, %v669
  %v671 = vpop.f32.mrf.mxu0
  %672 = vdwg.mxu0
  %673 = vmatpush.bf16.msra.mxu0 %v521
  %674 = vmatpush.bf16.msra.mxu0 %v520
  %675 = vmatpush.bf16.msra.mxu0 %v519
  %676 = vmatpush.bf16.msra.mxu0 %v518
  %677 = vmatpush.bf16.msra.mxu0 %v517
  %678 = vmatpush.bf16.msra.mxu0 %v516
  %679 = vmatpush.bf16.msra.mxu0 %v515
  %680 = vmatpush.bf16.msra.mxu0 %v514
  %681 = vmatmul.bf16.gmra.mxu0 %v187
  %v682 = vpop.f32.mrf.mxu0
  %v683 = vadd.f32 %v670, %v682
  %v684 = vpop.f32.mrf.mxu0
  %685 = vdwg.mxu0
  %686 = vmatpush.bf16.msra.mxu0 %v529
  %687 = vmatpush.bf16.msra.mxu0 %v528
  %688 = vmatpush.bf16.msra.mxu0 %v527
  %689 = vmatpush.bf16.msra.mxu0 %v526
  %690 = vmatpush.bf16.msra.mxu0 %v525
  %691 = vmatpush.bf16.msra.mxu0 %v524
  %692 = vmatpush.bf16.msra.mxu0 %v523
  %693 = vmatpush.bf16.msra.mxu0 %v522
  %694 = vmatmul.bf16.gmra.mxu0 %v188
  %v695 = vpop.f32.mrf.mxu0
  %v696 = vadd.f32 %v683, %v695
  %v697 = vpop.f32.mrf.mxu0
  %698 = vdwg.mxu0
  %699 = vmatpush.bf16.msra.mxu0 %v537
  %700 = vmatpush.bf16.msra.mxu0 %v536
  %701 = vmatpush.bf16.msra.mxu0 %v535
  %702 = vmatpush.bf16.msra.mxu0 %v534
  %703 = vmatpush.bf16.msra.mxu0 %v533
  %704 = vmatpush.bf16.msra.mxu0 %v532
  %705 = vmatpush.bf16.msra.mxu0 %v531
  %706 = vmatpush.bf16.msra.mxu0 %v530
  %707 = vmatmul.bf16.gmra.mxu0 %v189
  %v708 = vpop.f32.mrf.mxu0
  %v709 = vadd.f32 %v696, %v708
  %v710 = vpop.f32.mrf.mxu0
  %711 = vdwg.mxu0
  %712 = vmatpush.bf16.msra.mxu0 %v545
  %713 = vmatpush.bf16.msra.mxu0 %v544
  %714 = vmatpush.bf16.msra.mxu0 %v543
  %715 = vmatpush.bf16.msra.mxu0 %v542
  %716 = vmatpush.bf16.msra.mxu0 %v541
  %717 = vmatpush.bf16.msra.mxu0 %v540
  %718 = vmatpush.bf16.msra.mxu0 %v539
  %719 = vmatpush.bf16.msra.mxu0 %v538
  %720 = vmatmul.bf16.gmra.mxu0 %v190
  %v721 = vpop.f32.mrf.mxu0
  %v722 = vadd.f32 %v709, %v721
  %v723 = vpop.f32.mrf.mxu0
  %724 = vdwg.mxu0
  %725 = vmatpush.bf16.msra.mxu0 %v553
  %726 = vmatpush.bf16.msra.mxu0 %v552
  %727 = vmatpush.bf16.msra.mxu0 %v551
  %728 = vmatpush.bf16.msra.mxu0 %v550
  %729 = vmatpush.bf16.msra.mxu0 %v549
  %730 = vmatpush.bf16.msra.mxu0 %v548
  %731 = vmatpush.bf16.msra.mxu0 %v547
  %732 = vmatpush.bf16.msra.mxu0 %v546
  %733 = vmatmul.bf16.gmra.mxu0 %v191
  %v734 = vpop.f32.mrf.mxu0
  %v735 = vadd.f32 %v722, %v734
  %v736 = vpop.f32.mrf.mxu0
  %737 = vdwg.mxu0
  %738 = vmatpush.bf16.msra.mxu0 %v561
  %739 = vmatpush.bf16.msra.mxu0 %v560
  %740 = vmatpush.bf16.msra.mxu0 %v559
  %741 = vmatpush.bf16.msra.mxu0 %v558
  %742 = vmatpush.bf16.msra.mxu0 %v557
  %743 = vmatpush.bf16.msra.mxu0 %v556
  %744 = vmatpush.bf16.msra.mxu0 %v555
  %745 = vmatpush.bf16.msra.mxu0 %v554
  %746 = vmatmul.bf16.gmra.mxu0 %v192
  %v747 = vpop.f32.mrf.mxu0
  %v748 = vadd.f32 %v735, %v747
  %v749 = vpop.f32.mrf.mxu0
  %750 = vdwg.mxu0
  %v751 = vld [vmem:[%s3] sm:$0xf]
  %v752 = vunpack.c.l.bf16 %v751
  %v753 = vadd.f32 %v748, %v752
  %v754 = vmax.f32 %v753, 0.0
  %v755 = vpack.c.bf16 %v754, %v754
  %756 = vst [vmem:[%s4] sm:$0xf] %v755
  // Predicated region
  $region18: #{resnet18_forward.24} parent=0 // pred_check
    _
  $region19: #{resnet18_forward.24} parent=0 // pred_check_branch
    %758 = sbr.rel (0) target = $region21
  $region20: #{resnet18_forward.24} parent=0 // pred_region
    _
  $region21: #{resnet18_forward.24} parent=0 // pred_fallthru
    _
  // Predicated region
  $region22: #{resnet18_forward.24} parent=0 // pred_check
    _
  $region23: #{resnet18_forward.24} parent=0 // pred_check_branch
    %760 = sbr.rel (0) target = $region25
  $region24: #{resnet18_forward.24} parent=0 // pred_region
    _
  $region25: #{resnet18_forward.24} parent=0 // pred_fallthru
    _

// kernel: resnet18_forward.25
$region0: #{resnet18_forward.25}
  #allocation0 [shape = 'u32[]', space=smem, size = 0x4, offset = 0x4, fixed_abs, tag = 'smem constant byte address 0x4 - core index']
  #allocation1 [shape = 'u32[72,128]{1,0:T(1,128)}', space=vmem, size = 0x9000, scoped, tag = 'internal scratch']
  %s0 = inlined_call_operand.vmem [shape: bf16[8,1152], index: 0, kind: input, shape index: {}]
  %s1 = inlined_call_operand.vmem [shape: bf16[1152,128], index: 1, kind: input, shape index: {}]
  %s2 = inlined_call_operand.vmem [shape: f32[1,128], index: 2, kind: input, shape index: {}]
  %s3 = inlined_call_operand.vmem [shape: bf16[8,128], index: 3, kind: output, shape index: {}]
  %s4 = sld [smem:[#allocation0]]
  $region22: #{resnet18_forward.25} parent=0
    _
  %s6 = ssub.s32 1, %s4
  %s7 = scalar_select 0, %s6, %s4
  // Predicated region
  $region2: #{resnet18_forward.25} parent=0 // pred_check
    _
  $region3: #{resnet18_forward.25} parent=0 // pred_check_branch
    %9 = sbr.rel (0) target = $region5
  $region4: #{resnet18_forward.25} parent=0 // pred_region
    _
  $region5: #{resnet18_forward.25} parent=0 // pred_fallthru
    _
  // Predicated region
  $region6: #{resnet18_forward.25} parent=0 // pred_check
    _
  $region7: #{resnet18_forward.25} parent=0 // pred_check_branch
    %11 = sbr.rel (0) target = $region9
  $region8: #{resnet18_forward.25} parent=0 // pred_region
    _
  $region9: #{resnet18_forward.25} parent=0 // pred_fallthru
    _
  // Predicated region
  $region10: #{resnet18_forward.25} parent=0 // pred_check
    _
  $region11: #{resnet18_forward.25} parent=0 // pred_check_branch
    %13 = sbr.rel (0) target = $region13
  $region12: #{resnet18_forward.25} parent=0 // pred_region
    _
  $region13: #{resnet18_forward.25} parent=0 // pred_fallthru
    _
  %v14 = vld [vmem:[%s0] sm:$0xff]
  %v15 = vld [vmem:[%s0 + $0x8] sm:$0xff]
  %v16 = vld [vmem:[%s0 + $0x10] sm:$0xff]
  %v17 = vld [vmem:[%s0 + $0x18] sm:$0xff]
  %v18 = vld [vmem:[%s0 + $0x20] sm:$0xf]
  %v19 = vld [vmem:[%s1] sm:$0xf]
  %v20 = vld [vmem:[%s1 + $0x4] sm:$0xf]
  %v21 = vld [vmem:[%s1 + $0x8] sm:$0xf]
  %v22 = vld [vmem:[%s1 + $0xc] sm:$0xf]
  %v23 = vld [vmem:[%s1 + $0x10] sm:$0xf]
  %v24 = vld [vmem:[%s1 + $0x14] sm:$0xf]
  %v25 = vld [vmem:[%s1 + $0x18] sm:$0xf]
  %v26 = vld [vmem:[%s1 + $0x1c] sm:$0xf]
  %v27 = vld [vmem:[%s1 + $0x20] sm:$0xf]
  %v28 = vld [vmem:[%s1 + $0x24] sm:$0xf]
  %v29 = vld [vmem:[%s1 + $0x28] sm:$0xf]
  %v30 = vld [vmem:[%s1 + $0x2c] sm:$0xf]
  %v31 = vld [vmem:[%s1 + $0x30] sm:$0xf]
  %v32 = vld [vmem:[%s1 + $0x34] sm:$0xf]
  %v33 = vld [vmem:[%s1 + $0x38] sm:$0xf]
  %v34 = vld [vmem:[%s1 + $0x3c] sm:$0xf]
  %v35 = vld [vmem:[%s1 + $0x40] sm:$0xf]
  %v36 = vld [vmem:[%s1 + $0x44] sm:$0xf]
  %v37 = vld [vmem:[%s1 + $0x48] sm:$0xf]
  %v38 = vld [vmem:[%s1 + $0x4c] sm:$0xf]
  %v39 = vld [vmem:[%s1 + $0x50] sm:$0xf]
  %v40 = vld [vmem:[%s1 + $0x54] sm:$0xf]
  %v41 = vld [vmem:[%s1 + $0x58] sm:$0xf]
  %v42 = vld [vmem:[%s1 + $0x5c] sm:$0xf]
  %v43 = vld [vmem:[%s1 + $0x60] sm:$0xf]
  %v44 = vld [vmem:[%s1 + $0x64] sm:$0xf]
  %v45 = vld [vmem:[%s1 + $0x68] sm:$0xf]
  %v46 = vld [vmem:[%s1 + $0x6c] sm:$0xf]
  %v47 = vld [vmem:[%s1 + $0x70] sm:$0xf]
  %v48 = vld [vmem:[%s1 + $0x74] sm:$0xf]
  %v49 = vld [vmem:[%s1 + $0x78] sm:$0xf]
  %v50 = vld [vmem:[%s1 + $0x7c] sm:$0xf]
  %v51 = vld [vmem:[%s1 + $0x80] sm:$0xf]
  %v52 = vld [vmem:[%s1 + $0x84] sm:$0xf]
  %v53 = vld [vmem:[%s1 + $0x88] sm:$0xf]
  %v54 = vld [vmem:[%s1 + $0x8c] sm:$0xf]
  %v55 = vld [vmem:[%s1 + $0x90] sm:$0xf]
  %v56 = vld [vmem:[%s1 + $0x94] sm:$0xf]
  %v57 = vld [vmem:[%s1 + $0x98] sm:$0xf]
  %v58 = vld [vmem:[%s1 + $0x9c] sm:$0xf]
  %v59 = vld [vmem:[%s1 + $0xa0] sm:$0xf]
  %v60 = vld [vmem:[%s1 + $0xa4] sm:$0xf]
  %v61 = vld [vmem:[%s1 + $0xa8] sm:$0xf]
  %v62 = vld [vmem:[%s1 + $0xac] sm:$0xf]
  %v63 = vld [vmem:[%s1 + $0xb0] sm:$0xf]
  %v64 = vld [vmem:[%s1 + $0xb4] sm:$0xf]
  %v65 = vld [vmem:[%s1 + $0xb8] sm:$0xf]
  %v66 = vld [vmem:[%s1 + $0xbc] sm:$0xf]
  %v67 = vld [vmem:[%s1 + $0xc0] sm:$0xf]
  %v68 = vld [vmem:[%s1 + $0xc4] sm:$0xf]
  %v69 = vld [vmem:[%s1 + $0xc8] sm:$0xf]
  %v70 = vld [vmem:[%s1 + $0xcc] sm:$0xf]
  %v71 = vld [vmem:[%s1 + $0xd0] sm:$0xf]
  %v72 = vld [vmem:[%s1 + $0xd4] sm:$0xf]
  %v73 = vld [vmem:[%s1 + $0xd8] sm:$0xf]
  %v74 = vld [vmem:[%s1 + $0xdc] sm:$0xf]
  %v75 = vld [vmem:[%s1 + $0xe0] sm:$0xf]
  %v76 = vld [vmem:[%s1 + $0xe4] sm:$0xf]
  %v77 = vld [vmem:[%s1 + $0xe8] sm:$0xf]
  %v78 = vld [vmem:[%s1 + $0xec] sm:$0xf]
  %v79 = vld [vmem:[%s1 + $0xf0] sm:$0xf]
  %v80 = vld [vmem:[%s1 + $0xf4] sm:$0xf]
  %v81 = vld [vmem:[%s1 + $0xf8] sm:$0xf]
  %v82 = vld [vmem:[%s1 + $0xfc] sm:$0xf]
  %v83 = vld [vmem:[%s1 + $0x100] sm:$0xf]
  %v84 = vld [vmem:[%s1 + $0x104] sm:$0xf]
  %v85 = vld [vmem:[%s1 + $0x108] sm:$0xf]
  %v86 = vld [vmem:[%s1 + $0x10c] sm:$0xf]
  %v87 = vld [vmem:[%s1 + $0x110] sm:$0xf]
  %v88 = vld [vmem:[%s1 + $0x114] sm:$0xf]
  %v89 = vld [vmem:[%s1 + $0x118] sm:$0xf]
  %v90 = vld [vmem:[%s1 + $0x11c] sm:$0xf]
  %v91 = vld [vmem:[%s1 + $0x120] sm:$0xf]
  %v92 = vld [vmem:[%s1 + $0x124] sm:$0xf]
  %v93 = vld [vmem:[%s1 + $0x128] sm:$0xf]
  %v94 = vld [vmem:[%s1 + $0x12c] sm:$0xf]
  %v95 = vld [vmem:[%s1 + $0x130] sm:$0xf]
  %v96 = vld [vmem:[%s1 + $0x134] sm:$0xf]
  %v97 = vld [vmem:[%s1 + $0x138] sm:$0xf]
  %v98 = vld [vmem:[%s1 + $0x13c] sm:$0xf]
  %v99 = vld [vmem:[%s1 + $0x140] sm:$0xf]
  %v100 = vld [vmem:[%s1 + $0x144] sm:$0xf]
  %v101 = vld [vmem:[%s1 + $0x148] sm:$0xf]
  %v102 = vld [vmem:[%s1 + $0x14c] sm:$0xf]
  %v103 = vld [vmem:[%s1 + $0x150] sm:$0xf]
  %v104 = vld [vmem:[%s1 + $0x154] sm:$0xf]
  %v105 = vld [vmem:[%s1 + $0x158] sm:$0xf]
  %v106 = vld [vmem:[%s1 + $0x15c] sm:$0xf]
  %v107 = vld [vmem:[%s1 + $0x160] sm:$0xf]
  %v108 = vld [vmem:[%s1 + $0x164] sm:$0xf]
  %v109 = vld [vmem:[%s1 + $0x168] sm:$0xf]
  %v110 = vld [vmem:[%s1 + $0x16c] sm:$0xf]
  %v111 = vld [vmem:[%s1 + $0x170] sm:$0xf]
  %v112 = vld [vmem:[%s1 + $0x174] sm:$0xf]
  %v113 = vld [vmem:[%s1 + $0x178] sm:$0xf]
  %v114 = vld [vmem:[%s1 + $0x17c] sm:$0xf]
  %v115 = vld [vmem:[%s1 + $0x180] sm:$0xf]
  %v116 = vld [vmem:[%s1 + $0x184] sm:$0xf]
  %v117 = vld [vmem:[%s1 + $0x188] sm:$0xf]
  %v118 = vld [vmem:[%s1 + $0x18c] sm:$0xf]
  %v119 = vld [vmem:[%s1 + $0x190] sm:$0xf]
  %v120 = vld [vmem:[%s1 + $0x194] sm:$0xf]
  %v121 = vld [vmem:[%s1 + $0x198] sm:$0xf]
  %v122 = vld [vmem:[%s1 + $0x19c] sm:$0xf]
  %v123 = vld [vmem:[%s1 + $0x1a0] sm:$0xf]
  %v124 = vld [vmem:[%s1 + $0x1a4] sm:$0xf]
  %v125 = vld [vmem:[%s1 + $0x1a8] sm:$0xf]
  %v126 = vld [vmem:[%s1 + $0x1ac] sm:$0xf]
  %v127 = vld [vmem:[%s1 + $0x1b0] sm:$0xf]
  %v128 = vld [vmem:[%s1 + $0x1b4] sm:$0xf]
  %v129 = vld [vmem:[%s1 + $0x1b8] sm:$0xf]
  %v130 = vld [vmem:[%s1 + $0x1bc] sm:$0xf]
  %v131 = vld [vmem:[%s1 + $0x1c0] sm:$0xf]
  %v132 = vld [vmem:[%s1 + $0x1c4] sm:$0xf]
  %v133 = vld [vmem:[%s1 + $0x1c8] sm:$0xf]
  %v134 = vld [vmem:[%s1 + $0x1cc] sm:$0xf]
  %v135 = vld [vmem:[%s1 + $0x1d0] sm:$0xf]
  %v136 = vld [vmem:[%s1 + $0x1d4] sm:$0xf]
  %v137 = vld [vmem:[%s1 + $0x1d8] sm:$0xf]
  %v138 = vld [vmem:[%s1 + $0x1dc] sm:$0xf]
  %v139 = vld [vmem:[%s1 + $0x1e0] sm:$0xf]
  %v140 = vld [vmem:[%s1 + $0x1e4] sm:$0xf]
  %v141 = vld [vmem:[%s1 + $0x1e8] sm:$0xf]
  %v142 = vld [vmem:[%s1 + $0x1ec] sm:$0xf]
  %v143 = vld [vmem:[%s1 + $0x1f0] sm:$0xf]
  %v144 = vld [vmem:[%s1 + $0x1f4] sm:$0xf]
  %v145 = vld [vmem:[%s1 + $0x1f8] sm:$0xf]
  %v146 = vld [vmem:[%s1 + $0x1fc] sm:$0xf]
  %v147 = vld [vmem:[%s1 + $0x200] sm:$0xf]
  %v148 = vld [vmem:[%s1 + $0x204] sm:$0xf]
  %v149 = vld [vmem:[%s1 + $0x208] sm:$0xf]
  %v150 = vld [vmem:[%s1 + $0x20c] sm:$0xf]
  %v151 = vld [vmem:[%s1 + $0x210] sm:$0xf]
  %v152 = vld [vmem:[%s1 + $0x214] sm:$0xf]
  %v153 = vld [vmem:[%s1 + $0x218] sm:$0xf]
  %v154 = vld [vmem:[%s1 + $0x21c] sm:$0xf]
  %v155 = vld [vmem:[%s1 + $0x220] sm:$0xf]
  %v156 = vld [vmem:[%s1 + $0x224] sm:$0xf]
  %v157 = vld [vmem:[%s1 + $0x228] sm:$0xf]
  %v158 = vld [vmem:[%s1 + $0x22c] sm:$0xf]
  %v159 = vld [vmem:[%s1 + $0x230] sm:$0xf]
  %v160 = vld [vmem:[%s1 + $0x234] sm:$0xf]
  %v161 = vld [vmem:[%s1 + $0x238] sm:$0xf]
  %v162 = vld [vmem:[%s1 + $0x23c] sm:$0xf]
  %v163 = vld [vmem:[%s2] sm:$0x1]
  %v165 = vperm.slane %v163, 0
  %v172 = vunpack.c.l.b16 %v14
  %v173 = vunpack.c.h.b16 %v14
  %v174 = vunpack.c.l.b16 %v15
  %v175 = vunpack.c.h.b16 %v15
  %v176 = vunpack.c.l.b16 %v16
  %v177 = vunpack.c.h.b16 %v16
  %v178 = vunpack.c.l.b16 %v17
  %v179 = vunpack.c.h.b16 %v17
  %v180 = vunpack.c.l.b16 %v18
  %v181 = vpack.c.b16 %v172, %v172
  %v182 = vpack.c.b16 %v173, %v173
  %v183 = vpack.c.b16 %v174, %v174
  %v184 = vpack.c.b16 %v175, %v175
  %v185 = vpack.c.b16 %v176, %v176
  %v186 = vpack.c.b16 %v177, %v177
  %v187 = vpack.c.b16 %v178, %v178
  %v188 = vpack.c.b16 %v179, %v179
  %v189 = vpack.c.b16 %v180, %v180
  %v343 = vunpack.c.l.b16 %v19
  %v344 = vunpack.c.l.b16 %v20
  %v345 = vunpack.c.l.b16 %v21
  %v346 = vunpack.c.l.b16 %v22
  %v347 = vunpack.c.l.b16 %v23
  %v348 = vunpack.c.l.b16 %v24
  %v349 = vunpack.c.l.b16 %v25
  %v350 = vunpack.c.l.b16 %v26
  %v351 = vunpack.c.l.b16 %v27
  %v352 = vunpack.c.l.b16 %v28
  %v353 = vunpack.c.l.b16 %v29
  %v354 = vunpack.c.l.b16 %v30
  %v355 = vunpack.c.l.b16 %v31
  %v356 = vunpack.c.l.b16 %v32
  %v357 = vunpack.c.l.b16 %v33
  %v358 = vunpack.c.l.b16 %v34
  %v359 = vunpack.c.l.b16 %v35
  %v360 = vunpack.c.l.b16 %v36
  %v361 = vunpack.c.l.b16 %v37
  %v362 = vunpack.c.l.b16 %v38
  %v363 = vunpack.c.l.b16 %v39
  %v364 = vunpack.c.l.b16 %v40
  %v365 = vunpack.c.l.b16 %v41
  %v366 = vunpack.c.l.b16 %v42
  %v367 = vunpack.c.l.b16 %v43
  %v368 = vunpack.c.l.b16 %v44
  %v369 = vunpack.c.l.b16 %v45
  %v370 = vunpack.c.l.b16 %v46
  %v371 = vunpack.c.l.b16 %v47
  %v372 = vunpack.c.l.b16 %v48
  %v373 = vunpack.c.l.b16 %v49
  %v374 = vunpack.c.l.b16 %v50
  %v375 = vunpack.c.l.b16 %v51
  %v376 = vunpack.c.l.b16 %v52
  %v377 = vunpack.c.l.b16 %v53
  %v378 = vunpack.c.l.b16 %v54
  %v379 = vunpack.c.l.b16 %v55
  %v380 = vunpack.c.l.b16 %v56
  %v381 = vunpack.c.l.b16 %v57
  %v382 = vunpack.c.l.b16 %v58
  %v383 = vunpack.c.l.b16 %v59
  %v384 = vunpack.c.l.b16 %v60
  %v385 = vunpack.c.l.b16 %v61
  %v386 = vunpack.c.l.b16 %v62
  %v387 = vunpack.c.l.b16 %v63
  %v388 = vunpack.c.l.b16 %v64
  %v389 = vunpack.c.l.b16 %v65
  %v390 = vunpack.c.l.b16 %v66
  %v391 = vunpack.c.l.b16 %v67
  %v392 = vunpack.c.l.b16 %v68
  %v393 = vunpack.c.l.b16 %v69
  %v394 = vunpack.c.l.b16 %v70
  %v395 = vunpack.c.l.b16 %v71
  %v396 = vunpack.c.l.b16 %v72
  %v397 = vunpack.c.l.b16 %v73
  %v398 = vunpack.c.l.b16 %v74
  %v399 = vunpack.c.l.b16 %v75
  %v400 = vunpack.c.l.b16 %v76
  %v401 = vunpack.c.l.b16 %v77
  %v402 = vunpack.c.l.b16 %v78
  %v403 = vunpack.c.l.b16 %v79
  %v404 = vunpack.c.l.b16 %v80
  %v405 = vunpack.c.l.b16 %v81
  %v406 = vunpack.c.l.b16 %v82
  %v407 = vunpack.c.l.b16 %v83
  %v408 = vunpack.c.l.b16 %v84
  %v409 = vunpack.c.l.b16 %v85
  %v410 = vunpack.c.l.b16 %v86
  %v411 = vunpack.c.l.b16 %v87
  %v412 = vunpack.c.l.b16 %v88
  %v413 = vunpack.c.l.b16 %v89
  %v414 = vunpack.c.l.b16 %v90
  %v415 = vunpack.c.l.b16 %v91
  %v416 = vunpack.c.l.b16 %v92
  %v417 = vunpack.c.l.b16 %v93
  %v418 = vunpack.c.l.b16 %v94
  %v419 = vunpack.c.l.b16 %v95
  %v420 = vunpack.c.l.b16 %v96
  %v421 = vunpack.c.l.b16 %v97
  %v422 = vunpack.c.l.b16 %v98
  %v423 = vunpack.c.l.b16 %v99
  %v424 = vunpack.c.l.b16 %v100
  %v425 = vunpack.c.l.b16 %v101
  %v426 = vunpack.c.l.b16 %v102
  %v427 = vunpack.c.l.b16 %v103
  %v428 = vunpack.c.l.b16 %v104
  %v429 = vunpack.c.l.b16 %v105
  %v430 = vunpack.c.l.b16 %v106
  %v431 = vunpack.c.l.b16 %v107
  %v432 = vunpack.c.l.b16 %v108
  %v433 = vunpack.c.l.b16 %v109
  %v434 = vunpack.c.l.b16 %v110
  %v435 = vunpack.c.l.b16 %v111
  %v436 = vunpack.c.l.b16 %v112
  %v437 = vunpack.c.l.b16 %v113
  %v438 = vunpack.c.l.b16 %v114
  %v439 = vunpack.c.l.b16 %v115
  %v440 = vunpack.c.l.b16 %v116
  %v441 = vunpack.c.l.b16 %v117
  %v442 = vunpack.c.l.b16 %v118
  %v443 = vunpack.c.l.b16 %v119
  %v444 = vunpack.c.l.b16 %v120
  %v445 = vunpack.c.l.b16 %v121
  %v446 = vunpack.c.l.b16 %v122
  %v447 = vunpack.c.l.b16 %v123
  %v448 = vunpack.c.l.b16 %v124
  %v449 = vunpack.c.l.b16 %v125
  %v450 = vunpack.c.l.b16 %v126
  %v451 = vunpack.c.l.b16 %v127
  %v452 = vunpack.c.l.b16 %v128
  %v453 = vunpack.c.l.b16 %v129
  %v454 = vunpack.c.l.b16 %v130
  %v455 = vunpack.c.l.b16 %v131
  %v456 = vunpack.c.l.b16 %v132
  %v457 = vunpack.c.l.b16 %v133
  %v458 = vunpack.c.l.b16 %v134
  %v459 = vunpack.c.l.b16 %v135
  %v460 = vunpack.c.l.b16 %v136
  %v461 = vunpack.c.l.b16 %v137
  %v462 = vunpack.c.l.b16 %v138
  %v463 = vunpack.c.l.b16 %v139
  %v464 = vunpack.c.l.b16 %v140
  %v465 = vunpack.c.l.b16 %v141
  %v466 = vunpack.c.l.b16 %v142
  %v467 = vunpack.c.l.b16 %v143
  %v468 = vunpack.c.l.b16 %v144
  %v469 = vunpack.c.l.b16 %v145
  %v470 = vunpack.c.l.b16 %v146
  %v471 = vunpack.c.l.b16 %v147
  %v472 = vunpack.c.l.b16 %v148
  %v473 = vunpack.c.l.b16 %v149
  %v474 = vunpack.c.l.b16 %v150
  %v475 = vunpack.c.l.b16 %v151
  %v476 = vunpack.c.l.b16 %v152
  %v477 = vunpack.c.l.b16 %v153
  %v478 = vunpack.c.l.b16 %v154
  %v479 = vunpack.c.l.b16 %v155
  %v480 = vunpack.c.l.b16 %v156
  %v481 = vunpack.c.l.b16 %v157
  %v482 = vunpack.c.l.b16 %v158
  %v483 = vunpack.c.l.b16 %v159
  %v484 = vunpack.c.l.b16 %v160
  %v485 = vunpack.c.l.b16 %v161
  %v486 = vunpack.c.l.b16 %v162
  %v487 = vpack.c.b16 %v344, %v343
  %v488 = vpack.c.b16 %v346, %v345
  %v489 = vpack.c.b16 %v348, %v347
  %v490 = vpack.c.b16 %v350, %v349
  %v491 = vpack.c.b16 %v352, %v351
  %v492 = vpack.c.b16 %v354, %v353
  %v493 = vpack.c.b16 %v356, %v355
  %v494 = vpack.c.b16 %v358, %v357
  %v495 = vpack.c.b16 %v360, %v359
  %v496 = vpack.c.b16 %v362, %v361
  %v497 = vpack.c.b16 %v364, %v363
  %v498 = vpack.c.b16 %v366, %v365
  %v499 = vpack.c.b16 %v368, %v367
  %v500 = vpack.c.b16 %v370, %v369
  %v501 = vpack.c.b16 %v372, %v371
  %v502 = vpack.c.b16 %v374, %v373
  %v503 = vpack.c.b16 %v376, %v375
  %v504 = vpack.c.b16 %v378, %v377
  %v505 = vpack.c.b16 %v380, %v379
  %v506 = vpack.c.b16 %v382, %v381
  %v507 = vpack.c.b16 %v384, %v383
  %v508 = vpack.c.b16 %v386, %v385
  %v509 = vpack.c.b16 %v388, %v387
  %v510 = vpack.c.b16 %v390, %v389
  %v511 = vpack.c.b16 %v392, %v391
  %v512 = vpack.c.b16 %v394, %v393
  %v513 = vpack.c.b16 %v396, %v395
  %v514 = vpack.c.b16 %v398, %v397
  %v515 = vpack.c.b16 %v400, %v399
  %v516 = vpack.c.b16 %v402, %v401
  %v517 = vpack.c.b16 %v404, %v403
  %v518 = vpack.c.b16 %v406, %v405
  %v519 = vpack.c.b16 %v408, %v407
  %v520 = vpack.c.b16 %v410, %v409
  %v521 = vpack.c.b16 %v412, %v411
  %v522 = vpack.c.b16 %v414, %v413
  %v523 = vpack.c.b16 %v416, %v415
  %v524 = vpack.c.b16 %v418, %v417
  %v525 = vpack.c.b16 %v420, %v419
  %v526 = vpack.c.b16 %v422, %v421
  %v527 = vpack.c.b16 %v424, %v423
  %v528 = vpack.c.b16 %v426, %v425
  %v529 = vpack.c.b16 %v428, %v427
  %v530 = vpack.c.b16 %v430, %v429
  %v531 = vpack.c.b16 %v432, %v431
  %v532 = vpack.c.b16 %v434, %v433
  %v533 = vpack.c.b16 %v436, %v435
  %v534 = vpack.c.b16 %v438, %v437
  %v535 = vpack.c.b16 %v440, %v439
  %v536 = vpack.c.b16 %v442, %v441
  %v537 = vpack.c.b16 %v444, %v443
  %v538 = vpack.c.b16 %v446, %v445
  %v539 = vpack.c.b16 %v448, %v447
  %v540 = vpack.c.b16 %v450, %v449
  %v541 = vpack.c.b16 %v452, %v451
  %v542 = vpack.c.b16 %v454, %v453
  %v543 = vpack.c.b16 %v456, %v455
  %v544 = vpack.c.b16 %v458, %v457
  %v545 = vpack.c.b16 %v460, %v459
  %v546 = vpack.c.b16 %v462, %v461
  %v547 = vpack.c.b16 %v464, %v463
  %v548 = vpack.c.b16 %v466, %v465
  %v549 = vpack.c.b16 %v468, %v467
  %v550 = vpack.c.b16 %v470, %v469
  %v551 = vpack.c.b16 %v472, %v471
  %v552 = vpack.c.b16 %v474, %v473
  %v553 = vpack.c.b16 %v476, %v475
  %v554 = vpack.c.b16 %v478, %v477
  %v555 = vpack.c.b16 %v480, %v479
  %v556 = vpack.c.b16 %v482, %v481
  %v557 = vpack.c.b16 %v484, %v483
  %v558 = vpack.c.b16 %v486, %v485
  %631 = vmatpush.bf16.msra.mxu0 %v494
  %632 = vmatpush.bf16.msra.mxu0 %v493
  %633 = vmatpush.bf16.msra.mxu0 %v492
  %634 = vmatpush.bf16.msra.mxu0 %v491
  %635 = vmatpush.bf16.msra.mxu0 %v490
  %636 = vmatpush.bf16.msra.mxu0 %v489
  %637 = vmatpush.bf16.msra.mxu0 %v488
  %638 = vmatpush.bf16.msra.mxu0 %v487
  %639 = vmatmul.bf16.gmra.mxu0 %v181
  %v640 = vpop.f32.mrf.mxu0
  %v641 = vadd.f32 %v165, %v640
  %v642 = vpop.f32.mrf.mxu0
  %643 = vdwg.mxu0
  %644 = vmatpush.bf16.msra.mxu0 %v502
  %645 = vmatpush.bf16.msra.mxu0 %v501
  %646 = vmatpush.bf16.msra.mxu0 %v500
  %647 = vmatpush.bf16.msra.mxu0 %v499
  %648 = vmatpush.bf16.msra.mxu0 %v498
  %649 = vmatpush.bf16.msra.mxu0 %v497
  %650 = vmatpush.bf16.msra.mxu0 %v496
  %651 = vmatpush.bf16.msra.mxu0 %v495
  %652 = vmatmul.bf16.gmra.mxu0 %v182
  %v653 = vpop.f32.mrf.mxu0
  %v654 = vadd.f32 %v641, %v653
  %v655 = vpop.f32.mrf.mxu0
  %656 = vdwg.mxu0
  %657 = vmatpush.bf16.msra.mxu0 %v510
  %658 = vmatpush.bf16.msra.mxu0 %v509
  %659 = vmatpush.bf16.msra.mxu0 %v508
  %660 = vmatpush.bf16.msra.mxu0 %v507
  %661 = vmatpush.bf16.msra.mxu0 %v506
  %662 = vmatpush.bf16.msra.mxu0 %v505
  %663 = vmatpush.bf16.msra.mxu0 %v504
  %664 = vmatpush.bf16.msra.mxu0 %v503
  %665 = vmatmul.bf16.gmra.mxu0 %v183
  %v666 = vpop.f32.mrf.mxu0
  %v667 = vadd.f32 %v654, %v666
  %v668 = vpop.f32.mrf.mxu0
  %669 = vdwg.mxu0
  %670 = vmatpush.bf16.msra.mxu0 %v518
  %671 = vmatpush.bf16.msra.mxu0 %v517
  %672 = vmatpush.bf16.msra.mxu0 %v516
  %673 = vmatpush.bf16.msra.mxu0 %v515
  %674 = vmatpush.bf16.msra.mxu0 %v514
  %675 = vmatpush.bf16.msra.mxu0 %v513
  %676 = vmatpush.bf16.msra.mxu0 %v512
  %677 = vmatpush.bf16.msra.mxu0 %v511
  %678 = vmatmul.bf16.gmra.mxu0 %v184
  %v679 = vpop.f32.mrf.mxu0
  %v680 = vadd.f32 %v667, %v679
  %v681 = vpop.f32.mrf.mxu0
  %682 = vdwg.mxu0
  %683 = vmatpush.bf16.msra.mxu0 %v526
  %684 = vmatpush.bf16.msra.mxu0 %v525
  %685 = vmatpush.bf16.msra.mxu0 %v524
  %686 = vmatpush.bf16.msra.mxu0 %v523
  %687 = vmatpush.bf16.msra.mxu0 %v522
  %688 = vmatpush.bf16.msra.mxu0 %v521
  %689 = vmatpush.bf16.msra.mxu0 %v520
  %690 = vmatpush.bf16.msra.mxu0 %v519
  %691 = vmatmul.bf16.gmra.mxu0 %v185
  %v692 = vpop.f32.mrf.mxu0
  %v693 = vadd.f32 %v680, %v692
  %v694 = vpop.f32.mrf.mxu0
  %695 = vdwg.mxu0
  %696 = vmatpush.bf16.msra.mxu0 %v534
  %697 = vmatpush.bf16.msra.mxu0 %v533
  %698 = vmatpush.bf16.msra.mxu0 %v532
  %699 = vmatpush.bf16.msra.mxu0 %v531
  %700 = vmatpush.bf16.msra.mxu0 %v530
  %701 = vmatpush.bf16.msra.mxu0 %v529
  %702 = vmatpush.bf16.msra.mxu0 %v528
  %703 = vmatpush.bf16.msra.mxu0 %v527
  %704 = vmatmul.bf16.gmra.mxu0 %v186
  %v705 = vpop.f32.mrf.mxu0
  %v706 = vadd.f32 %v693, %v705
  %v707 = vpop.f32.mrf.mxu0
  %708 = vdwg.mxu0
  %709 = vmatpush.bf16.msra.mxu0 %v542
  %710 = vmatpush.bf16.msra.mxu0 %v541
  %711 = vmatpush.bf16.msra.mxu0 %v540
  %712 = vmatpush.bf16.msra.mxu0 %v539
  %713 = vmatpush.bf16.msra.mxu0 %v538
  %714 = vmatpush.bf16.msra.mxu0 %v537
  %715 = vmatpush.bf16.msra.mxu0 %v536
  %716 = vmatpush.bf16.msra.mxu0 %v535
  %717 = vmatmul.bf16.gmra.mxu0 %v187
  %v718 = vpop.f32.mrf.mxu0
  %v719 = vadd.f32 %v706, %v718
  %v720 = vpop.f32.mrf.mxu0
  %721 = vdwg.mxu0
  %722 = vmatpush.bf16.msra.mxu0 %v550
  %723 = vmatpush.bf16.msra.mxu0 %v549
  %724 = vmatpush.bf16.msra.mxu0 %v548
  %725 = vmatpush.bf16.msra.mxu0 %v547
  %726 = vmatpush.bf16.msra.mxu0 %v546
  %727 = vmatpush.bf16.msra.mxu0 %v545
  %728 = vmatpush.bf16.msra.mxu0 %v544
  %729 = vmatpush.bf16.msra.mxu0 %v543
  %730 = vmatmul.bf16.gmra.mxu0 %v188
  %v731 = vpop.f32.mrf.mxu0
  %v732 = vadd.f32 %v719, %v731
  %v733 = vpop.f32.mrf.mxu0
  %734 = vdwg.mxu0
  %735 = vmatpush.bf16.msra.mxu0 %v558
  %736 = vmatpush.bf16.msra.mxu0 %v557
  %737 = vmatpush.bf16.msra.mxu0 %v556
  %738 = vmatpush.bf16.msra.mxu0 %v555
  %739 = vmatpush.bf16.msra.mxu0 %v554
  %740 = vmatpush.bf16.msra.mxu0 %v553
  %741 = vmatpush.bf16.msra.mxu0 %v552
  %742 = vmatpush.bf16.msra.mxu0 %v551
  %743 = vmatmul.bf16.gmra.mxu0 %v189
  %v744 = vpop.f32.mrf.mxu0
  %v745 = vadd.f32 %v732, %v744
  %v746 = vpop.f32.mrf.mxu0
  %747 = vdwg.mxu0
  %v748 = vmax.f32 %v745, 0.0
  %v749 = vpack.c.bf16 %v748, %v748
  %750 = vst [vmem:[%s3] sm:$0xf] %v749
  // Predicated region
  $region14: #{resnet18_forward.25} parent=0 // pred_check
    _
  $region15: #{resnet18_forward.25} parent=0 // pred_check_branch
    %752 = sbr.rel (0) target = $region17
  $region16: #{resnet18_forward.25} parent=0 // pred_region
    _
  $region17: #{resnet18_forward.25} parent=0 // pred_fallthru
    _
  // Predicated region
  $region18: #{resnet18_forward.25} parent=0 // pred_check
    _
  $region19: #{resnet18_forward.25} parent=0 // pred_check_branch
    %754 = sbr.rel (0) target = $region21
  $region20: #{resnet18_forward.25} parent=0 // pred_region
    _
  $region21: #{resnet18_forward.25} parent=0 // pred_fallthru
    _

// kernel: resnet18_forward.28
$region0: #{resnet18_forward.28}
  #allocation0 [shape = 'u32[]', space=smem, size = 0x4, offset = 0x4, fixed_abs, tag = 'smem constant byte address 0x4 - core index']
  #allocation1 [shape = 'u32[72,128]{1,0:T(1,128)}', space=vmem, size = 0x9000, scoped, tag = 'internal scratch']
  %s0 = inlined_call_operand.vmem [shape: bf16[2,256], index: 0, kind: input, shape index: {}]
  %s1 = inlined_call_operand.hbm [shape: bf16[256,256], index: 1, kind: input, shape index: {}]
  %s2 = inlined_call_operand.vmem [shape: f32[1,256], index: 2, kind: input, shape index: {}]
  %s3 = inlined_call_operand.hbm [shape: bf16[256,256], index: 3, kind: input, shape index: {}]
  %s4 = inlined_call_operand.vmem [shape: f32[1,256], index: 4, kind: input, shape index: {}]
  %s5 = inlined_call_operand.vmem [shape: bf16[2,256], index: 5, kind: output, shape index: {}]
  %s6 = sld [smem:[#allocation0]]
  $region38: #{resnet18_forward.28} parent=0
    _
  %s8 = ssub.s32 1, %s6
  %s9 = scalar_select 0, %s8, %s6
  $region1: #{resnet18_forward.28} parent=0
    #allocation2 [shape = 'u8[131072]{0}', space=vmem, size = 0x20000, scoped, tag = 'input window, operand 1, single buffered']
    #allocation3 [shape = 's32[1]{0}', space=sflag, size = 0x4, scoped, tag = 'scoped memory for resnet18_forward.28']
    #allocation4 [shape = 'u8[131072]{0}', space=vmem, size = 0x20000, scoped, tag = 'input window, operand 3, single buffered']
    #allocation5 [shape = 's32[1]{0}', space=sflag, size = 0x4, scoped, tag = 'scoped memory for resnet18_forward.28']
    %10 = vsyncpa [#allocation3], 0
    %11 = vsyncpa [#allocation5], 0
    // Predicated region
    $region2: #{resnet18_forward.28} parent=1 // pred_check
      _
    $region3: #{resnet18_forward.28} parent=1 // pred_check_branch
      %13 = sbr.rel (0) target = $region5
    $region4: #{resnet18_forward.28} parent=1 // pred_region
      _
    $region5: #{resnet18_forward.28} parent=1 // pred_fallthru
      _
    // Predicated region
    $region6: #{resnet18_forward.28} parent=1 // pred_check
      _
    $region7: #{resnet18_forward.28} parent=1 // pred_check_branch
      %15 = sbr.rel (0) target = $region9
    $region8: #{resnet18_forward.28} parent=1 // pred_region
      %17 = vsyncadd [#allocation3], 0
      %s18 = sshll.u32 %s1, 4
      %s19 = int_to_ptr.hbm [resolvable:$true] %s18
      %s20 = sshll.u32 [#allocation2], 4
      %s21 = int_to_ptr.vmem [resolvable:$true] %s20
      %26 = dma.hbm_to_vmem [thread:$0]  %s19, 4096, %s21, [#allocation3], 128, 128, 8
    $region9: #{resnet18_forward.28} parent=1 // pred_fallthru
      _
    // Predicated region
    $region10: #{resnet18_forward.28} parent=1 // pred_check
      _
    $region11: #{resnet18_forward.28} parent=1 // pred_check_branch
      %28 = sbr.rel (0) target = $region13
    $region12: #{resnet18_forward.28} parent=1 // pred_region
      _
    $region13: #{resnet18_forward.28} parent=1 // pred_fallthru
      _
    // Predicated region
    $region14: #{resnet18_forward.28} parent=1 // pred_check
      _
    $region15: #{resnet18_forward.28} parent=1 // pred_check_branch
      %30 = sbr.rel (0) target = $region17
    $region16: #{resnet18_forward.28} parent=1 // pred_region
      %32 = vsyncadd [#allocation5], 0
      %s33 = sshll.u32 %s3, 4
      %s34 = int_to_ptr.hbm [resolvable:$true] %s33
      %s35 = sshll.u32 [#allocation4], 4
      %s36 = int_to_ptr.vmem [resolvable:$true] %s35
      %41 = dma.hbm_to_vmem [thread:$0]  %s34, 4096, %s36, [#allocation5], 128, 128, 8
    $region17: #{resnet18_forward.28} parent=1 // pred_fallthru
      _
    // Predicated region
    $region18: #{resnet18_forward.28} parent=1 // pred_check
      _
    $region19: #{resnet18_forward.28} parent=1 // pred_check_branch
      %43 = sbr.rel (0) target = $region21
    $region20: #{resnet18_forward.28} parent=1 // pred_region
      _
    $region21: #{resnet18_forward.28} parent=1 // pred_fallthru
      _
    // Predicated region
    $region22: #{resnet18_forward.28} parent=1 // pred_check
      _
    $region23: #{resnet18_forward.28} parent=1 // pred_check_branch
      %45 = sbr.rel (0) target = $region25
    $region24: #{resnet18_forward.28} parent=1 // pred_region
      %47 = dma.done [#allocation3], 4096
    $region25: #{resnet18_forward.28} parent=1 // pred_fallthru
      _
    // Predicated region
    $region26: #{resnet18_forward.28} parent=1 // pred_check
      _
    $region27: #{resnet18_forward.28} parent=1 // pred_check_branch
      %49 = sbr.rel (0) target = $region29
    $region28: #{resnet18_forward.28} parent=1 // pred_region
      %51 = dma.done [#allocation5], 4096
    $region29: #{resnet18_forward.28} parent=1 // pred_fallthru
      _
    %v52 = vld [vmem:[%s0] sm:$0x3]
    %v53 = vld [vmem:[#allocation2] sm:$0xff]
    %v54 = vld [vmem:[#allocation2 + $0x8] sm:$0xff]
    %v55 = vld [vmem:[#allocation2 + $0x10] sm:$0xff]
    %v56 = vld [vmem:[#allocation2 + $0x18] sm:$0xff]
    %v57 = vld [vmem:[#allocation2 + $0x20] sm:$0xff]
    %v58 = vld [vmem:[#allocation2 + $0x28] sm:$0xff]
    %v59 = vld [vmem:[#allocation2 + $0x30] sm:$0xff]
    %v60 = vld [vmem:[#allocation2 + $0x38] sm:$0xff]
    %v61 = vld [vmem:[#allocation2 + $0x40] sm:$0xff]
    %v62 = vld [vmem:[#allocation2 + $0x48] sm:$0xff]
    %v63 = vld [vmem:[#allocation2 + $0x50] sm:$0xff]
    %v64 = vld [vmem:[#allocation2 + $0x58] sm:$0xff]
    %v65 = vld [vmem:[#allocation2 + $0x60] sm:$0xff]
    %v66 = vld [vmem:[#allocation2 + $0x68] sm:$0xff]
    %v67 = vld [vmem:[#allocation2 + $0x70] sm:$0xff]
    %v68 = vld [vmem:[#allocation2 + $0x78] sm:$0xff]
    %v69 = vld [vmem:[#allocation2 + $0x80] sm:$0xff]
    %v70 = vld [vmem:[#allocation2 + $0x88] sm:$0xff]
    %v71 = vld [vmem:[#allocation2 + $0x90] sm:$0xff]
    %v72 = vld [vmem:[#allocation2 + $0x98] sm:$0xff]
    %v73 = vld [vmem:[#allocation2 + $0xa0] sm:$0xff]
    %v74 = vld [vmem:[#allocation2 + $0xa8] sm:$0xff]
    %v75 = vld [vmem:[#allocation2 + $0xb0] sm:$0xff]
    %v76 = vld [vmem:[#allocation2 + $0xb8] sm:$0xff]
    %v77 = vld [vmem:[#allocation2 + $0xc0] sm:$0xff]
    %v78 = vld [vmem:[#allocation2 + $0xc8] sm:$0xff]
    %v79 = vld [vmem:[#allocation2 + $0xd0] sm:$0xff]
    %v80 = vld [vmem:[#allocation2 + $0xd8] sm:$0xff]
    %v81 = vld [vmem:[#allocation2 + $0xe0] sm:$0xff]
    %v82 = vld [vmem:[#allocation2 + $0xe8] sm:$0xff]
    %v83 = vld [vmem:[#allocation2 + $0xf0] sm:$0xff]
    %v84 = vld [vmem:[#allocation2 + $0xf8] sm:$0xff]
    %v85 = vld [vmem:[%s2] sm:$0x3]
    %v87 = vperm.slane %v85, 0
    %v88 = vperm.slane %v85, 1
    %92 = vst [vmem:[#allocation1] ss:$9 sm:$0xff] %v52
    %v93 = vld [vmem:[#allocation1] sm:$0xff]
    %v94 = vld [vmem:[#allocation1 + $0x9] sm:$0xff]
    %v129 = vunpack.c.l.b16 %v53
    %v130 = vunpack.c.h.b16 %v53
    %v131 = vunpack.c.l.b16 %v54
    %v132 = vunpack.c.h.b16 %v54
    %v133 = vunpack.c.l.b16 %v55
    %v134 = vunpack.c.h.b16 %v55
    %v135 = vunpack.c.l.b16 %v56
    %v136 = vunpack.c.h.b16 %v56
    %v137 = vunpack.c.l.b16 %v57
    %v138 = vunpack.c.h.b16 %v57
    %v139 = vunpack.c.l.b16 %v58
    %v140 = vunpack.c.h.b16 %v58
    %v141 = vunpack.c.l.b16 %v59
    %v142 = vunpack.c.h.b16 %v59
    %v143 = vunpack.c.l.b16 %v60
    %v144 = vunpack.c.h.b16 %v60
    %v145 = vunpack.c.l.b16 %v61
    %v146 = vunpack.c.h.b16 %v61
    %v147 = vunpack.c.l.b16 %v62
    %v148 = vunpack.c.h.b16 %v62
    %v149 = vunpack.c.l.b16 %v63
    %v150 = vunpack.c.h.b16 %v63
    %v151 = vunpack.c.l.b16 %v64
    %v152 = vunpack.c.h.b16 %v64
    %v153 = vunpack.c.l.b16 %v65
    %v154 = vunpack.c.h.b16 %v65
    %v155 = vunpack.c.l.b16 %v66
    %v156 = vunpack.c.h.b16 %v66
    %v157 = vunpack.c.l.b16 %v67
    %v158 = vunpack.c.h.b16 %v67
    %v159 = vunpack.c.l.b16 %v68
    %v160 = vunpack.c.h.b16 %v68
    %v161 = vunpack.c.l.b16 %v69
    %v162 = vunpack.c.h.b16 %v69
    %v163 = vunpack.c.l.b16 %v70
    %v164 = vunpack.c.h.b16 %v70
    %v165 = vunpack.c.l.b16 %v71
    %v166 = vunpack.c.h.b16 %v71
    %v167 = vunpack.c.l.b16 %v72
    %v168 = vunpack.c.h.b16 %v72
    %v169 = vunpack.c.l.b16 %v73
    %v170 = vunpack.c.h.b16 %v73
    %v171 = vunpack.c.l.b16 %v74
    %v172 = vunpack.c.h.b16 %v74
    %v173 = vunpack.c.l.b16 %v75
    %v174 = vunpack.c.h.b16 %v75
    %v175 = vunpack.c.l.b16 %v76
    %v176 = vunpack.c.h.b16 %v76
    %v177 = vunpack.c.l.b16 %v77
    %v178 = vunpack.c.h.b16 %v77
    %v179 = vunpack.c.l.b16 %v78
    %v180 = vunpack.c.h.b16 %v78
    %v181 = vunpack.c.l.b16 %v79
    %v182 = vunpack.c.h.b16 %v79
    %v183 = vunpack.c.l.b16 %v80
    %v184 = vunpack.c.h.b16 %v80
    %v185 = vunpack.c.l.b16 %v81
    %v186 = vunpack.c.h.b16 %v81
    %v187 = vunpack.c.l.b16 %v82
    %v188 = vunpack.c.h.b16 %v82
    %v189 = vunpack.c.l.b16 %v83
    %v190 = vunpack.c.h.b16 %v83
    %v191 = vunpack.c.l.b16 %v84
    %v192 = vunpack.c.h.b16 %v84
    %v193 = vpack.c.b16 %v131, %v129
    %v194 = vpack.c.b16 %v132, %v130
    %v195 = vpack.c.b16 %v135, %v133
    %v196 = vpack.c.b16 %v136, %v134
    %v197 = vpack.c.b16 %v139, %v137
    %v198 = vpack.c.b16 %v140, %v138
    %v199 = vpack.c.b16 %v143, %v141
    %v200 = vpack.c.b16 %v144, %v142
    %v201 = vpack.c.b16 %v147, %v145
    %v202 = vpack.c.b16 %v148, %v146
    %v203 = vpack.c.b16 %v151, %v149
    %v204 = vpack.c.b16 %v152, %v150
    %v205 = vpack.c.b16 %v155, %v153
    %v206 = vpack.c.b16 %v156, %v154
    %v207 = vpack.c.b16 %v159, %v157
    %v208 = vpack.c.b16 %v160, %v158
    %v209 = vpack.c.b16 %v163, %v161
    %v210 = vpack.c.b16 %v164, %v162
    %v211 = vpack.c.b16 %v167, %v165
    %v212 = vpack.c.b16 %v168, %v166
    %v213 = vpack.c.b16 %v171, %v169
    %v214 = vpack.c.b16 %v172, %v170
    %v215 = vpack.c.b16 %v175, %v173
    %v216 = vpack.c.b16 %v176, %v174
    %v217 = vpack.c.b16 %v179, %v177
    %v218 = vpack.c.b16 %v180, %v178
    %v219 = vpack.c.b16 %v183, %v181
    %v220 = vpack.c.b16 %v184, %v182
    %v221 = vpack.c.b16 %v187, %v185
    %v222 = vpack.c.b16 %v188, %v186
    %v223 = vpack.c.b16 %v191, %v189
    %v224 = vpack.c.b16 %v192, %v190
    %257 = vmatpush.bf16.msra.mxu0 %v207
    %258 = vmatpush.bf16.msra.mxu0 %v205
    %259 = vmatpush.bf16.msra.mxu0 %v203
    %260 = vmatpush.bf16.msra.mxu0 %v201
    %261 = vmatpush.bf16.msra.mxu0 %v199
    %262 = vmatpush.bf16.msra.mxu0 %v197
    %263 = vmatpush.bf16.msra.mxu0 %v195
    %264 = vmatpush.bf16.msra.mxu0 %v193
    %265 = vmatmul.bf16.gmra.mxu0 %v93
    %v266 = vpop.f32.mrf.mxu0
    %v267 = vadd.f32 %v87, %v266
    %v268 = vpop.f32.mrf.mxu0
    %269 = vdwg.mxu0
    %270 = vmatpush.bf16.msra.mxu0 %v223
    %271 = vmatpush.bf16.msra.mxu0 %v221
    %272 = vmatpush.bf16.msra.mxu0 %v219
    %273 = vmatpush.bf16.msra.mxu0 %v217
    %274 = vmatpush.bf16.msra.mxu0 %v215
    %275 = vmatpush.bf16.msra.mxu0 %v213
    %276 = vmatpush.bf16.msra.mxu0 %v211
    %277 = vmatpush.bf16.msra.mxu0 %v209
    %278 = vmatmul.bf16.gmra.mxu0 %v94
    %v279 = vpop.f32.mrf.mxu0
    %v280 = vadd.f32 %v267, %v279
    %v281 = vpop.f32.mrf.mxu0
    %282 = vdwg.mxu0
    %283 = vmatpush.bf16.msra.mxu0 %v208
    %284 = vmatpush.bf16.msra.mxu0 %v206
    %285 = vmatpush.bf16.msra.mxu0 %v204
    %286 = vmatpush.bf16.msra.mxu0 %v202
    %287 = vmatpush.bf16.msra.mxu0 %v200
    %288 = vmatpush.bf16.msra.mxu0 %v198
    %289 = vmatpush.bf16.msra.mxu0 %v196
    %290 = vmatpush.bf16.msra.mxu0 %v194
    %291 = vmatmul.bf16.gmra.mxu0 %v93
    %v292 = vpop.f32.mrf.mxu0
    %v293 = vadd.f32 %v88, %v292
    %v294 = vpop.f32.mrf.mxu0
    %295 = vdwg.mxu0
    %296 = vmatpush.bf16.msra.mxu0 %v224
    %297 = vmatpush.bf16.msra.mxu0 %v222
    %298 = vmatpush.bf16.msra.mxu0 %v220
    %299 = vmatpush.bf16.msra.mxu0 %v218
    %300 = vmatpush.bf16.msra.mxu0 %v216
    %301 = vmatpush.bf16.msra.mxu0 %v214
    %302 = vmatpush.bf16.msra.mxu0 %v212
    %303 = vmatpush.bf16.msra.mxu0 %v210
    %304 = vmatmul.bf16.gmra.mxu0 %v94
    %v305 = vpop.f32.mrf.mxu0
    %v306 = vadd.f32 %v293, %v305
    %v307 = vpop.f32.mrf.mxu0
    %308 = vdwg.mxu0
    %v309 = vmax.f32 %v280, 0.0
    %v310 = vmax.f32 %v306, 0.0
    %v311 = vpack.c.bf16 %v309, %v309
    %v312 = vpack.c.bf16 %v310, %v310
    %v313 = vld [vmem:[#allocation4] sm:$0xff]
    %v314 = vld [vmem:[#allocation4 + $0x8] sm:$0xff]
    %v315 = vld [vmem:[#allocation4 + $0x10] sm:$0xff]
    %v316 = vld [vmem:[#allocation4 + $0x18] sm:$0xff]
    %v317 = vld [vmem:[#allocation4 + $0x20] sm:$0xff]
    %v318 = vld [vmem:[#allocation4 + $0x28] sm:$0xff]
    %v319 = vld [vmem:[#allocation4 + $0x30] sm:$0xff]
    %v320 = vld [vmem:[#allocation4 + $0x38] sm:$0xff]
    %v321 = vld [vmem:[#allocation4 + $0x40] sm:$0xff]
    %v322 = vld [vmem:[#allocation4 + $0x48] sm:$0xff]
    %v323 = vld [vmem:[#allocation4 + $0x50] sm:$0xff]
    %v324 = vld [vmem:[#allocation4 + $0x58] sm:$0xff]
    %v325 = vld [vmem:[#allocation4 + $0x60] sm:$0xff]
    %v326 = vld [vmem:[#allocation4 + $0x68] sm:$0xff]
    %v327 = vld [vmem:[#allocation4 + $0x70] sm:$0xff]
    %v328 = vld [vmem:[#allocation4 + $0x78] sm:$0xff]
    %v329 = vld [vmem:[#allocation4 + $0x80] sm:$0xff]
    %v330 = vld [vmem:[#allocation4 + $0x88] sm:$0xff]
    %v331 = vld [vmem:[#allocation4 + $0x90] sm:$0xff]
    %v332 = vld [vmem:[#allocation4 + $0x98] sm:$0xff]
    %v333 = vld [vmem:[#allocation4 + $0xa0] sm:$0xff]
    %v334 = vld [vmem:[#allocation4 + $0xa8] sm:$0xff]
    %v335 = vld [vmem:[#allocation4 + $0xb0] sm:$0xff]
    %v336 = vld [vmem:[#allocation4 + $0xb8] sm:$0xff]
    %v337 = vld [vmem:[#allocation4 + $0xc0] sm:$0xff]
    %v338 = vld [vmem:[#allocation4 + $0xc8] sm:$0xff]
    %v339 = vld [vmem:[#allocation4 + $0xd0] sm:$0xff]
    %v340 = vld [vmem:[#allocation4 + $0xd8] sm:$0xff]
    %v341 = vld [vmem:[#allocation4 + $0xe0] sm:$0xff]
    %v342 = vld [vmem:[#allocation4 + $0xe8] sm:$0xff]
    %v343 = vld [vmem:[#allocation4 + $0xf0] sm:$0xff]
    %v344 = vld [vmem:[#allocation4 + $0xf8] sm:$0xff]
    %v345 = vld [vmem:[%s4] sm:$0x3]
    %v347 = vperm.slane %v345, 0
    %v348 = vperm.slane %v345, 1
    %v383 = vunpack.c.l.b16 %v313
    %v384 = vunpack.c.h.b16 %v313
    %v385 = vunpack.c.l.b16 %v314
    %v386 = vunpack.c.h.b16 %v314
    %v387 = vunpack.c.l.b16 %v315
    %v388 = vunpack.c.h.b16 %v315
    %v389 = vunpack.c.l.b16 %v316
    %v390 = vunpack.c.h.b16 %v316
    %v391 = vunpack.c.l.b16 %v317
    %v392 = vunpack.c.h.b16 %v317
    %v393 = vunpack.c.l.b16 %v318
    %v394 = vunpack.c.h.b16 %v318
    %v395 = vunpack.c.l.b16 %v319
    %v396 = vunpack.c.h.b16 %v319
    %v397 = vunpack.c.l.b16 %v320
    %v398 = vunpack.c.h.b16 %v320
    %v399 = vunpack.c.l.b16 %v321
    %v400 = vunpack.c.h.b16 %v321
    %v401 = vunpack.c.l.b16 %v322
    %v402 = vunpack.c.h.b16 %v322
    %v403 = vunpack.c.l.b16 %v323
    %v404 = vunpack.c.h.b16 %v323
    %v405 = vunpack.c.l.b16 %v324
    %v406 = vunpack.c.h.b16 %v324
    %v407 = vunpack.c.l.b16 %v325
    %v408 = vunpack.c.h.b16 %v325
    %v409 = vunpack.c.l.b16 %v326
    %v410 = vunpack.c.h.b16 %v326
    %v411 = vunpack.c.l.b16 %v327
    %v412 = vunpack.c.h.b16 %v327
    %v413 = vunpack.c.l.b16 %v328
    %v414 = vunpack.c.h.b16 %v328
    %v415 = vunpack.c.l.b16 %v329
    %v416 = vunpack.c.h.b16 %v329
    %v417 = vunpack.c.l.b16 %v330
    %v418 = vunpack.c.h.b16 %v330
    %v419 = vunpack.c.l.b16 %v331
    %v420 = vunpack.c.h.b16 %v331
    %v421 = vunpack.c.l.b16 %v332
    %v422 = vunpack.c.h.b16 %v332
    %v423 = vunpack.c.l.b16 %v333
    %v424 = vunpack.c.h.b16 %v333
    %v425 = vunpack.c.l.b16 %v334
    %v426 = vunpack.c.h.b16 %v334
    %v427 = vunpack.c.l.b16 %v335
    %v428 = vunpack.c.h.b16 %v335
    %v429 = vunpack.c.l.b16 %v336
    %v430 = vunpack.c.h.b16 %v336
    %v431 = vunpack.c.l.b16 %v337
    %v432 = vunpack.c.h.b16 %v337
    %v433 = vunpack.c.l.b16 %v338
    %v434 = vunpack.c.h.b16 %v338
    %v435 = vunpack.c.l.b16 %v339
    %v436 = vunpack.c.h.b16 %v339
    %v437 = vunpack.c.l.b16 %v340
    %v438 = vunpack.c.h.b16 %v340
    %v439 = vunpack.c.l.b16 %v341
    %v440 = vunpack.c.h.b16 %v341
    %v441 = vunpack.c.l.b16 %v342
    %v442 = vunpack.c.h.b16 %v342
    %v443 = vunpack.c.l.b16 %v343
    %v444 = vunpack.c.h.b16 %v343
    %v445 = vunpack.c.l.b16 %v344
    %v446 = vunpack.c.h.b16 %v344
    %v447 = vpack.c.b16 %v385, %v383
    %v448 = vpack.c.b16 %v386, %v384
    %v449 = vpack.c.b16 %v389, %v387
    %v450 = vpack.c.b16 %v390, %v388
    %v451 = vpack.c.b16 %v393, %v391
    %v452 = vpack.c.b16 %v394, %v392
    %v453 = vpack.c.b16 %v397, %v395
    %v454 = vpack.c.b16 %v398, %v396
    %v455 = vpack.c.b16 %v401, %v399
    %v456 = vpack.c.b16 %v402, %v400
    %v457 = vpack.c.b16 %v405, %v403
    %v458 = vpack.c.b16 %v406, %v404
    %v459 = vpack.c.b16 %v409, %v407
    %v460 = vpack.c.b16 %v410, %v408
    %v461 = vpack.c.b16 %v413, %v411
    %v462 = vpack.c.b16 %v414, %v412
    %v463 = vpack.c.b16 %v417, %v415
    %v464 = vpack.c.b16 %v418, %v416
    %v465 = vpack.c.b16 %v421, %v419
    %v466 = vpack.c.b16 %v422, %v420
    %v467 = vpack.c.b16 %v425, %v423
    %v468 = vpack.c.b16 %v426, %v424
    %v469 = vpack.c.b16 %v429, %v427
    %v470 = vpack.c.b16 %v430, %v428
    %v471 = vpack.c.b16 %v433, %v431
    %v472 = vpack.c.b16 %v434, %v432
    %v473 = vpack.c.b16 %v437, %v435
    %v474 = vpack.c.b16 %v438, %v436
    %v475 = vpack.c.b16 %v441, %v439
    %v476 = vpack.c.b16 %v442, %v440
    %v477 = vpack.c.b16 %v445, %v443
    %v478 = vpack.c.b16 %v446, %v444
    %511 = vmatpush.bf16.msra.mxu0 %v461
    %512 = vmatpush.bf16.msra.mxu0 %v459
    %513 = vmatpush.bf16.msra.mxu0 %v457
    %514 = vmatpush.bf16.msra.mxu0 %v455
    %515 = vmatpush.bf16.msra.mxu0 %v453
    %516 = vmatpush.bf16.msra.mxu0 %v451
    %517 = vmatpush.bf16.msra.mxu0 %v449
    %518 = vmatpush.bf16.msra.mxu0 %v447
    %519 = vmatmul.bf16.gmra.mxu0 %v311
    %v520 = vpop.f32.mrf.mxu0
    %v521 = vadd.f32 %v347, %v520
    %v522 = vpop.f32.mrf.mxu0
    %523 = vdwg.mxu0
    %524 = vmatpush.bf16.msra.mxu0 %v477
    %525 = vmatpush.bf16.msra.mxu0 %v475
    %526 = vmatpush.bf16.msra.mxu0 %v473
    %527 = vmatpush.bf16.msra.mxu0 %v471
    %528 = vmatpush.bf16.msra.mxu0 %v469
    %529 = vmatpush.bf16.msra.mxu0 %v467
    %530 = vmatpush.bf16.msra.mxu0 %v465
    %531 = vmatpush.bf16.msra.mxu0 %v463
    %532 = vmatmul.bf16.gmra.mxu0 %v312
    %v533 = vpop.f32.mrf.mxu0
    %v534 = vadd.f32 %v521, %v533
    %v535 = vpop.f32.mrf.mxu0
    %536 = vdwg.mxu0
    %537 = vmatpush.bf16.msra.mxu0 %v462
    %538 = vmatpush.bf16.msra.mxu0 %v460
    %539 = vmatpush.bf16.msra.mxu0 %v458
    %540 = vmatpush.bf16.msra.mxu0 %v456
    %541 = vmatpush.bf16.msra.mxu0 %v454
    %542 = vmatpush.bf16.msra.mxu0 %v452
    %543 = vmatpush.bf16.msra.mxu0 %v450
    %544 = vmatpush.bf16.msra.mxu0 %v448
    %545 = vmatmul.bf16.gmra.mxu0 %v311
    %v546 = vpop.f32.mrf.mxu0
    %v547 = vadd.f32 %v348, %v546
    %v548 = vpop.f32.mrf.mxu0
    %549 = vdwg.mxu0
    %550 = vmatpush.bf16.msra.mxu0 %v478
    %551 = vmatpush.bf16.msra.mxu0 %v476
    %552 = vmatpush.bf16.msra.mxu0 %v474
    %553 = vmatpush.bf16.msra.mxu0 %v472
    %554 = vmatpush.bf16.msra.mxu0 %v470
    %555 = vmatpush.bf16.msra.mxu0 %v468
    %556 = vmatpush.bf16.msra.mxu0 %v466
    %557 = vmatpush.bf16.msra.mxu0 %v464
    %558 = vmatmul.bf16.gmra.mxu0 %v312
    %v559 = vpop.f32.mrf.mxu0
    %v560 = vadd.f32 %v547, %v559
    %v561 = vpop.f32.mrf.mxu0
    %562 = vdwg.mxu0
    %v563 = vunpack.c.l.bf16 %v52
    %565 = vst [vmem:[#allocation1] ss:$4 sm:$0xff] %v563
    %v566 = vld.sshfl [vmem:[#allocation1] sm:$0xff pattern:$0x73625140]
    %v567 = vld.sshfl [vmem:[#allocation1 + $0x8] sm:$0xff pattern:$0x73625140]
    %v570 = vadd.f32 %v534, %v566
    %v571 = vadd.f32 %v560, %v567
    %v572 = vmax.f32 %v570, 0.0
    %v573 = vmax.f32 %v571, 0.0
    %v574 = vpack.c.bf16 %v573, %v572
    %v576 = vrot.slane %v574, 3
    %vm577 = vcmask 1040384
    %v580 = vsel %vm577, %v574, %v576
    %582 = vst [vmem:[%s5] sm:$0x3] %v580
    // Predicated region
    $region30: #{resnet18_forward.28} parent=1 // pred_check
      _
    $region31: #{resnet18_forward.28} parent=1 // pred_check_branch
      %584 = sbr.rel (0) target = $region33
    $region32: #{resnet18_forward.28} parent=1 // pred_region
      _
    $region33: #{resnet18_forward.28} parent=1 // pred_fallthru
      _
    // Predicated region
    $region34: #{resnet18_forward.28} parent=1 // pred_check
      _
    $region35: #{resnet18_forward.28} parent=1 // pred_check_branch
      %586 = sbr.rel (0) target = $region37
    $region36: #{resnet18_forward.28} parent=1 // pred_region
      _
    $region37: #{resnet18_forward.28} parent=1 // pred_fallthru
      _
    %587 = vsyncpa [#allocation3], 1
    %588 = vsyncpa [#allocation5], 1

// kernel: resnet18_forward.27
$region0: #{resnet18_forward.27}
  #allocation0 [shape = 'u32[]', space=smem, size = 0x4, offset = 0x4, fixed_abs, tag = 'smem constant byte address 0x4 - core index']
  #allocation1 [shape = 'u32[72,128]{1,0:T(1,128)}', space=vmem, size = 0x9000, scoped, tag = 'internal scratch']
  %s0 = inlined_call_operand.vmem [shape: bf16[2,512], index: 0, kind: input, shape index: {}, may-alias: {0,1}]
  %s1 = inlined_call_operand.vmem [shape: bf16[2,512], index: 1, kind: input, shape index: {}, may-alias: {0,1}]
  %s2 = inlined_call_operand.vmem [shape: bf16[512,256], index: 2, kind: input, shape index: {}]
  %s3 = inlined_call_operand.vmem [shape: f32[1,256], index: 3, kind: input, shape index: {}]
  %s4 = inlined_call_operand.hbm [shape: bf16[256,256], index: 4, kind: input, shape index: {}]
  %s5 = inlined_call_operand.vmem [shape: f32[1,256], index: 5, kind: input, shape index: {}]
  %s6 = inlined_call_operand.vmem [shape: bf16[512,256], index: 6, kind: input, shape index: {}]
  %s7 = inlined_call_operand.vmem [shape: f32[1,256], index: 7, kind: input, shape index: {}]
  %s8 = inlined_call_operand.vmem [shape: bf16[2,256], index: 8, kind: output, shape index: {}]
  %s9 = sld [smem:[#allocation0]]
  $region46: #{resnet18_forward.27} parent=0
    _
  %s11 = ssub.s32 1, %s9
  %s12 = scalar_select 0, %s11, %s9
  $region1: #{resnet18_forward.27} parent=0
    #allocation2 [shape = 'u8[131072]{0}', space=vmem, size = 0x20000, scoped, tag = 'input window, operand 4, single buffered']
    #allocation3 [shape = 's32[1]{0}', space=sflag, size = 0x4, scoped, tag = 'scoped memory for resnet18_forward.27']
    %13 = vsyncpa [#allocation3], 0
    // Predicated region
    $region2: #{resnet18_forward.27} parent=1 // pred_check
      _
    $region3: #{resnet18_forward.27} parent=1 // pred_check_branch
      %15 = sbr.rel (0) target = $region5
    $region4: #{resnet18_forward.27} parent=1 // pred_region
      _
    $region5: #{resnet18_forward.27} parent=1 // pred_fallthru
      _
    // Predicated region
    $region6: #{resnet18_forward.27} parent=1 // pred_check
      _
    $region7: #{resnet18_forward.27} parent=1 // pred_check_branch
      %17 = sbr.rel (0) target = $region9
    $region8: #{resnet18_forward.27} parent=1 // pred_region
      _
    $region9: #{resnet18_forward.27} parent=1 // pred_fallthru
      _
    // Predicated region
    $region10: #{resnet18_forward.27} parent=1 // pred_check
      _
    $region11: #{resnet18_forward.27} parent=1 // pred_check_branch
      %19 = sbr.rel (0) target = $region13
    $region12: #{resnet18_forward.27} parent=1 // pred_region
      _
    $region13: #{resnet18_forward.27} parent=1 // pred_fallthru
      _
    // Predicated region
    $region14: #{resnet18_forward.27} parent=1 // pred_check
      _
    $region15: #{resnet18_forward.27} parent=1 // pred_check_branch
      %21 = sbr.rel (0) target = $region17
    $region16: #{resnet18_forward.27} parent=1 // pred_region
      _
    $region17: #{resnet18_forward.27} parent=1 // pred_fallthru
      _
    // Predicated region
    $region18: #{resnet18_forward.27} parent=1 // pred_check
      _
    $region19: #{resnet18_forward.27} parent=1 // pred_check_branch
      %23 = sbr.rel (0) target = $region21
    $region20: #{resnet18_forward.27} parent=1 // pred_region
      %25 = vsyncadd [#allocation3], 0
      %s26 = sshll.u32 %s4, 4
      %s27 = int_to_ptr.hbm [resolvable:$true] %s26
      %s28 = sshll.u32 [#allocation2], 4
      %s29 = int_to_ptr.vmem [resolvable:$true] %s28
      %34 = dma.hbm_to_vmem [thread:$0]  %s27, 4096, %s29, [#allocation3], 128, 128, 8
    $region21: #{resnet18_forward.27} parent=1 // pred_fallthru
      _
    // Predicated region
    $region22: #{resnet18_forward.27} parent=1 // pred_check
      _
    $region23: #{resnet18_forward.27} parent=1 // pred_check_branch
      %36 = sbr.rel (0) target = $region25
    $region24: #{resnet18_forward.27} parent=1 // pred_region
      _
    $region25: #{resnet18_forward.27} parent=1 // pred_fallthru
      _
    // Predicated region
    $region26: #{resnet18_forward.27} parent=1 // pred_check
      _
    $region27: #{resnet18_forward.27} parent=1 // pred_check_branch
      %38 = sbr.rel (0) target = $region29
    $region28: #{resnet18_forward.27} parent=1 // pred_region
      _
    $region29: #{resnet18_forward.27} parent=1 // pred_fallthru
      _
    // Predicated region
    $region30: #{resnet18_forward.27} parent=1 // pred_check
      _
    $region31: #{resnet18_forward.27} parent=1 // pred_check_branch
      %40 = sbr.rel (0) target = $region33
    $region32: #{resnet18_forward.27} parent=1 // pred_region
      _
    $region33: #{resnet18_forward.27} parent=1 // pred_fallthru
      _
    // Predicated region
    $region34: #{resnet18_forward.27} parent=1 // pred_check
      _
    $region35: #{resnet18_forward.27} parent=1 // pred_check_branch
      %42 = sbr.rel (0) target = $region37
    $region36: #{resnet18_forward.27} parent=1 // pred_region
      %44 = dma.done [#allocation3], 4096
    $region37: #{resnet18_forward.27} parent=1 // pred_fallthru
      _
    %v45 = vld [vmem:[%s1] sm:$0xf]
    %v46 = vld [vmem:[%s6] sm:$0xff]
    %v47 = vld [vmem:[%s6 + $0x8] sm:$0xff]
    %v48 = vld [vmem:[%s6 + $0x10] sm:$0xff]
    %v49 = vld [vmem:[%s6 + $0x18] sm:$0xff]
    %v50 = vld [vmem:[%s6 + $0x20] sm:$0xff]
    %v51 = vld [vmem:[%s6 + $0x28] sm:$0xff]
    %v52 = vld [vmem:[%s6 + $0x30] sm:$0xff]
    %v53 = vld [vmem:[%s6 + $0x38] sm:$0xff]
    %v54 = vld [vmem:[%s6 + $0x40] sm:$0xff]
    %v55 = vld [vmem:[%s6 + $0x48] sm:$0xff]
    %v56 = vld [vmem:[%s6 + $0x50] sm:$0xff]
    %v57 = vld [vmem:[%s6 + $0x58] sm:$0xff]
    %v58 = vld [vmem:[%s6 + $0x60] sm:$0xff]
    %v59 = vld [vmem:[%s6 + $0x68] sm:$0xff]
    %v60 = vld [vmem:[%s6 + $0x70] sm:$0xff]
    %v61 = vld [vmem:[%s6 + $0x78] sm:$0xff]
    %v62 = vld [vmem:[%s6 + $0x80] sm:$0xff]
    %v63 = vld [vmem:[%s6 + $0x88] sm:$0xff]
    %v64 = vld [vmem:[%s6 + $0x90] sm:$0xff]
    %v65 = vld [vmem:[%s6 + $0x98] sm:$0xff]
    %v66 = vld [vmem:[%s6 + $0xa0] sm:$0xff]
    %v67 = vld [vmem:[%s6 + $0xa8] sm:$0xff]
    %v68 = vld [vmem:[%s6 + $0xb0] sm:$0xff]
    %v69 = vld [vmem:[%s6 + $0xb8] sm:$0xff]
    %v70 = vld [vmem:[%s6 + $0xc0] sm:$0xff]
    %v71 = vld [vmem:[%s6 + $0xc8] sm:$0xff]
    %v72 = vld [vmem:[%s6 + $0xd0] sm:$0xff]
    %v73 = vld [vmem:[%s6 + $0xd8] sm:$0xff]
    %v74 = vld [vmem:[%s6 + $0xe0] sm:$0xff]
    %v75 = vld [vmem:[%s6 + $0xe8] sm:$0xff]
    %v76 = vld [vmem:[%s6 + $0xf0] sm:$0xff]
    %v77 = vld [vmem:[%s6 + $0xf8] sm:$0xff]
    %v78 = vld [vmem:[%s6 + $0x100] sm:$0xff]
    %v79 = vld [vmem:[%s6 + $0x108] sm:$0xff]
    %v80 = vld [vmem:[%s6 + $0x110] sm:$0xff]
    %v81 = vld [vmem:[%s6 + $0x118] sm:$0xff]
    %v82 = vld [vmem:[%s6 + $0x120] sm:$0xff]
    %v83 = vld [vmem:[%s6 + $0x128] sm:$0xff]
    %v84 = vld [vmem:[%s6 + $0x130] sm:$0xff]
    %v85 = vld [vmem:[%s6 + $0x138] sm:$0xff]
    %v86 = vld [vmem:[%s6 + $0x140] sm:$0xff]
    %v87 = vld [vmem:[%s6 + $0x148] sm:$0xff]
    %v88 = vld [vmem:[%s6 + $0x150] sm:$0xff]
    %v89 = vld [vmem:[%s6 + $0x158] sm:$0xff]
    %v90 = vld [vmem:[%s6 + $0x160] sm:$0xff]
    %v91 = vld [vmem:[%s6 + $0x168] sm:$0xff]
    %v92 = vld [vmem:[%s6 + $0x170] sm:$0xff]
    %v93 = vld [vmem:[%s6 + $0x178] sm:$0xff]
    %v94 = vld [vmem:[%s6 + $0x180] sm:$0xff]
    %v95 = vld [vmem:[%s6 + $0x188] sm:$0xff]
    %v96 = vld [vmem:[%s6 + $0x190] sm:$0xff]
    %v97 = vld [vmem:[%s6 + $0x198] sm:$0xff]
    %v98 = vld [vmem:[%s6 + $0x1a0] sm:$0xff]
    %v99 = vld [vmem:[%s6 + $0x1a8] sm:$0xff]
    %v100 = vld [vmem:[%s6 + $0x1b0] sm:$0xff]
    %v101 = vld [vmem:[%s6 + $0x1b8] sm:$0xff]
    %v102 = vld [vmem:[%s6 + $0x1c0] sm:$0xff]
    %v103 = vld [vmem:[%s6 + $0x1c8] sm:$0xff]
    %v104 = vld [vmem:[%s6 + $0x1d0] sm:$0xff]
    %v105 = vld [vmem:[%s6 + $0x1d8] sm:$0xff]
    %v106 = vld [vmem:[%s6 + $0x1e0] sm:$0xff]
    %v107 = vld [vmem:[%s6 + $0x1e8] sm:$0xff]
    %v108 = vld [vmem:[%s6 + $0x1f0] sm:$0xff]
    %v109 = vld [vmem:[%s6 + $0x1f8] sm:$0xff]
    %v110 = vld [vmem:[%s7] sm:$0x3]
    %v112 = vperm.slane %v110, 0
    %v113 = vperm.slane %v110, 1
    %117 = vst [vmem:[#allocation1] ss:$9 sm:$0xff] %v45
    %v118 = vld [vmem:[#allocation1] sm:$0xff]
    %v119 = vld [vmem:[#allocation1 + $0x9] sm:$0xff]
    %v120 = vld [vmem:[#allocation1 + $0x12] sm:$0xff]
    %v121 = vld [vmem:[#allocation1 + $0x1b] sm:$0xff]
    %v190 = vunpack.c.l.b16 %v46
    %v191 = vunpack.c.h.b16 %v46
    %v192 = vunpack.c.l.b16 %v47
    %v193 = vunpack.c.h.b16 %v47
    %v194 = vunpack.c.l.b16 %v48
    %v195 = vunpack.c.h.b16 %v48
    %v196 = vunpack.c.l.b16 %v49
    %v197 = vunpack.c.h.b16 %v49
    %v198 = vunpack.c.l.b16 %v50
    %v199 = vunpack.c.h.b16 %v50
    %v200 = vunpack.c.l.b16 %v51
    %v201 = vunpack.c.h.b16 %v51
    %v202 = vunpack.c.l.b16 %v52
    %v203 = vunpack.c.h.b16 %v52
    %v204 = vunpack.c.l.b16 %v53
    %v205 = vunpack.c.h.b16 %v53
    %v206 = vunpack.c.l.b16 %v54
    %v207 = vunpack.c.h.b16 %v54
    %v208 = vunpack.c.l.b16 %v55
    %v209 = vunpack.c.h.b16 %v55
    %v210 = vunpack.c.l.b16 %v56
    %v211 = vunpack.c.h.b16 %v56
    %v212 = vunpack.c.l.b16 %v57
    %v213 = vunpack.c.h.b16 %v57
    %v214 = vunpack.c.l.b16 %v58
    %v215 = vunpack.c.h.b16 %v58
    %v216 = vunpack.c.l.b16 %v59
    %v217 = vunpack.c.h.b16 %v59
    %v218 = vunpack.c.l.b16 %v60
    %v219 = vunpack.c.h.b16 %v60
    %v220 = vunpack.c.l.b16 %v61
    %v221 = vunpack.c.h.b16 %v61
    %v222 = vunpack.c.l.b16 %v62
    %v223 = vunpack.c.h.b16 %v62
    %v224 = vunpack.c.l.b16 %v63
    %v225 = vunpack.c.h.b16 %v63
    %v226 = vunpack.c.l.b16 %v64
    %v227 = vunpack.c.h.b16 %v64
    %v228 = vunpack.c.l.b16 %v65
    %v229 = vunpack.c.h.b16 %v65
    %v230 = vunpack.c.l.b16 %v66
    %v231 = vunpack.c.h.b16 %v66
    %v232 = vunpack.c.l.b16 %v67
    %v233 = vunpack.c.h.b16 %v67
    %v234 = vunpack.c.l.b16 %v68
    %v235 = vunpack.c.h.b16 %v68
    %v236 = vunpack.c.l.b16 %v69
    %v237 = vunpack.c.h.b16 %v69
    %v238 = vunpack.c.l.b16 %v70
    %v239 = vunpack.c.h.b16 %v70
    %v240 = vunpack.c.l.b16 %v71
    %v241 = vunpack.c.h.b16 %v71
    %v242 = vunpack.c.l.b16 %v72
    %v243 = vunpack.c.h.b16 %v72
    %v244 = vunpack.c.l.b16 %v73
    %v245 = vunpack.c.h.b16 %v73
    %v246 = vunpack.c.l.b16 %v74
    %v247 = vunpack.c.h.b16 %v74
    %v248 = vunpack.c.l.b16 %v75
    %v249 = vunpack.c.h.b16 %v75
    %v250 = vunpack.c.l.b16 %v76
    %v251 = vunpack.c.h.b16 %v76
    %v252 = vunpack.c.l.b16 %v77
    %v253 = vunpack.c.h.b16 %v77
    %v254 = vunpack.c.l.b16 %v78
    %v255 = vunpack.c.h.b16 %v78
    %v256 = vunpack.c.l.b16 %v79
    %v257 = vunpack.c.h.b16 %v79
    %v258 = vunpack.c.l.b16 %v80
    %v259 = vunpack.c.h.b16 %v80
    %v260 = vunpack.c.l.b16 %v81
    %v261 = vunpack.c.h.b16 %v81
    %v262 = vunpack.c.l.b16 %v82
    %v263 = vunpack.c.h.b16 %v82
    %v264 = vunpack.c.l.b16 %v83
    %v265 = vunpack.c.h.b16 %v83
    %v266 = vunpack.c.l.b16 %v84
    %v267 = vunpack.c.h.b16 %v84
    %v268 = vunpack.c.l.b16 %v85
    %v269 = vunpack.c.h.b16 %v85
    %v270 = vunpack.c.l.b16 %v86
    %v271 = vunpack.c.h.b16 %v86
    %v272 = vunpack.c.l.b16 %v87
    %v273 = vunpack.c.h.b16 %v87
    %v274 = vunpack.c.l.b16 %v88
    %v275 = vunpack.c.h.b16 %v88
    %v276 = vunpack.c.l.b16 %v89
    %v277 = vunpack.c.h.b16 %v89
    %v278 = vunpack.c.l.b16 %v90
    %v279 = vunpack.c.h.b16 %v90
    %v280 = vunpack.c.l.b16 %v91
    %v281 = vunpack.c.h.b16 %v91
    %v282 = vunpack.c.l.b16 %v92
    %v283 = vunpack.c.h.b16 %v92
    %v284 = vunpack.c.l.b16 %v93
    %v285 = vunpack.c.h.b16 %v93
    %v286 = vunpack.c.l.b16 %v94
    %v287 = vunpack.c.h.b16 %v94
    %v288 = vunpack.c.l.b16 %v95
    %v289 = vunpack.c.h.b16 %v95
    %v290 = vunpack.c.l.b16 %v96
    %v291 = vunpack.c.h.b16 %v96
    %v292 = vunpack.c.l.b16 %v97
    %v293 = vunpack.c.h.b16 %v97
    %v294 = vunpack.c.l.b16 %v98
    %v295 = vunpack.c.h.b16 %v98
    %v296 = vunpack.c.l.b16 %v99
    %v297 = vunpack.c.h.b16 %v99
    %v298 = vunpack.c.l.b16 %v100
    %v299 = vunpack.c.h.b16 %v100
    %v300 = vunpack.c.l.b16 %v101
    %v301 = vunpack.c.h.b16 %v101
    %v302 = vunpack.c.l.b16 %v102
    %v303 = vunpack.c.h.b16 %v102
    %v304 = vunpack.c.l.b16 %v103
    %v305 = vunpack.c.h.b16 %v103
    %v306 = vunpack.c.l.b16 %v104
    %v307 = vunpack.c.h.b16 %v104
    %v308 = vunpack.c.l.b16 %v105
    %v309 = vunpack.c.h.b16 %v105
    %v310 = vunpack.c.l.b16 %v106
    %v311 = vunpack.c.h.b16 %v106
    %v312 = vunpack.c.l.b16 %v107
    %v313 = vunpack.c.h.b16 %v107
    %v314 = vunpack.c.l.b16 %v108
    %v315 = vunpack.c.h.b16 %v108
    %v316 = vunpack.c.l.b16 %v109
    %v317 = vunpack.c.h.b16 %v109
    %v318 = vpack.c.b16 %v192, %v190
    %v319 = vpack.c.b16 %v193, %v191
    %v320 = vpack.c.b16 %v196, %v194
    %v321 = vpack.c.b16 %v197, %v195
    %v322 = vpack.c.b16 %v200, %v198
    %v323 = vpack.c.b16 %v201, %v199
    %v324 = vpack.c.b16 %v204, %v202
    %v325 = vpack.c.b16 %v205, %v203
    %v326 = vpack.c.b16 %v208, %v206
    %v327 = vpack.c.b16 %v209, %v207
    %v328 = vpack.c.b16 %v212, %v210
    %v329 = vpack.c.b16 %v213, %v211
    %v330 = vpack.c.b16 %v216, %v214
    %v331 = vpack.c.b16 %v217, %v215
    %v332 = vpack.c.b16 %v220, %v218
    %v333 = vpack.c.b16 %v221, %v219
    %v334 = vpack.c.b16 %v224, %v222
    %v335 = vpack.c.b16 %v225, %v223
    %v336 = vpack.c.b16 %v228, %v226
    %v337 = vpack.c.b16 %v229, %v227
    %v338 = vpack.c.b16 %v232, %v230
    %v339 = vpack.c.b16 %v233, %v231
    %v340 = vpack.c.b16 %v236, %v234
    %v341 = vpack.c.b16 %v237, %v235
    %v342 = vpack.c.b16 %v240, %v238
    %v343 = vpack.c.b16 %v241, %v239
    %v344 = vpack.c.b16 %v244, %v242
    %v345 = vpack.c.b16 %v245, %v243
    %v346 = vpack.c.b16 %v248, %v246
    %v347 = vpack.c.b16 %v249, %v247
    %v348 = vpack.c.b16 %v252, %v250
    %v349 = vpack.c.b16 %v253, %v251
    %v350 = vpack.c.b16 %v256, %v254
    %v351 = vpack.c.b16 %v257, %v255
    %v352 = vpack.c.b16 %v260, %v258
    %v353 = vpack.c.b16 %v261, %v259
    %v354 = vpack.c.b16 %v264, %v262
    %v355 = vpack.c.b16 %v265, %v263
    %v356 = vpack.c.b16 %v268, %v266
    %v357 = vpack.c.b16 %v269, %v267
    %v358 = vpack.c.b16 %v272, %v270
    %v359 = vpack.c.b16 %v273, %v271
    %v360 = vpack.c.b16 %v276, %v274
    %v361 = vpack.c.b16 %v277, %v275
    %v362 = vpack.c.b16 %v280, %v278
    %v363 = vpack.c.b16 %v281, %v279
    %v364 = vpack.c.b16 %v284, %v282
    %v365 = vpack.c.b16 %v285, %v283
    %v366 = vpack.c.b16 %v288, %v286
    %v367 = vpack.c.b16 %v289, %v287
    %v368 = vpack.c.b16 %v292, %v290
    %v369 = vpack.c.b16 %v293, %v291
    %v370 = vpack.c.b16 %v296, %v294
    %v371 = vpack.c.b16 %v297, %v295
    %v372 = vpack.c.b16 %v300, %v298
    %v373 = vpack.c.b16 %v301, %v299
    %v374 = vpack.c.b16 %v304, %v302
    %v375 = vpack.c.b16 %v305, %v303
    %v376 = vpack.c.b16 %v308, %v306
    %v377 = vpack.c.b16 %v309, %v307
    %v378 = vpack.c.b16 %v312, %v310
    %v379 = vpack.c.b16 %v313, %v311
    %v380 = vpack.c.b16 %v316, %v314
    %v381 = vpack.c.b16 %v317, %v315
    %446 = vmatpush.bf16.msra.mxu0 %v332
    %447 = vmatpush.bf16.msra.mxu0 %v330
    %448 = vmatpush.bf16.msra.mxu0 %v328
    %449 = vmatpush.bf16.msra.mxu0 %v326
    %450 = vmatpush.bf16.msra.mxu0 %v324
    %451 = vmatpush.bf16.msra.mxu0 %v322
    %452 = vmatpush.bf16.msra.mxu0 %v320
    %453 = vmatpush.bf16.msra.mxu0 %v318
    %454 = vmatmul.bf16.gmra.mxu0 %v118
    %v455 = vpop.f32.mrf.mxu0
    %v456 = vadd.f32 %v112, %v455
    %v457 = vpop.f32.mrf.mxu0
    %458 = vdwg.mxu0
    %459 = vmatpush.bf16.msra.mxu0 %v348
    %460 = vmatpush.bf16.msra.mxu0 %v346
    %461 = vmatpush.bf16.msra.mxu0 %v344
    %462 = vmatpush.bf16.msra.mxu0 %v342
    %463 = vmatpush.bf16.msra.mxu0 %v340
    %464 = vmatpush.bf16.msra.mxu0 %v338
    %465 = vmatpush.bf16.msra.mxu0 %v336
    %466 = vmatpush.bf16.msra.mxu0 %v334
    %467 = vmatmul.bf16.gmra.mxu0 %v119
    %v468 = vpop.f32.mrf.mxu0
    %v469 = vadd.f32 %v456, %v468
    %v470 = vpop.f32.mrf.mxu0
    %471 = vdwg.mxu0
    %472 = vmatpush.bf16.msra.mxu0 %v364
    %473 = vmatpush.bf16.msra.mxu0 %v362
    %474 = vmatpush.bf16.msra.mxu0 %v360
    %475 = vmatpush.bf16.msra.mxu0 %v358
    %476 = vmatpush.bf16.msra.mxu0 %v356
    %477 = vmatpush.bf16.msra.mxu0 %v354
    %478 = vmatpush.bf16.msra.mxu0 %v352
    %479 = vmatpush.bf16.msra.mxu0 %v350
    %480 = vmatmul.bf16.gmra.mxu0 %v120
    %v481 = vpop.f32.mrf.mxu0
    %v482 = vadd.f32 %v469, %v481
    %v483 = vpop.f32.mrf.mxu0
    %484 = vdwg.mxu0
    %485 = vmatpush.bf16.msra.mxu0 %v380
    %486 = vmatpush.bf16.msra.mxu0 %v378
    %487 = vmatpush.bf16.msra.mxu0 %v376
    %488 = vmatpush.bf16.msra.mxu0 %v374
    %489 = vmatpush.bf16.msra.mxu0 %v372
    %490 = vmatpush.bf16.msra.mxu0 %v370
    %491 = vmatpush.bf16.msra.mxu0 %v368
    %492 = vmatpush.bf16.msra.mxu0 %v366
    %493 = vmatmul.bf16.gmra.mxu0 %v121
    %v494 = vpop.f32.mrf.mxu0
    %v495 = vadd.f32 %v482, %v494
    %v496 = vpop.f32.mrf.mxu0
    %497 = vdwg.mxu0
    %498 = vmatpush.bf16.msra.mxu0 %v333
    %499 = vmatpush.bf16.msra.mxu0 %v331
    %500 = vmatpush.bf16.msra.mxu0 %v329
    %501 = vmatpush.bf16.msra.mxu0 %v327
    %502 = vmatpush.bf16.msra.mxu0 %v325
    %503 = vmatpush.bf16.msra.mxu0 %v323
    %504 = vmatpush.bf16.msra.mxu0 %v321
    %505 = vmatpush.bf16.msra.mxu0 %v319
    %506 = vmatmul.bf16.gmra.mxu0 %v118
    %v507 = vpop.f32.mrf.mxu0
    %v508 = vadd.f32 %v113, %v507
    %v509 = vpop.f32.mrf.mxu0
    %510 = vdwg.mxu0
    %511 = vmatpush.bf16.msra.mxu0 %v349
    %512 = vmatpush.bf16.msra.mxu0 %v347
    %513 = vmatpush.bf16.msra.mxu0 %v345
    %514 = vmatpush.bf16.msra.mxu0 %v343
    %515 = vmatpush.bf16.msra.mxu0 %v341
    %516 = vmatpush.bf16.msra.mxu0 %v339
    %517 = vmatpush.bf16.msra.mxu0 %v337
    %518 = vmatpush.bf16.msra.mxu0 %v335
    %519 = vmatmul.bf16.gmra.mxu0 %v119
    %v520 = vpop.f32.mrf.mxu0
    %v521 = vadd.f32 %v508, %v520
    %v522 = vpop.f32.mrf.mxu0
    %523 = vdwg.mxu0
    %524 = vmatpush.bf16.msra.mxu0 %v365
    %525 = vmatpush.bf16.msra.mxu0 %v363
    %526 = vmatpush.bf16.msra.mxu0 %v361
    %527 = vmatpush.bf16.msra.mxu0 %v359
    %528 = vmatpush.bf16.msra.mxu0 %v357
    %529 = vmatpush.bf16.msra.mxu0 %v355
    %530 = vmatpush.bf16.msra.mxu0 %v353
    %531 = vmatpush.bf16.msra.mxu0 %v351
    %532 = vmatmul.bf16.gmra.mxu0 %v120
    %v533 = vpop.f32.mrf.mxu0
    %v534 = vadd.f32 %v521, %v533
    %v535 = vpop.f32.mrf.mxu0
    %536 = vdwg.mxu0
    %537 = vmatpush.bf16.msra.mxu0 %v381
    %538 = vmatpush.bf16.msra.mxu0 %v379
    %539 = vmatpush.bf16.msra.mxu0 %v377
    %540 = vmatpush.bf16.msra.mxu0 %v375
    %541 = vmatpush.bf16.msra.mxu0 %v373
    %542 = vmatpush.bf16.msra.mxu0 %v371
    %543 = vmatpush.bf16.msra.mxu0 %v369
    %544 = vmatpush.bf16.msra.mxu0 %v367
    %545 = vmatmul.bf16.gmra.mxu0 %v121
    %v546 = vpop.f32.mrf.mxu0
    %v547 = vadd.f32 %v534, %v546
    %v548 = vpop.f32.mrf.mxu0
    %549 = vdwg.mxu0
    %v550 = vld [vmem:[%s0] sm:$0xf]
    %v551 = vld [vmem:[%s2] sm:$0xff]
    %v552 = vld [vmem:[%s2 + $0x8] sm:$0xff]
    %v553 = vld [vmem:[%s2 + $0x10] sm:$0xff]
    %v554 = vld [vmem:[%s2 + $0x18] sm:$0xff]
    %v555 = vld [vmem:[%s2 + $0x20] sm:$0xff]
    %v556 = vld [vmem:[%s2 + $0x28] sm:$0xff]
    %v557 = vld [vmem:[%s2 + $0x30] sm:$0xff]
    %v558 = vld [vmem:[%s2 + $0x38] sm:$0xff]
    %v559 = vld [vmem:[%s2 + $0x40] sm:$0xff]
    %v560 = vld [vmem:[%s2 + $0x48] sm:$0xff]
    %v561 = vld [vmem:[%s2 + $0x50] sm:$0xff]
    %v562 = vld [vmem:[%s2 + $0x58] sm:$0xff]
    %v563 = vld [vmem:[%s2 + $0x60] sm:$0xff]
    %v564 = vld [vmem:[%s2 + $0x68] sm:$0xff]
    %v565 = vld [vmem:[%s2 + $0x70] sm:$0xff]
    %v566 = vld [vmem:[%s2 + $0x78] sm:$0xff]
    %v567 = vld [vmem:[%s2 + $0x80] sm:$0xff]
    %v568 = vld [vmem:[%s2 + $0x88] sm:$0xff]
    %v569 = vld [vmem:[%s2 + $0x90] sm:$0xff]
    %v570 = vld [vmem:[%s2 + $0x98] sm:$0xff]
    %v571 = vld [vmem:[%s2 + $0xa0] sm:$0xff]
    %v572 = vld [vmem:[%s2 + $0xa8] sm:$0xff]
    %v573 = vld [vmem:[%s2 + $0xb0] sm:$0xff]
    %v574 = vld [vmem:[%s2 + $0xb8] sm:$0xff]
    %v575 = vld [vmem:[%s2 + $0xc0] sm:$0xff]
    %v576 = vld [vmem:[%s2 + $0xc8] sm:$0xff]
    %v577 = vld [vmem:[%s2 + $0xd0] sm:$0xff]
    %v578 = vld [vmem:[%s2 + $0xd8] sm:$0xff]
    %v579 = vld [vmem:[%s2 + $0xe0] sm:$0xff]
    %v580 = vld [vmem:[%s2 + $0xe8] sm:$0xff]
    %v581 = vld [vmem:[%s2 + $0xf0] sm:$0xff]
    %v582 = vld [vmem:[%s2 + $0xf8] sm:$0xff]
    %v583 = vld [vmem:[%s2 + $0x100] sm:$0xff]
    %v584 = vld [vmem:[%s2 + $0x108] sm:$0xff]
    %v585 = vld [vmem:[%s2 + $0x110] sm:$0xff]
    %v586 = vld [vmem:[%s2 + $0x118] sm:$0xff]
    %v587 = vld [vmem:[%s2 + $0x120] sm:$0xff]
    %v588 = vld [vmem:[%s2 + $0x128] sm:$0xff]
    %v589 = vld [vmem:[%s2 + $0x130] sm:$0xff]
    %v590 = vld [vmem:[%s2 + $0x138] sm:$0xff]
    %v591 = vld [vmem:[%s2 + $0x140] sm:$0xff]
    %v592 = vld [vmem:[%s2 + $0x148] sm:$0xff]
    %v593 = vld [vmem:[%s2 + $0x150] sm:$0xff]
    %v594 = vld [vmem:[%s2 + $0x158] sm:$0xff]
    %v595 = vld [vmem:[%s2 + $0x160] sm:$0xff]
    %v596 = vld [vmem:[%s2 + $0x168] sm:$0xff]
    %v597 = vld [vmem:[%s2 + $0x170] sm:$0xff]
    %v598 = vld [vmem:[%s2 + $0x178] sm:$0xff]
    %v599 = vld [vmem:[%s2 + $0x180] sm:$0xff]
    %v600 = vld [vmem:[%s2 + $0x188] sm:$0xff]
    %v601 = vld [vmem:[%s2 + $0x190] sm:$0xff]
    %v602 = vld [vmem:[%s2 + $0x198] sm:$0xff]
    %v603 = vld [vmem:[%s2 + $0x1a0] sm:$0xff]
    %v604 = vld [vmem:[%s2 + $0x1a8] sm:$0xff]
    %v605 = vld [vmem:[%s2 + $0x1b0] sm:$0xff]
    %v606 = vld [vmem:[%s2 + $0x1b8] sm:$0xff]
    %v607 = vld [vmem:[%s2 + $0x1c0] sm:$0xff]
    %v608 = vld [vmem:[%s2 + $0x1c8] sm:$0xff]
    %v609 = vld [vmem:[%s2 + $0x1d0] sm:$0xff]
    %v610 = vld [vmem:[%s2 + $0x1d8] sm:$0xff]
    %v611 = vld [vmem:[%s2 + $0x1e0] sm:$0xff]
    %v612 = vld [vmem:[%s2 + $0x1e8] sm:$0xff]
    %v613 = vld [vmem:[%s2 + $0x1f0] sm:$0xff]
    %v614 = vld [vmem:[%s2 + $0x1f8] sm:$0xff]
    %v615 = vld [vmem:[%s3] sm:$0x3]
    %v617 = vperm.slane %v615, 0
    %v618 = vperm.slane %v615, 1
    %622 = vst [vmem:[#allocation1] ss:$9 sm:$0xff] %v550
    %v623 = vld [vmem:[#allocation1] sm:$0xff]
    %v624 = vld [vmem:[#allocation1 + $0x9] sm:$0xff]
    %v625 = vld [vmem:[#allocation1 + $0x12] sm:$0xff]
    %v626 = vld [vmem:[#allocation1 + $0x1b] sm:$0xff]
    %v695 = vunpack.c.l.b16 %v551
    %v696 = vunpack.c.h.b16 %v551
    %v697 = vunpack.c.l.b16 %v552
    %v698 = vunpack.c.h.b16 %v552
    %v699 = vunpack.c.l.b16 %v553
    %v700 = vunpack.c.h.b16 %v553
    %v701 = vunpack.c.l.b16 %v554
    %v702 = vunpack.c.h.b16 %v554
    %v703 = vunpack.c.l.b16 %v555
    %v704 = vunpack.c.h.b16 %v555
    %v705 = vunpack.c.l.b16 %v556
    %v706 = vunpack.c.h.b16 %v556
    %v707 = vunpack.c.l.b16 %v557
    %v708 = vunpack.c.h.b16 %v557
    %v709 = vunpack.c.l.b16 %v558
    %v710 = vunpack.c.h.b16 %v558
    %v711 = vunpack.c.l.b16 %v559
    %v712 = vunpack.c.h.b16 %v559
    %v713 = vunpack.c.l.b16 %v560
    %v714 = vunpack.c.h.b16 %v560
    %v715 = vunpack.c.l.b16 %v561
    %v716 = vunpack.c.h.b16 %v561
    %v717 = vunpack.c.l.b16 %v562
    %v718 = vunpack.c.h.b16 %v562
    %v719 = vunpack.c.l.b16 %v563
    %v720 = vunpack.c.h.b16 %v563
    %v721 = vunpack.c.l.b16 %v564
    %v722 = vunpack.c.h.b16 %v564
    %v723 = vunpack.c.l.b16 %v565
    %v724 = vunpack.c.h.b16 %v565
    %v725 = vunpack.c.l.b16 %v566
    %v726 = vunpack.c.h.b16 %v566
    %v727 = vunpack.c.l.b16 %v567
    %v728 = vunpack.c.h.b16 %v567
    %v729 = vunpack.c.l.b16 %v568
    %v730 = vunpack.c.h.b16 %v568
    %v731 = vunpack.c.l.b16 %v569
    %v732 = vunpack.c.h.b16 %v569
    %v733 = vunpack.c.l.b16 %v570
    %v734 = vunpack.c.h.b16 %v570
    %v735 = vunpack.c.l.b16 %v571
    %v736 = vunpack.c.h.b16 %v571
    %v737 = vunpack.c.l.b16 %v572
    %v738 = vunpack.c.h.b16 %v572
    %v739 = vunpack.c.l.b16 %v573
    %v740 = vunpack.c.h.b16 %v573
    %v741 = vunpack.c.l.b16 %v574
    %v742 = vunpack.c.h.b16 %v574
    %v743 = vunpack.c.l.b16 %v575
    %v744 = vunpack.c.h.b16 %v575
    %v745 = vunpack.c.l.b16 %v576
    %v746 = vunpack.c.h.b16 %v576
    %v747 = vunpack.c.l.b16 %v577
    %v748 = vunpack.c.h.b16 %v577
    %v749 = vunpack.c.l.b16 %v578
    %v750 = vunpack.c.h.b16 %v578
    %v751 = vunpack.c.l.b16 %v579
    %v752 = vunpack.c.h.b16 %v579
    %v753 = vunpack.c.l.b16 %v580
    %v754 = vunpack.c.h.b16 %v580
    %v755 = vunpack.c.l.b16 %v581
    %v756 = vunpack.c.h.b16 %v581
    %v757 = vunpack.c.l.b16 %v582
    %v758 = vunpack.c.h.b16 %v582
    %v759 = vunpack.c.l.b16 %v583
    %v760 = vunpack.c.h.b16 %v583
    %v761 = vunpack.c.l.b16 %v584
    %v762 = vunpack.c.h.b16 %v584
    %v763 = vunpack.c.l.b16 %v585
    %v764 = vunpack.c.h.b16 %v585
    %v765 = vunpack.c.l.b16 %v586
    %v766 = vunpack.c.h.b16 %v586
    %v767 = vunpack.c.l.b16 %v587
    %v768 = vunpack.c.h.b16 %v587
    %v769 = vunpack.c.l.b16 %v588
    %v770 = vunpack.c.h.b16 %v588
    %v771 = vunpack.c.l.b16 %v589
    %v772 = vunpack.c.h.b16 %v589
    %v773 = vunpack.c.l.b16 %v590
    %v774 = vunpack.c.h.b16 %v590
    %v775 = vunpack.c.l.b16 %v591
    %v776 = vunpack.c.h.b16 %v591
    %v777 = vunpack.c.l.b16 %v592
    %v778 = vunpack.c.h.b16 %v592
    %v779 = vunpack.c.l.b16 %v593
    %v780 = vunpack.c.h.b16 %v593
    %v781 = vunpack.c.l.b16 %v594
    %v782 = vunpack.c.h.b16 %v594
    %v783 = vunpack.c.l.b16 %v595
    %v784 = vunpack.c.h.b16 %v595
    %v785 = vunpack.c.l.b16 %v596
    %v786 = vunpack.c.h.b16 %v596
    %v787 = vunpack.c.l.b16 %v597
    %v788 = vunpack.c.h.b16 %v597
    %v789 = vunpack.c.l.b16 %v598
    %v790 = vunpack.c.h.b16 %v598
    %v791 = vunpack.c.l.b16 %v599
    %v792 = vunpack.c.h.b16 %v599
    %v793 = vunpack.c.l.b16 %v600
    %v794 = vunpack.c.h.b16 %v600
    %v795 = vunpack.c.l.b16 %v601
    %v796 = vunpack.c.h.b16 %v601
    %v797 = vunpack.c.l.b16 %v602
    %v798 = vunpack.c.h.b16 %v602
    %v799 = vunpack.c.l.b16 %v603
    %v800 = vunpack.c.h.b16 %v603
    %v801 = vunpack.c.l.b16 %v604
    %v802 = vunpack.c.h.b16 %v604
    %v803 = vunpack.c.l.b16 %v605
    %v804 = vunpack.c.h.b16 %v605
    %v805 = vunpack.c.l.b16 %v606
    %v806 = vunpack.c.h.b16 %v606
    %v807 = vunpack.c.l.b16 %v607
    %v808 = vunpack.c.h.b16 %v607
    %v809 = vunpack.c.l.b16 %v608
    %v810 = vunpack.c.h.b16 %v608
    %v811 = vunpack.c.l.b16 %v609
    %v812 = vunpack.c.h.b16 %v609
    %v813 = vunpack.c.l.b16 %v610
    %v814 = vunpack.c.h.b16 %v610
    %v815 = vunpack.c.l.b16 %v611
    %v816 = vunpack.c.h.b16 %v611
    %v817 = vunpack.c.l.b16 %v612
    %v818 = vunpack.c.h.b16 %v612
    %v819 = vunpack.c.l.b16 %v613
    %v820 = vunpack.c.h.b16 %v613
    %v821 = vunpack.c.l.b16 %v614
    %v822 = vunpack.c.h.b16 %v614
    %v823 = vpack.c.b16 %v697, %v695
    %v824 = vpack.c.b16 %v698, %v696
    %v825 = vpack.c.b16 %v701, %v699
    %v826 = vpack.c.b16 %v702, %v700
    %v827 = vpack.c.b16 %v705, %v703
    %v828 = vpack.c.b16 %v706, %v704
    %v829 = vpack.c.b16 %v709, %v707
    %v830 = vpack.c.b16 %v710, %v708
    %v831 = vpack.c.b16 %v713, %v711
    %v832 = vpack.c.b16 %v714, %v712
    %v833 = vpack.c.b16 %v717, %v715
    %v834 = vpack.c.b16 %v718, %v716
    %v835 = vpack.c.b16 %v721, %v719
    %v836 = vpack.c.b16 %v722, %v720
    %v837 = vpack.c.b16 %v725, %v723
    %v838 = vpack.c.b16 %v726, %v724
    %v839 = vpack.c.b16 %v729, %v727
    %v840 = vpack.c.b16 %v730, %v728
    %v841 = vpack.c.b16 %v733, %v731
    %v842 = vpack.c.b16 %v734, %v732
    %v843 = vpack.c.b16 %v737, %v735
    %v844 = vpack.c.b16 %v738, %v736
    %v845 = vpack.c.b16 %v741, %v739
    %v846 = vpack.c.b16 %v742, %v740
    %v847 = vpack.c.b16 %v745, %v743
    %v848 = vpack.c.b16 %v746, %v744
    %v849 = vpack.c.b16 %v749, %v747
    %v850 = vpack.c.b16 %v750, %v748
    %v851 = vpack.c.b16 %v753, %v751
    %v852 = vpack.c.b16 %v754, %v752
    %v853 = vpack.c.b16 %v757, %v755
    %v854 = vpack.c.b16 %v758, %v756
    %v855 = vpack.c.b16 %v761, %v759
    %v856 = vpack.c.b16 %v762, %v760
    %v857 = vpack.c.b16 %v765, %v763
    %v858 = vpack.c.b16 %v766, %v764
    %v859 = vpack.c.b16 %v769, %v767
    %v860 = vpack.c.b16 %v770, %v768
    %v861 = vpack.c.b16 %v773, %v771
    %v862 = vpack.c.b16 %v774, %v772
    %v863 = vpack.c.b16 %v777, %v775
    %v864 = vpack.c.b16 %v778, %v776
    %v865 = vpack.c.b16 %v781, %v779
    %v866 = vpack.c.b16 %v782, %v780
    %v867 = vpack.c.b16 %v785, %v783
    %v868 = vpack.c.b16 %v786, %v784
    %v869 = vpack.c.b16 %v789, %v787
    %v870 = vpack.c.b16 %v790, %v788
    %v871 = vpack.c.b16 %v793, %v791
    %v872 = vpack.c.b16 %v794, %v792
    %v873 = vpack.c.b16 %v797, %v795
    %v874 = vpack.c.b16 %v798, %v796
    %v875 = vpack.c.b16 %v801, %v799
    %v876 = vpack.c.b16 %v802, %v800
    %v877 = vpack.c.b16 %v805, %v803
    %v878 = vpack.c.b16 %v806, %v804
    %v879 = vpack.c.b16 %v809, %v807
    %v880 = vpack.c.b16 %v810, %v808
    %v881 = vpack.c.b16 %v813, %v811
    %v882 = vpack.c.b16 %v814, %v812
    %v883 = vpack.c.b16 %v817, %v815
    %v884 = vpack.c.b16 %v818, %v816
    %v885 = vpack.c.b16 %v821, %v819
    %v886 = vpack.c.b16 %v822, %v820
    %951 = vmatpush.bf16.msra.mxu0 %v837
    %952 = vmatpush.bf16.msra.mxu0 %v835
    %953 = vmatpush.bf16.msra.mxu0 %v833
    %954 = vmatpush.bf16.msra.mxu0 %v831
    %955 = vmatpush.bf16.msra.mxu0 %v829
    %956 = vmatpush.bf16.msra.mxu0 %v827
    %957 = vmatpush.bf16.msra.mxu0 %v825
    %958 = vmatpush.bf16.msra.mxu0 %v823
    %959 = vmatmul.bf16.gmra.mxu0 %v623
    %v960 = vpop.f32.mrf.mxu0
    %v961 = vadd.f32 %v617, %v960
    %v962 = vpop.f32.mrf.mxu0
    %963 = vdwg.mxu0
    %964 = vmatpush.bf16.msra.mxu0 %v853
    %965 = vmatpush.bf16.msra.mxu0 %v851
    %966 = vmatpush.bf16.msra.mxu0 %v849
    %967 = vmatpush.bf16.msra.mxu0 %v847
    %968 = vmatpush.bf16.msra.mxu0 %v845
    %969 = vmatpush.bf16.msra.mxu0 %v843
    %970 = vmatpush.bf16.msra.mxu0 %v841
    %971 = vmatpush.bf16.msra.mxu0 %v839
    %972 = vmatmul.bf16.gmra.mxu0 %v624
    %v973 = vpop.f32.mrf.mxu0
    %v974 = vadd.f32 %v961, %v973
    %v975 = vpop.f32.mrf.mxu0
    %976 = vdwg.mxu0
    %977 = vmatpush.bf16.msra.mxu0 %v869
    %978 = vmatpush.bf16.msra.mxu0 %v867
    %979 = vmatpush.bf16.msra.mxu0 %v865
    %980 = vmatpush.bf16.msra.mxu0 %v863
    %981 = vmatpush.bf16.msra.mxu0 %v861
    %982 = vmatpush.bf16.msra.mxu0 %v859
    %983 = vmatpush.bf16.msra.mxu0 %v857
    %984 = vmatpush.bf16.msra.mxu0 %v855
    %985 = vmatmul.bf16.gmra.mxu0 %v625
    %v986 = vpop.f32.mrf.mxu0
    %v987 = vadd.f32 %v974, %v986
    %v988 = vpop.f32.mrf.mxu0
    %989 = vdwg.mxu0
    %990 = vmatpush.bf16.msra.mxu0 %v885
    %991 = vmatpush.bf16.msra.mxu0 %v883
    %992 = vmatpush.bf16.msra.mxu0 %v881
    %993 = vmatpush.bf16.msra.mxu0 %v879
    %994 = vmatpush.bf16.msra.mxu0 %v877
    %995 = vmatpush.bf16.msra.mxu0 %v875
    %996 = vmatpush.bf16.msra.mxu0 %v873
    %997 = vmatpush.bf16.msra.mxu0 %v871
    %998 = vmatmul.bf16.gmra.mxu0 %v626
    %v999 = vpop.f32.mrf.mxu0
    %v1000 = vadd.f32 %v987, %v999
    %v1001 = vpop.f32.mrf.mxu0
    %1002 = vdwg.mxu0
    %1003 = vmatpush.bf16.msra.mxu0 %v838
    %1004 = vmatpush.bf16.msra.mxu0 %v836
    %1005 = vmatpush.bf16.msra.mxu0 %v834
    %1006 = vmatpush.bf16.msra.mxu0 %v832
    %1007 = vmatpush.bf16.msra.mxu0 %v830
    %1008 = vmatpush.bf16.msra.mxu0 %v828
    %1009 = vmatpush.bf16.msra.mxu0 %v826
    %1010 = vmatpush.bf16.msra.mxu0 %v824
    %1011 = vmatmul.bf16.gmra.mxu0 %v623
    %v1012 = vpop.f32.mrf.mxu0
    %v1013 = vadd.f32 %v618, %v1012
    %v1014 = vpop.f32.mrf.mxu0
    %1015 = vdwg.mxu0
    %1016 = vmatpush.bf16.msra.mxu0 %v854
    %1017 = vmatpush.bf16.msra.mxu0 %v852
    %1018 = vmatpush.bf16.msra.mxu0 %v850
    %1019 = vmatpush.bf16.msra.mxu0 %v848
    %1020 = vmatpush.bf16.msra.mxu0 %v846
    %1021 = vmatpush.bf16.msra.mxu0 %v844
    %1022 = vmatpush.bf16.msra.mxu0 %v842
    %1023 = vmatpush.bf16.msra.mxu0 %v840
    %1024 = vmatmul.bf16.gmra.mxu0 %v624
    %v1025 = vpop.f32.mrf.mxu0
    %v1026 = vadd.f32 %v1013, %v1025
    %v1027 = vpop.f32.mrf.mxu0
    %1028 = vdwg.mxu0
    %1029 = vmatpush.bf16.msra.mxu0 %v870
    %1030 = vmatpush.bf16.msra.mxu0 %v868
    %1031 = vmatpush.bf16.msra.mxu0 %v866
    %1032 = vmatpush.bf16.msra.mxu0 %v864
    %1033 = vmatpush.bf16.msra.mxu0 %v862
    %1034 = vmatpush.bf16.msra.mxu0 %v860
    %1035 = vmatpush.bf16.msra.mxu0 %v858
    %1036 = vmatpush.bf16.msra.mxu0 %v856
    %1037 = vmatmul.bf16.gmra.mxu0 %v625
    %v1038 = vpop.f32.mrf.mxu0
    %v1039 = vadd.f32 %v1026, %v1038
    %v1040 = vpop.f32.mrf.mxu0
    %1041 = vdwg.mxu0
    %1042 = vmatpush.bf16.msra.mxu0 %v886
    %1043 = vmatpush.bf16.msra.mxu0 %v884
    %1044 = vmatpush.bf16.msra.mxu0 %v882
    %1045 = vmatpush.bf16.msra.mxu0 %v880
    %1046 = vmatpush.bf16.msra.mxu0 %v878
    %1047 = vmatpush.bf16.msra.mxu0 %v876
    %1048 = vmatpush.bf16.msra.mxu0 %v874
    %1049 = vmatpush.bf16.msra.mxu0 %v872
    %1050 = vmatmul.bf16.gmra.mxu0 %v626
    %v1051 = vpop.f32.mrf.mxu0
    %v1052 = vadd.f32 %v1039, %v1051
    %v1053 = vpop.f32.mrf.mxu0
    %1054 = vdwg.mxu0
    %v1055 = vmax.f32 %v1000, 0.0
    %v1056 = vmax.f32 %v1052, 0.0
    %v1057 = vpack.c.bf16 %v1055, %v1055
    %v1058 = vpack.c.bf16 %v1056, %v1056
    %v1059 = vld [vmem:[#allocation2] sm:$0xff]
    %v1060 = vld [vmem:[#allocation2 + $0x8] sm:$0xff]
    %v1061 = vld [vmem:[#allocation2 + $0x10] sm:$0xff]
    %v1062 = vld [vmem:[#allocation2 + $0x18] sm:$0xff]
    %v1063 = vld [vmem:[#allocation2 + $0x20] sm:$0xff]
    %v1064 = vld [vmem:[#allocation2 + $0x28] sm:$0xff]
    %v1065 = vld [vmem:[#allocation2 + $0x30] sm:$0xff]
    %v1066 = vld [vmem:[#allocation2 + $0x38] sm:$0xff]
    %v1067 = vld [vmem:[#allocation2 + $0x40] sm:$0xff]
    %v1068 = vld [vmem:[#allocation2 + $0x48] sm:$0xff]
    %v1069 = vld [vmem:[#allocation2 + $0x50] sm:$0xff]
    %v1070 = vld [vmem:[#allocation2 + $0x58] sm:$0xff]
    %v1071 = vld [vmem:[#allocation2 + $0x60] sm:$0xff]
    %v1072 = vld [vmem:[#allocation2 + $0x68] sm:$0xff]
    %v1073 = vld [vmem:[#allocation2 + $0x70] sm:$0xff]
    %v1074 = vld [vmem:[#allocation2 + $0x78] sm:$0xff]
    %v1075 = vld [vmem:[#allocation2 + $0x80] sm:$0xff]
    %v1076 = vld [vmem:[#allocation2 + $0x88] sm:$0xff]
    %v1077 = vld [vmem:[#allocation2 + $0x90] sm:$0xff]
    %v1078 = vld [vmem:[#allocation2 + $0x98] sm:$0xff]
    %v1079 = vld [vmem:[#allocation2 + $0xa0] sm:$0xff]
    %v1080 = vld [vmem:[#allocation2 + $0xa8] sm:$0xff]
    %v1081 = vld [vmem:[#allocation2 + $0xb0] sm:$0xff]
    %v1082 = vld [vmem:[#allocation2 + $0xb8] sm:$0xff]
    %v1083 = vld [vmem:[#allocation2 + $0xc0] sm:$0xff]
    %v1084 = vld [vmem:[#allocation2 + $0xc8] sm:$0xff]
    %v1085 = vld [vmem:[#allocation2 + $0xd0] sm:$0xff]
    %v1086 = vld [vmem:[#allocation2 + $0xd8] sm:$0xff]
    %v1087 = vld [vmem:[#allocation2 + $0xe0] sm:$0xff]
    %v1088 = vld [vmem:[#allocation2 + $0xe8] sm:$0xff]
    %v1089 = vld [vmem:[#allocation2 + $0xf0] sm:$0xff]
    %v1090 = vld [vmem:[#allocation2 + $0xf8] sm:$0xff]
    %v1091 = vld [vmem:[%s5] sm:$0x3]
    %v1093 = vperm.slane %v1091, 0
    %v1094 = vperm.slane %v1091, 1
    %v1129 = vunpack.c.l.b16 %v1059
    %v1130 = vunpack.c.h.b16 %v1059
    %v1131 = vunpack.c.l.b16 %v1060
    %v1132 = vunpack.c.h.b16 %v1060
    %v1133 = vunpack.c.l.b16 %v1061
    %v1134 = vunpack.c.h.b16 %v1061
    %v1135 = vunpack.c.l.b16 %v1062
    %v1136 = vunpack.c.h.b16 %v1062
    %v1137 = vunpack.c.l.b16 %v1063
    %v1138 = vunpack.c.h.b16 %v1063
    %v1139 = vunpack.c.l.b16 %v1064
    %v1140 = vunpack.c.h.b16 %v1064
    %v1141 = vunpack.c.l.b16 %v1065
    %v1142 = vunpack.c.h.b16 %v1065
    %v1143 = vunpack.c.l.b16 %v1066
    %v1144 = vunpack.c.h.b16 %v1066
    %v1145 = vunpack.c.l.b16 %v1067
    %v1146 = vunpack.c.h.b16 %v1067
    %v1147 = vunpack.c.l.b16 %v1068
    %v1148 = vunpack.c.h.b16 %v1068
    %v1149 = vunpack.c.l.b16 %v1069
    %v1150 = vunpack.c.h.b16 %v1069
    %v1151 = vunpack.c.l.b16 %v1070
    %v1152 = vunpack.c.h.b16 %v1070
    %v1153 = vunpack.c.l.b16 %v1071
    %v1154 = vunpack.c.h.b16 %v1071
    %v1155 = vunpack.c.l.b16 %v1072
    %v1156 = vunpack.c.h.b16 %v1072
    %v1157 = vunpack.c.l.b16 %v1073
    %v1158 = vunpack.c.h.b16 %v1073
    %v1159 = vunpack.c.l.b16 %v1074
    %v1160 = vunpack.c.h.b16 %v1074
    %v1161 = vunpack.c.l.b16 %v1075
    %v1162 = vunpack.c.h.b16 %v1075
    %v1163 = vunpack.c.l.b16 %v1076
    %v1164 = vunpack.c.h.b16 %v1076
    %v1165 = vunpack.c.l.b16 %v1077
    %v1166 = vunpack.c.h.b16 %v1077
    %v1167 = vunpack.c.l.b16 %v1078
    %v1168 = vunpack.c.h.b16 %v1078
    %v1169 = vunpack.c.l.b16 %v1079
    %v1170 = vunpack.c.h.b16 %v1079
    %v1171 = vunpack.c.l.b16 %v1080
    %v1172 = vunpack.c.h.b16 %v1080
    %v1173 = vunpack.c.l.b16 %v1081
    %v1174 = vunpack.c.h.b16 %v1081
    %v1175 = vunpack.c.l.b16 %v1082
    %v1176 = vunpack.c.h.b16 %v1082
    %v1177 = vunpack.c.l.b16 %v1083
    %v1178 = vunpack.c.h.b16 %v1083
    %v1179 = vunpack.c.l.b16 %v1084
    %v1180 = vunpack.c.h.b16 %v1084
    %v1181 = vunpack.c.l.b16 %v1085
    %v1182 = vunpack.c.h.b16 %v1085
    %v1183 = vunpack.c.l.b16 %v1086
    %v1184 = vunpack.c.h.b16 %v1086
    %v1185 = vunpack.c.l.b16 %v1087
    %v1186 = vunpack.c.h.b16 %v1087
    %v1187 = vunpack.c.l.b16 %v1088
    %v1188 = vunpack.c.h.b16 %v1088
    %v1189 = vunpack.c.l.b16 %v1089
    %v1190 = vunpack.c.h.b16 %v1089
    %v1191 = vunpack.c.l.b16 %v1090
    %v1192 = vunpack.c.h.b16 %v1090
    %v1193 = vpack.c.b16 %v1131, %v1129
    %v1194 = vpack.c.b16 %v1132, %v1130
    %v1195 = vpack.c.b16 %v1135, %v1133
    %v1196 = vpack.c.b16 %v1136, %v1134
    %v1197 = vpack.c.b16 %v1139, %v1137
    %v1198 = vpack.c.b16 %v1140, %v1138
    %v1199 = vpack.c.b16 %v1143, %v1141
    %v1200 = vpack.c.b16 %v1144, %v1142
    %v1201 = vpack.c.b16 %v1147, %v1145
    %v1202 = vpack.c.b16 %v1148, %v1146
    %v1203 = vpack.c.b16 %v1151, %v1149
    %v1204 = vpack.c.b16 %v1152, %v1150
    %v1205 = vpack.c.b16 %v1155, %v1153
    %v1206 = vpack.c.b16 %v1156, %v1154
    %v1207 = vpack.c.b16 %v1159, %v1157
    %v1208 = vpack.c.b16 %v1160, %v1158
    %v1209 = vpack.c.b16 %v1163, %v1161
    %v1210 = vpack.c.b16 %v1164, %v1162
    %v1211 = vpack.c.b16 %v1167, %v1165
    %v1212 = vpack.c.b16 %v1168, %v1166
    %v1213 = vpack.c.b16 %v1171, %v1169
    %v1214 = vpack.c.b16 %v1172, %v1170
    %v1215 = vpack.c.b16 %v1175, %v1173
    %v1216 = vpack.c.b16 %v1176, %v1174
    %v1217 = vpack.c.b16 %v1179, %v1177
    %v1218 = vpack.c.b16 %v1180, %v1178
    %v1219 = vpack.c.b16 %v1183, %v1181
    %v1220 = vpack.c.b16 %v1184, %v1182
    %v1221 = vpack.c.b16 %v1187, %v1185
    %v1222 = vpack.c.b16 %v1188, %v1186
    %v1223 = vpack.c.b16 %v1191, %v1189
    %v1224 = vpack.c.b16 %v1192, %v1190
    %1257 = vmatpush.bf16.msra.mxu0 %v1207
    %1258 = vmatpush.bf16.msra.mxu0 %v1205
    %1259 = vmatpush.bf16.msra.mxu0 %v1203
    %1260 = vmatpush.bf16.msra.mxu0 %v1201
    %1261 = vmatpush.bf16.msra.mxu0 %v1199
    %1262 = vmatpush.bf16.msra.mxu0 %v1197
    %1263 = vmatpush.bf16.msra.mxu0 %v1195
    %1264 = vmatpush.bf16.msra.mxu0 %v1193
    %1265 = vmatmul.bf16.gmra.mxu0 %v1057
    %v1266 = vpop.f32.mrf.mxu0
    %v1267 = vadd.f32 %v1093, %v1266
    %v1268 = vpop.f32.mrf.mxu0
    %1269 = vdwg.mxu0
    %1270 = vmatpush.bf16.msra.mxu0 %v1223
    %1271 = vmatpush.bf16.msra.mxu0 %v1221
    %1272 = vmatpush.bf16.msra.mxu0 %v1219
    %1273 = vmatpush.bf16.msra.mxu0 %v1217
    %1274 = vmatpush.bf16.msra.mxu0 %v1215
    %1275 = vmatpush.bf16.msra.mxu0 %v1213
    %1276 = vmatpush.bf16.msra.mxu0 %v1211
    %1277 = vmatpush.bf16.msra.mxu0 %v1209
    %1278 = vmatmul.bf16.gmra.mxu0 %v1058
    %v1279 = vpop.f32.mrf.mxu0
    %v1280 = vadd.f32 %v1267, %v1279
    %v1281 = vpop.f32.mrf.mxu0
    %1282 = vdwg.mxu0
    %1283 = vmatpush.bf16.msra.mxu0 %v1208
    %1284 = vmatpush.bf16.msra.mxu0 %v1206
    %1285 = vmatpush.bf16.msra.mxu0 %v1204
    %1286 = vmatpush.bf16.msra.mxu0 %v1202
    %1287 = vmatpush.bf16.msra.mxu0 %v1200
    %1288 = vmatpush.bf16.msra.mxu0 %v1198
    %1289 = vmatpush.bf16.msra.mxu0 %v1196
    %1290 = vmatpush.bf16.msra.mxu0 %v1194
    %1291 = vmatmul.bf16.gmra.mxu0 %v1057
    %v1292 = vpop.f32.mrf.mxu0
    %v1293 = vadd.f32 %v1094, %v1292
    %v1294 = vpop.f32.mrf.mxu0
    %1295 = vdwg.mxu0
    %1296 = vmatpush.bf16.msra.mxu0 %v1224
    %1297 = vmatpush.bf16.msra.mxu0 %v1222
    %1298 = vmatpush.bf16.msra.mxu0 %v1220
    %1299 = vmatpush.bf16.msra.mxu0 %v1218
    %1300 = vmatpush.bf16.msra.mxu0 %v1216
    %1301 = vmatpush.bf16.msra.mxu0 %v1214
    %1302 = vmatpush.bf16.msra.mxu0 %v1212
    %1303 = vmatpush.bf16.msra.mxu0 %v1210
    %1304 = vmatmul.bf16.gmra.mxu0 %v1058
    %v1305 = vpop.f32.mrf.mxu0
    %v1306 = vadd.f32 %v1293, %v1305
    %v1307 = vpop.f32.mrf.mxu0
    %1308 = vdwg.mxu0
    %v1309 = vadd.f32 %v1280, %v495
    %v1310 = vadd.f32 %v1306, %v547
    %v1311 = vmax.f32 %v1309, 0.0
    %v1312 = vmax.f32 %v1310, 0.0
    %v1313 = vpack.c.bf16 %v1312, %v1311
    %v1315 = vrot.slane %v1313, 3
    %vm1316 = vcmask 1040384
    %v1319 = vsel %vm1316, %v1313, %v1315
    %1321 = vst [vmem:[%s8] sm:$0x3] %v1319
    // Predicated region
    $region38: #{resnet18_forward.27} parent=1 // pred_check
      _
    $region39: #{resnet18_forward.27} parent=1 // pred_check_branch
      %1323 = sbr.rel (0) target = $region41
    $region40: #{resnet18_forward.27} parent=1 // pred_region
      _
    $region41: #{resnet18_forward.27} parent=1 // pred_fallthru
      _
    // Predicated region
    $region42: #{resnet18_forward.27} parent=1 // pred_check
      _
    $region43: #{resnet18_forward.27} parent=1 // pred_check_branch
      %1325 = sbr.rel (0) target = $region45
    $region44: #{resnet18_forward.27} parent=1 // pred_region
      _
    $region45: #{resnet18_forward.27} parent=1 // pred_fallthru
      _
    %1326 = vsyncpa [#allocation3], 1

// kernel: resnet18_forward.29
$region0: #{resnet18_forward.29}
  #allocation0 [shape = 'u32[]', space=smem, size = 0x4, offset = 0x4, fixed_abs, tag = 'smem constant byte address 0x4 - core index']
  #allocation1 [shape = 'u32[72,128]{1,0:T(1,128)}', space=vmem, size = 0x9000, scoped, tag = 'internal scratch']
  %s0 = inlined_call_operand.vmem [shape: bf16[2,256], index: 0, kind: input, shape index: {}, may-alias: {0,1}]
  %s1 = inlined_call_operand.vmem [shape: bf16[2,256], index: 1, kind: input, shape index: {}, may-alias: {0,1}]
  %s2 = inlined_call_operand.vmem [shape: bf16[256,512], index: 2, kind: input, shape index: {}]
  %s3 = inlined_call_operand.vmem [shape: f32[1,512], index: 3, kind: input, shape index: {}]
  %s4 = inlined_call_operand.vmem [shape: bf16[512,512], index: 4, kind: input, shape index: {}]
  %s5 = inlined_call_operand.vmem [shape: f32[1,512], index: 5, kind: input, shape index: {}]
  %s6 = inlined_call_operand.vmem [shape: bf16[256,512], index: 6, kind: input, shape index: {}]
  %s7 = inlined_call_operand.vmem [shape: f32[1,512], index: 7, kind: input, shape index: {}]
  %s8 = inlined_call_operand.vmem [shape: bf16[2,512], index: 8, kind: output, shape index: {}]
  %s9 = sld [smem:[#allocation0]]
  $region42: #{resnet18_forward.29} parent=0
    _
  %s11 = ssub.s32 1, %s9
  %s12 = scalar_select 0, %s11, %s9
  // Predicated region
  $region2: #{resnet18_forward.29} parent=0 // pred_check
    _
  $region3: #{resnet18_forward.29} parent=0 // pred_check_branch
    %14 = sbr.rel (0) target = $region5
  $region4: #{resnet18_forward.29} parent=0 // pred_region
    _
  $region5: #{resnet18_forward.29} parent=0 // pred_fallthru
    _
  // Predicated region
  $region6: #{resnet18_forward.29} parent=0 // pred_check
    _
  $region7: #{resnet18_forward.29} parent=0 // pred_check_branch
    %16 = sbr.rel (0) target = $region9
  $region8: #{resnet18_forward.29} parent=0 // pred_region
    _
  $region9: #{resnet18_forward.29} parent=0 // pred_fallthru
    _
  // Predicated region
  $region10: #{resnet18_forward.29} parent=0 // pred_check
    _
  $region11: #{resnet18_forward.29} parent=0 // pred_check_branch
    %18 = sbr.rel (0) target = $region13
  $region12: #{resnet18_forward.29} parent=0 // pred_region
    _
  $region13: #{resnet18_forward.29} parent=0 // pred_fallthru
    _
  // Predicated region
  $region14: #{resnet18_forward.29} parent=0 // pred_check
    _
  $region15: #{resnet18_forward.29} parent=0 // pred_check_branch
    %20 = sbr.rel (0) target = $region17
  $region16: #{resnet18_forward.29} parent=0 // pred_region
    _
  $region17: #{resnet18_forward.29} parent=0 // pred_fallthru
    _
  // Predicated region
  $region18: #{resnet18_forward.29} parent=0 // pred_check
    _
  $region19: #{resnet18_forward.29} parent=0 // pred_check_branch
    %22 = sbr.rel (0) target = $region21
  $region20: #{resnet18_forward.29} parent=0 // pred_region
    _
  $region21: #{resnet18_forward.29} parent=0 // pred_fallthru
    _
  // Predicated region
  $region22: #{resnet18_forward.29} parent=0 // pred_check
    _
  $region23: #{resnet18_forward.29} parent=0 // pred_check_branch
    %24 = sbr.rel (0) target = $region25
  $region24: #{resnet18_forward.29} parent=0 // pred_region
    _
  $region25: #{resnet18_forward.29} parent=0 // pred_fallthru
    _
  // Predicated region
  $region26: #{resnet18_forward.29} parent=0 // pred_check
    _
  $region27: #{resnet18_forward.29} parent=0 // pred_check_branch
    %26 = sbr.rel (0) target = $region29
  $region28: #{resnet18_forward.29} parent=0 // pred_region
    _
  $region29: #{resnet18_forward.29} parent=0 // pred_fallthru
    _
  // Predicated region
  $region30: #{resnet18_forward.29} parent=0 // pred_check
    _
  $region31: #{resnet18_forward.29} parent=0 // pred_check_branch
    %28 = sbr.rel (0) target = $region33
  $region32: #{resnet18_forward.29} parent=0 // pred_region
    _
  $region33: #{resnet18_forward.29} parent=0 // pred_fallthru
    _
  %v29 = vld [vmem:[%s1] sm:$0x3]
  %v30 = vld [vmem:[%s6] sm:$0xff]
  %v31 = vld [vmem:[%s6 + $0x8] sm:$0xff]
  %v32 = vld [vmem:[%s6 + $0x10] sm:$0xff]
  %v33 = vld [vmem:[%s6 + $0x18] sm:$0xff]
  %v34 = vld [vmem:[%s6 + $0x20] sm:$0xff]
  %v35 = vld [vmem:[%s6 + $0x28] sm:$0xff]
  %v36 = vld [vmem:[%s6 + $0x30] sm:$0xff]
  %v37 = vld [vmem:[%s6 + $0x38] sm:$0xff]
  %v38 = vld [vmem:[%s6 + $0x40] sm:$0xff]
  %v39 = vld [vmem:[%s6 + $0x48] sm:$0xff]
  %v40 = vld [vmem:[%s6 + $0x50] sm:$0xff]
  %v41 = vld [vmem:[%s6 + $0x58] sm:$0xff]
  %v42 = vld [vmem:[%s6 + $0x60] sm:$0xff]
  %v43 = vld [vmem:[%s6 + $0x68] sm:$0xff]
  %v44 = vld [vmem:[%s6 + $0x70] sm:$0xff]
  %v45 = vld [vmem:[%s6 + $0x78] sm:$0xff]
  %v46 = vld [vmem:[%s6 + $0x80] sm:$0xff]
  %v47 = vld [vmem:[%s6 + $0x88] sm:$0xff]
  %v48 = vld [vmem:[%s6 + $0x90] sm:$0xff]
  %v49 = vld [vmem:[%s6 + $0x98] sm:$0xff]
  %v50 = vld [vmem:[%s6 + $0xa0] sm:$0xff]
  %v51 = vld [vmem:[%s6 + $0xa8] sm:$0xff]
  %v52 = vld [vmem:[%s6 + $0xb0] sm:$0xff]
  %v53 = vld [vmem:[%s6 + $0xb8] sm:$0xff]
  %v54 = vld [vmem:[%s6 + $0xc0] sm:$0xff]
  %v55 = vld [vmem:[%s6 + $0xc8] sm:$0xff]
  %v56 = vld [vmem:[%s6 + $0xd0] sm:$0xff]
  %v57 = vld [vmem:[%s6 + $0xd8] sm:$0xff]
  %v58 = vld [vmem:[%s6 + $0xe0] sm:$0xff]
  %v59 = vld [vmem:[%s6 + $0xe8] sm:$0xff]
  %v60 = vld [vmem:[%s6 + $0xf0] sm:$0xff]
  %v61 = vld [vmem:[%s6 + $0xf8] sm:$0xff]
  %v62 = vld [vmem:[%s6 + $0x100] sm:$0xff]
  %v63 = vld [vmem:[%s6 + $0x108] sm:$0xff]
  %v64 = vld [vmem:[%s6 + $0x110] sm:$0xff]
  %v65 = vld [vmem:[%s6 + $0x118] sm:$0xff]
  %v66 = vld [vmem:[%s6 + $0x120] sm:$0xff]
  %v67 = vld [vmem:[%s6 + $0x128] sm:$0xff]
  %v68 = vld [vmem:[%s6 + $0x130] sm:$0xff]
  %v69 = vld [vmem:[%s6 + $0x138] sm:$0xff]
  %v70 = vld [vmem:[%s6 + $0x140] sm:$0xff]
  %v71 = vld [vmem:[%s6 + $0x148] sm:$0xff]
  %v72 = vld [vmem:[%s6 + $0x150] sm:$0xff]
  %v73 = vld [vmem:[%s6 + $0x158] sm:$0xff]
  %v74 = vld [vmem:[%s6 + $0x160] sm:$0xff]
  %v75 = vld [vmem:[%s6 + $0x168] sm:$0xff]
  %v76 = vld [vmem:[%s6 + $0x170] sm:$0xff]
  %v77 = vld [vmem:[%s6 + $0x178] sm:$0xff]
  %v78 = vld [vmem:[%s6 + $0x180] sm:$0xff]
  %v79 = vld [vmem:[%s6 + $0x188] sm:$0xff]
  %v80 = vld [vmem:[%s6 + $0x190] sm:$0xff]
  %v81 = vld [vmem:[%s6 + $0x198] sm:$0xff]
  %v82 = vld [vmem:[%s6 + $0x1a0] sm:$0xff]
  %v83 = vld [vmem:[%s6 + $0x1a8] sm:$0xff]
  %v84 = vld [vmem:[%s6 + $0x1b0] sm:$0xff]
  %v85 = vld [vmem:[%s6 + $0x1b8] sm:$0xff]
  %v86 = vld [vmem:[%s6 + $0x1c0] sm:$0xff]
  %v87 = vld [vmem:[%s6 + $0x1c8] sm:$0xff]
  %v88 = vld [vmem:[%s6 + $0x1d0] sm:$0xff]
  %v89 = vld [vmem:[%s6 + $0x1d8] sm:$0xff]
  %v90 = vld [vmem:[%s6 + $0x1e0] sm:$0xff]
  %v91 = vld [vmem:[%s6 + $0x1e8] sm:$0xff]
  %v92 = vld [vmem:[%s6 + $0x1f0] sm:$0xff]
  %v93 = vld [vmem:[%s6 + $0x1f8] sm:$0xff]
  %v94 = vld [vmem:[%s7] sm:$0xf]
  %v96 = vperm.slane %v94, 0
  %v97 = vperm.slane %v94, 1
  %v98 = vperm.slane %v94, 2
  %v99 = vperm.slane %v94, 3
  %105 = vst [vmem:[#allocation1] ss:$9 sm:$0xff] %v29
  %v106 = vld [vmem:[#allocation1] sm:$0xff]
  %v107 = vld [vmem:[#allocation1 + $0x9] sm:$0xff]
  %v174 = vunpack.c.l.b16 %v30
  %v175 = vunpack.c.h.b16 %v30
  %v176 = vunpack.c.l.b16 %v31
  %v177 = vunpack.c.h.b16 %v31
  %v178 = vunpack.c.l.b16 %v32
  %v179 = vunpack.c.h.b16 %v32
  %v180 = vunpack.c.l.b16 %v33
  %v181 = vunpack.c.h.b16 %v33
  %v182 = vunpack.c.l.b16 %v34
  %v183 = vunpack.c.h.b16 %v34
  %v184 = vunpack.c.l.b16 %v35
  %v185 = vunpack.c.h.b16 %v35
  %v186 = vunpack.c.l.b16 %v36
  %v187 = vunpack.c.h.b16 %v36
  %v188 = vunpack.c.l.b16 %v37
  %v189 = vunpack.c.h.b16 %v37
  %v190 = vunpack.c.l.b16 %v38
  %v191 = vunpack.c.h.b16 %v38
  %v192 = vunpack.c.l.b16 %v39
  %v193 = vunpack.c.h.b16 %v39
  %v194 = vunpack.c.l.b16 %v40
  %v195 = vunpack.c.h.b16 %v40
  %v196 = vunpack.c.l.b16 %v41
  %v197 = vunpack.c.h.b16 %v41
  %v198 = vunpack.c.l.b16 %v42
  %v199 = vunpack.c.h.b16 %v42
  %v200 = vunpack.c.l.b16 %v43
  %v201 = vunpack.c.h.b16 %v43
  %v202 = vunpack.c.l.b16 %v44
  %v203 = vunpack.c.h.b16 %v44
  %v204 = vunpack.c.l.b16 %v45
  %v205 = vunpack.c.h.b16 %v45
  %v206 = vunpack.c.l.b16 %v46
  %v207 = vunpack.c.h.b16 %v46
  %v208 = vunpack.c.l.b16 %v47
  %v209 = vunpack.c.h.b16 %v47
  %v210 = vunpack.c.l.b16 %v48
  %v211 = vunpack.c.h.b16 %v48
  %v212 = vunpack.c.l.b16 %v49
  %v213 = vunpack.c.h.b16 %v49
  %v214 = vunpack.c.l.b16 %v50
  %v215 = vunpack.c.h.b16 %v50
  %v216 = vunpack.c.l.b16 %v51
  %v217 = vunpack.c.h.b16 %v51
  %v218 = vunpack.c.l.b16 %v52
  %v219 = vunpack.c.h.b16 %v52
  %v220 = vunpack.c.l.b16 %v53
  %v221 = vunpack.c.h.b16 %v53
  %v222 = vunpack.c.l.b16 %v54
  %v223 = vunpack.c.h.b16 %v54
  %v224 = vunpack.c.l.b16 %v55
  %v225 = vunpack.c.h.b16 %v55
  %v226 = vunpack.c.l.b16 %v56
  %v227 = vunpack.c.h.b16 %v56
  %v228 = vunpack.c.l.b16 %v57
  %v229 = vunpack.c.h.b16 %v57
  %v230 = vunpack.c.l.b16 %v58
  %v231 = vunpack.c.h.b16 %v58
  %v232 = vunpack.c.l.b16 %v59
  %v233 = vunpack.c.h.b16 %v59
  %v234 = vunpack.c.l.b16 %v60
  %v235 = vunpack.c.h.b16 %v60
  %v236 = vunpack.c.l.b16 %v61
  %v237 = vunpack.c.h.b16 %v61
  %v238 = vunpack.c.l.b16 %v62
  %v239 = vunpack.c.h.b16 %v62
  %v240 = vunpack.c.l.b16 %v63
  %v241 = vunpack.c.h.b16 %v63
  %v242 = vunpack.c.l.b16 %v64
  %v243 = vunpack.c.h.b16 %v64
  %v244 = vunpack.c.l.b16 %v65
  %v245 = vunpack.c.h.b16 %v65
  %v246 = vunpack.c.l.b16 %v66
  %v247 = vunpack.c.h.b16 %v66
  %v248 = vunpack.c.l.b16 %v67
  %v249 = vunpack.c.h.b16 %v67
  %v250 = vunpack.c.l.b16 %v68
  %v251 = vunpack.c.h.b16 %v68
  %v252 = vunpack.c.l.b16 %v69
  %v253 = vunpack.c.h.b16 %v69
  %v254 = vunpack.c.l.b16 %v70
  %v255 = vunpack.c.h.b16 %v70
  %v256 = vunpack.c.l.b16 %v71
  %v257 = vunpack.c.h.b16 %v71
  %v258 = vunpack.c.l.b16 %v72
  %v259 = vunpack.c.h.b16 %v72
  %v260 = vunpack.c.l.b16 %v73
  %v261 = vunpack.c.h.b16 %v73
  %v262 = vunpack.c.l.b16 %v74
  %v263 = vunpack.c.h.b16 %v74
  %v264 = vunpack.c.l.b16 %v75
  %v265 = vunpack.c.h.b16 %v75
  %v266 = vunpack.c.l.b16 %v76
  %v267 = vunpack.c.h.b16 %v76
  %v268 = vunpack.c.l.b16 %v77
  %v269 = vunpack.c.h.b16 %v77
  %v270 = vunpack.c.l.b16 %v78
  %v271 = vunpack.c.h.b16 %v78
  %v272 = vunpack.c.l.b16 %v79
  %v273 = vunpack.c.h.b16 %v79
  %v274 = vunpack.c.l.b16 %v80
  %v275 = vunpack.c.h.b16 %v80
  %v276 = vunpack.c.l.b16 %v81
  %v277 = vunpack.c.h.b16 %v81
  %v278 = vunpack.c.l.b16 %v82
  %v279 = vunpack.c.h.b16 %v82
  %v280 = vunpack.c.l.b16 %v83
  %v281 = vunpack.c.h.b16 %v83
  %v282 = vunpack.c.l.b16 %v84
  %v283 = vunpack.c.h.b16 %v84
  %v284 = vunpack.c.l.b16 %v85
  %v285 = vunpack.c.h.b16 %v85
  %v286 = vunpack.c.l.b16 %v86
  %v287 = vunpack.c.h.b16 %v86
  %v288 = vunpack.c.l.b16 %v87
  %v289 = vunpack.c.h.b16 %v87
  %v290 = vunpack.c.l.b16 %v88
  %v291 = vunpack.c.h.b16 %v88
  %v292 = vunpack.c.l.b16 %v89
  %v293 = vunpack.c.h.b16 %v89
  %v294 = vunpack.c.l.b16 %v90
  %v295 = vunpack.c.h.b16 %v90
  %v296 = vunpack.c.l.b16 %v91
  %v297 = vunpack.c.h.b16 %v91
  %v298 = vunpack.c.l.b16 %v92
  %v299 = vunpack.c.h.b16 %v92
  %v300 = vunpack.c.l.b16 %v93
  %v301 = vunpack.c.h.b16 %v93
  %v302 = vpack.c.b16 %v178, %v174
  %v303 = vpack.c.b16 %v179, %v175
  %v304 = vpack.c.b16 %v180, %v176
  %v305 = vpack.c.b16 %v181, %v177
  %v306 = vpack.c.b16 %v186, %v182
  %v307 = vpack.c.b16 %v187, %v183
  %v308 = vpack.c.b16 %v188, %v184
  %v309 = vpack.c.b16 %v189, %v185
  %v310 = vpack.c.b16 %v194, %v190
  %v311 = vpack.c.b16 %v195, %v191
  %v312 = vpack.c.b16 %v196, %v192
  %v313 = vpack.c.b16 %v197, %v193
  %v314 = vpack.c.b16 %v202, %v198
  %v315 = vpack.c.b16 %v203, %v199
  %v316 = vpack.c.b16 %v204, %v200
  %v317 = vpack.c.b16 %v205, %v201
  %v318 = vpack.c.b16 %v210, %v206
  %v319 = vpack.c.b16 %v211, %v207
  %v320 = vpack.c.b16 %v212, %v208
  %v321 = vpack.c.b16 %v213, %v209
  %v322 = vpack.c.b16 %v218, %v214
  %v323 = vpack.c.b16 %v219, %v215
  %v324 = vpack.c.b16 %v220, %v216
  %v325 = vpack.c.b16 %v221, %v217
  %v326 = vpack.c.b16 %v226, %v222
  %v327 = vpack.c.b16 %v227, %v223
  %v328 = vpack.c.b16 %v228, %v224
  %v329 = vpack.c.b16 %v229, %v225
  %v330 = vpack.c.b16 %v234, %v230
  %v331 = vpack.c.b16 %v235, %v231
  %v332 = vpack.c.b16 %v236, %v232
  %v333 = vpack.c.b16 %v237, %v233
  %v334 = vpack.c.b16 %v242, %v238
  %v335 = vpack.c.b16 %v243, %v239
  %v336 = vpack.c.b16 %v244, %v240
  %v337 = vpack.c.b16 %v245, %v241
  %v338 = vpack.c.b16 %v250, %v246
  %v339 = vpack.c.b16 %v251, %v247
  %v340 = vpack.c.b16 %v252, %v248
  %v341 = vpack.c.b16 %v253, %v249
  %v342 = vpack.c.b16 %v258, %v254
  %v343 = vpack.c.b16 %v259, %v255
  %v344 = vpack.c.b16 %v260, %v256
  %v345 = vpack.c.b16 %v261, %v257
  %v346 = vpack.c.b16 %v266, %v262
  %v347 = vpack.c.b16 %v267, %v263
  %v348 = vpack.c.b16 %v268, %v264
  %v349 = vpack.c.b16 %v269, %v265
  %v350 = vpack.c.b16 %v274, %v270
  %v351 = vpack.c.b16 %v275, %v271
  %v352 = vpack.c.b16 %v276, %v272
  %v353 = vpack.c.b16 %v277, %v273
  %v354 = vpack.c.b16 %v282, %v278
  %v355 = vpack.c.b16 %v283, %v279
  %v356 = vpack.c.b16 %v284, %v280
  %v357 = vpack.c.b16 %v285, %v281
  %v358 = vpack.c.b16 %v290, %v286
  %v359 = vpack.c.b16 %v291, %v287
  %v360 = vpack.c.b16 %v292, %v288
  %v361 = vpack.c.b16 %v293, %v289
  %v362 = vpack.c.b16 %v298, %v294
  %v363 = vpack.c.b16 %v299, %v295
  %v364 = vpack.c.b16 %v300, %v296
  %v365 = vpack.c.b16 %v301, %v297
  %430 = vmatpush.bf16.msra.mxu0 %v330
  %431 = vmatpush.bf16.msra.mxu0 %v326
  %432 = vmatpush.bf16.msra.mxu0 %v322
  %433 = vmatpush.bf16.msra.mxu0 %v318
  %434 = vmatpush.bf16.msra.mxu0 %v314
  %435 = vmatpush.bf16.msra.mxu0 %v310
  %436 = vmatpush.bf16.msra.mxu0 %v306
  %437 = vmatpush.bf16.msra.mxu0 %v302
  %438 = vmatmul.bf16.gmra.mxu0 %v106
  %v439 = vpop.f32.mrf.mxu0
  %v440 = vadd.f32 %v96, %v439
  %v441 = vpop.f32.mrf.mxu0
  %442 = vdwg.mxu0
  %443 = vmatpush.bf16.msra.mxu0 %v362
  %444 = vmatpush.bf16.msra.mxu0 %v358
  %445 = vmatpush.bf16.msra.mxu0 %v354
  %446 = vmatpush.bf16.msra.mxu0 %v350
  %447 = vmatpush.bf16.msra.mxu0 %v346
  %448 = vmatpush.bf16.msra.mxu0 %v342
  %449 = vmatpush.bf16.msra.mxu0 %v338
  %450 = vmatpush.bf16.msra.mxu0 %v334
  %451 = vmatmul.bf16.gmra.mxu0 %v107
  %v452 = vpop.f32.mrf.mxu0
  %v453 = vadd.f32 %v440, %v452
  %v454 = vpop.f32.mrf.mxu0
  %455 = vdwg.mxu0
  %456 = vmatpush.bf16.msra.mxu0 %v331
  %457 = vmatpush.bf16.msra.mxu0 %v327
  %458 = vmatpush.bf16.msra.mxu0 %v323
  %459 = vmatpush.bf16.msra.mxu0 %v319
  %460 = vmatpush.bf16.msra.mxu0 %v315
  %461 = vmatpush.bf16.msra.mxu0 %v311
  %462 = vmatpush.bf16.msra.mxu0 %v307
  %463 = vmatpush.bf16.msra.mxu0 %v303
  %464 = vmatmul.bf16.gmra.mxu0 %v106
  %v465 = vpop.f32.mrf.mxu0
  %v466 = vadd.f32 %v97, %v465
  %v467 = vpop.f32.mrf.mxu0
  %468 = vdwg.mxu0
  %469 = vmatpush.bf16.msra.mxu0 %v363
  %470 = vmatpush.bf16.msra.mxu0 %v359
  %471 = vmatpush.bf16.msra.mxu0 %v355
  %472 = vmatpush.bf16.msra.mxu0 %v351
  %473 = vmatpush.bf16.msra.mxu0 %v347
  %474 = vmatpush.bf16.msra.mxu0 %v343
  %475 = vmatpush.bf16.msra.mxu0 %v339
  %476 = vmatpush.bf16.msra.mxu0 %v335
  %477 = vmatmul.bf16.gmra.mxu0 %v107
  %v478 = vpop.f32.mrf.mxu0
  %v479 = vadd.f32 %v466, %v478
  %v480 = vpop.f32.mrf.mxu0
  %481 = vdwg.mxu0
  %482 = vmatpush.bf16.msra.mxu0 %v332
  %483 = vmatpush.bf16.msra.mxu0 %v328
  %484 = vmatpush.bf16.msra.mxu0 %v324
  %485 = vmatpush.bf16.msra.mxu0 %v320
  %486 = vmatpush.bf16.msra.mxu0 %v316
  %487 = vmatpush.bf16.msra.mxu0 %v312
  %488 = vmatpush.bf16.msra.mxu0 %v308
  %489 = vmatpush.bf16.msra.mxu0 %v304
  %490 = vmatmul.bf16.gmra.mxu0 %v106
  %v491 = vpop.f32.mrf.mxu0
  %v492 = vadd.f32 %v98, %v491
  %v493 = vpop.f32.mrf.mxu0
  %494 = vdwg.mxu0
  %495 = vmatpush.bf16.msra.mxu0 %v364
  %496 = vmatpush.bf16.msra.mxu0 %v360
  %497 = vmatpush.bf16.msra.mxu0 %v356
  %498 = vmatpush.bf16.msra.mxu0 %v352
  %499 = vmatpush.bf16.msra.mxu0 %v348
  %500 = vmatpush.bf16.msra.mxu0 %v344
  %501 = vmatpush.bf16.msra.mxu0 %v340
  %502 = vmatpush.bf16.msra.mxu0 %v336
  %503 = vmatmul.bf16.gmra.mxu0 %v107
  %v504 = vpop.f32.mrf.mxu0
  %v505 = vadd.f32 %v492, %v504
  %v506 = vpop.f32.mrf.mxu0
  %507 = vdwg.mxu0
  %508 = vmatpush.bf16.msra.mxu0 %v333
  %509 = vmatpush.bf16.msra.mxu0 %v329
  %510 = vmatpush.bf16.msra.mxu0 %v325
  %511 = vmatpush.bf16.msra.mxu0 %v321
  %512 = vmatpush.bf16.msra.mxu0 %v317
  %513 = vmatpush.bf16.msra.mxu0 %v313
  %514 = vmatpush.bf16.msra.mxu0 %v309
  %515 = vmatpush.bf16.msra.mxu0 %v305
  %516 = vmatmul.bf16.gmra.mxu0 %v106
  %v517 = vpop.f32.mrf.mxu0
  %v518 = vadd.f32 %v99, %v517
  %v519 = vpop.f32.mrf.mxu0
  %520 = vdwg.mxu0
  %521 = vmatpush.bf16.msra.mxu0 %v365
  %522 = vmatpush.bf16.msra.mxu0 %v361
  %523 = vmatpush.bf16.msra.mxu0 %v357
  %524 = vmatpush.bf16.msra.mxu0 %v353
  %525 = vmatpush.bf16.msra.mxu0 %v349
  %526 = vmatpush.bf16.msra.mxu0 %v345
  %527 = vmatpush.bf16.msra.mxu0 %v341
  %528 = vmatpush.bf16.msra.mxu0 %v337
  %529 = vmatmul.bf16.gmra.mxu0 %v107
  %v530 = vpop.f32.mrf.mxu0
  %v531 = vadd.f32 %v518, %v530
  %v532 = vpop.f32.mrf.mxu0
  %533 = vdwg.mxu0
  %v534 = vld [vmem:[%s0] sm:$0x3]
  %v535 = vld [vmem:[%s2] sm:$0xff]
  %v536 = vld [vmem:[%s2 + $0x8] sm:$0xff]
  %v537 = vld [vmem:[%s2 + $0x10] sm:$0xff]
  %v538 = vld [vmem:[%s2 + $0x18] sm:$0xff]
  %v539 = vld [vmem:[%s2 + $0x20] sm:$0xff]
  %v540 = vld [vmem:[%s2 + $0x28] sm:$0xff]
  %v541 = vld [vmem:[%s2 + $0x30] sm:$0xff]
  %v542 = vld [vmem:[%s2 + $0x38] sm:$0xff]
  %v543 = vld [vmem:[%s2 + $0x40] sm:$0xff]
  %v544 = vld [vmem:[%s2 + $0x48] sm:$0xff]
  %v545 = vld [vmem:[%s2 + $0x50] sm:$0xff]
  %v546 = vld [vmem:[%s2 + $0x58] sm:$0xff]
  %v547 = vld [vmem:[%s2 + $0x60] sm:$0xff]
  %v548 = vld [vmem:[%s2 + $0x68] sm:$0xff]
  %v549 = vld [vmem:[%s2 + $0x70] sm:$0xff]
  %v550 = vld [vmem:[%s2 + $0x78] sm:$0xff]
  %v551 = vld [vmem:[%s2 + $0x80] sm:$0xff]
  %v552 = vld [vmem:[%s2 + $0x88] sm:$0xff]
  %v553 = vld [vmem:[%s2 + $0x90] sm:$0xff]
  %v554 = vld [vmem:[%s2 + $0x98] sm:$0xff]
  %v555 = vld [vmem:[%s2 + $0xa0] sm:$0xff]
  %v556 = vld [vmem:[%s2 + $0xa8] sm:$0xff]
  %v557 = vld [vmem:[%s2 + $0xb0] sm:$0xff]
  %v558 = vld [vmem:[%s2 + $0xb8] sm:$0xff]
  %v559 = vld [vmem:[%s2 + $0xc0] sm:$0xff]
  %v560 = vld [vmem:[%s2 + $0xc8] sm:$0xff]
  %v561 = vld [vmem:[%s2 + $0xd0] sm:$0xff]
  %v562 = vld [vmem:[%s2 + $0xd8] sm:$0xff]
  %v563 = vld [vmem:[%s2 + $0xe0] sm:$0xff]
  %v564 = vld [vmem:[%s2 + $0xe8] sm:$0xff]
  %v565 = vld [vmem:[%s2 + $0xf0] sm:$0xff]
  %v566 = vld [vmem:[%s2 + $0xf8] sm:$0xff]
  %v567 = vld [vmem:[%s2 + $0x100] sm:$0xff]
  %v568 = vld [vmem:[%s2 + $0x108] sm:$0xff]
  %v569 = vld [vmem:[%s2 + $0x110] sm:$0xff]
  %v570 = vld [vmem:[%s2 + $0x118] sm:$0xff]
  %v571 = vld [vmem:[%s2 + $0x120] sm:$0xff]
  %v572 = vld [vmem:[%s2 + $0x128] sm:$0xff]
  %v573 = vld [vmem:[%s2 + $0x130] sm:$0xff]
  %v574 = vld [vmem:[%s2 + $0x138] sm:$0xff]
  %v575 = vld [vmem:[%s2 + $0x140] sm:$0xff]
  %v576 = vld [vmem:[%s2 + $0x148] sm:$0xff]
  %v577 = vld [vmem:[%s2 + $0x150] sm:$0xff]
  %v578 = vld [vmem:[%s2 + $0x158] sm:$0xff]
  %v579 = vld [vmem:[%s2 + $0x160] sm:$0xff]
  %v580 = vld [vmem:[%s2 + $0x168] sm:$0xff]
  %v581 = vld [vmem:[%s2 + $0x170] sm:$0xff]
  %v582 = vld [vmem:[%s2 + $0x178] sm:$0xff]
  %v583 = vld [vmem:[%s2 + $0x180] sm:$0xff]
  %v584 = vld [vmem:[%s2 + $0x188] sm:$0xff]
  %v585 = vld [vmem:[%s2 + $0x190] sm:$0xff]
  %v586 = vld [vmem:[%s2 + $0x198] sm:$0xff]
  %v587 = vld [vmem:[%s2 + $0x1a0] sm:$0xff]
  %v588 = vld [vmem:[%s2 + $0x1a8] sm:$0xff]
  %v589 = vld [vmem:[%s2 + $0x1b0] sm:$0xff]
  %v590 = vld [vmem:[%s2 + $0x1b8] sm:$0xff]
  %v591 = vld [vmem:[%s2 + $0x1c0] sm:$0xff]
  %v592 = vld [vmem:[%s2 + $0x1c8] sm:$0xff]
  %v593 = vld [vmem:[%s2 + $0x1d0] sm:$0xff]
  %v594 = vld [vmem:[%s2 + $0x1d8] sm:$0xff]
  %v595 = vld [vmem:[%s2 + $0x1e0] sm:$0xff]
  %v596 = vld [vmem:[%s2 + $0x1e8] sm:$0xff]
  %v597 = vld [vmem:[%s2 + $0x1f0] sm:$0xff]
  %v598 = vld [vmem:[%s2 + $0x1f8] sm:$0xff]
  %v599 = vld [vmem:[%s3] sm:$0xf]
  %v601 = vperm.slane %v599, 0
  %v602 = vperm.slane %v599, 1
  %v603 = vperm.slane %v599, 2
  %v604 = vperm.slane %v599, 3
  %610 = vst [vmem:[#allocation1] ss:$9 sm:$0xff] %v534
  %v611 = vld [vmem:[#allocation1] sm:$0xff]
  %v612 = vld [vmem:[#allocation1 + $0x9] sm:$0xff]
  %v679 = vunpack.c.l.b16 %v535
  %v680 = vunpack.c.h.b16 %v535
  %v681 = vunpack.c.l.b16 %v536
  %v682 = vunpack.c.h.b16 %v536
  %v683 = vunpack.c.l.b16 %v537
  %v684 = vunpack.c.h.b16 %v537
  %v685 = vunpack.c.l.b16 %v538
  %v686 = vunpack.c.h.b16 %v538
  %v687 = vunpack.c.l.b16 %v539
  %v688 = vunpack.c.h.b16 %v539
  %v689 = vunpack.c.l.b16 %v540
  %v690 = vunpack.c.h.b16 %v540
  %v691 = vunpack.c.l.b16 %v541
  %v692 = vunpack.c.h.b16 %v541
  %v693 = vunpack.c.l.b16 %v542
  %v694 = vunpack.c.h.b16 %v542
  %v695 = vunpack.c.l.b16 %v543
  %v696 = vunpack.c.h.b16 %v543
  %v697 = vunpack.c.l.b16 %v544
  %v698 = vunpack.c.h.b16 %v544
  %v699 = vunpack.c.l.b16 %v545
  %v700 = vunpack.c.h.b16 %v545
  %v701 = vunpack.c.l.b16 %v546
  %v702 = vunpack.c.h.b16 %v546
  %v703 = vunpack.c.l.b16 %v547
  %v704 = vunpack.c.h.b16 %v547
  %v705 = vunpack.c.l.b16 %v548
  %v706 = vunpack.c.h.b16 %v548
  %v707 = vunpack.c.l.b16 %v549
  %v708 = vunpack.c.h.b16 %v549
  %v709 = vunpack.c.l.b16 %v550
  %v710 = vunpack.c.h.b16 %v550
  %v711 = vunpack.c.l.b16 %v551
  %v712 = vunpack.c.h.b16 %v551
  %v713 = vunpack.c.l.b16 %v552
  %v714 = vunpack.c.h.b16 %v552
  %v715 = vunpack.c.l.b16 %v553
  %v716 = vunpack.c.h.b16 %v553
  %v717 = vunpack.c.l.b16 %v554
  %v718 = vunpack.c.h.b16 %v554
  %v719 = vunpack.c.l.b16 %v555
  %v720 = vunpack.c.h.b16 %v555
  %v721 = vunpack.c.l.b16 %v556
  %v722 = vunpack.c.h.b16 %v556
  %v723 = vunpack.c.l.b16 %v557
  %v724 = vunpack.c.h.b16 %v557
  %v725 = vunpack.c.l.b16 %v558
  %v726 = vunpack.c.h.b16 %v558
  %v727 = vunpack.c.l.b16 %v559
  %v728 = vunpack.c.h.b16 %v559
  %v729 = vunpack.c.l.b16 %v560
  %v730 = vunpack.c.h.b16 %v560
  %v731 = vunpack.c.l.b16 %v561
  %v732 = vunpack.c.h.b16 %v561
  %v733 = vunpack.c.l.b16 %v562
  %v734 = vunpack.c.h.b16 %v562
  %v735 = vunpack.c.l.b16 %v563
  %v736 = vunpack.c.h.b16 %v563
  %v737 = vunpack.c.l.b16 %v564
  %v738 = vunpack.c.h.b16 %v564
  %v739 = vunpack.c.l.b16 %v565
  %v740 = vunpack.c.h.b16 %v565
  %v741 = vunpack.c.l.b16 %v566
  %v742 = vunpack.c.h.b16 %v566
  %v743 = vunpack.c.l.b16 %v567
  %v744 = vunpack.c.h.b16 %v567
  %v745 = vunpack.c.l.b16 %v568
  %v746 = vunpack.c.h.b16 %v568
  %v747 = vunpack.c.l.b16 %v569
  %v748 = vunpack.c.h.b16 %v569
  %v749 = vunpack.c.l.b16 %v570
  %v750 = vunpack.c.h.b16 %v570
  %v751 = vunpack.c.l.b16 %v571
  %v752 = vunpack.c.h.b16 %v571
  %v753 = vunpack.c.l.b16 %v572
  %v754 = vunpack.c.h.b16 %v572
  %v755 = vunpack.c.l.b16 %v573
  %v756 = vunpack.c.h.b16 %v573
  %v757 = vunpack.c.l.b16 %v574
  %v758 = vunpack.c.h.b16 %v574
  %v759 = vunpack.c.l.b16 %v575
  %v760 = vunpack.c.h.b16 %v575
  %v761 = vunpack.c.l.b16 %v576
  %v762 = vunpack.c.h.b16 %v576
  %v763 = vunpack.c.l.b16 %v577
  %v764 = vunpack.c.h.b16 %v577
  %v765 = vunpack.c.l.b16 %v578
  %v766 = vunpack.c.h.b16 %v578
  %v767 = vunpack.c.l.b16 %v579
  %v768 = vunpack.c.h.b16 %v579
  %v769 = vunpack.c.l.b16 %v580
  %v770 = vunpack.c.h.b16 %v580
  %v771 = vunpack.c.l.b16 %v581
  %v772 = vunpack.c.h.b16 %v581
  %v773 = vunpack.c.l.b16 %v582
  %v774 = vunpack.c.h.b16 %v582
  %v775 = vunpack.c.l.b16 %v583
  %v776 = vunpack.c.h.b16 %v583
  %v777 = vunpack.c.l.b16 %v584
  %v778 = vunpack.c.h.b16 %v584
  %v779 = vunpack.c.l.b16 %v585
  %v780 = vunpack.c.h.b16 %v585
  %v781 = vunpack.c.l.b16 %v586
  %v782 = vunpack.c.h.b16 %v586
  %v783 = vunpack.c.l.b16 %v587
  %v784 = vunpack.c.h.b16 %v587
  %v785 = vunpack.c.l.b16 %v588
  %v786 = vunpack.c.h.b16 %v588
  %v787 = vunpack.c.l.b16 %v589
  %v788 = vunpack.c.h.b16 %v589
  %v789 = vunpack.c.l.b16 %v590
  %v790 = vunpack.c.h.b16 %v590
  %v791 = vunpack.c.l.b16 %v591
  %v792 = vunpack.c.h.b16 %v591
  %v793 = vunpack.c.l.b16 %v592
  %v794 = vunpack.c.h.b16 %v592
  %v795 = vunpack.c.l.b16 %v593
  %v796 = vunpack.c.h.b16 %v593
  %v797 = vunpack.c.l.b16 %v594
  %v798 = vunpack.c.h.b16 %v594
  %v799 = vunpack.c.l.b16 %v595
  %v800 = vunpack.c.h.b16 %v595
  %v801 = vunpack.c.l.b16 %v596
  %v802 = vunpack.c.h.b16 %v596
  %v803 = vunpack.c.l.b16 %v597
  %v804 = vunpack.c.h.b16 %v597
  %v805 = vunpack.c.l.b16 %v598
  %v806 = vunpack.c.h.b16 %v598
  %v807 = vpack.c.b16 %v683, %v679
  %v808 = vpack.c.b16 %v684, %v680
  %v809 = vpack.c.b16 %v685, %v681
  %v810 = vpack.c.b16 %v686, %v682
  %v811 = vpack.c.b16 %v691, %v687
  %v812 = vpack.c.b16 %v692, %v688
  %v813 = vpack.c.b16 %v693, %v689
  %v814 = vpack.c.b16 %v694, %v690
  %v815 = vpack.c.b16 %v699, %v695
  %v816 = vpack.c.b16 %v700, %v696
  %v817 = vpack.c.b16 %v701, %v697
  %v818 = vpack.c.b16 %v702, %v698
  %v819 = vpack.c.b16 %v707, %v703
  %v820 = vpack.c.b16 %v708, %v704
  %v821 = vpack.c.b16 %v709, %v705
  %v822 = vpack.c.b16 %v710, %v706
  %v823 = vpack.c.b16 %v715, %v711
  %v824 = vpack.c.b16 %v716, %v712
  %v825 = vpack.c.b16 %v717, %v713
  %v826 = vpack.c.b16 %v718, %v714
  %v827 = vpack.c.b16 %v723, %v719
  %v828 = vpack.c.b16 %v724, %v720
  %v829 = vpack.c.b16 %v725, %v721
  %v830 = vpack.c.b16 %v726, %v722
  %v831 = vpack.c.b16 %v731, %v727
  %v832 = vpack.c.b16 %v732, %v728
  %v833 = vpack.c.b16 %v733, %v729
  %v834 = vpack.c.b16 %v734, %v730
  %v835 = vpack.c.b16 %v739, %v735
  %v836 = vpack.c.b16 %v740, %v736
  %v837 = vpack.c.b16 %v741, %v737
  %v838 = vpack.c.b16 %v742, %v738
  %v839 = vpack.c.b16 %v747, %v743
  %v840 = vpack.c.b16 %v748, %v744
  %v841 = vpack.c.b16 %v749, %v745
  %v842 = vpack.c.b16 %v750, %v746
  %v843 = vpack.c.b16 %v755, %v751
  %v844 = vpack.c.b16 %v756, %v752
  %v845 = vpack.c.b16 %v757, %v753
  %v846 = vpack.c.b16 %v758, %v754
  %v847 = vpack.c.b16 %v763, %v759
  %v848 = vpack.c.b16 %v764, %v760
  %v849 = vpack.c.b16 %v765, %v761
  %v850 = vpack.c.b16 %v766, %v762
  %v851 = vpack.c.b16 %v771, %v767
  %v852 = vpack.c.b16 %v772, %v768
  %v853 = vpack.c.b16 %v773, %v769
  %v854 = vpack.c.b16 %v774, %v770
  %v855 = vpack.c.b16 %v779, %v775
  %v856 = vpack.c.b16 %v780, %v776
  %v857 = vpack.c.b16 %v781, %v777
  %v858 = vpack.c.b16 %v782, %v778
  %v859 = vpack.c.b16 %v787, %v783
  %v860 = vpack.c.b16 %v788, %v784
  %v861 = vpack.c.b16 %v789, %v785
  %v862 = vpack.c.b16 %v790, %v786
  %v863 = vpack.c.b16 %v795, %v791
  %v864 = vpack.c.b16 %v796, %v792
  %v865 = vpack.c.b16 %v797, %v793
  %v866 = vpack.c.b16 %v798, %v794
  %v867 = vpack.c.b16 %v803, %v799
  %v868 = vpack.c.b16 %v804, %v800
  %v869 = vpack.c.b16 %v805, %v801
  %v870 = vpack.c.b16 %v806, %v802
  %935 = vmatpush.bf16.msra.mxu0 %v835
  %936 = vmatpush.bf16.msra.mxu0 %v831
  %937 = vmatpush.bf16.msra.mxu0 %v827
  %938 = vmatpush.bf16.msra.mxu0 %v823
  %939 = vmatpush.bf16.msra.mxu0 %v819
  %940 = vmatpush.bf16.msra.mxu0 %v815
  %941 = vmatpush.bf16.msra.mxu0 %v811
  %942 = vmatpush.bf16.msra.mxu0 %v807
  %943 = vmatmul.bf16.gmra.mxu0 %v611
  %v944 = vpop.f32.mrf.mxu0
  %v945 = vadd.f32 %v601, %v944
  %v946 = vpop.f32.mrf.mxu0
  %947 = vdwg.mxu0
  %948 = vmatpush.bf16.msra.mxu0 %v867
  %949 = vmatpush.bf16.msra.mxu0 %v863
  %950 = vmatpush.bf16.msra.mxu0 %v859
  %951 = vmatpush.bf16.msra.mxu0 %v855
  %952 = vmatpush.bf16.msra.mxu0 %v851
  %953 = vmatpush.bf16.msra.mxu0 %v847
  %954 = vmatpush.bf16.msra.mxu0 %v843
  %955 = vmatpush.bf16.msra.mxu0 %v839
  %956 = vmatmul.bf16.gmra.mxu0 %v612
  %v957 = vpop.f32.mrf.mxu0
  %v958 = vadd.f32 %v945, %v957
  %v959 = vpop.f32.mrf.mxu0
  %960 = vdwg.mxu0
  %961 = vmatpush.bf16.msra.mxu0 %v836
  %962 = vmatpush.bf16.msra.mxu0 %v832
  %963 = vmatpush.bf16.msra.mxu0 %v828
  %964 = vmatpush.bf16.msra.mxu0 %v824
  %965 = vmatpush.bf16.msra.mxu0 %v820
  %966 = vmatpush.bf16.msra.mxu0 %v816
  %967 = vmatpush.bf16.msra.mxu0 %v812
  %968 = vmatpush.bf16.msra.mxu0 %v808
  %969 = vmatmul.bf16.gmra.mxu0 %v611
  %v970 = vpop.f32.mrf.mxu0
  %v971 = vadd.f32 %v602, %v970
  %v972 = vpop.f32.mrf.mxu0
  %973 = vdwg.mxu0
  %974 = vmatpush.bf16.msra.mxu0 %v868
  %975 = vmatpush.bf16.msra.mxu0 %v864
  %976 = vmatpush.bf16.msra.mxu0 %v860
  %977 = vmatpush.bf16.msra.mxu0 %v856
  %978 = vmatpush.bf16.msra.mxu0 %v852
  %979 = vmatpush.bf16.msra.mxu0 %v848
  %980 = vmatpush.bf16.msra.mxu0 %v844
  %981 = vmatpush.bf16.msra.mxu0 %v840
  %982 = vmatmul.bf16.gmra.mxu0 %v612
  %v983 = vpop.f32.mrf.mxu0
  %v984 = vadd.f32 %v971, %v983
  %v985 = vpop.f32.mrf.mxu0
  %986 = vdwg.mxu0
  %987 = vmatpush.bf16.msra.mxu0 %v837
  %988 = vmatpush.bf16.msra.mxu0 %v833
  %989 = vmatpush.bf16.msra.mxu0 %v829
  %990 = vmatpush.bf16.msra.mxu0 %v825
  %991 = vmatpush.bf16.msra.mxu0 %v821
  %992 = vmatpush.bf16.msra.mxu0 %v817
  %993 = vmatpush.bf16.msra.mxu0 %v813
  %994 = vmatpush.bf16.msra.mxu0 %v809
  %995 = vmatmul.bf16.gmra.mxu0 %v611
  %v996 = vpop.f32.mrf.mxu0
  %v997 = vadd.f32 %v603, %v996
  %v998 = vpop.f32.mrf.mxu0
  %999 = vdwg.mxu0
  %1000 = vmatpush.bf16.msra.mxu0 %v869
  %1001 = vmatpush.bf16.msra.mxu0 %v865
  %1002 = vmatpush.bf16.msra.mxu0 %v861
  %1003 = vmatpush.bf16.msra.mxu0 %v857
  %1004 = vmatpush.bf16.msra.mxu0 %v853
  %1005 = vmatpush.bf16.msra.mxu0 %v849
  %1006 = vmatpush.bf16.msra.mxu0 %v845
  %1007 = vmatpush.bf16.msra.mxu0 %v841
  %1008 = vmatmul.bf16.gmra.mxu0 %v612
  %v1009 = vpop.f32.mrf.mxu0
  %v1010 = vadd.f32 %v997, %v1009
  %v1011 = vpop.f32.mrf.mxu0
  %1012 = vdwg.mxu0
  %1013 = vmatpush.bf16.msra.mxu0 %v838
  %1014 = vmatpush.bf16.msra.mxu0 %v834
  %1015 = vmatpush.bf16.msra.mxu0 %v830
  %1016 = vmatpush.bf16.msra.mxu0 %v826
  %1017 = vmatpush.bf16.msra.mxu0 %v822
  %1018 = vmatpush.bf16.msra.mxu0 %v818
  %1019 = vmatpush.bf16.msra.mxu0 %v814
  %1020 = vmatpush.bf16.msra.mxu0 %v810
  %1021 = vmatmul.bf16.gmra.mxu0 %v611
  %v1022 = vpop.f32.mrf.mxu0
  %v1023 = vadd.f32 %v604, %v1022
  %v1024 = vpop.f32.mrf.mxu0
  %1025 = vdwg.mxu0
  %1026 = vmatpush.bf16.msra.mxu0 %v870
  %1027 = vmatpush.bf16.msra.mxu0 %v866
  %1028 = vmatpush.bf16.msra.mxu0 %v862
  %1029 = vmatpush.bf16.msra.mxu0 %v858
  %1030 = vmatpush.bf16.msra.mxu0 %v854
  %1031 = vmatpush.bf16.msra.mxu0 %v850
  %1032 = vmatpush.bf16.msra.mxu0 %v846
  %1033 = vmatpush.bf16.msra.mxu0 %v842
  %1034 = vmatmul.bf16.gmra.mxu0 %v612
  %v1035 = vpop.f32.mrf.mxu0
  %v1036 = vadd.f32 %v1023, %v1035
  %v1037 = vpop.f32.mrf.mxu0
  %1038 = vdwg.mxu0
  %v1039 = vmax.f32 %v958, 0.0
  %v1040 = vmax.f32 %v984, 0.0
  %v1041 = vmax.f32 %v1010, 0.0
  %v1042 = vmax.f32 %v1036, 0.0
  %v1043 = vpack.c.bf16 %v1039, %v1039
  %v1044 = vpack.c.bf16 %v1040, %v1040
  %v1045 = vpack.c.bf16 %v1041, %v1041
  %v1046 = vpack.c.bf16 %v1042, %v1042
  %v1047 = vld [vmem:[%s4] sm:$0xff]
  %v1048 = vld [vmem:[%s4 + $0x8] sm:$0xff]
  %v1049 = vld [vmem:[%s4 + $0x10] sm:$0xff]
  %v1050 = vld [vmem:[%s4 + $0x18] sm:$0xff]
  %v1051 = vld [vmem:[%s4 + $0x20] sm:$0xff]
  %v1052 = vld [vmem:[%s4 + $0x28] sm:$0xff]
  %v1053 = vld [vmem:[%s4 + $0x30] sm:$0xff]
  %v1054 = vld [vmem:[%s4 + $0x38] sm:$0xff]
  %v1055 = vld [vmem:[%s4 + $0x40] sm:$0xff]
  %v1056 = vld [vmem:[%s4 + $0x48] sm:$0xff]
  %v1057 = vld [vmem:[%s4 + $0x50] sm:$0xff]
  %v1058 = vld [vmem:[%s4 + $0x58] sm:$0xff]
  %v1059 = vld [vmem:[%s4 + $0x60] sm:$0xff]
  %v1060 = vld [vmem:[%s4 + $0x68] sm:$0xff]
  %v1061 = vld [vmem:[%s4 + $0x70] sm:$0xff]
  %v1062 = vld [vmem:[%s4 + $0x78] sm:$0xff]
  %v1063 = vld [vmem:[%s4 + $0x80] sm:$0xff]
  %v1064 = vld [vmem:[%s4 + $0x88] sm:$0xff]
  %v1065 = vld [vmem:[%s4 + $0x90] sm:$0xff]
  %v1066 = vld [vmem:[%s4 + $0x98] sm:$0xff]
  %v1067 = vld [vmem:[%s4 + $0xa0] sm:$0xff]
  %v1068 = vld [vmem:[%s4 + $0xa8] sm:$0xff]
  %v1069 = vld [vmem:[%s4 + $0xb0] sm:$0xff]
  %v1070 = vld [vmem:[%s4 + $0xb8] sm:$0xff]
  %v1071 = vld [vmem:[%s4 + $0xc0] sm:$0xff]
  %v1072 = vld [vmem:[%s4 + $0xc8] sm:$0xff]
  %v1073 = vld [vmem:[%s4 + $0xd0] sm:$0xff]
  %v1074 = vld [vmem:[%s4 + $0xd8] sm:$0xff]
  %v1075 = vld [vmem:[%s4 + $0xe0] sm:$0xff]
  %v1076 = vld [vmem:[%s4 + $0xe8] sm:$0xff]
  %v1077 = vld [vmem:[%s4 + $0xf0] sm:$0xff]
  %v1078 = vld [vmem:[%s4 + $0xf8] sm:$0xff]
  %v1079 = vld [vmem:[%s4 + $0x100] sm:$0xff]
  %v1080 = vld [vmem:[%s4 + $0x108] sm:$0xff]
  %v1081 = vld [vmem:[%s4 + $0x110] sm:$0xff]
  %v1082 = vld [vmem:[%s4 + $0x118] sm:$0xff]
  %v1083 = vld [vmem:[%s4 + $0x120] sm:$0xff]
  %v1084 = vld [vmem:[%s4 + $0x128] sm:$0xff]
  %v1085 = vld [vmem:[%s4 + $0x130] sm:$0xff]
  %v1086 = vld [vmem:[%s4 + $0x138] sm:$0xff]
  %v1087 = vld [vmem:[%s4 + $0x140] sm:$0xff]
  %v1088 = vld [vmem:[%s4 + $0x148] sm:$0xff]
  %v1089 = vld [vmem:[%s4 + $0x150] sm:$0xff]
  %v1090 = vld [vmem:[%s4 + $0x158] sm:$0xff]
  %v1091 = vld [vmem:[%s4 + $0x160] sm:$0xff]
  %v1092 = vld [vmem:[%s4 + $0x168] sm:$0xff]
  %v1093 = vld [vmem:[%s4 + $0x170] sm:$0xff]
  %v1094 = vld [vmem:[%s4 + $0x178] sm:$0xff]
  %v1095 = vld [vmem:[%s4 + $0x180] sm:$0xff]
  %v1096 = vld [vmem:[%s4 + $0x188] sm:$0xff]
  %v1097 = vld [vmem:[%s4 + $0x190] sm:$0xff]
  %v1098 = vld [vmem:[%s4 + $0x198] sm:$0xff]
  %v1099 = vld [vmem:[%s4 + $0x1a0] sm:$0xff]
  %v1100 = vld [vmem:[%s4 + $0x1a8] sm:$0xff]
  %v1101 = vld [vmem:[%s4 + $0x1b0] sm:$0xff]
  %v1102 = vld [vmem:[%s4 + $0x1b8] sm:$0xff]
  %v1103 = vld [vmem:[%s4 + $0x1c0] sm:$0xff]
  %v1104 = vld [vmem:[%s4 + $0x1c8] sm:$0xff]
  %v1105 = vld [vmem:[%s4 + $0x1d0] sm:$0xff]
  %v1106 = vld [vmem:[%s4 + $0x1d8] sm:$0xff]
  %v1107 = vld [vmem:[%s4 + $0x1e0] sm:$0xff]
  %v1108 = vld [vmem:[%s4 + $0x1e8] sm:$0xff]
  %v1109 = vld [vmem:[%s4 + $0x1f0] sm:$0xff]
  %v1110 = vld [vmem:[%s4 + $0x1f8] sm:$0xff]
  %v1111 = vld [vmem:[%s4 + $0x200] sm:$0xff]
  %v1112 = vld [vmem:[%s4 + $0x208] sm:$0xff]
  %v1113 = vld [vmem:[%s4 + $0x210] sm:$0xff]
  %v1114 = vld [vmem:[%s4 + $0x218] sm:$0xff]
  %v1115 = vld [vmem:[%s4 + $0x220] sm:$0xff]
  %v1116 = vld [vmem:[%s4 + $0x228] sm:$0xff]
  %v1117 = vld [vmem:[%s4 + $0x230] sm:$0xff]
  %v1118 = vld [vmem:[%s4 + $0x238] sm:$0xff]
  %v1119 = vld [vmem:[%s4 + $0x240] sm:$0xff]
  %v1120 = vld [vmem:[%s4 + $0x248] sm:$0xff]
  %v1121 = vld [vmem:[%s4 + $0x250] sm:$0xff]
  %v1122 = vld [vmem:[%s4 + $0x258] sm:$0xff]
  %v1123 = vld [vmem:[%s4 + $0x260] sm:$0xff]
  %v1124 = vld [vmem:[%s4 + $0x268] sm:$0xff]
  %v1125 = vld [vmem:[%s4 + $0x270] sm:$0xff]
  %v1126 = vld [vmem:[%s4 + $0x278] sm:$0xff]
  %v1127 = vld [vmem:[%s4 + $0x280] sm:$0xff]
  %v1128 = vld [vmem:[%s4 + $0x288] sm:$0xff]
  %v1129 = vld [vmem:[%s4 + $0x290] sm:$0xff]
  %v1130 = vld [vmem:[%s4 + $0x298] sm:$0xff]
  %v1131 = vld [vmem:[%s4 + $0x2a0] sm:$0xff]
  %v1132 = vld [vmem:[%s4 + $0x2a8] sm:$0xff]
  %v1133 = vld [vmem:[%s4 + $0x2b0] sm:$0xff]
  %v1134 = vld [vmem:[%s4 + $0x2b8] sm:$0xff]
  %v1135 = vld [vmem:[%s4 + $0x2c0] sm:$0xff]
  %v1136 = vld [vmem:[%s4 + $0x2c8] sm:$0xff]
  %v1137 = vld [vmem:[%s4 + $0x2d0] sm:$0xff]
  %v1138 = vld [vmem:[%s4 + $0x2d8] sm:$0xff]
  %v1139 = vld [vmem:[%s4 + $0x2e0] sm:$0xff]
  %v1140 = vld [vmem:[%s4 + $0x2e8] sm:$0xff]
  %v1141 = vld [vmem:[%s4 + $0x2f0] sm:$0xff]
  %v1142 = vld [vmem:[%s4 + $0x2f8] sm:$0xff]
  %v1143 = vld [vmem:[%s4 + $0x300] sm:$0xff]
  %v1144 = vld [vmem:[%s4 + $0x308] sm:$0xff]
  %v1145 = vld [vmem:[%s4 + $0x310] sm:$0xff]
  %v1146 = vld [vmem:[%s4 + $0x318] sm:$0xff]
  %v1147 = vld [vmem:[%s4 + $0x320] sm:$0xff]
  %v1148 = vld [vmem:[%s4 + $0x328] sm:$0xff]
  %v1149 = vld [vmem:[%s4 + $0x330] sm:$0xff]
  %v1150 = vld [vmem:[%s4 + $0x338] sm:$0xff]
  %v1151 = vld [vmem:[%s4 + $0x340] sm:$0xff]
  %v1152 = vld [vmem:[%s4 + $0x348] sm:$0xff]
  %v1153 = vld [vmem:[%s4 + $0x350] sm:$0xff]
  %v1154 = vld [vmem:[%s4 + $0x358] sm:$0xff]
  %v1155 = vld [vmem:[%s4 + $0x360] sm:$0xff]
  %v1156 = vld [vmem:[%s4 + $0x368] sm:$0xff]
  %v1157 = vld [vmem:[%s4 + $0x370] sm:$0xff]
  %v1158 = vld [vmem:[%s4 + $0x378] sm:$0xff]
  %v1159 = vld [vmem:[%s4 + $0x380] sm:$0xff]
  %v1160 = vld [vmem:[%s4 + $0x388] sm:$0xff]
  %v1161 = vld [vmem:[%s4 + $0x390] sm:$0xff]
  %v1162 = vld [vmem:[%s4 + $0x398] sm:$0xff]
  %v1163 = vld [vmem:[%s4 + $0x3a0] sm:$0xff]
  %v1164 = vld [vmem:[%s4 + $0x3a8] sm:$0xff]
  %v1165 = vld [vmem:[%s4 + $0x3b0] sm:$0xff]
  %v1166 = vld [vmem:[%s4 + $0x3b8] sm:$0xff]
  %v1167 = vld [vmem:[%s4 + $0x3c0] sm:$0xff]
  %v1168 = vld [vmem:[%s4 + $0x3c8] sm:$0xff]
  %v1169 = vld [vmem:[%s4 + $0x3d0] sm:$0xff]
  %v1170 = vld [vmem:[%s4 + $0x3d8] sm:$0xff]
  %v1171 = vld [vmem:[%s4 + $0x3e0] sm:$0xff]
  %v1172 = vld [vmem:[%s4 + $0x3e8] sm:$0xff]
  %v1173 = vld [vmem:[%s4 + $0x3f0] sm:$0xff]
  %v1174 = vld [vmem:[%s4 + $0x3f8] sm:$0xff]
  %v1175 = vld [vmem:[%s5] sm:$0xf]
  %v1177 = vperm.slane %v1175, 0
  %v1178 = vperm.slane %v1175, 1
  %v1179 = vperm.slane %v1175, 2
  %v1180 = vperm.slane %v1175, 3
  %v1313 = vunpack.c.l.b16 %v1047
  %v1314 = vunpack.c.h.b16 %v1047
  %v1315 = vunpack.c.l.b16 %v1048
  %v1316 = vunpack.c.h.b16 %v1048
  %v1317 = vunpack.c.l.b16 %v1049
  %v1318 = vunpack.c.h.b16 %v1049
  %v1319 = vunpack.c.l.b16 %v1050
  %v1320 = vunpack.c.h.b16 %v1050
  %v1321 = vunpack.c.l.b16 %v1051
  %v1322 = vunpack.c.h.b16 %v1051
  %v1323 = vunpack.c.l.b16 %v1052
  %v1324 = vunpack.c.h.b16 %v1052
  %v1325 = vunpack.c.l.b16 %v1053
  %v1326 = vunpack.c.h.b16 %v1053
  %v1327 = vunpack.c.l.b16 %v1054
  %v1328 = vunpack.c.h.b16 %v1054
  %v1329 = vunpack.c.l.b16 %v1055
  %v1330 = vunpack.c.h.b16 %v1055
  %v1331 = vunpack.c.l.b16 %v1056
  %v1332 = vunpack.c.h.b16 %v1056
  %v1333 = vunpack.c.l.b16 %v1057
  %v1334 = vunpack.c.h.b16 %v1057
  %v1335 = vunpack.c.l.b16 %v1058
  %v1336 = vunpack.c.h.b16 %v1058
  %v1337 = vunpack.c.l.b16 %v1059
  %v1338 = vunpack.c.h.b16 %v1059
  %v1339 = vunpack.c.l.b16 %v1060
  %v1340 = vunpack.c.h.b16 %v1060
  %v1341 = vunpack.c.l.b16 %v1061
  %v1342 = vunpack.c.h.b16 %v1061
  %v1343 = vunpack.c.l.b16 %v1062
  %v1344 = vunpack.c.h.b16 %v1062
  %v1345 = vunpack.c.l.b16 %v1063
  %v1346 = vunpack.c.h.b16 %v1063
  %v1347 = vunpack.c.l.b16 %v1064
  %v1348 = vunpack.c.h.b16 %v1064
  %v1349 = vunpack.c.l.b16 %v1065
  %v1350 = vunpack.c.h.b16 %v1065
  %v1351 = vunpack.c.l.b16 %v1066
  %v1352 = vunpack.c.h.b16 %v1066
  %v1353 = vunpack.c.l.b16 %v1067
  %v1354 = vunpack.c.h.b16 %v1067
  %v1355 = vunpack.c.l.b16 %v1068
  %v1356 = vunpack.c.h.b16 %v1068
  %v1357 = vunpack.c.l.b16 %v1069
  %v1358 = vunpack.c.h.b16 %v1069
  %v1359 = vunpack.c.l.b16 %v1070
  %v1360 = vunpack.c.h.b16 %v1070
  %v1361 = vunpack.c.l.b16 %v1071
  %v1362 = vunpack.c.h.b16 %v1071
  %v1363 = vunpack.c.l.b16 %v1072
  %v1364 = vunpack.c.h.b16 %v1072
  %v1365 = vunpack.c.l.b16 %v1073
  %v1366 = vunpack.c.h.b16 %v1073
  %v1367 = vunpack.c.l.b16 %v1074
  %v1368 = vunpack.c.h.b16 %v1074
  %v1369 = vunpack.c.l.b16 %v1075
  %v1370 = vunpack.c.h.b16 %v1075
  %v1371 = vunpack.c.l.b16 %v1076
  %v1372 = vunpack.c.h.b16 %v1076
  %v1373 = vunpack.c.l.b16 %v1077
  %v1374 = vunpack.c.h.b16 %v1077
  %v1375 = vunpack.c.l.b16 %v1078
  %v1376 = vunpack.c.h.b16 %v1078
  %v1377 = vunpack.c.l.b16 %v1079
  %v1378 = vunpack.c.h.b16 %v1079
  %v1379 = vunpack.c.l.b16 %v1080
  %v1380 = vunpack.c.h.b16 %v1080
  %v1381 = vunpack.c.l.b16 %v1081
  %v1382 = vunpack.c.h.b16 %v1081
  %v1383 = vunpack.c.l.b16 %v1082
  %v1384 = vunpack.c.h.b16 %v1082
  %v1385 = vunpack.c.l.b16 %v1083
  %v1386 = vunpack.c.h.b16 %v1083
  %v1387 = vunpack.c.l.b16 %v1084
  %v1388 = vunpack.c.h.b16 %v1084
  %v1389 = vunpack.c.l.b16 %v1085
  %v1390 = vunpack.c.h.b16 %v1085
  %v1391 = vunpack.c.l.b16 %v1086
  %v1392 = vunpack.c.h.b16 %v1086
  %v1393 = vunpack.c.l.b16 %v1087
  %v1394 = vunpack.c.h.b16 %v1087
  %v1395 = vunpack.c.l.b16 %v1088
  %v1396 = vunpack.c.h.b16 %v1088
  %v1397 = vunpack.c.l.b16 %v1089
  %v1398 = vunpack.c.h.b16 %v1089
  %v1399 = vunpack.c.l.b16 %v1090
  %v1400 = vunpack.c.h.b16 %v1090
  %v1401 = vunpack.c.l.b16 %v1091
  %v1402 = vunpack.c.h.b16 %v1091
  %v1403 = vunpack.c.l.b16 %v1092
  %v1404 = vunpack.c.h.b16 %v1092
  %v1405 = vunpack.c.l.b16 %v1093
  %v1406 = vunpack.c.h.b16 %v1093
  %v1407 = vunpack.c.l.b16 %v1094
  %v1408 = vunpack.c.h.b16 %v1094
  %v1409 = vunpack.c.l.b16 %v1095
  %v1410 = vunpack.c.h.b16 %v1095
  %v1411 = vunpack.c.l.b16 %v1096
  %v1412 = vunpack.c.h.b16 %v1096
  %v1413 = vunpack.c.l.b16 %v1097
  %v1414 = vunpack.c.h.b16 %v1097
  %v1415 = vunpack.c.l.b16 %v1098
  %v1416 = vunpack.c.h.b16 %v1098
  %v1417 = vunpack.c.l.b16 %v1099
  %v1418 = vunpack.c.h.b16 %v1099
  %v1419 = vunpack.c.l.b16 %v1100
  %v1420 = vunpack.c.h.b16 %v1100
  %v1421 = vunpack.c.l.b16 %v1101
  %v1422 = vunpack.c.h.b16 %v1101
  %v1423 = vunpack.c.l.b16 %v1102
  %v1424 = vunpack.c.h.b16 %v1102
  %v1425 = vunpack.c.l.b16 %v1103
  %v1426 = vunpack.c.h.b16 %v1103
  %v1427 = vunpack.c.l.b16 %v1104
  %v1428 = vunpack.c.h.b16 %v1104
  %v1429 = vunpack.c.l.b16 %v1105
  %v1430 = vunpack.c.h.b16 %v1105
  %v1431 = vunpack.c.l.b16 %v1106
  %v1432 = vunpack.c.h.b16 %v1106
  %v1433 = vunpack.c.l.b16 %v1107
  %v1434 = vunpack.c.h.b16 %v1107
  %v1435 = vunpack.c.l.b16 %v1108
  %v1436 = vunpack.c.h.b16 %v1108
  %v1437 = vunpack.c.l.b16 %v1109
  %v1438 = vunpack.c.h.b16 %v1109
  %v1439 = vunpack.c.l.b16 %v1110
  %v1440 = vunpack.c.h.b16 %v1110
  %v1441 = vunpack.c.l.b16 %v1111
  %v1442 = vunpack.c.h.b16 %v1111
  %v1443 = vunpack.c.l.b16 %v1112
  %v1444 = vunpack.c.h.b16 %v1112
  %v1445 = vunpack.c.l.b16 %v1113
  %v1446 = vunpack.c.h.b16 %v1113
  %v1447 = vunpack.c.l.b16 %v1114
  %v1448 = vunpack.c.h.b16 %v1114
  %v1449 = vunpack.c.l.b16 %v1115
  %v1450 = vunpack.c.h.b16 %v1115
  %v1451 = vunpack.c.l.b16 %v1116
  %v1452 = vunpack.c.h.b16 %v1116
  %v1453 = vunpack.c.l.b16 %v1117
  %v1454 = vunpack.c.h.b16 %v1117
  %v1455 = vunpack.c.l.b16 %v1118
  %v1456 = vunpack.c.h.b16 %v1118
  %v1457 = vunpack.c.l.b16 %v1119
  %v1458 = vunpack.c.h.b16 %v1119
  %v1459 = vunpack.c.l.b16 %v1120
  %v1460 = vunpack.c.h.b16 %v1120
  %v1461 = vunpack.c.l.b16 %v1121
  %v1462 = vunpack.c.h.b16 %v1121
  %v1463 = vunpack.c.l.b16 %v1122
  %v1464 = vunpack.c.h.b16 %v1122
  %v1465 = vunpack.c.l.b16 %v1123
  %v1466 = vunpack.c.h.b16 %v1123
  %v1467 = vunpack.c.l.b16 %v1124
  %v1468 = vunpack.c.h.b16 %v1124
  %v1469 = vunpack.c.l.b16 %v1125
  %v1470 = vunpack.c.h.b16 %v1125
  %v1471 = vunpack.c.l.b16 %v1126
  %v1472 = vunpack.c.h.b16 %v1126
  %v1473 = vunpack.c.l.b16 %v1127
  %v1474 = vunpack.c.h.b16 %v1127
  %v1475 = vunpack.c.l.b16 %v1128
  %v1476 = vunpack.c.h.b16 %v1128
  %v1477 = vunpack.c.l.b16 %v1129
  %v1478 = vunpack.c.h.b16 %v1129
  %v1479 = vunpack.c.l.b16 %v1130
  %v1480 = vunpack.c.h.b16 %v1130
  %v1481 = vunpack.c.l.b16 %v1131
  %v1482 = vunpack.c.h.b16 %v1131
  %v1483 = vunpack.c.l.b16 %v1132
  %v1484 = vunpack.c.h.b16 %v1132
  %v1485 = vunpack.c.l.b16 %v1133
  %v1486 = vunpack.c.h.b16 %v1133
  %v1487 = vunpack.c.l.b16 %v1134
  %v1488 = vunpack.c.h.b16 %v1134
  %v1489 = vunpack.c.l.b16 %v1135
  %v1490 = vunpack.c.h.b16 %v1135
  %v1491 = vunpack.c.l.b16 %v1136
  %v1492 = vunpack.c.h.b16 %v1136
  %v1493 = vunpack.c.l.b16 %v1137
  %v1494 = vunpack.c.h.b16 %v1137
  %v1495 = vunpack.c.l.b16 %v1138
  %v1496 = vunpack.c.h.b16 %v1138
  %v1497 = vunpack.c.l.b16 %v1139
  %v1498 = vunpack.c.h.b16 %v1139
  %v1499 = vunpack.c.l.b16 %v1140
  %v1500 = vunpack.c.h.b16 %v1140
  %v1501 = vunpack.c.l.b16 %v1141
  %v1502 = vunpack.c.h.b16 %v1141
  %v1503 = vunpack.c.l.b16 %v1142
  %v1504 = vunpack.c.h.b16 %v1142
  %v1505 = vunpack.c.l.b16 %v1143
  %v1506 = vunpack.c.h.b16 %v1143
  %v1507 = vunpack.c.l.b16 %v1144
  %v1508 = vunpack.c.h.b16 %v1144
  %v1509 = vunpack.c.l.b16 %v1145
  %v1510 = vunpack.c.h.b16 %v1145
  %v1511 = vunpack.c.l.b16 %v1146
  %v1512 = vunpack.c.h.b16 %v1146
  %v1513 = vunpack.c.l.b16 %v1147
  %v1514 = vunpack.c.h.b16 %v1147
  %v1515 = vunpack.c.l.b16 %v1148
  %v1516 = vunpack.c.h.b16 %v1148
  %v1517 = vunpack.c.l.b16 %v1149
  %v1518 = vunpack.c.h.b16 %v1149
  %v1519 = vunpack.c.l.b16 %v1150
  %v1520 = vunpack.c.h.b16 %v1150
  %v1521 = vunpack.c.l.b16 %v1151
  %v1522 = vunpack.c.h.b16 %v1151
  %v1523 = vunpack.c.l.b16 %v1152
  %v1524 = vunpack.c.h.b16 %v1152
  %v1525 = vunpack.c.l.b16 %v1153
  %v1526 = vunpack.c.h.b16 %v1153
  %v1527 = vunpack.c.l.b16 %v1154
  %v1528 = vunpack.c.h.b16 %v1154
  %v1529 = vunpack.c.l.b16 %v1155
  %v1530 = vunpack.c.h.b16 %v1155
  %v1531 = vunpack.c.l.b16 %v1156
  %v1532 = vunpack.c.h.b16 %v1156
  %v1533 = vunpack.c.l.b16 %v1157
  %v1534 = vunpack.c.h.b16 %v1157
  %v1535 = vunpack.c.l.b16 %v1158
  %v1536 = vunpack.c.h.b16 %v1158
  %v1537 = vunpack.c.l.b16 %v1159
  %v1538 = vunpack.c.h.b16 %v1159
  %v1539 = vunpack.c.l.b16 %v1160
  %v1540 = vunpack.c.h.b16 %v1160
  %v1541 = vunpack.c.l.b16 %v1161
  %v1542 = vunpack.c.h.b16 %v1161
  %v1543 = vunpack.c.l.b16 %v1162
  %v1544 = vunpack.c.h.b16 %v1162
  %v1545 = vunpack.c.l.b16 %v1163
  %v1546 = vunpack.c.h.b16 %v1163
  %v1547 = vunpack.c.l.b16 %v1164
  %v1548 = vunpack.c.h.b16 %v1164
  %v1549 = vunpack.c.l.b16 %v1165
  %v1550 = vunpack.c.h.b16 %v1165
  %v1551 = vunpack.c.l.b16 %v1166
  %v1552 = vunpack.c.h.b16 %v1166
  %v1553 = vunpack.c.l.b16 %v1167
  %v1554 = vunpack.c.h.b16 %v1167
  %v1555 = vunpack.c.l.b16 %v1168
  %v1556 = vunpack.c.h.b16 %v1168
  %v1557 = vunpack.c.l.b16 %v1169
  %v1558 = vunpack.c.h.b16 %v1169
  %v1559 = vunpack.c.l.b16 %v1170
  %v1560 = vunpack.c.h.b16 %v1170
  %v1561 = vunpack.c.l.b16 %v1171
  %v1562 = vunpack.c.h.b16 %v1171
  %v1563 = vunpack.c.l.b16 %v1172
  %v1564 = vunpack.c.h.b16 %v1172
  %v1565 = vunpack.c.l.b16 %v1173
  %v1566 = vunpack.c.h.b16 %v1173
  %v1567 = vunpack.c.l.b16 %v1174
  %v1568 = vunpack.c.h.b16 %v1174
  %v1569 = vpack.c.b16 %v1317, %v1313
  %v1570 = vpack.c.b16 %v1318, %v1314
  %v1571 = vpack.c.b16 %v1319, %v1315
  %v1572 = vpack.c.b16 %v1320, %v1316
  %v1573 = vpack.c.b16 %v1325, %v1321
  %v1574 = vpack.c.b16 %v1326, %v1322
  %v1575 = vpack.c.b16 %v1327, %v1323
  %v1576 = vpack.c.b16 %v1328, %v1324
  %v1577 = vpack.c.b16 %v1333, %v1329
  %v1578 = vpack.c.b16 %v1334, %v1330
  %v1579 = vpack.c.b16 %v1335, %v1331
  %v1580 = vpack.c.b16 %v1336, %v1332
  %v1581 = vpack.c.b16 %v1341, %v1337
  %v1582 = vpack.c.b16 %v1342, %v1338
  %v1583 = vpack.c.b16 %v1343, %v1339
  %v1584 = vpack.c.b16 %v1344, %v1340
  %v1585 = vpack.c.b16 %v1349, %v1345
  %v1586 = vpack.c.b16 %v1350, %v1346
  %v1587 = vpack.c.b16 %v1351, %v1347
  %v1588 = vpack.c.b16 %v1352, %v1348
  %v1589 = vpack.c.b16 %v1357, %v1353
  %v1590 = vpack.c.b16 %v1358, %v1354
  %v1591 = vpack.c.b16 %v1359, %v1355
  %v1592 = vpack.c.b16 %v1360, %v1356
  %v1593 = vpack.c.b16 %v1365, %v1361
  %v1594 = vpack.c.b16 %v1366, %v1362
  %v1595 = vpack.c.b16 %v1367, %v1363
  %v1596 = vpack.c.b16 %v1368, %v1364
  %v1597 = vpack.c.b16 %v1373, %v1369
  %v1598 = vpack.c.b16 %v1374, %v1370
  %v1599 = vpack.c.b16 %v1375, %v1371
  %v1600 = vpack.c.b16 %v1376, %v1372
  %v1601 = vpack.c.b16 %v1381, %v1377
  %v1602 = vpack.c.b16 %v1382, %v1378
  %v1603 = vpack.c.b16 %v1383, %v1379
  %v1604 = vpack.c.b16 %v1384, %v1380
  %v1605 = vpack.c.b16 %v1389, %v1385
  %v1606 = vpack.c.b16 %v1390, %v1386
  %v1607 = vpack.c.b16 %v1391, %v1387
  %v1608 = vpack.c.b16 %v1392, %v1388
  %v1609 = vpack.c.b16 %v1397, %v1393
  %v1610 = vpack.c.b16 %v1398, %v1394
  %v1611 = vpack.c.b16 %v1399, %v1395
  %v1612 = vpack.c.b16 %v1400, %v1396
  %v1613 = vpack.c.b16 %v1405, %v1401
  %v1614 = vpack.c.b16 %v1406, %v1402
  %v1615 = vpack.c.b16 %v1407, %v1403
  %v1616 = vpack.c.b16 %v1408, %v1404
  %v1617 = vpack.c.b16 %v1413, %v1409
  %v1618 = vpack.c.b16 %v1414, %v1410
  %v1619 = vpack.c.b16 %v1415, %v1411
  %v1620 = vpack.c.b16 %v1416, %v1412
  %v1621 = vpack.c.b16 %v1421, %v1417
  %v1622 = vpack.c.b16 %v1422, %v1418
  %v1623 = vpack.c.b16 %v1423, %v1419
  %v1624 = vpack.c.b16 %v1424, %v1420
  %v1625 = vpack.c.b16 %v1429, %v1425
  %v1626 = vpack.c.b16 %v1430, %v1426
  %v1627 = vpack.c.b16 %v1431, %v1427
  %v1628 = vpack.c.b16 %v1432, %v1428
  %v1629 = vpack.c.b16 %v1437, %v1433
  %v1630 = vpack.c.b16 %v1438, %v1434
  %v1631 = vpack.c.b16 %v1439, %v1435
  %v1632 = vpack.c.b16 %v1440, %v1436
  %v1633 = vpack.c.b16 %v1445, %v1441
  %v1634 = vpack.c.b16 %v1446, %v1442
  %v1635 = vpack.c.b16 %v1447, %v1443
  %v1636 = vpack.c.b16 %v1448, %v1444
  %v1637 = vpack.c.b16 %v1453, %v1449
  %v1638 = vpack.c.b16 %v1454, %v1450
  %v1639 = vpack.c.b16 %v1455, %v1451
  %v1640 = vpack.c.b16 %v1456, %v1452
  %v1641 = vpack.c.b16 %v1461, %v1457
  %v1642 = vpack.c.b16 %v1462, %v1458
  %v1643 = vpack.c.b16 %v1463, %v1459
  %v1644 = vpack.c.b16 %v1464, %v1460
  %v1645 = vpack.c.b16 %v1469, %v1465
  %v1646 = vpack.c.b16 %v1470, %v1466
  %v1647 = vpack.c.b16 %v1471, %v1467
  %v1648 = vpack.c.b16 %v1472, %v1468
  %v1649 = vpack.c.b16 %v1477, %v1473
  %v1650 = vpack.c.b16 %v1478, %v1474
  %v1651 = vpack.c.b16 %v1479, %v1475
  %v1652 = vpack.c.b16 %v1480, %v1476
  %v1653 = vpack.c.b16 %v1485, %v1481
  %v1654 = vpack.c.b16 %v1486, %v1482
  %v1655 = vpack.c.b16 %v1487, %v1483
  %v1656 = vpack.c.b16 %v1488, %v1484
  %v1657 = vpack.c.b16 %v1493, %v1489
  %v1658 = vpack.c.b16 %v1494, %v1490
  %v1659 = vpack.c.b16 %v1495, %v1491
  %v1660 = vpack.c.b16 %v1496, %v1492
  %v1661 = vpack.c.b16 %v1501, %v1497
  %v1662 = vpack.c.b16 %v1502, %v1498
  %v1663 = vpack.c.b16 %v1503, %v1499
  %v1664 = vpack.c.b16 %v1504, %v1500
  %v1665 = vpack.c.b16 %v1509, %v1505
  %v1666 = vpack.c.b16 %v1510, %v1506
  %v1667 = vpack.c.b16 %v1511, %v1507
  %v1668 = vpack.c.b16 %v1512, %v1508
  %v1669 = vpack.c.b16 %v1517, %v1513
  %v1670 = vpack.c.b16 %v1518, %v1514
  %v1671 = vpack.c.b16 %v1519, %v1515
  %v1672 = vpack.c.b16 %v1520, %v1516
  %v1673 = vpack.c.b16 %v1525, %v1521
  %v1674 = vpack.c.b16 %v1526, %v1522
  %v1675 = vpack.c.b16 %v1527, %v1523
  %v1676 = vpack.c.b16 %v1528, %v1524
  %v1677 = vpack.c.b16 %v1533, %v1529
  %v1678 = vpack.c.b16 %v1534, %v1530
  %v1679 = vpack.c.b16 %v1535, %v1531
  %v1680 = vpack.c.b16 %v1536, %v1532
  %v1681 = vpack.c.b16 %v1541, %v1537
  %v1682 = vpack.c.b16 %v1542, %v1538
  %v1683 = vpack.c.b16 %v1543, %v1539
  %v1684 = vpack.c.b16 %v1544, %v1540
  %v1685 = vpack.c.b16 %v1549, %v1545
  %v1686 = vpack.c.b16 %v1550, %v1546
  %v1687 = vpack.c.b16 %v1551, %v1547
  %v1688 = vpack.c.b16 %v1552, %v1548
  %v1689 = vpack.c.b16 %v1557, %v1553
  %v1690 = vpack.c.b16 %v1558, %v1554
  %v1691 = vpack.c.b16 %v1559, %v1555
  %v1692 = vpack.c.b16 %v1560, %v1556
  %v1693 = vpack.c.b16 %v1565, %v1561
  %v1694 = vpack.c.b16 %v1566, %v1562
  %v1695 = vpack.c.b16 %v1567, %v1563
  %v1696 = vpack.c.b16 %v1568, %v1564
  %1825 = vmatpush.bf16.msra.mxu0 %v1597
  %1826 = vmatpush.bf16.msra.mxu0 %v1593
  %1827 = vmatpush.bf16.msra.mxu0 %v1589
  %1828 = vmatpush.bf16.msra.mxu0 %v1585
  %1829 = vmatpush.bf16.msra.mxu0 %v1581
  %1830 = vmatpush.bf16.msra.mxu0 %v1577
  %1831 = vmatpush.bf16.msra.mxu0 %v1573
  %1832 = vmatpush.bf16.msra.mxu0 %v1569
  %1833 = vmatmul.bf16.gmra.mxu0 %v1043
  %v1834 = vpop.f32.mrf.mxu0
  %v1835 = vadd.f32 %v1177, %v1834
  %v1836 = vpop.f32.mrf.mxu0
  %1837 = vdwg.mxu0
  %1838 = vmatpush.bf16.msra.mxu0 %v1629
  %1839 = vmatpush.bf16.msra.mxu0 %v1625
  %1840 = vmatpush.bf16.msra.mxu0 %v1621
  %1841 = vmatpush.bf16.msra.mxu0 %v1617
  %1842 = vmatpush.bf16.msra.mxu0 %v1613
  %1843 = vmatpush.bf16.msra.mxu0 %v1609
  %1844 = vmatpush.bf16.msra.mxu0 %v1605
  %1845 = vmatpush.bf16.msra.mxu0 %v1601
  %1846 = vmatmul.bf16.gmra.mxu0 %v1044
  %v1847 = vpop.f32.mrf.mxu0
  %v1848 = vadd.f32 %v1835, %v1847
  %v1849 = vpop.f32.mrf.mxu0
  %1850 = vdwg.mxu0
  %1851 = vmatpush.bf16.msra.mxu0 %v1661
  %1852 = vmatpush.bf16.msra.mxu0 %v1657
  %1853 = vmatpush.bf16.msra.mxu0 %v1653
  %1854 = vmatpush.bf16.msra.mxu0 %v1649
  %1855 = vmatpush.bf16.msra.mxu0 %v1645
  %1856 = vmatpush.bf16.msra.mxu0 %v1641
  %1857 = vmatpush.bf16.msra.mxu0 %v1637
  %1858 = vmatpush.bf16.msra.mxu0 %v1633
  %1859 = vmatmul.bf16.gmra.mxu0 %v1045
  %v1860 = vpop.f32.mrf.mxu0
  %v1861 = vadd.f32 %v1848, %v1860
  %v1862 = vpop.f32.mrf.mxu0
  %1863 = vdwg.mxu0
  %1864 = vmatpush.bf16.msra.mxu0 %v1693
  %1865 = vmatpush.bf16.msra.mxu0 %v1689
  %1866 = vmatpush.bf16.msra.mxu0 %v1685
  %1867 = vmatpush.bf16.msra.mxu0 %v1681
  %1868 = vmatpush.bf16.msra.mxu0 %v1677
  %1869 = vmatpush.bf16.msra.mxu0 %v1673
  %1870 = vmatpush.bf16.msra.mxu0 %v1669
  %1871 = vmatpush.bf16.msra.mxu0 %v1665
  %1872 = vmatmul.bf16.gmra.mxu0 %v1046
  %v1873 = vpop.f32.mrf.mxu0
  %v1874 = vadd.f32 %v1861, %v1873
  %v1875 = vpop.f32.mrf.mxu0
  %1876 = vdwg.mxu0
  %1877 = vmatpush.bf16.msra.mxu0 %v1598
  %1878 = vmatpush.bf16.msra.mxu0 %v1594
  %1879 = vmatpush.bf16.msra.mxu0 %v1590
  %1880 = vmatpush.bf16.msra.mxu0 %v1586
  %1881 = vmatpush.bf16.msra.mxu0 %v1582
  %1882 = vmatpush.bf16.msra.mxu0 %v1578
  %1883 = vmatpush.bf16.msra.mxu0 %v1574
  %1884 = vmatpush.bf16.msra.mxu0 %v1570
  %1885 = vmatmul.bf16.gmra.mxu0 %v1043
  %v1886 = vpop.f32.mrf.mxu0
  %v1887 = vadd.f32 %v1178, %v1886
  %v1888 = vpop.f32.mrf.mxu0
  %1889 = vdwg.mxu0
  %1890 = vmatpush.bf16.msra.mxu0 %v1630
  %1891 = vmatpush.bf16.msra.mxu0 %v1626
  %1892 = vmatpush.bf16.msra.mxu0 %v1622
  %1893 = vmatpush.bf16.msra.mxu0 %v1618
  %1894 = vmatpush.bf16.msra.mxu0 %v1614
  %1895 = vmatpush.bf16.msra.mxu0 %v1610
  %1896 = vmatpush.bf16.msra.mxu0 %v1606
  %1897 = vmatpush.bf16.msra.mxu0 %v1602
  %1898 = vmatmul.bf16.gmra.mxu0 %v1044
  %v1899 = vpop.f32.mrf.mxu0
  %v1900 = vadd.f32 %v1887, %v1899
  %v1901 = vpop.f32.mrf.mxu0
  %1902 = vdwg.mxu0
  %1903 = vmatpush.bf16.msra.mxu0 %v1662
  %1904 = vmatpush.bf16.msra.mxu0 %v1658
  %1905 = vmatpush.bf16.msra.mxu0 %v1654
  %1906 = vmatpush.bf16.msra.mxu0 %v1650
  %1907 = vmatpush.bf16.msra.mxu0 %v1646
  %1908 = vmatpush.bf16.msra.mxu0 %v1642
  %1909 = vmatpush.bf16.msra.mxu0 %v1638
  %1910 = vmatpush.bf16.msra.mxu0 %v1634
  %1911 = vmatmul.bf16.gmra.mxu0 %v1045
  %v1912 = vpop.f32.mrf.mxu0
  %v1913 = vadd.f32 %v1900, %v1912
  %v1914 = vpop.f32.mrf.mxu0
  %1915 = vdwg.mxu0
  %1916 = vmatpush.bf16.msra.mxu0 %v1694
  %1917 = vmatpush.bf16.msra.mxu0 %v1690
  %1918 = vmatpush.bf16.msra.mxu0 %v1686
  %1919 = vmatpush.bf16.msra.mxu0 %v1682
  %1920 = vmatpush.bf16.msra.mxu0 %v1678
  %1921 = vmatpush.bf16.msra.mxu0 %v1674
  %1922 = vmatpush.bf16.msra.mxu0 %v1670
  %1923 = vmatpush.bf16.msra.mxu0 %v1666
  %1924 = vmatmul.bf16.gmra.mxu0 %v1046
  %v1925 = vpop.f32.mrf.mxu0
  %v1926 = vadd.f32 %v1913, %v1925
  %v1927 = vpop.f32.mrf.mxu0
  %1928 = vdwg.mxu0
  %1929 = vmatpush.bf16.msra.mxu0 %v1599
  %1930 = vmatpush.bf16.msra.mxu0 %v1595
  %1931 = vmatpush.bf16.msra.mxu0 %v1591
  %1932 = vmatpush.bf16.msra.mxu0 %v1587
  %1933 = vmatpush.bf16.msra.mxu0 %v1583
  %1934 = vmatpush.bf16.msra.mxu0 %v1579
  %1935 = vmatpush.bf16.msra.mxu0 %v1575
  %1936 = vmatpush.bf16.msra.mxu0 %v1571
  %1937 = vmatmul.bf16.gmra.mxu0 %v1043
  %v1938 = vpop.f32.mrf.mxu0
  %v1939 = vadd.f32 %v1179, %v1938
  %v1940 = vpop.f32.mrf.mxu0
  %1941 = vdwg.mxu0
  %1942 = vmatpush.bf16.msra.mxu0 %v1631
  %1943 = vmatpush.bf16.msra.mxu0 %v1627
  %1944 = vmatpush.bf16.msra.mxu0 %v1623
  %1945 = vmatpush.bf16.msra.mxu0 %v1619
  %1946 = vmatpush.bf16.msra.mxu0 %v1615
  %1947 = vmatpush.bf16.msra.mxu0 %v1611
  %1948 = vmatpush.bf16.msra.mxu0 %v1607
  %1949 = vmatpush.bf16.msra.mxu0 %v1603
  %1950 = vmatmul.bf16.gmra.mxu0 %v1044
  %v1951 = vpop.f32.mrf.mxu0
  %v1952 = vadd.f32 %v1939, %v1951
  %v1953 = vpop.f32.mrf.mxu0
  %1954 = vdwg.mxu0
  %1955 = vmatpush.bf16.msra.mxu0 %v1663
  %1956 = vmatpush.bf16.msra.mxu0 %v1659
  %1957 = vmatpush.bf16.msra.mxu0 %v1655
  %1958 = vmatpush.bf16.msra.mxu0 %v1651
  %1959 = vmatpush.bf16.msra.mxu0 %v1647
  %1960 = vmatpush.bf16.msra.mxu0 %v1643
  %1961 = vmatpush.bf16.msra.mxu0 %v1639
  %1962 = vmatpush.bf16.msra.mxu0 %v1635
  %1963 = vmatmul.bf16.gmra.mxu0 %v1045
  %v1964 = vpop.f32.mrf.mxu0
  %v1965 = vadd.f32 %v1952, %v1964
  %v1966 = vpop.f32.mrf.mxu0
  %1967 = vdwg.mxu0
  %1968 = vmatpush.bf16.msra.mxu0 %v1695
  %1969 = vmatpush.bf16.msra.mxu0 %v1691
  %1970 = vmatpush.bf16.msra.mxu0 %v1687
  %1971 = vmatpush.bf16.msra.mxu0 %v1683
  %1972 = vmatpush.bf16.msra.mxu0 %v1679
  %1973 = vmatpush.bf16.msra.mxu0 %v1675
  %1974 = vmatpush.bf16.msra.mxu0 %v1671
  %1975 = vmatpush.bf16.msra.mxu0 %v1667
  %1976 = vmatmul.bf16.gmra.mxu0 %v1046
  %v1977 = vpop.f32.mrf.mxu0
  %v1978 = vadd.f32 %v1965, %v1977
  %v1979 = vpop.f32.mrf.mxu0
  %1980 = vdwg.mxu0
  %1981 = vmatpush.bf16.msra.mxu0 %v1600
  %1982 = vmatpush.bf16.msra.mxu0 %v1596
  %1983 = vmatpush.bf16.msra.mxu0 %v1592
  %1984 = vmatpush.bf16.msra.mxu0 %v1588
  %1985 = vmatpush.bf16.msra.mxu0 %v1584
  %1986 = vmatpush.bf16.msra.mxu0 %v1580
  %1987 = vmatpush.bf16.msra.mxu0 %v1576
  %1988 = vmatpush.bf16.msra.mxu0 %v1572
  %1989 = vmatmul.bf16.gmra.mxu0 %v1043
  %v1990 = vpop.f32.mrf.mxu0
  %v1991 = vadd.f32 %v1180, %v1990
  %v1992 = vpop.f32.mrf.mxu0
  %1993 = vdwg.mxu0
  %1994 = vmatpush.bf16.msra.mxu0 %v1632
  %1995 = vmatpush.bf16.msra.mxu0 %v1628
  %1996 = vmatpush.bf16.msra.mxu0 %v1624
  %1997 = vmatpush.bf16.msra.mxu0 %v1620
  %1998 = vmatpush.bf16.msra.mxu0 %v1616
  %1999 = vmatpush.bf16.msra.mxu0 %v1612
  %2000 = vmatpush.bf16.msra.mxu0 %v1608
  %2001 = vmatpush.bf16.msra.mxu0 %v1604
  %2002 = vmatmul.bf16.gmra.mxu0 %v1044
  %v2003 = vpop.f32.mrf.mxu0
  %v2004 = vadd.f32 %v1991, %v2003
  %v2005 = vpop.f32.mrf.mxu0
  %2006 = vdwg.mxu0
  %2007 = vmatpush.bf16.msra.mxu0 %v1664
  %2008 = vmatpush.bf16.msra.mxu0 %v1660
  %2009 = vmatpush.bf16.msra.mxu0 %v1656
  %2010 = vmatpush.bf16.msra.mxu0 %v1652
  %2011 = vmatpush.bf16.msra.mxu0 %v1648
  %2012 = vmatpush.bf16.msra.mxu0 %v1644
  %2013 = vmatpush.bf16.msra.mxu0 %v1640
  %2014 = vmatpush.bf16.msra.mxu0 %v1636
  %2015 = vmatmul.bf16.gmra.mxu0 %v1045
  %v2016 = vpop.f32.mrf.mxu0
  %v2017 = vadd.f32 %v2004, %v2016
  %v2018 = vpop.f32.mrf.mxu0
  %2019 = vdwg.mxu0
  %2020 = vmatpush.bf16.msra.mxu0 %v1696
  %2021 = vmatpush.bf16.msra.mxu0 %v1692
  %2022 = vmatpush.bf16.msra.mxu0 %v1688
  %2023 = vmatpush.bf16.msra.mxu0 %v1684
  %2024 = vmatpush.bf16.msra.mxu0 %v1680
  %2025 = vmatpush.bf16.msra.mxu0 %v1676
  %2026 = vmatpush.bf16.msra.mxu0 %v1672
  %2027 = vmatpush.bf16.msra.mxu0 %v1668
  %2028 = vmatmul.bf16.gmra.mxu0 %v1046
  %v2029 = vpop.f32.mrf.mxu0
  %v2030 = vadd.f32 %v2017, %v2029
  %v2031 = vpop.f32.mrf.mxu0
  %2032 = vdwg.mxu0
  %v2033 = vadd.f32 %v1874, %v453
  %v2034 = vadd.f32 %v1926, %v479
  %v2035 = vadd.f32 %v1978, %v505
  %v2036 = vadd.f32 %v2030, %v531
  %v2037 = vmax.f32 %v2033, 0.0
  %v2038 = vmax.f32 %v2034, 0.0
  %v2039 = vmax.f32 %v2035, 0.0
  %v2040 = vmax.f32 %v2036, 0.0
  %v2041 = vpack.c.bf16 %v2038, %v2037
  %v2042 = vpack.c.bf16 %v2040, %v2039
  %v2045 = vrot.slane %v2041, 3
  %v2046 = vrot.slane %v2042, 6
  %v2047 = vrot.slane %v2042, 1
  %vm2048 = vcmask 1040384
  %v2051 = vsel %vm2048, %v2041, %v2045
  %vm2052 = vcmask 1042434
  %v2055 = vsel %vm2052, %v2046, %v2047
  %vm2056 = vcmask 1041408
  %v2057 = vsel %vm2056, %v2051, %v2055
  %2059 = vst [vmem:[%s8] sm:$0xf] %v2057
  // Predicated region
  $region34: #{resnet18_forward.29} parent=0 // pred_check
    _
  $region35: #{resnet18_forward.29} parent=0 // pred_check_branch
    %2061 = sbr.rel (0) target = $region37
  $region36: #{resnet18_forward.29} parent=0 // pred_region
    _
  $region37: #{resnet18_forward.29} parent=0 // pred_fallthru
    _
  // Predicated region
  $region38: #{resnet18_forward.29} parent=0 // pred_check
    _
  $region39: #{resnet18_forward.29} parent=0 // pred_check_branch
    %2063 = sbr.rel (0) target = $region41
  $region40: #{resnet18_forward.29} parent=0 // pred_region
    _
  $region41: #{resnet18_forward.29} parent=0 // pred_fallthru
    _

// kernel: resnet18_forward.31
$region0: #{resnet18_forward.31}
  #allocation0 [shape = 'u32[]', space=smem, size = 0x4, offset = 0x4, fixed_abs, tag = 'smem constant byte address 0x4 - core index']
  #allocation1 [shape = 'u32[72,128]{1,0:T(1,128)}', space=vmem, size = 0x9000, scoped, tag = 'internal scratch']
  %s0 = inlined_call_operand.vmem [shape: bf16[2,1,512], index: 0, kind: input, shape index: {}]
  %s1 = inlined_call_operand.vmem [shape: f32[512,128], index: 1, kind: input, shape index: {}]
  %s2 = inlined_call_operand.vmem [shape: f32[1,128], index: 2, kind: input, shape index: {}]
  %s3 = inlined_call_operand.hbm [shape: f32[2,128], index: 3, kind: output, shape index: {}]
  %s4 = sld [smem:[#allocation0]]
  $region22: #{resnet18_forward.31} parent=0
    _
  %s6 = ssub.s32 1, %s4
  %s7 = scalar_select 0, %s6, %s4
  $region1: #{resnet18_forward.31} parent=0
    #allocation2 [shape = 'u8[1024]{0}', space=vmem, size = 0x400, scoped, tag = 'output window, operand 0, single buffered']
    #allocation3 [shape = 's32[1]{0}', space=sflag, size = 0x4, scoped, tag = 'scoped memory for resnet18_forward.31']
    %8 = vsyncpa [#allocation3], 0
    // Predicated region
    $region2: #{resnet18_forward.31} parent=1 // pred_check
      _
    $region3: #{resnet18_forward.31} parent=1 // pred_check_branch
      %10 = sbr.rel (0) target = $region5
    $region4: #{resnet18_forward.31} parent=1 // pred_region
      _
    $region5: #{resnet18_forward.31} parent=1 // pred_fallthru
      _
    // Predicated region
    $region6: #{resnet18_forward.31} parent=1 // pred_check
      _
    $region7: #{resnet18_forward.31} parent=1 // pred_check_branch
      %12 = sbr.rel (0) target = $region9
    $region8: #{resnet18_forward.31} parent=1 // pred_region
      _
    $region9: #{resnet18_forward.31} parent=1 // pred_fallthru
      _
    // Predicated region
    $region10: #{resnet18_forward.31} parent=1 // pred_check
      _
    $region11: #{resnet18_forward.31} parent=1 // pred_check_branch
      %14 = sbr.rel (0) target = $region13
    $region12: #{resnet18_forward.31} parent=1 // pred_region
      _
    $region13: #{resnet18_forward.31} parent=1 // pred_fallthru
      _
    %v15 = vld [vmem:[%s0] sm:$0xf]
    %v16 = vld [vmem:[%s0 + $0x4] sm:$0xf]
    %v17 = vunpack.c.l.bf16 %v15
    %v18 = vunpack.c.l.bf16 %v16
    %v19 = vadd.f32 %v17, 0.0
    %v20 = vadd.f32 %v18, 0.0
    %v21 = vld [vmem:[%s1] sm:$0xff]
    %v22 = vld [vmem:[%s1 + $0x8] sm:$0xff]
    %v23 = vld [vmem:[%s1 + $0x10] sm:$0xff]
    %v24 = vld [vmem:[%s1 + $0x18] sm:$0xff]
    %v25 = vld [vmem:[%s1 + $0x20] sm:$0xff]
    %v26 = vld [vmem:[%s1 + $0x28] sm:$0xff]
    %v27 = vld [vmem:[%s1 + $0x30] sm:$0xff]
    %v28 = vld [vmem:[%s1 + $0x38] sm:$0xff]
    %v29 = vld [vmem:[%s1 + $0x40] sm:$0xff]
    %v30 = vld [vmem:[%s1 + $0x48] sm:$0xff]
    %v31 = vld [vmem:[%s1 + $0x50] sm:$0xff]
    %v32 = vld [vmem:[%s1 + $0x58] sm:$0xff]
    %v33 = vld [vmem:[%s1 + $0x60] sm:$0xff]
    %v34 = vld [vmem:[%s1 + $0x68] sm:$0xff]
    %v35 = vld [vmem:[%s1 + $0x70] sm:$0xff]
    %v36 = vld [vmem:[%s1 + $0x78] sm:$0xff]
    %v37 = vld [vmem:[%s1 + $0x80] sm:$0xff]
    %v38 = vld [vmem:[%s1 + $0x88] sm:$0xff]
    %v39 = vld [vmem:[%s1 + $0x90] sm:$0xff]
    %v40 = vld [vmem:[%s1 + $0x98] sm:$0xff]
    %v41 = vld [vmem:[%s1 + $0xa0] sm:$0xff]
    %v42 = vld [vmem:[%s1 + $0xa8] sm:$0xff]
    %v43 = vld [vmem:[%s1 + $0xb0] sm:$0xff]
    %v44 = vld [vmem:[%s1 + $0xb8] sm:$0xff]
    %v45 = vld [vmem:[%s1 + $0xc0] sm:$0xff]
    %v46 = vld [vmem:[%s1 + $0xc8] sm:$0xff]
    %v47 = vld [vmem:[%s1 + $0xd0] sm:$0xff]
    %v48 = vld [vmem:[%s1 + $0xd8] sm:$0xff]
    %v49 = vld [vmem:[%s1 + $0xe0] sm:$0xff]
    %v50 = vld [vmem:[%s1 + $0xe8] sm:$0xff]
    %v51 = vld [vmem:[%s1 + $0xf0] sm:$0xff]
    %v52 = vld [vmem:[%s1 + $0xf8] sm:$0xff]
    %v53 = vld [vmem:[%s1 + $0x100] sm:$0xff]
    %v54 = vld [vmem:[%s1 + $0x108] sm:$0xff]
    %v55 = vld [vmem:[%s1 + $0x110] sm:$0xff]
    %v56 = vld [vmem:[%s1 + $0x118] sm:$0xff]
    %v57 = vld [vmem:[%s1 + $0x120] sm:$0xff]
    %v58 = vld [vmem:[%s1 + $0x128] sm:$0xff]
    %v59 = vld [vmem:[%s1 + $0x130] sm:$0xff]
    %v60 = vld [vmem:[%s1 + $0x138] sm:$0xff]
    %v61 = vld [vmem:[%s1 + $0x140] sm:$0xff]
    %v62 = vld [vmem:[%s1 + $0x148] sm:$0xff]
    %v63 = vld [vmem:[%s1 + $0x150] sm:$0xff]
    %v64 = vld [vmem:[%s1 + $0x158] sm:$0xff]
    %v65 = vld [vmem:[%s1 + $0x160] sm:$0xff]
    %v66 = vld [vmem:[%s1 + $0x168] sm:$0xff]
    %v67 = vld [vmem:[%s1 + $0x170] sm:$0xff]
    %v68 = vld [vmem:[%s1 + $0x178] sm:$0xff]
    %v69 = vld [vmem:[%s1 + $0x180] sm:$0xff]
    %v70 = vld [vmem:[%s1 + $0x188] sm:$0xff]
    %v71 = vld [vmem:[%s1 + $0x190] sm:$0xff]
    %v72 = vld [vmem:[%s1 + $0x198] sm:$0xff]
    %v73 = vld [vmem:[%s1 + $0x1a0] sm:$0xff]
    %v74 = vld [vmem:[%s1 + $0x1a8] sm:$0xff]
    %v75 = vld [vmem:[%s1 + $0x1b0] sm:$0xff]
    %v76 = vld [vmem:[%s1 + $0x1b8] sm:$0xff]
    %v77 = vld [vmem:[%s1 + $0x1c0] sm:$0xff]
    %v78 = vld [vmem:[%s1 + $0x1c8] sm:$0xff]
    %v79 = vld [vmem:[%s1 + $0x1d0] sm:$0xff]
    %v80 = vld [vmem:[%s1 + $0x1d8] sm:$0xff]
    %v81 = vld [vmem:[%s1 + $0x1e0] sm:$0xff]
    %v82 = vld [vmem:[%s1 + $0x1e8] sm:$0xff]
    %v83 = vld [vmem:[%s1 + $0x1f0] sm:$0xff]
    %v84 = vld [vmem:[%s1 + $0x1f8] sm:$0xff]
    %v85 = vld [vmem:[%s2] sm:$0x1]
    %v87 = vperm.slane %v85, 0
    %v91 = vperm.slane %v19, 0
    %v92 = vperm.slane %v19, 2
    %v93 = vperm.slane %v19, 4
    %v94 = vperm.slane %v19, 6
    %v95 = vperm.slane %v20, 0
    %v96 = vperm.slane %v20, 2
    %v97 = vperm.slane %v20, 4
    %v98 = vperm.slane %v20, 6
    %vm99 = vcmask 1041409
    %v100 = vsel %vm99, %v95, %v91
    %v101 = vsel %vm99, %v96, %v92
    %v102 = vsel %vm99, %v97, %v93
    %v103 = vsel %vm99, %v98, %v94
    %108 = vmatpush.msra.mxu0 %v36
    %109 = vmatpush.msra.mxu0 %v35
    %110 = vmatpush.msra.mxu0 %v34
    %111 = vmatpush.msra.mxu0 %v33
    %112 = vmatpush.msra.mxu0 %v32
    %113 = vmatpush.msra.mxu0 %v31
    %114 = vmatpush.msra.mxu0 %v30
    %115 = vmatpush.msra.mxu0 %v29
    %116 = vmatpush.msra.mxu0 %v28
    %117 = vmatpush.msra.mxu0 %v27
    %118 = vmatpush.msra.mxu0 %v26
    %119 = vmatpush.msra.mxu0 %v25
    %120 = vmatpush.msra.mxu0 %v24
    %121 = vmatpush.msra.mxu0 %v23
    %122 = vmatpush.msra.mxu0 %v22
    %123 = vmatpush.msra.mxu0 %v21
    %124 = vmatmul.f32.gmra.mxu0 %v100
    %v125 = vpop.f32.mrf.mxu0
    %v126 = vadd.f32 %v87, %v125
    %127 = vdwg.mxu0
    %128 = vmatpush.msra.mxu0 %v52
    %129 = vmatpush.msra.mxu0 %v51
    %130 = vmatpush.msra.mxu0 %v50
    %131 = vmatpush.msra.mxu0 %v49
    %132 = vmatpush.msra.mxu0 %v48
    %133 = vmatpush.msra.mxu0 %v47
    %134 = vmatpush.msra.mxu0 %v46
    %135 = vmatpush.msra.mxu0 %v45
    %136 = vmatpush.msra.mxu0 %v44
    %137 = vmatpush.msra.mxu0 %v43
    %138 = vmatpush.msra.mxu0 %v42
    %139 = vmatpush.msra.mxu0 %v41
    %140 = vmatpush.msra.mxu0 %v40
    %141 = vmatpush.msra.mxu0 %v39
    %142 = vmatpush.msra.mxu0 %v38
    %143 = vmatpush.msra.mxu0 %v37
    %144 = vmatmul.f32.gmra.mxu0 %v101
    %v145 = vpop.f32.mrf.mxu0
    %v146 = vadd.f32 %v126, %v145
    %147 = vdwg.mxu0
    %148 = vmatpush.msra.mxu0 %v68
    %149 = vmatpush.msra.mxu0 %v67
    %150 = vmatpush.msra.mxu0 %v66
    %151 = vmatpush.msra.mxu0 %v65
    %152 = vmatpush.msra.mxu0 %v64
    %153 = vmatpush.msra.mxu0 %v63
    %154 = vmatpush.msra.mxu0 %v62
    %155 = vmatpush.msra.mxu0 %v61
    %156 = vmatpush.msra.mxu0 %v60
    %157 = vmatpush.msra.mxu0 %v59
    %158 = vmatpush.msra.mxu0 %v58
    %159 = vmatpush.msra.mxu0 %v57
    %160 = vmatpush.msra.mxu0 %v56
    %161 = vmatpush.msra.mxu0 %v55
    %162 = vmatpush.msra.mxu0 %v54
    %163 = vmatpush.msra.mxu0 %v53
    %164 = vmatmul.f32.gmra.mxu0 %v102
    %v165 = vpop.f32.mrf.mxu0
    %v166 = vadd.f32 %v146, %v165
    %167 = vdwg.mxu0
    %168 = vmatpush.msra.mxu0 %v84
    %169 = vmatpush.msra.mxu0 %v83
    %170 = vmatpush.msra.mxu0 %v82
    %171 = vmatpush.msra.mxu0 %v81
    %172 = vmatpush.msra.mxu0 %v80
    %173 = vmatpush.msra.mxu0 %v79
    %174 = vmatpush.msra.mxu0 %v78
    %175 = vmatpush.msra.mxu0 %v77
    %176 = vmatpush.msra.mxu0 %v76
    %177 = vmatpush.msra.mxu0 %v75
    %178 = vmatpush.msra.mxu0 %v74
    %179 = vmatpush.msra.mxu0 %v73
    %180 = vmatpush.msra.mxu0 %v72
    %181 = vmatpush.msra.mxu0 %v71
    %182 = vmatpush.msra.mxu0 %v70
    %183 = vmatpush.msra.mxu0 %v69
    %184 = vmatmul.f32.gmra.mxu0 %v103
    %v185 = vpop.f32.mrf.mxu0
    %v186 = vadd.f32 %v166, %v185
    %187 = vdwg.mxu0
    %188 = vst [vmem:[#allocation2] sm:$0x3] %v186
    // Predicated region
    $region14: #{resnet18_forward.31} parent=1 // pred_check
      _
    $region15: #{resnet18_forward.31} parent=1 // pred_check_branch
      %190 = sbr.rel (0) target = $region17
    $region16: #{resnet18_forward.31} parent=1 // pred_region
      %192 = vsyncadd [#allocation3], 0
      %s194 = sshll.u32 [#allocation2], 4
      %s195 = int_to_ptr.vmem [resolvable:$true] %s194
      %s196 = sshll.u32 %s3, 4
      %s197 = int_to_ptr.hbm [resolvable:$true] %s196
      %199 = dma.vmem_to_hbm [thread:$0]  %s195, 32, %s197, [#allocation3]
    $region17: #{resnet18_forward.31} parent=1 // pred_fallthru
      _
    // Predicated region
    $region18: #{resnet18_forward.31} parent=1 // pred_check
      _
    $region19: #{resnet18_forward.31} parent=1 // pred_check_branch
      %201 = sbr.rel (0) target = $region21
    $region20: #{resnet18_forward.31} parent=1 // pred_region
      %203 = dma.done [#allocation3], 32
    $region21: #{resnet18_forward.31} parent=1 // pred_fallthru
      _
    %204 = vsyncpa [#allocation3], 1

// kernel: resnet18_forward.30
$region0: #{resnet18_forward.30}
  #allocation0 [shape = 'u32[]', space=smem, size = 0x4, offset = 0x4, fixed_abs, tag = 'smem constant byte address 0x4 - core index']
  #allocation1 [shape = 'u32[72,128]{1,0:T(1,128)}', space=vmem, size = 0x9000, scoped, tag = 'internal scratch']
  %s0 = inlined_call_operand.vmem [shape: bf16[2,512], index: 0, kind: input, shape index: {}]
  %s1 = inlined_call_operand.vmem [shape: bf16[512,512], index: 1, kind: input, shape index: {}]
  %s2 = inlined_call_operand.vmem [shape: f32[1,512], index: 2, kind: input, shape index: {}]
  %s3 = inlined_call_operand.vmem [shape: bf16[512,512], index: 3, kind: input, shape index: {}]
  %s4 = inlined_call_operand.vmem [shape: f32[1,512], index: 4, kind: input, shape index: {}]
  %s5 = inlined_call_operand.vmem [shape: bf16[2,512], index: 5, kind: output, shape index: {}]
  %s6 = sld [smem:[#allocation0]]
  $region30: #{resnet18_forward.30} parent=0
    _
  %s8 = ssub.s32 1, %s6
  %s9 = scalar_select 0, %s8, %s6
  // Predicated region
  $region2: #{resnet18_forward.30} parent=0 // pred_check
    _
  $region3: #{resnet18_forward.30} parent=0 // pred_check_branch
    %11 = sbr.rel (0) target = $region5
  $region4: #{resnet18_forward.30} parent=0 // pred_region
    _
  $region5: #{resnet18_forward.30} parent=0 // pred_fallthru
    _
  // Predicated region
  $region6: #{resnet18_forward.30} parent=0 // pred_check
    _
  $region7: #{resnet18_forward.30} parent=0 // pred_check_branch
    %13 = sbr.rel (0) target = $region9
  $region8: #{resnet18_forward.30} parent=0 // pred_region
    _
  $region9: #{resnet18_forward.30} parent=0 // pred_fallthru
    _
  // Predicated region
  $region10: #{resnet18_forward.30} parent=0 // pred_check
    _
  $region11: #{resnet18_forward.30} parent=0 // pred_check_branch
    %15 = sbr.rel (0) target = $region13
  $region12: #{resnet18_forward.30} parent=0 // pred_region
    _
  $region13: #{resnet18_forward.30} parent=0 // pred_fallthru
    _
  // Predicated region
  $region14: #{resnet18_forward.30} parent=0 // pred_check
    _
  $region15: #{resnet18_forward.30} parent=0 // pred_check_branch
    %17 = sbr.rel (0) target = $region17
  $region16: #{resnet18_forward.30} parent=0 // pred_region
    _
  $region17: #{resnet18_forward.30} parent=0 // pred_fallthru
    _
  // Predicated region
  $region18: #{resnet18_forward.30} parent=0 // pred_check
    _
  $region19: #{resnet18_forward.30} parent=0 // pred_check_branch
    %19 = sbr.rel (0) target = $region21
  $region20: #{resnet18_forward.30} parent=0 // pred_region
    _
  $region21: #{resnet18_forward.30} parent=0 // pred_fallthru
    _
  %v20 = vld [vmem:[%s0] sm:$0xf]
  %v21 = vld [vmem:[%s1] sm:$0xff]
  %v22 = vld [vmem:[%s1 + $0x8] sm:$0xff]
  %v23 = vld [vmem:[%s1 + $0x10] sm:$0xff]
  %v24 = vld [vmem:[%s1 + $0x18] sm:$0xff]
  %v25 = vld [vmem:[%s1 + $0x20] sm:$0xff]
  %v26 = vld [vmem:[%s1 + $0x28] sm:$0xff]
  %v27 = vld [vmem:[%s1 + $0x30] sm:$0xff]
  %v28 = vld [vmem:[%s1 + $0x38] sm:$0xff]
  %v29 = vld [vmem:[%s1 + $0x40] sm:$0xff]
  %v30 = vld [vmem:[%s1 + $0x48] sm:$0xff]
  %v31 = vld [vmem:[%s1 + $0x50] sm:$0xff]
  %v32 = vld [vmem:[%s1 + $0x58] sm:$0xff]
  %v33 = vld [vmem:[%s1 + $0x60] sm:$0xff]
  %v34 = vld [vmem:[%s1 + $0x68] sm:$0xff]
  %v35 = vld [vmem:[%s1 + $0x70] sm:$0xff]
  %v36 = vld [vmem:[%s1 + $0x78] sm:$0xff]
  %v37 = vld [vmem:[%s1 + $0x80] sm:$0xff]
  %v38 = vld [vmem:[%s1 + $0x88] sm:$0xff]
  %v39 = vld [vmem:[%s1 + $0x90] sm:$0xff]
  %v40 = vld [vmem:[%s1 + $0x98] sm:$0xff]
  %v41 = vld [vmem:[%s1 + $0xa0] sm:$0xff]
  %v42 = vld [vmem:[%s1 + $0xa8] sm:$0xff]
  %v43 = vld [vmem:[%s1 + $0xb0] sm:$0xff]
  %v44 = vld [vmem:[%s1 + $0xb8] sm:$0xff]
  %v45 = vld [vmem:[%s1 + $0xc0] sm:$0xff]
  %v46 = vld [vmem:[%s1 + $0xc8] sm:$0xff]
  %v47 = vld [vmem:[%s1 + $0xd0] sm:$0xff]
  %v48 = vld [vmem:[%s1 + $0xd8] sm:$0xff]
  %v49 = vld [vmem:[%s1 + $0xe0] sm:$0xff]
  %v50 = vld [vmem:[%s1 + $0xe8] sm:$0xff]
  %v51 = vld [vmem:[%s1 + $0xf0] sm:$0xff]
  %v52 = vld [vmem:[%s1 + $0xf8] sm:$0xff]
  %v53 = vld [vmem:[%s1 + $0x100] sm:$0xff]
  %v54 = vld [vmem:[%s1 + $0x108] sm:$0xff]
  %v55 = vld [vmem:[%s1 + $0x110] sm:$0xff]
  %v56 = vld [vmem:[%s1 + $0x118] sm:$0xff]
  %v57 = vld [vmem:[%s1 + $0x120] sm:$0xff]
  %v58 = vld [vmem:[%s1 + $0x128] sm:$0xff]
  %v59 = vld [vmem:[%s1 + $0x130] sm:$0xff]
  %v60 = vld [vmem:[%s1 + $0x138] sm:$0xff]
  %v61 = vld [vmem:[%s1 + $0x140] sm:$0xff]
  %v62 = vld [vmem:[%s1 + $0x148] sm:$0xff]
  %v63 = vld [vmem:[%s1 + $0x150] sm:$0xff]
  %v64 = vld [vmem:[%s1 + $0x158] sm:$0xff]
  %v65 = vld [vmem:[%s1 + $0x160] sm:$0xff]
  %v66 = vld [vmem:[%s1 + $0x168] sm:$0xff]
  %v67 = vld [vmem:[%s1 + $0x170] sm:$0xff]
  %v68 = vld [vmem:[%s1 + $0x178] sm:$0xff]
  %v69 = vld [vmem:[%s1 + $0x180] sm:$0xff]
  %v70 = vld [vmem:[%s1 + $0x188] sm:$0xff]
  %v71 = vld [vmem:[%s1 + $0x190] sm:$0xff]
  %v72 = vld [vmem:[%s1 + $0x198] sm:$0xff]
  %v73 = vld [vmem:[%s1 + $0x1a0] sm:$0xff]
  %v74 = vld [vmem:[%s1 + $0x1a8] sm:$0xff]
  %v75 = vld [vmem:[%s1 + $0x1b0] sm:$0xff]
  %v76 = vld [vmem:[%s1 + $0x1b8] sm:$0xff]
  %v77 = vld [vmem:[%s1 + $0x1c0] sm:$0xff]
  %v78 = vld [vmem:[%s1 + $0x1c8] sm:$0xff]
  %v79 = vld [vmem:[%s1 + $0x1d0] sm:$0xff]
  %v80 = vld [vmem:[%s1 + $0x1d8] sm:$0xff]
  %v81 = vld [vmem:[%s1 + $0x1e0] sm:$0xff]
  %v82 = vld [vmem:[%s1 + $0x1e8] sm:$0xff]
  %v83 = vld [vmem:[%s1 + $0x1f0] sm:$0xff]
  %v84 = vld [vmem:[%s1 + $0x1f8] sm:$0xff]
  %v85 = vld [vmem:[%s1 + $0x200] sm:$0xff]
  %v86 = vld [vmem:[%s1 + $0x208] sm:$0xff]
  %v87 = vld [vmem:[%s1 + $0x210] sm:$0xff]
  %v88 = vld [vmem:[%s1 + $0x218] sm:$0xff]
  %v89 = vld [vmem:[%s1 + $0x220] sm:$0xff]
  %v90 = vld [vmem:[%s1 + $0x228] sm:$0xff]
  %v91 = vld [vmem:[%s1 + $0x230] sm:$0xff]
  %v92 = vld [vmem:[%s1 + $0x238] sm:$0xff]
  %v93 = vld [vmem:[%s1 + $0x240] sm:$0xff]
  %v94 = vld [vmem:[%s1 + $0x248] sm:$0xff]
  %v95 = vld [vmem:[%s1 + $0x250] sm:$0xff]
  %v96 = vld [vmem:[%s1 + $0x258] sm:$0xff]
  %v97 = vld [vmem:[%s1 + $0x260] sm:$0xff]
  %v98 = vld [vmem:[%s1 + $0x268] sm:$0xff]
  %v99 = vld [vmem:[%s1 + $0x270] sm:$0xff]
  %v100 = vld [vmem:[%s1 + $0x278] sm:$0xff]
  %v101 = vld [vmem:[%s1 + $0x280] sm:$0xff]
  %v102 = vld [vmem:[%s1 + $0x288] sm:$0xff]
  %v103 = vld [vmem:[%s1 + $0x290] sm:$0xff]
  %v104 = vld [vmem:[%s1 + $0x298] sm:$0xff]
  %v105 = vld [vmem:[%s1 + $0x2a0] sm:$0xff]
  %v106 = vld [vmem:[%s1 + $0x2a8] sm:$0xff]
  %v107 = vld [vmem:[%s1 + $0x2b0] sm:$0xff]
  %v108 = vld [vmem:[%s1 + $0x2b8] sm:$0xff]
  %v109 = vld [vmem:[%s1 + $0x2c0] sm:$0xff]
  %v110 = vld [vmem:[%s1 + $0x2c8] sm:$0xff]
  %v111 = vld [vmem:[%s1 + $0x2d0] sm:$0xff]
  %v112 = vld [vmem:[%s1 + $0x2d8] sm:$0xff]
  %v113 = vld [vmem:[%s1 + $0x2e0] sm:$0xff]
  %v114 = vld [vmem:[%s1 + $0x2e8] sm:$0xff]
  %v115 = vld [vmem:[%s1 + $0x2f0] sm:$0xff]
  %v116 = vld [vmem:[%s1 + $0x2f8] sm:$0xff]
  %v117 = vld [vmem:[%s1 + $0x300] sm:$0xff]
  %v118 = vld [vmem:[%s1 + $0x308] sm:$0xff]
  %v119 = vld [vmem:[%s1 + $0x310] sm:$0xff]
  %v120 = vld [vmem:[%s1 + $0x318] sm:$0xff]
  %v121 = vld [vmem:[%s1 + $0x320] sm:$0xff]
  %v122 = vld [vmem:[%s1 + $0x328] sm:$0xff]
  %v123 = vld [vmem:[%s1 + $0x330] sm:$0xff]
  %v124 = vld [vmem:[%s1 + $0x338] sm:$0xff]
  %v125 = vld [vmem:[%s1 + $0x340] sm:$0xff]
  %v126 = vld [vmem:[%s1 + $0x348] sm:$0xff]
  %v127 = vld [vmem:[%s1 + $0x350] sm:$0xff]
  %v128 = vld [vmem:[%s1 + $0x358] sm:$0xff]
  %v129 = vld [vmem:[%s1 + $0x360] sm:$0xff]
  %v130 = vld [vmem:[%s1 + $0x368] sm:$0xff]
  %v131 = vld [vmem:[%s1 + $0x370] sm:$0xff]
  %v132 = vld [vmem:[%s1 + $0x378] sm:$0xff]
  %v133 = vld [vmem:[%s1 + $0x380] sm:$0xff]
  %v134 = vld [vmem:[%s1 + $0x388] sm:$0xff]
  %v135 = vld [vmem:[%s1 + $0x390] sm:$0xff]
  %v136 = vld [vmem:[%s1 + $0x398] sm:$0xff]
  %v137 = vld [vmem:[%s1 + $0x3a0] sm:$0xff]
  %v138 = vld [vmem:[%s1 + $0x3a8] sm:$0xff]
  %v139 = vld [vmem:[%s1 + $0x3b0] sm:$0xff]
  %v140 = vld [vmem:[%s1 + $0x3b8] sm:$0xff]
  %v141 = vld [vmem:[%s1 + $0x3c0] sm:$0xff]
  %v142 = vld [vmem:[%s1 + $0x3c8] sm:$0xff]
  %v143 = vld [vmem:[%s1 + $0x3d0] sm:$0xff]
  %v144 = vld [vmem:[%s1 + $0x3d8] sm:$0xff]
  %v145 = vld [vmem:[%s1 + $0x3e0] sm:$0xff]
  %v146 = vld [vmem:[%s1 + $0x3e8] sm:$0xff]
  %v147 = vld [vmem:[%s1 + $0x3f0] sm:$0xff]
  %v148 = vld [vmem:[%s1 + $0x3f8] sm:$0xff]
  %v149 = vld [vmem:[%s2] sm:$0xf]
  %v151 = vperm.slane %v149, 0
  %v152 = vperm.slane %v149, 1
  %v153 = vperm.slane %v149, 2
  %v154 = vperm.slane %v149, 3
  %160 = vst [vmem:[#allocation1] ss:$9 sm:$0xff] %v20
  %v161 = vld [vmem:[#allocation1] sm:$0xff]
  %v162 = vld [vmem:[#allocation1 + $0x9] sm:$0xff]
  %v163 = vld [vmem:[#allocation1 + $0x12] sm:$0xff]
  %v164 = vld [vmem:[#allocation1 + $0x1b] sm:$0xff]
  %v297 = vunpack.c.l.b16 %v21
  %v298 = vunpack.c.h.b16 %v21
  %v299 = vunpack.c.l.b16 %v22
  %v300 = vunpack.c.h.b16 %v22
  %v301 = vunpack.c.l.b16 %v23
  %v302 = vunpack.c.h.b16 %v23
  %v303 = vunpack.c.l.b16 %v24
  %v304 = vunpack.c.h.b16 %v24
  %v305 = vunpack.c.l.b16 %v25
  %v306 = vunpack.c.h.b16 %v25
  %v307 = vunpack.c.l.b16 %v26
  %v308 = vunpack.c.h.b16 %v26
  %v309 = vunpack.c.l.b16 %v27
  %v310 = vunpack.c.h.b16 %v27
  %v311 = vunpack.c.l.b16 %v28
  %v312 = vunpack.c.h.b16 %v28
  %v313 = vunpack.c.l.b16 %v29
  %v314 = vunpack.c.h.b16 %v29
  %v315 = vunpack.c.l.b16 %v30
  %v316 = vunpack.c.h.b16 %v30
  %v317 = vunpack.c.l.b16 %v31
  %v318 = vunpack.c.h.b16 %v31
  %v319 = vunpack.c.l.b16 %v32
  %v320 = vunpack.c.h.b16 %v32
  %v321 = vunpack.c.l.b16 %v33
  %v322 = vunpack.c.h.b16 %v33
  %v323 = vunpack.c.l.b16 %v34
  %v324 = vunpack.c.h.b16 %v34
  %v325 = vunpack.c.l.b16 %v35
  %v326 = vunpack.c.h.b16 %v35
  %v327 = vunpack.c.l.b16 %v36
  %v328 = vunpack.c.h.b16 %v36
  %v329 = vunpack.c.l.b16 %v37
  %v330 = vunpack.c.h.b16 %v37
  %v331 = vunpack.c.l.b16 %v38
  %v332 = vunpack.c.h.b16 %v38
  %v333 = vunpack.c.l.b16 %v39
  %v334 = vunpack.c.h.b16 %v39
  %v335 = vunpack.c.l.b16 %v40
  %v336 = vunpack.c.h.b16 %v40
  %v337 = vunpack.c.l.b16 %v41
  %v338 = vunpack.c.h.b16 %v41
  %v339 = vunpack.c.l.b16 %v42
  %v340 = vunpack.c.h.b16 %v42
  %v341 = vunpack.c.l.b16 %v43
  %v342 = vunpack.c.h.b16 %v43
  %v343 = vunpack.c.l.b16 %v44
  %v344 = vunpack.c.h.b16 %v44
  %v345 = vunpack.c.l.b16 %v45
  %v346 = vunpack.c.h.b16 %v45
  %v347 = vunpack.c.l.b16 %v46
  %v348 = vunpack.c.h.b16 %v46
  %v349 = vunpack.c.l.b16 %v47
  %v350 = vunpack.c.h.b16 %v47
  %v351 = vunpack.c.l.b16 %v48
  %v352 = vunpack.c.h.b16 %v48
  %v353 = vunpack.c.l.b16 %v49
  %v354 = vunpack.c.h.b16 %v49
  %v355 = vunpack.c.l.b16 %v50
  %v356 = vunpack.c.h.b16 %v50
  %v357 = vunpack.c.l.b16 %v51
  %v358 = vunpack.c.h.b16 %v51
  %v359 = vunpack.c.l.b16 %v52
  %v360 = vunpack.c.h.b16 %v52
  %v361 = vunpack.c.l.b16 %v53
  %v362 = vunpack.c.h.b16 %v53
  %v363 = vunpack.c.l.b16 %v54
  %v364 = vunpack.c.h.b16 %v54
  %v365 = vunpack.c.l.b16 %v55
  %v366 = vunpack.c.h.b16 %v55
  %v367 = vunpack.c.l.b16 %v56
  %v368 = vunpack.c.h.b16 %v56
  %v369 = vunpack.c.l.b16 %v57
  %v370 = vunpack.c.h.b16 %v57
  %v371 = vunpack.c.l.b16 %v58
  %v372 = vunpack.c.h.b16 %v58
  %v373 = vunpack.c.l.b16 %v59
  %v374 = vunpack.c.h.b16 %v59
  %v375 = vunpack.c.l.b16 %v60
  %v376 = vunpack.c.h.b16 %v60
  %v377 = vunpack.c.l.b16 %v61
  %v378 = vunpack.c.h.b16 %v61
  %v379 = vunpack.c.l.b16 %v62
  %v380 = vunpack.c.h.b16 %v62
  %v381 = vunpack.c.l.b16 %v63
  %v382 = vunpack.c.h.b16 %v63
  %v383 = vunpack.c.l.b16 %v64
  %v384 = vunpack.c.h.b16 %v64
  %v385 = vunpack.c.l.b16 %v65
  %v386 = vunpack.c.h.b16 %v65
  %v387 = vunpack.c.l.b16 %v66
  %v388 = vunpack.c.h.b16 %v66
  %v389 = vunpack.c.l.b16 %v67
  %v390 = vunpack.c.h.b16 %v67
  %v391 = vunpack.c.l.b16 %v68
  %v392 = vunpack.c.h.b16 %v68
  %v393 = vunpack.c.l.b16 %v69
  %v394 = vunpack.c.h.b16 %v69
  %v395 = vunpack.c.l.b16 %v70
  %v396 = vunpack.c.h.b16 %v70
  %v397 = vunpack.c.l.b16 %v71
  %v398 = vunpack.c.h.b16 %v71
  %v399 = vunpack.c.l.b16 %v72
  %v400 = vunpack.c.h.b16 %v72
  %v401 = vunpack.c.l.b16 %v73
  %v402 = vunpack.c.h.b16 %v73
  %v403 = vunpack.c.l.b16 %v74
  %v404 = vunpack.c.h.b16 %v74
  %v405 = vunpack.c.l.b16 %v75
  %v406 = vunpack.c.h.b16 %v75
  %v407 = vunpack.c.l.b16 %v76
  %v408 = vunpack.c.h.b16 %v76
  %v409 = vunpack.c.l.b16 %v77
  %v410 = vunpack.c.h.b16 %v77
  %v411 = vunpack.c.l.b16 %v78
  %v412 = vunpack.c.h.b16 %v78
  %v413 = vunpack.c.l.b16 %v79
  %v414 = vunpack.c.h.b16 %v79
  %v415 = vunpack.c.l.b16 %v80
  %v416 = vunpack.c.h.b16 %v80
  %v417 = vunpack.c.l.b16 %v81
  %v418 = vunpack.c.h.b16 %v81
  %v419 = vunpack.c.l.b16 %v82
  %v420 = vunpack.c.h.b16 %v82
  %v421 = vunpack.c.l.b16 %v83
  %v422 = vunpack.c.h.b16 %v83
  %v423 = vunpack.c.l.b16 %v84
  %v424 = vunpack.c.h.b16 %v84
  %v425 = vunpack.c.l.b16 %v85
  %v426 = vunpack.c.h.b16 %v85
  %v427 = vunpack.c.l.b16 %v86
  %v428 = vunpack.c.h.b16 %v86
  %v429 = vunpack.c.l.b16 %v87
  %v430 = vunpack.c.h.b16 %v87
  %v431 = vunpack.c.l.b16 %v88
  %v432 = vunpack.c.h.b16 %v88
  %v433 = vunpack.c.l.b16 %v89
  %v434 = vunpack.c.h.b16 %v89
  %v435 = vunpack.c.l.b16 %v90
  %v436 = vunpack.c.h.b16 %v90
  %v437 = vunpack.c.l.b16 %v91
  %v438 = vunpack.c.h.b16 %v91
  %v439 = vunpack.c.l.b16 %v92
  %v440 = vunpack.c.h.b16 %v92
  %v441 = vunpack.c.l.b16 %v93
  %v442 = vunpack.c.h.b16 %v93
  %v443 = vunpack.c.l.b16 %v94
  %v444 = vunpack.c.h.b16 %v94
  %v445 = vunpack.c.l.b16 %v95
  %v446 = vunpack.c.h.b16 %v95
  %v447 = vunpack.c.l.b16 %v96
  %v448 = vunpack.c.h.b16 %v96
  %v449 = vunpack.c.l.b16 %v97
  %v450 = vunpack.c.h.b16 %v97
  %v451 = vunpack.c.l.b16 %v98
  %v452 = vunpack.c.h.b16 %v98
  %v453 = vunpack.c.l.b16 %v99
  %v454 = vunpack.c.h.b16 %v99
  %v455 = vunpack.c.l.b16 %v100
  %v456 = vunpack.c.h.b16 %v100
  %v457 = vunpack.c.l.b16 %v101
  %v458 = vunpack.c.h.b16 %v101
  %v459 = vunpack.c.l.b16 %v102
  %v460 = vunpack.c.h.b16 %v102
  %v461 = vunpack.c.l.b16 %v103
  %v462 = vunpack.c.h.b16 %v103
  %v463 = vunpack.c.l.b16 %v104
  %v464 = vunpack.c.h.b16 %v104
  %v465 = vunpack.c.l.b16 %v105
  %v466 = vunpack.c.h.b16 %v105
  %v467 = vunpack.c.l.b16 %v106
  %v468 = vunpack.c.h.b16 %v106
  %v469 = vunpack.c.l.b16 %v107
  %v470 = vunpack.c.h.b16 %v107
  %v471 = vunpack.c.l.b16 %v108
  %v472 = vunpack.c.h.b16 %v108
  %v473 = vunpack.c.l.b16 %v109
  %v474 = vunpack.c.h.b16 %v109
  %v475 = vunpack.c.l.b16 %v110
  %v476 = vunpack.c.h.b16 %v110
  %v477 = vunpack.c.l.b16 %v111
  %v478 = vunpack.c.h.b16 %v111
  %v479 = vunpack.c.l.b16 %v112
  %v480 = vunpack.c.h.b16 %v112
  %v481 = vunpack.c.l.b16 %v113
  %v482 = vunpack.c.h.b16 %v113
  %v483 = vunpack.c.l.b16 %v114
  %v484 = vunpack.c.h.b16 %v114
  %v485 = vunpack.c.l.b16 %v115
  %v486 = vunpack.c.h.b16 %v115
  %v487 = vunpack.c.l.b16 %v116
  %v488 = vunpack.c.h.b16 %v116
  %v489 = vunpack.c.l.b16 %v117
  %v490 = vunpack.c.h.b16 %v117
  %v491 = vunpack.c.l.b16 %v118
  %v492 = vunpack.c.h.b16 %v118
  %v493 = vunpack.c.l.b16 %v119
  %v494 = vunpack.c.h.b16 %v119
  %v495 = vunpack.c.l.b16 %v120
  %v496 = vunpack.c.h.b16 %v120
  %v497 = vunpack.c.l.b16 %v121
  %v498 = vunpack.c.h.b16 %v121
  %v499 = vunpack.c.l.b16 %v122
  %v500 = vunpack.c.h.b16 %v122
  %v501 = vunpack.c.l.b16 %v123
  %v502 = vunpack.c.h.b16 %v123
  %v503 = vunpack.c.l.b16 %v124
  %v504 = vunpack.c.h.b16 %v124
  %v505 = vunpack.c.l.b16 %v125
  %v506 = vunpack.c.h.b16 %v125
  %v507 = vunpack.c.l.b16 %v126
  %v508 = vunpack.c.h.b16 %v126
  %v509 = vunpack.c.l.b16 %v127
  %v510 = vunpack.c.h.b16 %v127
  %v511 = vunpack.c.l.b16 %v128
  %v512 = vunpack.c.h.b16 %v128
  %v513 = vunpack.c.l.b16 %v129
  %v514 = vunpack.c.h.b16 %v129
  %v515 = vunpack.c.l.b16 %v130
  %v516 = vunpack.c.h.b16 %v130
  %v517 = vunpack.c.l.b16 %v131
  %v518 = vunpack.c.h.b16 %v131
  %v519 = vunpack.c.l.b16 %v132
  %v520 = vunpack.c.h.b16 %v132
  %v521 = vunpack.c.l.b16 %v133
  %v522 = vunpack.c.h.b16 %v133
  %v523 = vunpack.c.l.b16 %v134
  %v524 = vunpack.c.h.b16 %v134
  %v525 = vunpack.c.l.b16 %v135
  %v526 = vunpack.c.h.b16 %v135
  %v527 = vunpack.c.l.b16 %v136
  %v528 = vunpack.c.h.b16 %v136
  %v529 = vunpack.c.l.b16 %v137
  %v530 = vunpack.c.h.b16 %v137
  %v531 = vunpack.c.l.b16 %v138
  %v532 = vunpack.c.h.b16 %v138
  %v533 = vunpack.c.l.b16 %v139
  %v534 = vunpack.c.h.b16 %v139
  %v535 = vunpack.c.l.b16 %v140
  %v536 = vunpack.c.h.b16 %v140
  %v537 = vunpack.c.l.b16 %v141
  %v538 = vunpack.c.h.b16 %v141
  %v539 = vunpack.c.l.b16 %v142
  %v540 = vunpack.c.h.b16 %v142
  %v541 = vunpack.c.l.b16 %v143
  %v542 = vunpack.c.h.b16 %v143
  %v543 = vunpack.c.l.b16 %v144
  %v544 = vunpack.c.h.b16 %v144
  %v545 = vunpack.c.l.b16 %v145
  %v546 = vunpack.c.h.b16 %v145
  %v547 = vunpack.c.l.b16 %v146
  %v548 = vunpack.c.h.b16 %v146
  %v549 = vunpack.c.l.b16 %v147
  %v550 = vunpack.c.h.b16 %v147
  %v551 = vunpack.c.l.b16 %v148
  %v552 = vunpack.c.h.b16 %v148
  %v553 = vpack.c.b16 %v301, %v297
  %v554 = vpack.c.b16 %v302, %v298
  %v555 = vpack.c.b16 %v303, %v299
  %v556 = vpack.c.b16 %v304, %v300
  %v557 = vpack.c.b16 %v309, %v305
  %v558 = vpack.c.b16 %v310, %v306
  %v559 = vpack.c.b16 %v311, %v307
  %v560 = vpack.c.b16 %v312, %v308
  %v561 = vpack.c.b16 %v317, %v313
  %v562 = vpack.c.b16 %v318, %v314
  %v563 = vpack.c.b16 %v319, %v315
  %v564 = vpack.c.b16 %v320, %v316
  %v565 = vpack.c.b16 %v325, %v321
  %v566 = vpack.c.b16 %v326, %v322
  %v567 = vpack.c.b16 %v327, %v323
  %v568 = vpack.c.b16 %v328, %v324
  %v569 = vpack.c.b16 %v333, %v329
  %v570 = vpack.c.b16 %v334, %v330
  %v571 = vpack.c.b16 %v335, %v331
  %v572 = vpack.c.b16 %v336, %v332
  %v573 = vpack.c.b16 %v341, %v337
  %v574 = vpack.c.b16 %v342, %v338
  %v575 = vpack.c.b16 %v343, %v339
  %v576 = vpack.c.b16 %v344, %v340
  %v577 = vpack.c.b16 %v349, %v345
  %v578 = vpack.c.b16 %v350, %v346
  %v579 = vpack.c.b16 %v351, %v347
  %v580 = vpack.c.b16 %v352, %v348
  %v581 = vpack.c.b16 %v357, %v353
  %v582 = vpack.c.b16 %v358, %v354
  %v583 = vpack.c.b16 %v359, %v355
  %v584 = vpack.c.b16 %v360, %v356
  %v585 = vpack.c.b16 %v365, %v361
  %v586 = vpack.c.b16 %v366, %v362
  %v587 = vpack.c.b16 %v367, %v363
  %v588 = vpack.c.b16 %v368, %v364
  %v589 = vpack.c.b16 %v373, %v369
  %v590 = vpack.c.b16 %v374, %v370
  %v591 = vpack.c.b16 %v375, %v371
  %v592 = vpack.c.b16 %v376, %v372
  %v593 = vpack.c.b16 %v381, %v377
  %v594 = vpack.c.b16 %v382, %v378
  %v595 = vpack.c.b16 %v383, %v379
  %v596 = vpack.c.b16 %v384, %v380
  %v597 = vpack.c.b16 %v389, %v385
  %v598 = vpack.c.b16 %v390, %v386
  %v599 = vpack.c.b16 %v391, %v387
  %v600 = vpack.c.b16 %v392, %v388
  %v601 = vpack.c.b16 %v397, %v393
  %v602 = vpack.c.b16 %v398, %v394
  %v603 = vpack.c.b16 %v399, %v395
  %v604 = vpack.c.b16 %v400, %v396
  %v605 = vpack.c.b16 %v405, %v401
  %v606 = vpack.c.b16 %v406, %v402
  %v607 = vpack.c.b16 %v407, %v403
  %v608 = vpack.c.b16 %v408, %v404
  %v609 = vpack.c.b16 %v413, %v409
  %v610 = vpack.c.b16 %v414, %v410
  %v611 = vpack.c.b16 %v415, %v411
  %v612 = vpack.c.b16 %v416, %v412
  %v613 = vpack.c.b16 %v421, %v417
  %v614 = vpack.c.b16 %v422, %v418
  %v615 = vpack.c.b16 %v423, %v419
  %v616 = vpack.c.b16 %v424, %v420
  %v617 = vpack.c.b16 %v429, %v425
  %v618 = vpack.c.b16 %v430, %v426
  %v619 = vpack.c.b16 %v431, %v427
  %v620 = vpack.c.b16 %v432, %v428
  %v621 = vpack.c.b16 %v437, %v433
  %v622 = vpack.c.b16 %v438, %v434
  %v623 = vpack.c.b16 %v439, %v435
  %v624 = vpack.c.b16 %v440, %v436
  %v625 = vpack.c.b16 %v445, %v441
  %v626 = vpack.c.b16 %v446, %v442
  %v627 = vpack.c.b16 %v447, %v443
  %v628 = vpack.c.b16 %v448, %v444
  %v629 = vpack.c.b16 %v453, %v449
  %v630 = vpack.c.b16 %v454, %v450
  %v631 = vpack.c.b16 %v455, %v451
  %v632 = vpack.c.b16 %v456, %v452
  %v633 = vpack.c.b16 %v461, %v457
  %v634 = vpack.c.b16 %v462, %v458
  %v635 = vpack.c.b16 %v463, %v459
  %v636 = vpack.c.b16 %v464, %v460
  %v637 = vpack.c.b16 %v469, %v465
  %v638 = vpack.c.b16 %v470, %v466
  %v639 = vpack.c.b16 %v471, %v467
  %v640 = vpack.c.b16 %v472, %v468
  %v641 = vpack.c.b16 %v477, %v473
  %v642 = vpack.c.b16 %v478, %v474
  %v643 = vpack.c.b16 %v479, %v475
  %v644 = vpack.c.b16 %v480, %v476
  %v645 = vpack.c.b16 %v485, %v481
  %v646 = vpack.c.b16 %v486, %v482
  %v647 = vpack.c.b16 %v487, %v483
  %v648 = vpack.c.b16 %v488, %v484
  %v649 = vpack.c.b16 %v493, %v489
  %v650 = vpack.c.b16 %v494, %v490
  %v651 = vpack.c.b16 %v495, %v491
  %v652 = vpack.c.b16 %v496, %v492
  %v653 = vpack.c.b16 %v501, %v497
  %v654 = vpack.c.b16 %v502, %v498
  %v655 = vpack.c.b16 %v503, %v499
  %v656 = vpack.c.b16 %v504, %v500
  %v657 = vpack.c.b16 %v509, %v505
  %v658 = vpack.c.b16 %v510, %v506
  %v659 = vpack.c.b16 %v511, %v507
  %v660 = vpack.c.b16 %v512, %v508
  %v661 = vpack.c.b16 %v517, %v513
  %v662 = vpack.c.b16 %v518, %v514
  %v663 = vpack.c.b16 %v519, %v515
  %v664 = vpack.c.b16 %v520, %v516
  %v665 = vpack.c.b16 %v525, %v521
  %v666 = vpack.c.b16 %v526, %v522
  %v667 = vpack.c.b16 %v527, %v523
  %v668 = vpack.c.b16 %v528, %v524
  %v669 = vpack.c.b16 %v533, %v529
  %v670 = vpack.c.b16 %v534, %v530
  %v671 = vpack.c.b16 %v535, %v531
  %v672 = vpack.c.b16 %v536, %v532
  %v673 = vpack.c.b16 %v541, %v537
  %v674 = vpack.c.b16 %v542, %v538
  %v675 = vpack.c.b16 %v543, %v539
  %v676 = vpack.c.b16 %v544, %v540
  %v677 = vpack.c.b16 %v549, %v545
  %v678 = vpack.c.b16 %v550, %v546
  %v679 = vpack.c.b16 %v551, %v547
  %v680 = vpack.c.b16 %v552, %v548
  %809 = vmatpush.bf16.msra.mxu0 %v581
  %810 = vmatpush.bf16.msra.mxu0 %v577
  %811 = vmatpush.bf16.msra.mxu0 %v573
  %812 = vmatpush.bf16.msra.mxu0 %v569
  %813 = vmatpush.bf16.msra.mxu0 %v565
  %814 = vmatpush.bf16.msra.mxu0 %v561
  %815 = vmatpush.bf16.msra.mxu0 %v557
  %816 = vmatpush.bf16.msra.mxu0 %v553
  %817 = vmatmul.bf16.gmra.mxu0 %v161
  %v818 = vpop.f32.mrf.mxu0
  %v819 = vadd.f32 %v151, %v818
  %v820 = vpop.f32.mrf.mxu0
  %821 = vdwg.mxu0
  %822 = vmatpush.bf16.msra.mxu0 %v613
  %823 = vmatpush.bf16.msra.mxu0 %v609
  %824 = vmatpush.bf16.msra.mxu0 %v605
  %825 = vmatpush.bf16.msra.mxu0 %v601
  %826 = vmatpush.bf16.msra.mxu0 %v597
  %827 = vmatpush.bf16.msra.mxu0 %v593
  %828 = vmatpush.bf16.msra.mxu0 %v589
  %829 = vmatpush.bf16.msra.mxu0 %v585
  %830 = vmatmul.bf16.gmra.mxu0 %v162
  %v831 = vpop.f32.mrf.mxu0
  %v832 = vadd.f32 %v819, %v831
  %v833 = vpop.f32.mrf.mxu0
  %834 = vdwg.mxu0
  %835 = vmatpush.bf16.msra.mxu0 %v645
  %836 = vmatpush.bf16.msra.mxu0 %v641
  %837 = vmatpush.bf16.msra.mxu0 %v637
  %838 = vmatpush.bf16.msra.mxu0 %v633
  %839 = vmatpush.bf16.msra.mxu0 %v629
  %840 = vmatpush.bf16.msra.mxu0 %v625
  %841 = vmatpush.bf16.msra.mxu0 %v621
  %842 = vmatpush.bf16.msra.mxu0 %v617
  %843 = vmatmul.bf16.gmra.mxu0 %v163
  %v844 = vpop.f32.mrf.mxu0
  %v845 = vadd.f32 %v832, %v844
  %v846 = vpop.f32.mrf.mxu0
  %847 = vdwg.mxu0
  %848 = vmatpush.bf16.msra.mxu0 %v677
  %849 = vmatpush.bf16.msra.mxu0 %v673
  %850 = vmatpush.bf16.msra.mxu0 %v669
  %851 = vmatpush.bf16.msra.mxu0 %v665
  %852 = vmatpush.bf16.msra.mxu0 %v661
  %853 = vmatpush.bf16.msra.mxu0 %v657
  %854 = vmatpush.bf16.msra.mxu0 %v653
  %855 = vmatpush.bf16.msra.mxu0 %v649
  %856 = vmatmul.bf16.gmra.mxu0 %v164
  %v857 = vpop.f32.mrf.mxu0
  %v858 = vadd.f32 %v845, %v857
  %v859 = vpop.f32.mrf.mxu0
  %860 = vdwg.mxu0
  %861 = vmatpush.bf16.msra.mxu0 %v582
  %862 = vmatpush.bf16.msra.mxu0 %v578
  %863 = vmatpush.bf16.msra.mxu0 %v574
  %864 = vmatpush.bf16.msra.mxu0 %v570
  %865 = vmatpush.bf16.msra.mxu0 %v566
  %866 = vmatpush.bf16.msra.mxu0 %v562
  %867 = vmatpush.bf16.msra.mxu0 %v558
  %868 = vmatpush.bf16.msra.mxu0 %v554
  %869 = vmatmul.bf16.gmra.mxu0 %v161
  %v870 = vpop.f32.mrf.mxu0
  %v871 = vadd.f32 %v152, %v870
  %v872 = vpop.f32.mrf.mxu0
  %873 = vdwg.mxu0
  %874 = vmatpush.bf16.msra.mxu0 %v614
  %875 = vmatpush.bf16.msra.mxu0 %v610
  %876 = vmatpush.bf16.msra.mxu0 %v606
  %877 = vmatpush.bf16.msra.mxu0 %v602
  %878 = vmatpush.bf16.msra.mxu0 %v598
  %879 = vmatpush.bf16.msra.mxu0 %v594
  %880 = vmatpush.bf16.msra.mxu0 %v590
  %881 = vmatpush.bf16.msra.mxu0 %v586
  %882 = vmatmul.bf16.gmra.mxu0 %v162
  %v883 = vpop.f32.mrf.mxu0
  %v884 = vadd.f32 %v871, %v883
  %v885 = vpop.f32.mrf.mxu0
  %886 = vdwg.mxu0
  %887 = vmatpush.bf16.msra.mxu0 %v646
  %888 = vmatpush.bf16.msra.mxu0 %v642
  %889 = vmatpush.bf16.msra.mxu0 %v638
  %890 = vmatpush.bf16.msra.mxu0 %v634
  %891 = vmatpush.bf16.msra.mxu0 %v630
  %892 = vmatpush.bf16.msra.mxu0 %v626
  %893 = vmatpush.bf16.msra.mxu0 %v622
  %894 = vmatpush.bf16.msra.mxu0 %v618
  %895 = vmatmul.bf16.gmra.mxu0 %v163
  %v896 = vpop.f32.mrf.mxu0
  %v897 = vadd.f32 %v884, %v896
  %v898 = vpop.f32.mrf.mxu0
  %899 = vdwg.mxu0
  %900 = vmatpush.bf16.msra.mxu0 %v678
  %901 = vmatpush.bf16.msra.mxu0 %v674
  %902 = vmatpush.bf16.msra.mxu0 %v670
  %903 = vmatpush.bf16.msra.mxu0 %v666
  %904 = vmatpush.bf16.msra.mxu0 %v662
  %905 = vmatpush.bf16.msra.mxu0 %v658
  %906 = vmatpush.bf16.msra.mxu0 %v654
  %907 = vmatpush.bf16.msra.mxu0 %v650
  %908 = vmatmul.bf16.gmra.mxu0 %v164
  %v909 = vpop.f32.mrf.mxu0
  %v910 = vadd.f32 %v897, %v909
  %v911 = vpop.f32.mrf.mxu0
  %912 = vdwg.mxu0
  %913 = vmatpush.bf16.msra.mxu0 %v583
  %914 = vmatpush.bf16.msra.mxu0 %v579
  %915 = vmatpush.bf16.msra.mxu0 %v575
  %916 = vmatpush.bf16.msra.mxu0 %v571
  %917 = vmatpush.bf16.msra.mxu0 %v567
  %918 = vmatpush.bf16.msra.mxu0 %v563
  %919 = vmatpush.bf16.msra.mxu0 %v559
  %920 = vmatpush.bf16.msra.mxu0 %v555
  %921 = vmatmul.bf16.gmra.mxu0 %v161
  %v922 = vpop.f32.mrf.mxu0
  %v923 = vadd.f32 %v153, %v922
  %v924 = vpop.f32.mrf.mxu0
  %925 = vdwg.mxu0
  %926 = vmatpush.bf16.msra.mxu0 %v615
  %927 = vmatpush.bf16.msra.mxu0 %v611
  %928 = vmatpush.bf16.msra.mxu0 %v607
  %929 = vmatpush.bf16.msra.mxu0 %v603
  %930 = vmatpush.bf16.msra.mxu0 %v599
  %931 = vmatpush.bf16.msra.mxu0 %v595
  %932 = vmatpush.bf16.msra.mxu0 %v591
  %933 = vmatpush.bf16.msra.mxu0 %v587
  %934 = vmatmul.bf16.gmra.mxu0 %v162
  %v935 = vpop.f32.mrf.mxu0
  %v936 = vadd.f32 %v923, %v935
  %v937 = vpop.f32.mrf.mxu0
  %938 = vdwg.mxu0
  %939 = vmatpush.bf16.msra.mxu0 %v647
  %940 = vmatpush.bf16.msra.mxu0 %v643
  %941 = vmatpush.bf16.msra.mxu0 %v639
  %942 = vmatpush.bf16.msra.mxu0 %v635
  %943 = vmatpush.bf16.msra.mxu0 %v631
  %944 = vmatpush.bf16.msra.mxu0 %v627
  %945 = vmatpush.bf16.msra.mxu0 %v623
  %946 = vmatpush.bf16.msra.mxu0 %v619
  %947 = vmatmul.bf16.gmra.mxu0 %v163
  %v948 = vpop.f32.mrf.mxu0
  %v949 = vadd.f32 %v936, %v948
  %v950 = vpop.f32.mrf.mxu0
  %951 = vdwg.mxu0
  %952 = vmatpush.bf16.msra.mxu0 %v679
  %953 = vmatpush.bf16.msra.mxu0 %v675
  %954 = vmatpush.bf16.msra.mxu0 %v671
  %955 = vmatpush.bf16.msra.mxu0 %v667
  %956 = vmatpush.bf16.msra.mxu0 %v663
  %957 = vmatpush.bf16.msra.mxu0 %v659
  %958 = vmatpush.bf16.msra.mxu0 %v655
  %959 = vmatpush.bf16.msra.mxu0 %v651
  %960 = vmatmul.bf16.gmra.mxu0 %v164
  %v961 = vpop.f32.mrf.mxu0
  %v962 = vadd.f32 %v949, %v961
  %v963 = vpop.f32.mrf.mxu0
  %964 = vdwg.mxu0
  %965 = vmatpush.bf16.msra.mxu0 %v584
  %966 = vmatpush.bf16.msra.mxu0 %v580
  %967 = vmatpush.bf16.msra.mxu0 %v576
  %968 = vmatpush.bf16.msra.mxu0 %v572
  %969 = vmatpush.bf16.msra.mxu0 %v568
  %970 = vmatpush.bf16.msra.mxu0 %v564
  %971 = vmatpush.bf16.msra.mxu0 %v560
  %972 = vmatpush.bf16.msra.mxu0 %v556
  %973 = vmatmul.bf16.gmra.mxu0 %v161
  %v974 = vpop.f32.mrf.mxu0
  %v975 = vadd.f32 %v154, %v974
  %v976 = vpop.f32.mrf.mxu0
  %977 = vdwg.mxu0
  %978 = vmatpush.bf16.msra.mxu0 %v616
  %979 = vmatpush.bf16.msra.mxu0 %v612
  %980 = vmatpush.bf16.msra.mxu0 %v608
  %981 = vmatpush.bf16.msra.mxu0 %v604
  %982 = vmatpush.bf16.msra.mxu0 %v600
  %983 = vmatpush.bf16.msra.mxu0 %v596
  %984 = vmatpush.bf16.msra.mxu0 %v592
  %985 = vmatpush.bf16.msra.mxu0 %v588
  %986 = vmatmul.bf16.gmra.mxu0 %v162
  %v987 = vpop.f32.mrf.mxu0
  %v988 = vadd.f32 %v975, %v987
  %v989 = vpop.f32.mrf.mxu0
  %990 = vdwg.mxu0
  %991 = vmatpush.bf16.msra.mxu0 %v648
  %992 = vmatpush.bf16.msra.mxu0 %v644
  %993 = vmatpush.bf16.msra.mxu0 %v640
  %994 = vmatpush.bf16.msra.mxu0 %v636
  %995 = vmatpush.bf16.msra.mxu0 %v632
  %996 = vmatpush.bf16.msra.mxu0 %v628
  %997 = vmatpush.bf16.msra.mxu0 %v624
  %998 = vmatpush.bf16.msra.mxu0 %v620
  %999 = vmatmul.bf16.gmra.mxu0 %v163
  %v1000 = vpop.f32.mrf.mxu0
  %v1001 = vadd.f32 %v988, %v1000
  %v1002 = vpop.f32.mrf.mxu0
  %1003 = vdwg.mxu0
  %1004 = vmatpush.bf16.msra.mxu0 %v680
  %1005 = vmatpush.bf16.msra.mxu0 %v676
  %1006 = vmatpush.bf16.msra.mxu0 %v672
  %1007 = vmatpush.bf16.msra.mxu0 %v668
  %1008 = vmatpush.bf16.msra.mxu0 %v664
  %1009 = vmatpush.bf16.msra.mxu0 %v660
  %1010 = vmatpush.bf16.msra.mxu0 %v656
  %1011 = vmatpush.bf16.msra.mxu0 %v652
  %1012 = vmatmul.bf16.gmra.mxu0 %v164
  %v1013 = vpop.f32.mrf.mxu0
  %v1014 = vadd.f32 %v1001, %v1013
  %v1015 = vpop.f32.mrf.mxu0
  %1016 = vdwg.mxu0
  %v1017 = vmax.f32 %v858, 0.0
  %v1018 = vmax.f32 %v910, 0.0
  %v1019 = vmax.f32 %v962, 0.0
  %v1020 = vmax.f32 %v1014, 0.0
  %v1021 = vpack.c.bf16 %v1017, %v1017
  %v1022 = vpack.c.bf16 %v1018, %v1018
  %v1023 = vpack.c.bf16 %v1019, %v1019
  %v1024 = vpack.c.bf16 %v1020, %v1020
  %v1025 = vld [vmem:[%s3] sm:$0xff]
  %v1026 = vld [vmem:[%s3 + $0x8] sm:$0xff]
  %v1027 = vld [vmem:[%s3 + $0x10] sm:$0xff]
  %v1028 = vld [vmem:[%s3 + $0x18] sm:$0xff]
  %v1029 = vld [vmem:[%s3 + $0x20] sm:$0xff]
  %v1030 = vld [vmem:[%s3 + $0x28] sm:$0xff]
  %v1031 = vld [vmem:[%s3 + $0x30] sm:$0xff]
  %v1032 = vld [vmem:[%s3 + $0x38] sm:$0xff]
  %v1033 = vld [vmem:[%s3 + $0x40] sm:$0xff]
  %v1034 = vld [vmem:[%s3 + $0x48] sm:$0xff]
  %v1035 = vld [vmem:[%s3 + $0x50] sm:$0xff]
  %v1036 = vld [vmem:[%s3 + $0x58] sm:$0xff]
  %v1037 = vld [vmem:[%s3 + $0x60] sm:$0xff]
  %v1038 = vld [vmem:[%s3 + $0x68] sm:$0xff]
  %v1039 = vld [vmem:[%s3 + $0x70] sm:$0xff]
  %v1040 = vld [vmem:[%s3 + $0x78] sm:$0xff]
  %v1041 = vld [vmem:[%s3 + $0x80] sm:$0xff]
  %v1042 = vld [vmem:[%s3 + $0x88] sm:$0xff]
  %v1043 = vld [vmem:[%s3 + $0x90] sm:$0xff]
  %v1044 = vld [vmem:[%s3 + $0x98] sm:$0xff]
  %v1045 = vld [vmem:[%s3 + $0xa0] sm:$0xff]
  %v1046 = vld [vmem:[%s3 + $0xa8] sm:$0xff]
  %v1047 = vld [vmem:[%s3 + $0xb0] sm:$0xff]
  %v1048 = vld [vmem:[%s3 + $0xb8] sm:$0xff]
  %v1049 = vld [vmem:[%s3 + $0xc0] sm:$0xff]
  %v1050 = vld [vmem:[%s3 + $0xc8] sm:$0xff]
  %v1051 = vld [vmem:[%s3 + $0xd0] sm:$0xff]
  %v1052 = vld [vmem:[%s3 + $0xd8] sm:$0xff]
  %v1053 = vld [vmem:[%s3 + $0xe0] sm:$0xff]
  %v1054 = vld [vmem:[%s3 + $0xe8] sm:$0xff]
  %v1055 = vld [vmem:[%s3 + $0xf0] sm:$0xff]
  %v1056 = vld [vmem:[%s3 + $0xf8] sm:$0xff]
  %v1057 = vld [vmem:[%s3 + $0x100] sm:$0xff]
  %v1058 = vld [vmem:[%s3 + $0x108] sm:$0xff]
  %v1059 = vld [vmem:[%s3 + $0x110] sm:$0xff]
  %v1060 = vld [vmem:[%s3 + $0x118] sm:$0xff]
  %v1061 = vld [vmem:[%s3 + $0x120] sm:$0xff]
  %v1062 = vld [vmem:[%s3 + $0x128] sm:$0xff]
  %v1063 = vld [vmem:[%s3 + $0x130] sm:$0xff]
  %v1064 = vld [vmem:[%s3 + $0x138] sm:$0xff]
  %v1065 = vld [vmem:[%s3 + $0x140] sm:$0xff]
  %v1066 = vld [vmem:[%s3 + $0x148] sm:$0xff]
  %v1067 = vld [vmem:[%s3 + $0x150] sm:$0xff]
  %v1068 = vld [vmem:[%s3 + $0x158] sm:$0xff]
  %v1069 = vld [vmem:[%s3 + $0x160] sm:$0xff]
  %v1070 = vld [vmem:[%s3 + $0x168] sm:$0xff]
  %v1071 = vld [vmem:[%s3 + $0x170] sm:$0xff]
  %v1072 = vld [vmem:[%s3 + $0x178] sm:$0xff]
  %v1073 = vld [vmem:[%s3 + $0x180] sm:$0xff]
  %v1074 = vld [vmem:[%s3 + $0x188] sm:$0xff]
  %v1075 = vld [vmem:[%s3 + $0x190] sm:$0xff]
  %v1076 = vld [vmem:[%s3 + $0x198] sm:$0xff]
  %v1077 = vld [vmem:[%s3 + $0x1a0] sm:$0xff]
  %v1078 = vld [vmem:[%s3 + $0x1a8] sm:$0xff]
  %v1079 = vld [vmem:[%s3 + $0x1b0] sm:$0xff]
  %v1080 = vld [vmem:[%s3 + $0x1b8] sm:$0xff]
  %v1081 = vld [vmem:[%s3 + $0x1c0] sm:$0xff]
  %v1082 = vld [vmem:[%s3 + $0x1c8] sm:$0xff]
  %v1083 = vld [vmem:[%s3 + $0x1d0] sm:$0xff]
  %v1084 = vld [vmem:[%s3 + $0x1d8] sm:$0xff]
  %v1085 = vld [vmem:[%s3 + $0x1e0] sm:$0xff]
  %v1086 = vld [vmem:[%s3 + $0x1e8] sm:$0xff]
  %v1087 = vld [vmem:[%s3 + $0x1f0] sm:$0xff]
  %v1088 = vld [vmem:[%s3 + $0x1f8] sm:$0xff]
  %v1089 = vld [vmem:[%s3 + $0x200] sm:$0xff]
  %v1090 = vld [vmem:[%s3 + $0x208] sm:$0xff]
  %v1091 = vld [vmem:[%s3 + $0x210] sm:$0xff]
  %v1092 = vld [vmem:[%s3 + $0x218] sm:$0xff]
  %v1093 = vld [vmem:[%s3 + $0x220] sm:$0xff]
  %v1094 = vld [vmem:[%s3 + $0x228] sm:$0xff]
  %v1095 = vld [vmem:[%s3 + $0x230] sm:$0xff]
  %v1096 = vld [vmem:[%s3 + $0x238] sm:$0xff]
  %v1097 = vld [vmem:[%s3 + $0x240] sm:$0xff]
  %v1098 = vld [vmem:[%s3 + $0x248] sm:$0xff]
  %v1099 = vld [vmem:[%s3 + $0x250] sm:$0xff]
  %v1100 = vld [vmem:[%s3 + $0x258] sm:$0xff]
  %v1101 = vld [vmem:[%s3 + $0x260] sm:$0xff]
  %v1102 = vld [vmem:[%s3 + $0x268] sm:$0xff]
  %v1103 = vld [vmem:[%s3 + $0x270] sm:$0xff]
  %v1104 = vld [vmem:[%s3 + $0x278] sm:$0xff]
  %v1105 = vld [vmem:[%s3 + $0x280] sm:$0xff]
  %v1106 = vld [vmem:[%s3 + $0x288] sm:$0xff]
  %v1107 = vld [vmem:[%s3 + $0x290] sm:$0xff]
  %v1108 = vld [vmem:[%s3 + $0x298] sm:$0xff]
  %v1109 = vld [vmem:[%s3 + $0x2a0] sm:$0xff]
  %v1110 = vld [vmem:[%s3 + $0x2a8] sm:$0xff]
  %v1111 = vld [vmem:[%s3 + $0x2b0] sm:$0xff]
  %v1112 = vld [vmem:[%s3 + $0x2b8] sm:$0xff]
  %v1113 = vld [vmem:[%s3 + $0x2c0] sm:$0xff]
  %v1114 = vld [vmem:[%s3 + $0x2c8] sm:$0xff]
  %v1115 = vld [vmem:[%s3 + $0x2d0] sm:$0xff]
  %v1116 = vld [vmem:[%s3 + $0x2d8] sm:$0xff]
  %v1117 = vld [vmem:[%s3 + $0x2e0] sm:$0xff]
  %v1118 = vld [vmem:[%s3 + $0x2e8] sm:$0xff]
  %v1119 = vld [vmem:[%s3 + $0x2f0] sm:$0xff]
  %v1120 = vld [vmem:[%s3 + $0x2f8] sm:$0xff]
  %v1121 = vld [vmem:[%s3 + $0x300] sm:$0xff]
  %v1122 = vld [vmem:[%s3 + $0x308] sm:$0xff]
  %v1123 = vld [vmem:[%s3 + $0x310] sm:$0xff]
  %v1124 = vld [vmem:[%s3 + $0x318] sm:$0xff]
  %v1125 = vld [vmem:[%s3 + $0x320] sm:$0xff]
  %v1126 = vld [vmem:[%s3 + $0x328] sm:$0xff]
  %v1127 = vld [vmem:[%s3 + $0x330] sm:$0xff]
  %v1128 = vld [vmem:[%s3 + $0x338] sm:$0xff]
  %v1129 = vld [vmem:[%s3 + $0x340] sm:$0xff]
  %v1130 = vld [vmem:[%s3 + $0x348] sm:$0xff]
  %v1131 = vld [vmem:[%s3 + $0x350] sm:$0xff]
  %v1132 = vld [vmem:[%s3 + $0x358] sm:$0xff]
  %v1133 = vld [vmem:[%s3 + $0x360] sm:$0xff]
  %v1134 = vld [vmem:[%s3 + $0x368] sm:$0xff]
  %v1135 = vld [vmem:[%s3 + $0x370] sm:$0xff]
  %v1136 = vld [vmem:[%s3 + $0x378] sm:$0xff]
  %v1137 = vld [vmem:[%s3 + $0x380] sm:$0xff]
  %v1138 = vld [vmem:[%s3 + $0x388] sm:$0xff]
  %v1139 = vld [vmem:[%s3 + $0x390] sm:$0xff]
  %v1140 = vld [vmem:[%s3 + $0x398] sm:$0xff]
  %v1141 = vld [vmem:[%s3 + $0x3a0] sm:$0xff]
  %v1142 = vld [vmem:[%s3 + $0x3a8] sm:$0xff]
  %v1143 = vld [vmem:[%s3 + $0x3b0] sm:$0xff]
  %v1144 = vld [vmem:[%s3 + $0x3b8] sm:$0xff]
  %v1145 = vld [vmem:[%s3 + $0x3c0] sm:$0xff]
  %v1146 = vld [vmem:[%s3 + $0x3c8] sm:$0xff]
  %v1147 = vld [vmem:[%s3 + $0x3d0] sm:$0xff]
  %v1148 = vld [vmem:[%s3 + $0x3d8] sm:$0xff]
  %v1149 = vld [vmem:[%s3 + $0x3e0] sm:$0xff]
  %v1150 = vld [vmem:[%s3 + $0x3e8] sm:$0xff]
  %v1151 = vld [vmem:[%s3 + $0x3f0] sm:$0xff]
  %v1152 = vld [vmem:[%s3 + $0x3f8] sm:$0xff]
  %v1153 = vld [vmem:[%s4] sm:$0xf]
  %v1155 = vperm.slane %v1153, 0
  %v1156 = vperm.slane %v1153, 1
  %v1157 = vperm.slane %v1153, 2
  %v1158 = vperm.slane %v1153, 3
  %v1291 = vunpack.c.l.b16 %v1025
  %v1292 = vunpack.c.h.b16 %v1025
  %v1293 = vunpack.c.l.b16 %v1026
  %v1294 = vunpack.c.h.b16 %v1026
  %v1295 = vunpack.c.l.b16 %v1027
  %v1296 = vunpack.c.h.b16 %v1027
  %v1297 = vunpack.c.l.b16 %v1028
  %v1298 = vunpack.c.h.b16 %v1028
  %v1299 = vunpack.c.l.b16 %v1029
  %v1300 = vunpack.c.h.b16 %v1029
  %v1301 = vunpack.c.l.b16 %v1030
  %v1302 = vunpack.c.h.b16 %v1030
  %v1303 = vunpack.c.l.b16 %v1031
  %v1304 = vunpack.c.h.b16 %v1031
  %v1305 = vunpack.c.l.b16 %v1032
  %v1306 = vunpack.c.h.b16 %v1032
  %v1307 = vunpack.c.l.b16 %v1033
  %v1308 = vunpack.c.h.b16 %v1033
  %v1309 = vunpack.c.l.b16 %v1034
  %v1310 = vunpack.c.h.b16 %v1034
  %v1311 = vunpack.c.l.b16 %v1035
  %v1312 = vunpack.c.h.b16 %v1035
  %v1313 = vunpack.c.l.b16 %v1036
  %v1314 = vunpack.c.h.b16 %v1036
  %v1315 = vunpack.c.l.b16 %v1037
  %v1316 = vunpack.c.h.b16 %v1037
  %v1317 = vunpack.c.l.b16 %v1038
  %v1318 = vunpack.c.h.b16 %v1038
  %v1319 = vunpack.c.l.b16 %v1039
  %v1320 = vunpack.c.h.b16 %v1039
  %v1321 = vunpack.c.l.b16 %v1040
  %v1322 = vunpack.c.h.b16 %v1040
  %v1323 = vunpack.c.l.b16 %v1041
  %v1324 = vunpack.c.h.b16 %v1041
  %v1325 = vunpack.c.l.b16 %v1042
  %v1326 = vunpack.c.h.b16 %v1042
  %v1327 = vunpack.c.l.b16 %v1043
  %v1328 = vunpack.c.h.b16 %v1043
  %v1329 = vunpack.c.l.b16 %v1044
  %v1330 = vunpack.c.h.b16 %v1044
  %v1331 = vunpack.c.l.b16 %v1045
  %v1332 = vunpack.c.h.b16 %v1045
  %v1333 = vunpack.c.l.b16 %v1046
  %v1334 = vunpack.c.h.b16 %v1046
  %v1335 = vunpack.c.l.b16 %v1047
  %v1336 = vunpack.c.h.b16 %v1047
  %v1337 = vunpack.c.l.b16 %v1048
  %v1338 = vunpack.c.h.b16 %v1048
  %v1339 = vunpack.c.l.b16 %v1049
  %v1340 = vunpack.c.h.b16 %v1049
  %v1341 = vunpack.c.l.b16 %v1050
  %v1342 = vunpack.c.h.b16 %v1050
  %v1343 = vunpack.c.l.b16 %v1051
  %v1344 = vunpack.c.h.b16 %v1051
  %v1345 = vunpack.c.l.b16 %v1052
  %v1346 = vunpack.c.h.b16 %v1052
  %v1347 = vunpack.c.l.b16 %v1053
  %v1348 = vunpack.c.h.b16 %v1053
  %v1349 = vunpack.c.l.b16 %v1054
  %v1350 = vunpack.c.h.b16 %v1054
  %v1351 = vunpack.c.l.b16 %v1055
  %v1352 = vunpack.c.h.b16 %v1055
  %v1353 = vunpack.c.l.b16 %v1056
  %v1354 = vunpack.c.h.b16 %v1056
  %v1355 = vunpack.c.l.b16 %v1057
  %v1356 = vunpack.c.h.b16 %v1057
  %v1357 = vunpack.c.l.b16 %v1058
  %v1358 = vunpack.c.h.b16 %v1058
  %v1359 = vunpack.c.l.b16 %v1059
  %v1360 = vunpack.c.h.b16 %v1059
  %v1361 = vunpack.c.l.b16 %v1060
  %v1362 = vunpack.c.h.b16 %v1060
  %v1363 = vunpack.c.l.b16 %v1061
  %v1364 = vunpack.c.h.b16 %v1061
  %v1365 = vunpack.c.l.b16 %v1062
  %v1366 = vunpack.c.h.b16 %v1062
  %v1367 = vunpack.c.l.b16 %v1063
  %v1368 = vunpack.c.h.b16 %v1063
  %v1369 = vunpack.c.l.b16 %v1064
  %v1370 = vunpack.c.h.b16 %v1064
  %v1371 = vunpack.c.l.b16 %v1065
  %v1372 = vunpack.c.h.b16 %v1065
  %v1373 = vunpack.c.l.b16 %v1066
  %v1374 = vunpack.c.h.b16 %v1066
  %v1375 = vunpack.c.l.b16 %v1067
  %v1376 = vunpack.c.h.b16 %v1067
  %v1377 = vunpack.c.l.b16 %v1068
  %v1378 = vunpack.c.h.b16 %v1068
  %v1379 = vunpack.c.l.b16 %v1069
  %v1380 = vunpack.c.h.b16 %v1069
  %v1381 = vunpack.c.l.b16 %v1070
  %v1382 = vunpack.c.h.b16 %v1070
  %v1383 = vunpack.c.l.b16 %v1071
  %v1384 = vunpack.c.h.b16 %v1071
  %v1385 = vunpack.c.l.b16 %v1072
  %v1386 = vunpack.c.h.b16 %v1072
  %v1387 = vunpack.c.l.b16 %v1073
  %v1388 = vunpack.c.h.b16 %v1073
  %v1389 = vunpack.c.l.b16 %v1074
  %v1390 = vunpack.c.h.b16 %v1074
  %v1391 = vunpack.c.l.b16 %v1075
  %v1392 = vunpack.c.h.b16 %v1075
  %v1393 = vunpack.c.l.b16 %v1076
  %v1394 = vunpack.c.h.b16 %v1076
  %v1395 = vunpack.c.l.b16 %v1077
  %v1396 = vunpack.c.h.b16 %v1077
  %v1397 = vunpack.c.l.b16 %v1078
  %v1398 = vunpack.c.h.b16 %v1078
  %v1399 = vunpack.c.l.b16 %v1079
  %v1400 = vunpack.c.h.b16 %v1079
  %v1401 = vunpack.c.l.b16 %v1080
  %v1402 = vunpack.c.h.b16 %v1080
  %v1403 = vunpack.c.l.b16 %v1081
  %v1404 = vunpack.c.h.b16 %v1081
  %v1405 = vunpack.c.l.b16 %v1082
  %v1406 = vunpack.c.h.b16 %v1082
  %v1407 = vunpack.c.l.b16 %v1083
  %v1408 = vunpack.c.h.b16 %v1083
  %v1409 = vunpack.c.l.b16 %v1084
  %v1410 = vunpack.c.h.b16 %v1084
  %v1411 = vunpack.c.l.b16 %v1085
  %v1412 = vunpack.c.h.b16 %v1085
  %v1413 = vunpack.c.l.b16 %v1086
  %v1414 = vunpack.c.h.b16 %v1086
  %v1415 = vunpack.c.l.b16 %v1087
  %v1416 = vunpack.c.h.b16 %v1087
  %v1417 = vunpack.c.l.b16 %v1088
  %v1418 = vunpack.c.h.b16 %v1088
  %v1419 = vunpack.c.l.b16 %v1089
  %v1420 = vunpack.c.h.b16 %v1089
  %v1421 = vunpack.c.l.b16 %v1090
  %v1422 = vunpack.c.h.b16 %v1090
  %v1423 = vunpack.c.l.b16 %v1091
  %v1424 = vunpack.c.h.b16 %v1091
  %v1425 = vunpack.c.l.b16 %v1092
  %v1426 = vunpack.c.h.b16 %v1092
  %v1427 = vunpack.c.l.b16 %v1093
  %v1428 = vunpack.c.h.b16 %v1093
  %v1429 = vunpack.c.l.b16 %v1094
  %v1430 = vunpack.c.h.b16 %v1094
  %v1431 = vunpack.c.l.b16 %v1095
  %v1432 = vunpack.c.h.b16 %v1095
  %v1433 = vunpack.c.l.b16 %v1096
  %v1434 = vunpack.c.h.b16 %v1096
  %v1435 = vunpack.c.l.b16 %v1097
  %v1436 = vunpack.c.h.b16 %v1097
  %v1437 = vunpack.c.l.b16 %v1098
  %v1438 = vunpack.c.h.b16 %v1098
  %v1439 = vunpack.c.l.b16 %v1099
  %v1440 = vunpack.c.h.b16 %v1099
  %v1441 = vunpack.c.l.b16 %v1100
  %v1442 = vunpack.c.h.b16 %v1100
  %v1443 = vunpack.c.l.b16 %v1101
  %v1444 = vunpack.c.h.b16 %v1101
  %v1445 = vunpack.c.l.b16 %v1102
  %v1446 = vunpack.c.h.b16 %v1102
  %v1447 = vunpack.c.l.b16 %v1103
  %v1448 = vunpack.c.h.b16 %v1103
  %v1449 = vunpack.c.l.b16 %v1104
  %v1450 = vunpack.c.h.b16 %v1104
  %v1451 = vunpack.c.l.b16 %v1105
  %v1452 = vunpack.c.h.b16 %v1105
  %v1453 = vunpack.c.l.b16 %v1106
  %v1454 = vunpack.c.h.b16 %v1106
  %v1455 = vunpack.c.l.b16 %v1107
  %v1456 = vunpack.c.h.b16 %v1107
  %v1457 = vunpack.c.l.b16 %v1108
  %v1458 = vunpack.c.h.b16 %v1108
  %v1459 = vunpack.c.l.b16 %v1109
  %v1460 = vunpack.c.h.b16 %v1109
  %v1461 = vunpack.c.l.b16 %v1110
  %v1462 = vunpack.c.h.b16 %v1110
  %v1463 = vunpack.c.l.b16 %v1111
  %v1464 = vunpack.c.h.b16 %v1111
  %v1465 = vunpack.c.l.b16 %v1112
  %v1466 = vunpack.c.h.b16 %v1112
  %v1467 = vunpack.c.l.b16 %v1113
  %v1468 = vunpack.c.h.b16 %v1113
  %v1469 = vunpack.c.l.b16 %v1114
  %v1470 = vunpack.c.h.b16 %v1114
  %v1471 = vunpack.c.l.b16 %v1115
  %v1472 = vunpack.c.h.b16 %v1115
  %v1473 = vunpack.c.l.b16 %v1116
  %v1474 = vunpack.c.h.b16 %v1116
  %v1475 = vunpack.c.l.b16 %v1117
  %v1476 = vunpack.c.h.b16 %v1117
  %v1477 = vunpack.c.l.b16 %v1118
  %v1478 = vunpack.c.h.b16 %v1118
  %v1479 = vunpack.c.l.b16 %v1119
  %v1480 = vunpack.c.h.b16 %v1119
  %v1481 = vunpack.c.l.b16 %v1120
  %v1482 = vunpack.c.h.b16 %v1120
  %v1483 = vunpack.c.l.b16 %v1121
  %v1484 = vunpack.c.h.b16 %v1121
  %v1485 = vunpack.c.l.b16 %v1122
  %v1486 = vunpack.c.h.b16 %v1122
  %v1487 = vunpack.c.l.b16 %v1123
  %v1488 = vunpack.c.h.b16 %v1123
  %v1489 = vunpack.c.l.b16 %v1124
  %v1490 = vunpack.c.h.b16 %v1124
  %v1491 = vunpack.c.l.b16 %v1125
  %v1492 = vunpack.c.h.b16 %v1125
  %v1493 = vunpack.c.l.b16 %v1126
  %v1494 = vunpack.c.h.b16 %v1126
  %v1495 = vunpack.c.l.b16 %v1127
  %v1496 = vunpack.c.h.b16 %v1127
  %v1497 = vunpack.c.l.b16 %v1128
  %v1498 = vunpack.c.h.b16 %v1128
  %v1499 = vunpack.c.l.b16 %v1129
  %v1500 = vunpack.c.h.b16 %v1129
  %v1501 = vunpack.c.l.b16 %v1130
  %v1502 = vunpack.c.h.b16 %v1130
  %v1503 = vunpack.c.l.b16 %v1131
  %v1504 = vunpack.c.h.b16 %v1131
  %v1505 = vunpack.c.l.b16 %v1132
  %v1506 = vunpack.c.h.b16 %v1132
  %v1507 = vunpack.c.l.b16 %v1133
  %v1508 = vunpack.c.h.b16 %v1133
  %v1509 = vunpack.c.l.b16 %v1134
  %v1510 = vunpack.c.h.b16 %v1134
  %v1511 = vunpack.c.l.b16 %v1135
  %v1512 = vunpack.c.h.b16 %v1135
  %v1513 = vunpack.c.l.b16 %v1136
  %v1514 = vunpack.c.h.b16 %v1136
  %v1515 = vunpack.c.l.b16 %v1137
  %v1516 = vunpack.c.h.b16 %v1137
  %v1517 = vunpack.c.l.b16 %v1138
  %v1518 = vunpack.c.h.b16 %v1138
  %v1519 = vunpack.c.l.b16 %v1139
  %v1520 = vunpack.c.h.b16 %v1139
  %v1521 = vunpack.c.l.b16 %v1140
  %v1522 = vunpack.c.h.b16 %v1140
  %v1523 = vunpack.c.l.b16 %v1141
  %v1524 = vunpack.c.h.b16 %v1141
  %v1525 = vunpack.c.l.b16 %v1142
  %v1526 = vunpack.c.h.b16 %v1142
  %v1527 = vunpack.c.l.b16 %v1143
  %v1528 = vunpack.c.h.b16 %v1143
  %v1529 = vunpack.c.l.b16 %v1144
  %v1530 = vunpack.c.h.b16 %v1144
  %v1531 = vunpack.c.l.b16 %v1145
  %v1532 = vunpack.c.h.b16 %v1145
  %v1533 = vunpack.c.l.b16 %v1146
  %v1534 = vunpack.c.h.b16 %v1146
  %v1535 = vunpack.c.l.b16 %v1147
  %v1536 = vunpack.c.h.b16 %v1147
  %v1537 = vunpack.c.l.b16 %v1148
  %v1538 = vunpack.c.h.b16 %v1148
  %v1539 = vunpack.c.l.b16 %v1149
  %v1540 = vunpack.c.h.b16 %v1149
  %v1541 = vunpack.c.l.b16 %v1150
  %v1542 = vunpack.c.h.b16 %v1150
  %v1543 = vunpack.c.l.b16 %v1151
  %v1544 = vunpack.c.h.b16 %v1151
  %v1545 = vunpack.c.l.b16 %v1152
  %v1546 = vunpack.c.h.b16 %v1152
  %v1547 = vpack.c.b16 %v1295, %v1291
  %v1548 = vpack.c.b16 %v1296, %v1292
  %v1549 = vpack.c.b16 %v1297, %v1293
  %v1550 = vpack.c.b16 %v1298, %v1294
  %v1551 = vpack.c.b16 %v1303, %v1299
  %v1552 = vpack.c.b16 %v1304, %v1300
  %v1553 = vpack.c.b16 %v1305, %v1301
  %v1554 = vpack.c.b16 %v1306, %v1302
  %v1555 = vpack.c.b16 %v1311, %v1307
  %v1556 = vpack.c.b16 %v1312, %v1308
  %v1557 = vpack.c.b16 %v1313, %v1309
  %v1558 = vpack.c.b16 %v1314, %v1310
  %v1559 = vpack.c.b16 %v1319, %v1315
  %v1560 = vpack.c.b16 %v1320, %v1316
  %v1561 = vpack.c.b16 %v1321, %v1317
  %v1562 = vpack.c.b16 %v1322, %v1318
  %v1563 = vpack.c.b16 %v1327, %v1323
  %v1564 = vpack.c.b16 %v1328, %v1324
  %v1565 = vpack.c.b16 %v1329, %v1325
  %v1566 = vpack.c.b16 %v1330, %v1326
  %v1567 = vpack.c.b16 %v1335, %v1331
  %v1568 = vpack.c.b16 %v1336, %v1332
  %v1569 = vpack.c.b16 %v1337, %v1333
  %v1570 = vpack.c.b16 %v1338, %v1334
  %v1571 = vpack.c.b16 %v1343, %v1339
  %v1572 = vpack.c.b16 %v1344, %v1340
  %v1573 = vpack.c.b16 %v1345, %v1341
  %v1574 = vpack.c.b16 %v1346, %v1342
  %v1575 = vpack.c.b16 %v1351, %v1347
  %v1576 = vpack.c.b16 %v1352, %v1348
  %v1577 = vpack.c.b16 %v1353, %v1349
  %v1578 = vpack.c.b16 %v1354, %v1350
  %v1579 = vpack.c.b16 %v1359, %v1355
  %v1580 = vpack.c.b16 %v1360, %v1356
  %v1581 = vpack.c.b16 %v1361, %v1357
  %v1582 = vpack.c.b16 %v1362, %v1358
  %v1583 = vpack.c.b16 %v1367, %v1363
  %v1584 = vpack.c.b16 %v1368, %v1364
  %v1585 = vpack.c.b16 %v1369, %v1365
  %v1586 = vpack.c.b16 %v1370, %v1366
  %v1587 = vpack.c.b16 %v1375, %v1371
  %v1588 = vpack.c.b16 %v1376, %v1372
  %v1589 = vpack.c.b16 %v1377, %v1373
  %v1590 = vpack.c.b16 %v1378, %v1374
  %v1591 = vpack.c.b16 %v1383, %v1379
  %v1592 = vpack.c.b16 %v1384, %v1380
  %v1593 = vpack.c.b16 %v1385, %v1381
  %v1594 = vpack.c.b16 %v1386, %v1382
  %v1595 = vpack.c.b16 %v1391, %v1387
  %v1596 = vpack.c.b16 %v1392, %v1388
  %v1597 = vpack.c.b16 %v1393, %v1389
  %v1598 = vpack.c.b16 %v1394, %v1390
  %v1599 = vpack.c.b16 %v1399, %v1395
  %v1600 = vpack.c.b16 %v1400, %v1396
  %v1601 = vpack.c.b16 %v1401, %v1397
  %v1602 = vpack.c.b16 %v1402, %v1398
  %v1603 = vpack.c.b16 %v1407, %v1403
  %v1604 = vpack.c.b16 %v1408, %v1404
  %v1605 = vpack.c.b16 %v1409, %v1405
  %v1606 = vpack.c.b16 %v1410, %v1406
  %v1607 = vpack.c.b16 %v1415, %v1411
  %v1608 = vpack.c.b16 %v1416, %v1412
  %v1609 = vpack.c.b16 %v1417, %v1413
  %v1610 = vpack.c.b16 %v1418, %v1414
  %v1611 = vpack.c.b16 %v1423, %v1419
  %v1612 = vpack.c.b16 %v1424, %v1420
  %v1613 = vpack.c.b16 %v1425, %v1421
  %v1614 = vpack.c.b16 %v1426, %v1422
  %v1615 = vpack.c.b16 %v1431, %v1427
  %v1616 = vpack.c.b16 %v1432, %v1428
  %v1617 = vpack.c.b16 %v1433, %v1429
  %v1618 = vpack.c.b16 %v1434, %v1430
  %v1619 = vpack.c.b16 %v1439, %v1435
  %v1620 = vpack.c.b16 %v1440, %v1436
  %v1621 = vpack.c.b16 %v1441, %v1437
  %v1622 = vpack.c.b16 %v1442, %v1438
  %v1623 = vpack.c.b16 %v1447, %v1443
  %v1624 = vpack.c.b16 %v1448, %v1444
  %v1625 = vpack.c.b16 %v1449, %v1445
  %v1626 = vpack.c.b16 %v1450, %v1446
  %v1627 = vpack.c.b16 %v1455, %v1451
  %v1628 = vpack.c.b16 %v1456, %v1452
  %v1629 = vpack.c.b16 %v1457, %v1453
  %v1630 = vpack.c.b16 %v1458, %v1454
  %v1631 = vpack.c.b16 %v1463, %v1459
  %v1632 = vpack.c.b16 %v1464, %v1460
  %v1633 = vpack.c.b16 %v1465, %v1461
  %v1634 = vpack.c.b16 %v1466, %v1462
  %v1635 = vpack.c.b16 %v1471, %v1467
  %v1636 = vpack.c.b16 %v1472, %v1468
  %v1637 = vpack.c.b16 %v1473, %v1469
  %v1638 = vpack.c.b16 %v1474, %v1470
  %v1639 = vpack.c.b16 %v1479, %v1475
  %v1640 = vpack.c.b16 %v1480, %v1476
  %v1641 = vpack.c.b16 %v1481, %v1477
  %v1642 = vpack.c.b16 %v1482, %v1478
  %v1643 = vpack.c.b16 %v1487, %v1483
  %v1644 = vpack.c.b16 %v1488, %v1484
  %v1645 = vpack.c.b16 %v1489, %v1485
  %v1646 = vpack.c.b16 %v1490, %v1486
  %v1647 = vpack.c.b16 %v1495, %v1491
  %v1648 = vpack.c.b16 %v1496, %v1492
  %v1649 = vpack.c.b16 %v1497, %v1493
  %v1650 = vpack.c.b16 %v1498, %v1494
  %v1651 = vpack.c.b16 %v1503, %v1499
  %v1652 = vpack.c.b16 %v1504, %v1500
  %v1653 = vpack.c.b16 %v1505, %v1501
  %v1654 = vpack.c.b16 %v1506, %v1502
  %v1655 = vpack.c.b16 %v1511, %v1507
  %v1656 = vpack.c.b16 %v1512, %v1508
  %v1657 = vpack.c.b16 %v1513, %v1509
  %v1658 = vpack.c.b16 %v1514, %v1510
  %v1659 = vpack.c.b16 %v1519, %v1515
  %v1660 = vpack.c.b16 %v1520, %v1516
  %v1661 = vpack.c.b16 %v1521, %v1517
  %v1662 = vpack.c.b16 %v1522, %v1518
  %v1663 = vpack.c.b16 %v1527, %v1523
  %v1664 = vpack.c.b16 %v1528, %v1524
  %v1665 = vpack.c.b16 %v1529, %v1525
  %v1666 = vpack.c.b16 %v1530, %v1526
  %v1667 = vpack.c.b16 %v1535, %v1531
  %v1668 = vpack.c.b16 %v1536, %v1532
  %v1669 = vpack.c.b16 %v1537, %v1533
  %v1670 = vpack.c.b16 %v1538, %v1534
  %v1671 = vpack.c.b16 %v1543, %v1539
  %v1672 = vpack.c.b16 %v1544, %v1540
  %v1673 = vpack.c.b16 %v1545, %v1541
  %v1674 = vpack.c.b16 %v1546, %v1542
  %1803 = vmatpush.bf16.msra.mxu0 %v1575
  %1804 = vmatpush.bf16.msra.mxu0 %v1571
  %1805 = vmatpush.bf16.msra.mxu0 %v1567
  %1806 = vmatpush.bf16.msra.mxu0 %v1563
  %1807 = vmatpush.bf16.msra.mxu0 %v1559
  %1808 = vmatpush.bf16.msra.mxu0 %v1555
  %1809 = vmatpush.bf16.msra.mxu0 %v1551
  %1810 = vmatpush.bf16.msra.mxu0 %v1547
  %1811 = vmatmul.bf16.gmra.mxu0 %v1021
  %v1812 = vpop.f32.mrf.mxu0
  %v1813 = vadd.f32 %v1155, %v1812
  %v1814 = vpop.f32.mrf.mxu0
  %1815 = vdwg.mxu0
  %1816 = vmatpush.bf16.msra.mxu0 %v1607
  %1817 = vmatpush.bf16.msra.mxu0 %v1603
  %1818 = vmatpush.bf16.msra.mxu0 %v1599
  %1819 = vmatpush.bf16.msra.mxu0 %v1595
  %1820 = vmatpush.bf16.msra.mxu0 %v1591
  %1821 = vmatpush.bf16.msra.mxu0 %v1587
  %1822 = vmatpush.bf16.msra.mxu0 %v1583
  %1823 = vmatpush.bf16.msra.mxu0 %v1579
  %1824 = vmatmul.bf16.gmra.mxu0 %v1022
  %v1825 = vpop.f32.mrf.mxu0
  %v1826 = vadd.f32 %v1813, %v1825
  %v1827 = vpop.f32.mrf.mxu0
  %1828 = vdwg.mxu0
  %1829 = vmatpush.bf16.msra.mxu0 %v1639
  %1830 = vmatpush.bf16.msra.mxu0 %v1635
  %1831 = vmatpush.bf16.msra.mxu0 %v1631
  %1832 = vmatpush.bf16.msra.mxu0 %v1627
  %1833 = vmatpush.bf16.msra.mxu0 %v1623
  %1834 = vmatpush.bf16.msra.mxu0 %v1619
  %1835 = vmatpush.bf16.msra.mxu0 %v1615
  %1836 = vmatpush.bf16.msra.mxu0 %v1611
  %1837 = vmatmul.bf16.gmra.mxu0 %v1023
  %v1838 = vpop.f32.mrf.mxu0
  %v1839 = vadd.f32 %v1826, %v1838
  %v1840 = vpop.f32.mrf.mxu0
  %1841 = vdwg.mxu0
  %1842 = vmatpush.bf16.msra.mxu0 %v1671
  %1843 = vmatpush.bf16.msra.mxu0 %v1667
  %1844 = vmatpush.bf16.msra.mxu0 %v1663
  %1845 = vmatpush.bf16.msra.mxu0 %v1659
  %1846 = vmatpush.bf16.msra.mxu0 %v1655
  %1847 = vmatpush.bf16.msra.mxu0 %v1651
  %1848 = vmatpush.bf16.msra.mxu0 %v1647
  %1849 = vmatpush.bf16.msra.mxu0 %v1643
  %1850 = vmatmul.bf16.gmra.mxu0 %v1024
  %v1851 = vpop.f32.mrf.mxu0
  %v1852 = vadd.f32 %v1839, %v1851
  %v1853 = vpop.f32.mrf.mxu0
  %1854 = vdwg.mxu0
  %1855 = vmatpush.bf16.msra.mxu0 %v1576
  %1856 = vmatpush.bf16.msra.mxu0 %v1572
  %1857 = vmatpush.bf16.msra.mxu0 %v1568
  %1858 = vmatpush.bf16.msra.mxu0 %v1564
  %1859 = vmatpush.bf16.msra.mxu0 %v1560
  %1860 = vmatpush.bf16.msra.mxu0 %v1556
  %1861 = vmatpush.bf16.msra.mxu0 %v1552
  %1862 = vmatpush.bf16.msra.mxu0 %v1548
  %1863 = vmatmul.bf16.gmra.mxu0 %v1021
  %v1864 = vpop.f32.mrf.mxu0
  %v1865 = vadd.f32 %v1156, %v1864
  %v1866 = vpop.f32.mrf.mxu0
  %1867 = vdwg.mxu0
  %1868 = vmatpush.bf16.msra.mxu0 %v1608
  %1869 = vmatpush.bf16.msra.mxu0 %v1604
  %1870 = vmatpush.bf16.msra.mxu0 %v1600
  %1871 = vmatpush.bf16.msra.mxu0 %v1596
  %1872 = vmatpush.bf16.msra.mxu0 %v1592
  %1873 = vmatpush.bf16.msra.mxu0 %v1588
  %1874 = vmatpush.bf16.msra.mxu0 %v1584
  %1875 = vmatpush.bf16.msra.mxu0 %v1580
  %1876 = vmatmul.bf16.gmra.mxu0 %v1022
  %v1877 = vpop.f32.mrf.mxu0
  %v1878 = vadd.f32 %v1865, %v1877
  %v1879 = vpop.f32.mrf.mxu0
  %1880 = vdwg.mxu0
  %1881 = vmatpush.bf16.msra.mxu0 %v1640
  %1882 = vmatpush.bf16.msra.mxu0 %v1636
  %1883 = vmatpush.bf16.msra.mxu0 %v1632
  %1884 = vmatpush.bf16.msra.mxu0 %v1628
  %1885 = vmatpush.bf16.msra.mxu0 %v1624
  %1886 = vmatpush.bf16.msra.mxu0 %v1620
  %1887 = vmatpush.bf16.msra.mxu0 %v1616
  %1888 = vmatpush.bf16.msra.mxu0 %v1612
  %1889 = vmatmul.bf16.gmra.mxu0 %v1023
  %v1890 = vpop.f32.mrf.mxu0
  %v1891 = vadd.f32 %v1878, %v1890
  %v1892 = vpop.f32.mrf.mxu0
  %1893 = vdwg.mxu0
  %1894 = vmatpush.bf16.msra.mxu0 %v1672
  %1895 = vmatpush.bf16.msra.mxu0 %v1668
  %1896 = vmatpush.bf16.msra.mxu0 %v1664
  %1897 = vmatpush.bf16.msra.mxu0 %v1660
  %1898 = vmatpush.bf16.msra.mxu0 %v1656
  %1899 = vmatpush.bf16.msra.mxu0 %v1652
  %1900 = vmatpush.bf16.msra.mxu0 %v1648
  %1901 = vmatpush.bf16.msra.mxu0 %v1644
  %1902 = vmatmul.bf16.gmra.mxu0 %v1024
  %v1903 = vpop.f32.mrf.mxu0
  %v1904 = vadd.f32 %v1891, %v1903
  %v1905 = vpop.f32.mrf.mxu0
  %1906 = vdwg.mxu0
  %1907 = vmatpush.bf16.msra.mxu0 %v1577
  %1908 = vmatpush.bf16.msra.mxu0 %v1573
  %1909 = vmatpush.bf16.msra.mxu0 %v1569
  %1910 = vmatpush.bf16.msra.mxu0 %v1565
  %1911 = vmatpush.bf16.msra.mxu0 %v1561
  %1912 = vmatpush.bf16.msra.mxu0 %v1557
  %1913 = vmatpush.bf16.msra.mxu0 %v1553
  %1914 = vmatpush.bf16.msra.mxu0 %v1549
  %1915 = vmatmul.bf16.gmra.mxu0 %v1021
  %v1916 = vpop.f32.mrf.mxu0
  %v1917 = vadd.f32 %v1157, %v1916
  %v1918 = vpop.f32.mrf.mxu0
  %1919 = vdwg.mxu0
  %1920 = vmatpush.bf16.msra.mxu0 %v1609
  %1921 = vmatpush.bf16.msra.mxu0 %v1605
  %1922 = vmatpush.bf16.msra.mxu0 %v1601
  %1923 = vmatpush.bf16.msra.mxu0 %v1597
  %1924 = vmatpush.bf16.msra.mxu0 %v1593
  %1925 = vmatpush.bf16.msra.mxu0 %v1589
  %1926 = vmatpush.bf16.msra.mxu0 %v1585
  %1927 = vmatpush.bf16.msra.mxu0 %v1581
  %1928 = vmatmul.bf16.gmra.mxu0 %v1022
  %v1929 = vpop.f32.mrf.mxu0
  %v1930 = vadd.f32 %v1917, %v1929
  %v1931 = vpop.f32.mrf.mxu0
  %1932 = vdwg.mxu0
  %1933 = vmatpush.bf16.msra.mxu0 %v1641
  %1934 = vmatpush.bf16.msra.mxu0 %v1637
  %1935 = vmatpush.bf16.msra.mxu0 %v1633
  %1936 = vmatpush.bf16.msra.mxu0 %v1629
  %1937 = vmatpush.bf16.msra.mxu0 %v1625
  %1938 = vmatpush.bf16.msra.mxu0 %v1621
  %1939 = vmatpush.bf16.msra.mxu0 %v1617
  %1940 = vmatpush.bf16.msra.mxu0 %v1613
  %1941 = vmatmul.bf16.gmra.mxu0 %v1023
  %v1942 = vpop.f32.mrf.mxu0
  %v1943 = vadd.f32 %v1930, %v1942
  %v1944 = vpop.f32.mrf.mxu0
  %1945 = vdwg.mxu0
  %1946 = vmatpush.bf16.msra.mxu0 %v1673
  %1947 = vmatpush.bf16.msra.mxu0 %v1669
  %1948 = vmatpush.bf16.msra.mxu0 %v1665
  %1949 = vmatpush.bf16.msra.mxu0 %v1661
  %1950 = vmatpush.bf16.msra.mxu0 %v1657
  %1951 = vmatpush.bf16.msra.mxu0 %v1653
  %1952 = vmatpush.bf16.msra.mxu0 %v1649
  %1953 = vmatpush.bf16.msra.mxu0 %v1645
  %1954 = vmatmul.bf16.gmra.mxu0 %v1024
  %v1955 = vpop.f32.mrf.mxu0
  %v1956 = vadd.f32 %v1943, %v1955
  %v1957 = vpop.f32.mrf.mxu0
  %1958 = vdwg.mxu0
  %1959 = vmatpush.bf16.msra.mxu0 %v1578
  %1960 = vmatpush.bf16.msra.mxu0 %v1574
  %1961 = vmatpush.bf16.msra.mxu0 %v1570
  %1962 = vmatpush.bf16.msra.mxu0 %v1566
  %1963 = vmatpush.bf16.msra.mxu0 %v1562
  %1964 = vmatpush.bf16.msra.mxu0 %v1558
  %1965 = vmatpush.bf16.msra.mxu0 %v1554
  %1966 = vmatpush.bf16.msra.mxu0 %v1550
  %1967 = vmatmul.bf16.gmra.mxu0 %v1021
  %v1968 = vpop.f32.mrf.mxu0
  %v1969 = vadd.f32 %v1158, %v1968
  %v1970 = vpop.f32.mrf.mxu0
  %1971 = vdwg.mxu0
  %1972 = vmatpush.bf16.msra.mxu0 %v1610
  %1973 = vmatpush.bf16.msra.mxu0 %v1606
  %1974 = vmatpush.bf16.msra.mxu0 %v1602
  %1975 = vmatpush.bf16.msra.mxu0 %v1598
  %1976 = vmatpush.bf16.msra.mxu0 %v1594
  %1977 = vmatpush.bf16.msra.mxu0 %v1590
  %1978 = vmatpush.bf16.msra.mxu0 %v1586
  %1979 = vmatpush.bf16.msra.mxu0 %v1582
  %1980 = vmatmul.bf16.gmra.mxu0 %v1022
  %v1981 = vpop.f32.mrf.mxu0
  %v1982 = vadd.f32 %v1969, %v1981
  %v1983 = vpop.f32.mrf.mxu0
  %1984 = vdwg.mxu0
  %1985 = vmatpush.bf16.msra.mxu0 %v1642
  %1986 = vmatpush.bf16.msra.mxu0 %v1638
  %1987 = vmatpush.bf16.msra.mxu0 %v1634
  %1988 = vmatpush.bf16.msra.mxu0 %v1630
  %1989 = vmatpush.bf16.msra.mxu0 %v1626
  %1990 = vmatpush.bf16.msra.mxu0 %v1622
  %1991 = vmatpush.bf16.msra.mxu0 %v1618
  %1992 = vmatpush.bf16.msra.mxu0 %v1614
  %1993 = vmatmul.bf16.gmra.mxu0 %v1023
  %v1994 = vpop.f32.mrf.mxu0
  %v1995 = vadd.f32 %v1982, %v1994
  %v1996 = vpop.f32.mrf.mxu0
  %1997 = vdwg.mxu0
  %1998 = vmatpush.bf16.msra.mxu0 %v1674
  %1999 = vmatpush.bf16.msra.mxu0 %v1670
  %2000 = vmatpush.bf16.msra.mxu0 %v1666
  %2001 = vmatpush.bf16.msra.mxu0 %v1662
  %2002 = vmatpush.bf16.msra.mxu0 %v1658
  %2003 = vmatpush.bf16.msra.mxu0 %v1654
  %2004 = vmatpush.bf16.msra.mxu0 %v1650
  %2005 = vmatpush.bf16.msra.mxu0 %v1646
  %2006 = vmatmul.bf16.gmra.mxu0 %v1024
  %v2007 = vpop.f32.mrf.mxu0
  %v2008 = vadd.f32 %v1995, %v2007
  %v2009 = vpop.f32.mrf.mxu0
  %2010 = vdwg.mxu0
  %v2011 = vunpack.c.l.bf16 %v20
  %2013 = vst [vmem:[#allocation1] ss:$4 sm:$0xff] %v2011
  %v2014 = vld.sshfl [vmem:[#allocation1] sm:$0xff pattern:$0x73625140]
  %v2015 = vld.sshfl [vmem:[#allocation1 + $0x8] sm:$0xff pattern:$0x73625140]
  %v2016 = vld.sshfl [vmem:[#allocation1 + $0x10] sm:$0xff pattern:$0x73625140]
  %v2017 = vld.sshfl [vmem:[#allocation1 + $0x18] sm:$0xff pattern:$0x73625140]
  %v2022 = vadd.f32 %v1852, %v2014
  %v2023 = vadd.f32 %v1904, %v2015
  %v2024 = vadd.f32 %v1956, %v2016
  %v2025 = vadd.f32 %v2008, %v2017
  %v2026 = vmax.f32 %v2022, 0.0
  %v2027 = vmax.f32 %v2023, 0.0
  %v2028 = vmax.f32 %v2024, 0.0
  %v2029 = vmax.f32 %v2025, 0.0
  %v2030 = vpack.c.bf16 %v2027, %v2026
  %v2031 = vpack.c.bf16 %v2029, %v2028
  %v2034 = vrot.slane %v2030, 3
  %v2035 = vrot.slane %v2031, 6
  %v2036 = vrot.slane %v2031, 1
  %vm2037 = vcmask 1040384
  %v2040 = vsel %vm2037, %v2030, %v2034
  %vm2041 = vcmask 1042434
  %v2044 = vsel %vm2041, %v2035, %v2036
  %vm2045 = vcmask 1041408
  %v2046 = vsel %vm2045, %v2040, %v2044
  %2048 = vst [vmem:[%s5] sm:$0xf] %v2046
  // Predicated region
  $region22: #{resnet18_forward.30} parent=0 // pred_check
    _
  $region23: #{resnet18_forward.30} parent=0 // pred_check_branch
    %2050 = sbr.rel (0) target = $region25
  $region24: #{resnet18_forward.30} parent=0 // pred_region
    _
  $region25: #{resnet18_forward.30} parent=0 // pred_fallthru
    _
  // Predicated region
  $region26: #{resnet18_forward.30} parent=0 // pred_check
    _
  $region27: #{resnet18_forward.30} parent=0 // pred_check_branch
    %2052 = sbr.rel (0) target = $region29
  $region28: #{resnet18_forward.30} parent=0 // pred_region
    _
  $region29: #{resnet18_forward.30} parent=0 // pred_fallthru
    _

</llo_original>
